<compile_context>
chip_gen: v6e
topology: v6e:2x2x1
jax: 0.10.0
libtpu: 0.0.40
codegen_flags: <defaults>
</compile_context>

<pallas_src>
import jax
import jax.numpy as jnp
import numpy as np
from jax.experimental import pallas as pl
from jax.experimental.pallas import tpu as pltpu

# Static layout constants (84x84 input is required by the 32*7*7 Linear).
_G1 = 10      # space-to-depth grid of conv1's 20x20 output (grouped 2x2)
_R2 = 89      # conv2 rows computed on the width-10 flat grid (last valid 8*10+8)
_R3 = 67      # conv3 rows computed on the width-10 flat grid (last valid 6*10+6)
_C2, _C3 = 64, 32


# ---------------------------------------------------------------------------
# Pallas kernel 1: conv1 + conv2 + conv3 (bias + ReLU fused), one batch sample
# per grid step, all intermediates VMEM-resident.
# ---------------------------------------------------------------------------
def _trunk_kernel(a1_ref, w1_ref, b1_ref, w2_ref, b2_ref, w3_ref, b3_ref, o_ref):
    # conv1 (/255 folded into w1, block-diagonal) -> space-to-depth [100, 128]
    acc1 = jnp.dot(a1_ref[0], w1_ref[...], preferred_element_type=jnp.float32)
    s2d = jnp.maximum(acc1 + b1_ref[...], 0.0)                      # [100, 128] f32

    # conv2: 2x2 stride-1 shift-and-GEMM over the 10x10 S2D grid -> [89, 64]
    acc2 = jnp.zeros((_R2, _C2), jnp.float32)
    for di in range(2):
        for dj in range(2):
            off = di * _G1 + dj
            lhs = s2d[off:off + _R2, :].astype(jnp.bfloat16)
            acc2 = acc2 + jnp.dot(lhs, w2_ref[di * 2 + dj],
                                  preferred_element_type=jnp.float32)
    y2 = jnp.maximum(acc2 + b2_ref[...], 0.0)                       # [89, 64] f32

    # conv3: 3x3 stride-1 shift-and-GEMM on the same flat grid -> [67, 32]
    acc3 = jnp.zeros((_R3, _C3), jnp.float32)
    for kh in range(3):
        for kw in range(3):
            off = kh * _G1 + kw
            lhs = y2[off:off + _R3, :].astype(jnp.bfloat16)
            acc3 = acc3 + jnp.dot(lhs, w3_ref[kh * 3 + kw],
                                  preferred_element_type=jnp.float32)
    y3 = jnp.maximum(acc3 + b3_ref[...], 0.0)                       # [67, 32]
    o_ref[0] = y3.astype(o_ref.dtype)


# ---------------------------------------------------------------------------
# Pallas kernel 2: fc1 (+ReLU) + fc2, single full-block call.
# ---------------------------------------------------------------------------
def _head_kernel(x_ref, w1_ref, b1_ref, w2_ref, b2_ref, o_ref):
    h = jnp.dot(x_ref[...], w1_ref[...], preferred_element_type=jnp.float32)
    h = jnp.maximum(h + b1_ref[...], 0.0).astype(jnp.bfloat16)
    y = jnp.dot(h, w2_ref[...], preferred_element_type=jnp.float32) + b2_ref[...]
    o_ref[...] = y


# ---------------------------------------------------------------------------
# One-time parameter repacking (PyTorch layouts -> kernel GEMM layouts).
# ---------------------------------------------------------------------------
def prepare_params(params, compute_dtype=jnp.bfloat16):
    c1_w = params["c1_w"]                     # [32, Cin, 8, 8]
    cin = c1_w.shape[1]

    # conv1: (kh, kw, ci) x 32 matrix with the 1/255 input scaling folded in,
    # replicated block-diagonally 4x so the GEMM output lands directly in the
    # 2x2 space-to-depth layout that conv2 consumes.
    w1m = jnp.transpose(c1_w, (2, 3, 1, 0)).reshape(64 * cin, 32) * (1.0 / 255.0)
    w1bd = jnp.kron(jnp.eye(4, dtype=w1m.dtype), w1m)               # [4*64*cin, 128]
    b1t = jnp.tile(params["c1_b"], 4).reshape(1, 128)

    # conv2: one [128, 64] block per 2x2 shift (di, dj); K ordered (p, q, cin1)
    # to match the S2D channel layout.
    w2t = jnp.transpose(params["c2_w"], (2, 3, 1, 0)).reshape(2, 2, 2, 2, 32, 64)
    w2blk = jnp.transpose(w2t, (0, 2, 1, 3, 4, 5)).reshape(4, 128, 64)
    b2 = params["c2_b"].reshape(1, 64)

    # conv3: one [64, 32] block per 3x3 shift (kh, kw).
    w3blk = jnp.transpose(params["c3_w"], (2, 3, 1, 0)).reshape(9, 64, 32)
    b3 = params["c3_b"].reshape(1, 32)

    # fc1: scatter the PyTorch-Flatten (c, h, w) rows into the kernel's
    # (width-10 flat spatial, c) layout; rows matching garbage positions stay 0.
    h3 = jnp.arange(7)[:, None, None]
    w3 = jnp.arange(7)[None, :, None]
    cc = jnp.arange(32)[None, None, :]
    dst = ((h3 * 10 + w3) * 32 + cc).reshape(-1)
    src = (cc * 49 + h3 * 7 + w3).reshape(-1)
    wfc1 = jnp.zeros((_R3 * 32, params["fc1_w"].shape[1]), params["fc1_w"].dtype)
    wfc1 = wfc1.at[dst].set(params["fc1_w"][src])
    bfc1 = params["fc1_b"].reshape(1, -1)

    wfc2 = params["fc2_w"]
    bfc2 = params["fc2_b"].reshape(1, -1)

    cd = compute_dtype
    return {
        "w1": w1bd.astype(cd), "b1": b1t.astype(jnp.float32),
        "w2": w2blk.astype(cd), "b2": b2.astype(jnp.float32),
        "w3": w3blk.astype(cd), "b3": b3.astype(jnp.float32),
        "wfc1": wfc1.astype(cd), "bfc1": bfc1.astype(jnp.float32),
        "wfc2": wfc2.astype(cd), "bfc2": bfc2.astype(jnp.float32),
    }


# ---------------------------------------------------------------------------
# conv1 im2col (pure layout, stays in XLA), rows grouped (h2, w2) and columns
# ordered (p, q, kh, kw, ci) so the conv1 GEMM writes the space-to-depth form.
# TODO(synk): conv1's im2col/patch extraction stays in XLA (data layout only);
# doing it in-kernel would need strided in-kernel slicing of the raw frame.
# ---------------------------------------------------------------------------
def _conv1_patches_s2d(x_nchw):
    B, cin, _, _ = x_nchw.shape
    x = jnp.transpose(x_nchw, (0, 2, 3, 1)).astype(jnp.float32)      # NHWC
    cols = []
    for kh in range(8):
        for kw in range(8):
            cols.append(x[:, kh:kh + 77:4, kw:kw + 77:4, :])         # [B,20,20,ci]
    p = jnp.stack(cols, axis=3).reshape(B, 20, 20, 64 * cin)         # (kh,kw,ci)
    p = p.reshape(B, 10, 2, 10, 2, 64 * cin).transpose(0, 1, 3, 2, 4, 5)
    return p.reshape(B, 100, 4 * 64 * cin)


# ---------------------------------------------------------------------------
# Forward pass: returns (value [B,1], action_logits [B,A], states), matching
# CNNBaseShared.forward.  `masks` is unused (no GRU; the PyTorch module raises
# NotImplementedError for use_gru=True).
# ---------------------------------------------------------------------------
def cnn_base_shared_forward(prepped, inputs_nchw, states, masks):
    B, cin, H, W = inputs_nchw.shape
    assert (H, W) == (84, 84), "CNNBaseShared requires 84x84 inputs (32*7*7 Linear)"
    kbd = 4 * 64 * cin

    a1 = _conv1_patches_s2d(inputs_nchw).astype(prepped["w1"].dtype)  # [B,100,kbd]

    w_bytes = sum(prepped[k].size * prepped[k].dtype.itemsize
                  for k in ("w1", "b1", "w2", "b2", "w3", "b3"))
    trunk_cost = pl.CostEstimate(
        flops=2 * B * (100 * kbd * 128 + 4 * _R2 * 128 * _C2 + 9 * _R3 * 64 * _C3),
        transcendentals=0,
        bytes_accessed=a1.size * a1.dtype.itemsize + w_bytes + B * _R3 * 32 * 2,
    )

    y3 = pl.pallas_call(
        _trunk_kernel,
        out_shape=jax.ShapeDtypeStruct((B, _R3, 32), jnp.bfloat16),
        grid_spec=pltpu.PrefetchScalarGridSpec(
            num_scalar_prefetch=0,
            grid=(B,),
            in_specs=[
                pl.BlockSpec((1, 100, kbd), lambda b: (b, 0, 0)),
                pl.BlockSpec((kbd, 128), lambda b: (0, 0)),
                pl.BlockSpec((1, 128), lambda b: (0, 0)),
                pl.BlockSpec((4, 128, 64), lambda b: (0, 0, 0)),
                pl.BlockSpec((1, 64), lambda b: (0, 0)),
                pl.BlockSpec((9, 64, 32), lambda b: (0, 0, 0)),
                pl.BlockSpec((1, 32), lambda b: (0, 0)),
            ],
            out_specs=pl.BlockSpec((1, _R3, 32), lambda b: (b, 0, 0)),
        ),
        compiler_params=pltpu.CompilerParams(dimension_semantics=("parallel",)),
        cost_estimate=trunk_cost,
    )(a1, prepped["w1"], prepped["b1"], prepped["w2"], prepped["b2"],
      prepped["w3"], prepped["b3"])

    xfc = y3.reshape(B, _R3 * 32)          # free row-major reshape in XLA

    nhid = prepped["wfc1"].shape[1]
    nout = prepped["wfc2"].shape[1]
    head_cost = pl.CostEstimate(
        flops=2 * B * (_R3 * 32 * nhid + nhid * nout),
        transcendentals=0,
        bytes_accessed=(xfc.size + prepped["wfc1"].size + prepped["wfc2"].size) * 2
        + B * nout * 4,
    )
    out = pl.pallas_call(
        _head_kernel,
        out_shape=jax.ShapeDtypeStruct((B, nout), jnp.float32),
        in_specs=[pl.BlockSpec(memory_space=pltpu.MemorySpace.VMEM)] * 5,
        out_specs=pl.BlockSpec(memory_space=pltpu.MemorySpace.VMEM),
        cost_estimate=head_cost,
    )(xfc, prepped["wfc1"], prepped["bfc1"], prepped["wfc2"], prepped["bfc2"])

    value = out[:, :1]
    actions = out[:, 1:]
    return value, actions, states


# ---------------------------------------------------------------------------
# Deterministic parameter init (PyTorch tensor layouts; fc weights stored as
# [in, out] i.e. already x @ W form).
# TODO(synk): orthogonal init with ReLU gain not reproduced; deterministic
# scaled-gaussian weights are used instead.
# ---------------------------------------------------------------------------
def init_params(key, num_inputs, num_actions):
    ks = jax.random.split(key, 10)

    def w(k, shape, s):
        return (s * jax.random.normal(k, shape)).astype(jnp.float32)

    return {
        "c1_w": w(ks[0], (32, num_inputs, 8, 8), 0.05),
        "c1_b": w(ks[5], (32,), 0.01),
        "c2_w": w(ks[1], (64, 32, 4, 4), 0.05),
        "c2_b": w(ks[6], (64,), 0.01),
        "c3_w": w(ks[2], (32, 64, 3, 3), 0.05),
        "c3_b": w(ks[7], (32,), 0.01),
        "fc1_w": w(ks[3], (32 * 7 * 7, 512), 0.02),
        "fc1_b": w(ks[8], (512,), 0.01),
        "fc2_w": w(ks[4], (512, 1 + num_actions), 0.02),
        "fc2_b": w(ks[9], (1 + num_actions,), 0.01),
    }


# Plain-JAX float32 reference (for numerical cross-check only).
def reference_forward(params, inputs, states, masks):
    x = inputs.astype(jnp.float32) / 255.0

    def conv(x, w, b, s):
        y = jax.lax.conv_general_dilated(
            x, w, window_strides=(s, s), padding="VALID",
            dimension_numbers=("NCHW", "OIHW", "NCHW"))
        return jax.nn.relu(y + b.reshape(1, -1, 1, 1))

    x = conv(x, params["c1_w"], params["c1_b"], 4)
    x = conv(x, params["c2_w"], params["c2_b"], 2)
    x = conv(x, params["c3_w"], params["c3_b"], 1)
    x = x.reshape(x.shape[0], -1)                     # NCHW flatten (C, H, W)
    x = jax.nn.relu(x @ params["fc1_w"] + params["fc1_b"])
    x = x @ params["fc2_w"] + params["fc2_b"]
    return x[:, :1], x[:, 1:], states


if __name__ == "__main__":
    key = jax.random.PRNGKey(0)
    k_in, k_p = jax.random.split(key)

    B, C, H, W = 2, 4, 84, 84        # 84x84 required by the 32*7*7 Linear
    num_actions = 6

    inputs = jax.random.uniform(k_in, (B, C, H, W), jnp.float32, 0.0, 255.0)
    states = jnp.zeros((B, 1), jnp.float32)
    masks = jnp.ones((B, 1), jnp.float32)

    params = init_params(k_p, C, num_actions)
    prepped = prepare_params(params)

    fwd = jax.jit(cnn_base_shared_forward)
    value, actions, out_states = fwd(prepped, inputs, states, masks)
    jax.block_until_ready((value, actions, out_states))

    assert value.shape == (B, 1)
    assert actions.shape == (B, num_actions)
    assert out_states.shape == states.shape

    # Cross-check against a plain-JAX float32 reference (bf16 MXU tolerance).
    ref_v, ref_a, _ = reference_forward(params, inputs, states, masks)
    np.testing.assert_allclose(np.asarray(value), np.asarray(ref_v),
                               rtol=0.15, atol=0.05)
    np.testing.assert_allclose(np.asarray(actions), np.asarray(ref_a),
                               rtol=0.15, atol=0.05)

    print("KERNEL_OK")
</pallas_src>

<mosaic_0001>
module attributes {stable_mosaic.version = 11 : i64} {
  func.func @_trunk_kernel(%arg0: i32, %arg1: memref<1x100x1024xbf16, #tpu.memory_space<vmem>>, %arg2: memref<1024x128xbf16, #tpu.memory_space<vmem>>, %arg3: memref<1x128xf32, #tpu.memory_space<vmem>>, %arg4: memref<4x128x64xbf16, #tpu.memory_space<vmem>>, %arg5: memref<1x64xf32, #tpu.memory_space<vmem>>, %arg6: memref<9x64x32xbf16, #tpu.memory_space<vmem>>, %arg7: memref<1x32xf32, #tpu.memory_space<vmem>>, %arg8: memref<1x67x32xbf16, #tpu.memory_space<vmem>>) attributes {dimension_semantics = [#tpu.dimension_semantics<parallel>], iteration_bounds = array<i64: 2>, scalar_prefetch = 0 : i64, scratch_operands = 0 : i64, tpu.core_type = #tpu.core_type<tc>, window_params = [{transform_indices = @transform_0, window_bounds = array<i64: 1, 100, 1024>}, {pipeline_mode = #tpu.pipeline_mode<synchronous>, transform_indices = @transform_1, window_bounds = array<i64: 1024, 128>}, {pipeline_mode = #tpu.pipeline_mode<synchronous>, transform_indices = @transform_2, window_bounds = array<i64: 1, 128>}, {pipeline_mode = #tpu.pipeline_mode<synchronous>, transform_indices = @transform_3, window_bounds = array<i64: 4, 128, 64>}, {pipeline_mode = #tpu.pipeline_mode<synchronous>, transform_indices = @transform_4, window_bounds = array<i64: 1, 64>}, {pipeline_mode = #tpu.pipeline_mode<synchronous>, transform_indices = @transform_5, window_bounds = array<i64: 9, 64, 32>}, {pipeline_mode = #tpu.pipeline_mode<synchronous>, transform_indices = @transform_6, window_bounds = array<i64: 1, 32>}, {transform_indices = @transform_7, window_bounds = array<i64: 1, 67, 32>}]} {
    %c0 = arith.constant 0 : index
    %c0_0 = arith.constant 0 : index
    %c0_1 = arith.constant 0 : index
    %0 = vector.load %arg1[%c0, %c0_0, %c0_1] : memref<1x100x1024xbf16, #tpu.memory_space<vmem>>, vector<1x100x1024xbf16>
    %1 = vector.shape_cast %0 : vector<1x100x1024xbf16> to vector<100x1024xbf16>
    %c0_2 = arith.constant 0 : index
    %c0_3 = arith.constant 0 : index
    %2 = vector.load %arg2[%c0_2, %c0_3] : memref<1024x128xbf16, #tpu.memory_space<vmem>>, vector<1024x128xbf16>
    %cst = arith.constant dense<0.000000e+00> : vector<100x128xf32>
    %3 = tpu.matmul %1, %2, %cst {dimension_numbers = #tpu.dot_dimension_numbers<[1], [0], [0], [1], [0, 0, 1, 1], [], []>} : vector<100x1024xbf16>, vector<1024x128xbf16>, vector<100x128xf32> -> vector<100x128xf32>
    %c0_4 = arith.constant 0 : index
    %c0_5 = arith.constant 0 : index
    %4 = vector.load %arg3[%c0_4, %c0_5] : memref<1x128xf32, #tpu.memory_space<vmem>>, vector<1x128xf32>
    %5 = vector.broadcast %4 : vector<1x128xf32> to vector<100x128xf32>
    %6 = arith.addf %3, %5 : vector<100x128xf32>
    %cst_6 = arith.constant 0.000000e+00 : f32
    %7 = vector.broadcast %cst_6 : f32 to vector<100x128xf32>
    %8 = arith.maximumf %6, %7 : vector<100x128xf32>
    %cst_7 = arith.constant 0.000000e+00 : f32
    %9 = vector.broadcast %cst_7 : f32 to vector<89x64xf32>
    %10 = vector.extract_strided_slice %8 {offsets = [0, 0], sizes = [89, 128], strides = [1, 1]} : vector<100x128xf32> to vector<89x128xf32>
    %11 = arith.truncf %10 : vector<89x128xf32> to vector<89x128xbf16>
    %c0_8 = arith.constant 0 : index
    %c0_9 = arith.constant 0 : index
    %c0_10 = arith.constant 0 : index
    %12 = vector.load %arg4[%c0_8, %c0_9, %c0_10] : memref<4x128x64xbf16, #tpu.memory_space<vmem>>, vector<1x128x64xbf16>
    %13 = vector.shape_cast %12 : vector<1x128x64xbf16> to vector<128x64xbf16>
    %cst_11 = arith.constant dense<0.000000e+00> : vector<89x64xf32>
    %14 = tpu.matmul %11, %13, %cst_11 {dimension_numbers = #tpu.dot_dimension_numbers<[1], [0], [0], [1], [0, 0, 1, 1], [], []>} : vector<89x128xbf16>, vector<128x64xbf16>, vector<89x64xf32> -> vector<89x64xf32>
    %15 = arith.addf %9, %14 : vector<89x64xf32>
    %16 = vector.extract_strided_slice %8 {offsets = [1, 0], sizes = [89, 128], strides = [1, 1]} : vector<100x128xf32> to vector<89x128xf32>
    %17 = arith.truncf %16 : vector<89x128xf32> to vector<89x128xbf16>
    %c1 = arith.constant 1 : index
    %c0_12 = arith.constant 0 : index
    %c0_13 = arith.constant 0 : index
    %18 = vector.load %arg4[%c1, %c0_12, %c0_13] : memref<4x128x64xbf16, #tpu.memory_space<vmem>>, vector<1x128x64xbf16>
    %19 = vector.shape_cast %18 : vector<1x128x64xbf16> to vector<128x64xbf16>
    %cst_14 = arith.constant dense<0.000000e+00> : vector<89x64xf32>
    %20 = tpu.matmul %17, %19, %cst_14 {dimension_numbers = #tpu.dot_dimension_numbers<[1], [0], [0], [1], [0, 0, 1, 1], [], []>} : vector<89x128xbf16>, vector<128x64xbf16>, vector<89x64xf32> -> vector<89x64xf32>
    %21 = arith.addf %15, %20 : vector<89x64xf32>
    %22 = vector.extract_strided_slice %8 {offsets = [10, 0], sizes = [89, 128], strides = [1, 1]} : vector<100x128xf32> to vector<89x128xf32>
    %23 = arith.truncf %22 : vector<89x128xf32> to vector<89x128xbf16>
    %c2 = arith.constant 2 : index
    %c0_15 = arith.constant 0 : index
    %c0_16 = arith.constant 0 : index
    %24 = vector.load %arg4[%c2, %c0_15, %c0_16] : memref<4x128x64xbf16, #tpu.memory_space<vmem>>, vector<1x128x64xbf16>
    %25 = vector.shape_cast %24 : vector<1x128x64xbf16> to vector<128x64xbf16>
    %cst_17 = arith.constant dense<0.000000e+00> : vector<89x64xf32>
    %26 = tpu.matmul %23, %25, %cst_17 {dimension_numbers = #tpu.dot_dimension_numbers<[1], [0], [0], [1], [0, 0, 1, 1], [], []>} : vector<89x128xbf16>, vector<128x64xbf16>, vector<89x64xf32> -> vector<89x64xf32>
    %27 = arith.addf %21, %26 : vector<89x64xf32>
    %28 = vector.extract_strided_slice %8 {offsets = [11, 0], sizes = [89, 128], strides = [1, 1]} : vector<100x128xf32> to vector<89x128xf32>
    %29 = arith.truncf %28 : vector<89x128xf32> to vector<89x128xbf16>
    %c3 = arith.constant 3 : index
    %c0_18 = arith.constant 0 : index
    %c0_19 = arith.constant 0 : index
    %30 = vector.load %arg4[%c3, %c0_18, %c0_19] : memref<4x128x64xbf16, #tpu.memory_space<vmem>>, vector<1x128x64xbf16>
    %31 = vector.shape_cast %30 : vector<1x128x64xbf16> to vector<128x64xbf16>
    %cst_20 = arith.constant dense<0.000000e+00> : vector<89x64xf32>
    %32 = tpu.matmul %29, %31, %cst_20 {dimension_numbers = #tpu.dot_dimension_numbers<[1], [0], [0], [1], [0, 0, 1, 1], [], []>} : vector<89x128xbf16>, vector<128x64xbf16>, vector<89x64xf32> -> vector<89x64xf32>
    %33 = arith.addf %27, %32 : vector<89x64xf32>
    %c0_21 = arith.constant 0 : index
    %c0_22 = arith.constant 0 : index
    %34 = vector.load %arg5[%c0_21, %c0_22] : memref<1x64xf32, #tpu.memory_space<vmem>>, vector<1x64xf32>
    %35 = vector.broadcast %34 : vector<1x64xf32> to vector<89x64xf32>
    %36 = arith.addf %33, %35 : vector<89x64xf32>
    %cst_23 = arith.constant 0.000000e+00 : f32
    %37 = vector.broadcast %cst_23 : f32 to vector<89x64xf32>
    %38 = arith.maximumf %36, %37 : vector<89x64xf32>
    %cst_24 = arith.constant 0.000000e+00 : f32
    %39 = vector.broadcast %cst_24 : f32 to vector<67x32xf32>
    %40 = vector.extract_strided_slice %38 {offsets = [0, 0], sizes = [67, 64], strides = [1, 1]} : vector<89x64xf32> to vector<67x64xf32>
    %41 = arith.truncf %40 : vector<67x64xf32> to vector<67x64xbf16>
    %c0_25 = arith.constant 0 : index
    %c0_26 = arith.constant 0 : index
    %c0_27 = arith.constant 0 : index
    %42 = vector.load %arg6[%c0_25, %c0_26, %c0_27] : memref<9x64x32xbf16, #tpu.memory_space<vmem>>, vector<1x64x32xbf16>
    %43 = vector.shape_cast %42 : vector<1x64x32xbf16> to vector<64x32xbf16>
    %cst_28 = arith.constant dense<0.000000e+00> : vector<67x32xf32>
    %44 = tpu.matmul %41, %43, %cst_28 {dimension_numbers = #tpu.dot_dimension_numbers<[1], [0], [0], [1], [0, 0, 1, 1], [], []>} : vector<67x64xbf16>, vector<64x32xbf16>, vector<67x32xf32> -> vector<67x32xf32>
    %45 = arith.addf %39, %44 : vector<67x32xf32>
    %46 = vector.extract_strided_slice %38 {offsets = [1, 0], sizes = [67, 64], strides = [1, 1]} : vector<89x64xf32> to vector<67x64xf32>
    %47 = arith.truncf %46 : vector<67x64xf32> to vector<67x64xbf16>
    %c1_29 = arith.constant 1 : index
    %c0_30 = arith.constant 0 : index
    %c0_31 = arith.constant 0 : index
    %48 = vector.load %arg6[%c1_29, %c0_30, %c0_31] : memref<9x64x32xbf16, #tpu.memory_space<vmem>>, vector<1x64x32xbf16>
    %49 = vector.shape_cast %48 : vector<1x64x32xbf16> to vector<64x32xbf16>
    %cst_32 = arith.constant dense<0.000000e+00> : vector<67x32xf32>
    %50 = tpu.matmul %47, %49, %cst_32 {dimension_numbers = #tpu.dot_dimension_numbers<[1], [0], [0], [1], [0, 0, 1, 1], [], []>} : vector<67x64xbf16>, vector<64x32xbf16>, vector<67x32xf32> -> vector<67x32xf32>
    %51 = arith.addf %45, %50 : vector<67x32xf32>
    %52 = vector.extract_strided_slice %38 {offsets = [2, 0], sizes = [67, 64], strides = [1, 1]} : vector<89x64xf32> to vector<67x64xf32>
    %53 = arith.truncf %52 : vector<67x64xf32> to vector<67x64xbf16>
    %c2_33 = arith.constant 2 : index
    %c0_34 = arith.constant 0 : index
    %c0_35 = arith.constant 0 : index
    %54 = vector.load %arg6[%c2_33, %c0_34, %c0_35] : memref<9x64x32xbf16, #tpu.memory_space<vmem>>, vector<1x64x32xbf16>
    %55 = vector.shape_cast %54 : vector<1x64x32xbf16> to vector<64x32xbf16>
    %cst_36 = arith.constant dense<0.000000e+00> : vector<67x32xf32>
    %56 = tpu.matmul %53, %55, %cst_36 {dimension_numbers = #tpu.dot_dimension_numbers<[1], [0], [0], [1], [0, 0, 1, 1], [], []>} : vector<67x64xbf16>, vector<64x32xbf16>, vector<67x32xf32> -> vector<67x32xf32>
    %57 = arith.addf %51, %56 : vector<67x32xf32>
    %58 = vector.extract_strided_slice %38 {offsets = [10, 0], sizes = [67, 64], strides = [1, 1]} : vector<89x64xf32> to vector<67x64xf32>
    %59 = arith.truncf %58 : vector<67x64xf32> to vector<67x64xbf16>
    %c3_37 = arith.constant 3 : index
    %c0_38 = arith.constant 0 : index
    %c0_39 = arith.constant 0 : index
    %60 = vector.load %arg6[%c3_37, %c0_38, %c0_39] : memref<9x64x32xbf16, #tpu.memory_space<vmem>>, vector<1x64x32xbf16>
    %61 = vector.shape_cast %60 : vector<1x64x32xbf16> to vector<64x32xbf16>
    %cst_40 = arith.constant dense<0.000000e+00> : vector<67x32xf32>
    %62 = tpu.matmul %59, %61, %cst_40 {dimension_numbers = #tpu.dot_dimension_numbers<[1], [0], [0], [1], [0, 0, 1, 1], [], []>} : vector<67x64xbf16>, vector<64x32xbf16>, vector<67x32xf32> -> vector<67x32xf32>
    %63 = arith.addf %57, %62 : vector<67x32xf32>
    %64 = vector.extract_strided_slice %38 {offsets = [11, 0], sizes = [67, 64], strides = [1, 1]} : vector<89x64xf32> to vector<67x64xf32>
    %65 = arith.truncf %64 : vector<67x64xf32> to vector<67x64xbf16>
    %c4 = arith.constant 4 : index
    %c0_41 = arith.constant 0 : index
    %c0_42 = arith.constant 0 : index
    %66 = vector.load %arg6[%c4, %c0_41, %c0_42] : memref<9x64x32xbf16, #tpu.memory_space<vmem>>, vector<1x64x32xbf16>
    %67 = vector.shape_cast %66 : vector<1x64x32xbf16> to vector<64x32xbf16>
    %cst_43 = arith.constant dense<0.000000e+00> : vector<67x32xf32>
    %68 = tpu.matmul %65, %67, %cst_43 {dimension_numbers = #tpu.dot_dimension_numbers<[1], [0], [0], [1], [0, 0, 1, 1], [], []>} : vector<67x64xbf16>, vector<64x32xbf16>, vector<67x32xf32> -> vector<67x32xf32>
    %69 = arith.addf %63, %68 : vector<67x32xf32>
    %70 = vector.extract_strided_slice %38 {offsets = [12, 0], sizes = [67, 64], strides = [1, 1]} : vector<89x64xf32> to vector<67x64xf32>
    %71 = arith.truncf %70 : vector<67x64xf32> to vector<67x64xbf16>
    %c5 = arith.constant 5 : index
    %c0_44 = arith.constant 0 : index
    %c0_45 = arith.constant 0 : index
    %72 = vector.load %arg6[%c5, %c0_44, %c0_45] : memref<9x64x32xbf16, #tpu.memory_space<vmem>>, vector<1x64x32xbf16>
    %73 = vector.shape_cast %72 : vector<1x64x32xbf16> to vector<64x32xbf16>
    %cst_46 = arith.constant dense<0.000000e+00> : vector<67x32xf32>
    %74 = tpu.matmul %71, %73, %cst_46 {dimension_numbers = #tpu.dot_dimension_numbers<[1], [0], [0], [1], [0, 0, 1, 1], [], []>} : vector<67x64xbf16>, vector<64x32xbf16>, vector<67x32xf32> -> vector<67x32xf32>
    %75 = arith.addf %69, %74 : vector<67x32xf32>
    %76 = vector.extract_strided_slice %38 {offsets = [20, 0], sizes = [67, 64], strides = [1, 1]} : vector<89x64xf32> to vector<67x64xf32>
    %77 = arith.truncf %76 : vector<67x64xf32> to vector<67x64xbf16>
    %c6 = arith.constant 6 : index
    %c0_47 = arith.constant 0 : index
    %c0_48 = arith.constant 0 : index
    %78 = vector.load %arg6[%c6, %c0_47, %c0_48] : memref<9x64x32xbf16, #tpu.memory_space<vmem>>, vector<1x64x32xbf16>
    %79 = vector.shape_cast %78 : vector<1x64x32xbf16> to vector<64x32xbf16>
    %cst_49 = arith.constant dense<0.000000e+00> : vector<67x32xf32>
    %80 = tpu.matmul %77, %79, %cst_49 {dimension_numbers = #tpu.dot_dimension_numbers<[1], [0], [0], [1], [0, 0, 1, 1], [], []>} : vector<67x64xbf16>, vector<64x32xbf16>, vector<67x32xf32> -> vector<67x32xf32>
    %81 = arith.addf %75, %80 : vector<67x32xf32>
    %82 = vector.extract_strided_slice %38 {offsets = [21, 0], sizes = [67, 64], strides = [1, 1]} : vector<89x64xf32> to vector<67x64xf32>
    %83 = arith.truncf %82 : vector<67x64xf32> to vector<67x64xbf16>
    %c7 = arith.constant 7 : index
    %c0_50 = arith.constant 0 : index
    %c0_51 = arith.constant 0 : index
    %84 = vector.load %arg6[%c7, %c0_50, %c0_51] : memref<9x64x32xbf16, #tpu.memory_space<vmem>>, vector<1x64x32xbf16>
    %85 = vector.shape_cast %84 : vector<1x64x32xbf16> to vector<64x32xbf16>
    %cst_52 = arith.constant dense<0.000000e+00> : vector<67x32xf32>
    %86 = tpu.matmul %83, %85, %cst_52 {dimension_numbers = #tpu.dot_dimension_numbers<[1], [0], [0], [1], [0, 0, 1, 1], [], []>} : vector<67x64xbf16>, vector<64x32xbf16>, vector<67x32xf32> -> vector<67x32xf32>
    %87 = arith.addf %81, %86 : vector<67x32xf32>
    %88 = vector.extract_strided_slice %38 {offsets = [22, 0], sizes = [67, 64], strides = [1, 1]} : vector<89x64xf32> to vector<67x64xf32>
    %89 = arith.truncf %88 : vector<67x64xf32> to vector<67x64xbf16>
    %c8 = arith.constant 8 : index
    %c0_53 = arith.constant 0 : index
    %c0_54 = arith.constant 0 : index
    %90 = vector.load %arg6[%c8, %c0_53, %c0_54] : memref<9x64x32xbf16, #tpu.memory_space<vmem>>, vector<1x64x32xbf16>
    %91 = vector.shape_cast %90 : vector<1x64x32xbf16> to vector<64x32xbf16>
    %cst_55 = arith.constant dense<0.000000e+00> : vector<67x32xf32>
    %92 = tpu.matmul %89, %91, %cst_55 {dimension_numbers = #tpu.dot_dimension_numbers<[1], [0], [0], [1], [0, 0, 1, 1], [], []>} : vector<67x64xbf16>, vector<64x32xbf16>, vector<67x32xf32> -> vector<67x32xf32>
    %93 = arith.addf %87, %92 : vector<67x32xf32>
    %c0_56 = arith.constant 0 : index
    %c0_57 = arith.constant 0 : index
    %94 = vector.load %arg7[%c0_56, %c0_57] : memref<1x32xf32, #tpu.memory_space<vmem>>, vector<1x32xf32>
    %95 = vector.broadcast %94 : vector<1x32xf32> to vector<67x32xf32>
    %96 = arith.addf %93, %95 : vector<67x32xf32>
    %cst_58 = arith.constant 0.000000e+00 : f32
    %97 = vector.broadcast %cst_58 : f32 to vector<67x32xf32>
    %98 = arith.maximumf %96, %97 : vector<67x32xf32>
    %99 = arith.truncf %98 : vector<67x32xf32> to vector<67x32xbf16>
    %c0_59 = arith.constant 0 : index
    %c0_60 = arith.constant 0 : index
    %c0_61 = arith.constant 0 : index
    %100 = vector.load %arg8[%c0_59, %c0_60, %c0_61] : memref<1x67x32xbf16, #tpu.memory_space<vmem>>, vector<1x67x32xbf16>
    %101 = vector.shape_cast %100 : vector<1x67x32xbf16> to vector<67x32xbf16>
    %102 = vector.shape_cast %99 : vector<67x32xbf16> to vector<1x67x32xbf16>
    tpu.vector_store %arg8[%c0_59, %c0_60, %c0_61], %102 {strides = array<i32>} : memref<1x67x32xbf16, #tpu.memory_space<vmem>>, vector<1x67x32xbf16>,
    return
  }
  func.func @transform_0(%arg0: i32) -> (i32, i32, i32) {
    %c0_i32 = arith.constant 0 : i32
    %c0_i32_0 = arith.constant 0 : i32
    %c0_i32_1 = arith.constant 0 : i32
    return %arg0, %c0_i32, %c0_i32_0 : i32, i32, i32
  }
  func.func @transform_1(%arg0: i32) -> (i32, i32) {
    %c0_i32 = arith.constant 0 : i32
    %c0_i32_0 = arith.constant 0 : i32
    %c0_i32_1 = arith.constant 0 : i32
    return %c0_i32, %c0_i32_0 : i32, i32
  }
  func.func @transform_2(%arg0: i32) -> (i32, i32) {
    %c0_i32 = arith.constant 0 : i32
    %c0_i32_0 = arith.constant 0 : i32
    %c0_i32_1 = arith.constant 0 : i32
    return %c0_i32, %c0_i32_0 : i32, i32
  }
  func.func @transform_3(%arg0: i32) -> (i32, i32, i32) {
    %c0_i32 = arith.constant 0 : i32
    %c0_i32_0 = arith.constant 0 : i32
    %c0_i32_1 = arith.constant 0 : i32
    %c0_i32_2 = arith.constant 0 : i32
    return %c0_i32, %c0_i32_0, %c0_i32_1 : i32, i32, i32
  }
  func.func @transform_4(%arg0: i32) -> (i32, i32) {
    %c0_i32 = arith.constant 0 : i32
    %c0_i32_0 = arith.constant 0 : i32
    %c0_i32_1 = arith.constant 0 : i32
    return %c0_i32, %c0_i32_0 : i32, i32
  }
  func.func @transform_5(%arg0: i32) -> (i32, i32, i32) {
    %c0_i32 = arith.constant 0 : i32
    %c0_i32_0 = arith.constant 0 : i32
    %c0_i32_1 = arith.constant 0 : i32
    %c0_i32_2 = arith.constant 0 : i32
    return %c0_i32, %c0_i32_0, %c0_i32_1 : i32, i32, i32
  }
  func.func @transform_6(%arg0: i32) -> (i32, i32) {
    %c0_i32 = arith.constant 0 : i32
    %c0_i32_0 = arith.constant 0 : i32
    %c0_i32_1 = arith.constant 0 : i32
    return %c0_i32, %c0_i32_0 : i32, i32
  }
  func.func @transform_7(%arg0: i32) -> (i32, i32, i32) {
    %c0_i32 = arith.constant 0 : i32
    %c0_i32_0 = arith.constant 0 : i32
    %c0_i32_1 = arith.constant 0 : i32
    return %arg0, %c0_i32, %c0_i32_0 : i32, i32, i32
  }
}

module attributes {stable_mosaic.version = 11 : i64} {
  func.func @_head_kernel(%arg0: memref<2x2144xbf16, #tpu.memory_space<vmem>>, %arg1: memref<2144x512xbf16, #tpu.memory_space<vmem>>, %arg2: memref<1x512xf32, #tpu.memory_space<vmem>>, %arg3: memref<512x7xbf16, #tpu.memory_space<vmem>>, %arg4: memref<1x7xf32, #tpu.memory_space<vmem>>, %arg5: memref<2x7xf32, #tpu.memory_space<vmem>>) attributes {dimension_semantics = [], scalar_prefetch = 0 : i64, scratch_operands = 0 : i64, tpu.core_type = #tpu.core_type<tc>} {
    %c0 = arith.constant 0 : index
    %c0_0 = arith.constant 0 : index
    %0 = vector.load %arg0[%c0, %c0_0] : memref<2x2144xbf16, #tpu.memory_space<vmem>>, vector<2x2144xbf16>
    %c0_1 = arith.constant 0 : index
    %c0_2 = arith.constant 0 : index
    %1 = vector.load %arg1[%c0_1, %c0_2] : memref<2144x512xbf16, #tpu.memory_space<vmem>>, vector<2144x512xbf16>
    %cst = arith.constant dense<0.000000e+00> : vector<2x512xf32>
    %2 = tpu.matmul %0, %1, %cst {dimension_numbers = #tpu.dot_dimension_numbers<[1], [0], [0], [1], [0, 0, 1, 1], [], []>} : vector<2x2144xbf16>, vector<2144x512xbf16>, vector<2x512xf32> -> vector<2x512xf32>
    %c0_3 = arith.constant 0 : index
    %c0_4 = arith.constant 0 : index
    %3 = vector.load %arg2[%c0_3, %c0_4] : memref<1x512xf32, #tpu.memory_space<vmem>>, vector<1x512xf32>
    %4 = vector.broadcast %3 : vector<1x512xf32> to vector<2x512xf32>
    %5 = arith.addf %2, %4 : vector<2x512xf32>
    %cst_5 = arith.constant 0.000000e+00 : f32
    %6 = vector.broadcast %cst_5 : f32 to vector<2x512xf32>
    %7 = arith.maximumf %5, %6 : vector<2x512xf32>
    %8 = arith.truncf %7 : vector<2x512xf32> to vector<2x512xbf16>
    %c0_6 = arith.constant 0 : index
    %c0_7 = arith.constant 0 : index
    %9 = vector.load %arg3[%c0_6, %c0_7] : memref<512x7xbf16, #tpu.memory_space<vmem>>, vector<512x7xbf16>
    %cst_8 = arith.constant dense<0.000000e+00> : vector<2x7xf32>
    %10 = tpu.matmul %8, %9, %cst_8 {dimension_numbers = #tpu.dot_dimension_numbers<[1], [0], [0], [1], [0, 0, 1, 1], [], []>} : vector<2x512xbf16>, vector<512x7xbf16>, vector<2x7xf32> -> vector<2x7xf32>
    %c0_9 = arith.constant 0 : index
    %c0_10 = arith.constant 0 : index
    %11 = vector.load %arg4[%c0_9, %c0_10] : memref<1x7xf32, #tpu.memory_space<vmem>>, vector<1x7xf32>
    %12 = vector.broadcast %11 : vector<1x7xf32> to vector<2x7xf32>
    %13 = arith.addf %10, %12 : vector<2x7xf32>
    %c0_11 = arith.constant 0 : index
    %c0_12 = arith.constant 0 : index
    %14 = vector.load %arg5[%c0_11, %c0_12] : memref<2x7xf32, #tpu.memory_space<vmem>>, vector<2x7xf32>
    tpu.vector_store %arg5[%c0_11, %c0_12], %13 {strides = array<i32>} : memref<2x7xf32, #tpu.memory_space<vmem>>, vector<2x7xf32>,
    return
  }
}

</mosaic_0001>

<llo_original>
// kernel: cnn_base_shared_forward.2
$region0: #{cnn_base_shared_forward.2}
  #allocation0 [shape = 'u32[]', space=smem, size = 0x4, offset = 0x4, fixed_abs, tag = 'smem constant byte address 0x4 - core index']
  #allocation1 [shape = 'u32[144,128]{1,0:T(1,128)}', space=vmem, size = 0x12000, scoped, tag = 'internal scratch']
  %s0 = inlined_call_operand.vmem [shape: bf16[2,100,1024], index: 0, kind: input, shape index: {}]
  %s1 = inlined_call_operand.vmem [shape: bf16[1024,128], index: 1, kind: input, shape index: {}]
  %s2 = inlined_call_operand.vmem [shape: f32[1,128], index: 2, kind: input, shape index: {}]
  %s3 = inlined_call_operand.vmem [shape: bf16[4,128,64], index: 3, kind: input, shape index: {}]
  %s4 = inlined_call_operand.vmem [shape: f32[1,64], index: 4, kind: input, shape index: {}]
  %s5 = inlined_call_operand.vmem [shape: bf16[9,64,32], index: 5, kind: input, shape index: {}]
  %s6 = inlined_call_operand.vmem [shape: f32[1,32], index: 6, kind: input, shape index: {}]
  %s7 = inlined_call_operand.vmem [shape: bf16[2,67,32], index: 7, kind: output, shape index: {}]
  %s8 = sld [smem:[#allocation0]]
  $region61: #{cnn_base_shared_forward.2} parent=0
    _
  %s10 = ssub.s32 1, %s8
  %s11 = scalar_select 0, %s10, %s8
  loop: start=0, step=1, limit=4
  $region2: #{cnn_base_shared_forward.2} parent=0 // loop_pre_header
    _
  $region3: #{cnn_base_shared_forward.2} parent=0 // loop_header
    %s13 = sphi 0, %s17
    %p14 = scmp.ge.s32.totalorder %s13, 4
    %s23 = sphi 0, %s25
    %s26 = sphi 0, %s23
    %s27 = sphi 0, %s26
    %s43 = sphi 0, %s27
    %s47 = sphi 0, %s47
    %s49 = sphi 0, %s47
    %s50 = sphi 0, %s49
    %s64 = sphi 0, %s50
    %s68 = sphi 0, %s68
    %s70 = sphi 0, %s68
    %s71 = sphi 0, %s70
    %s85 = sphi 0, %s71
    %s89 = sphi 0, %s89
    %s91 = sphi 0, %s89
    %s92 = sphi 0, %s91
    %s106 = sphi 0, %s92
    %s110 = sphi 0, %s110
    %s112 = sphi 0, %s110
    %s113 = sphi 0, %s112
    %s127 = sphi 0, %s113
    %s131 = sphi 0, %s131
    %s133 = sphi 0, %s131
    %s134 = sphi 0, %s133
    %s148 = sphi 0, %s134
    %s152 = sphi 0, %s152
    %s154 = sphi 0, %s152
    %s155 = sphi 0, %s154
    %s169 = sphi 0, %s155
    %s175 = sphi 0, %s177
    %s178 = sphi 0, %s175
    %s179 = sphi 0, %s178
    %s195 = sphi 0, %s179
  $region4: #{cnn_base_shared_forward.2} parent=0 // loop_header_branch
    %16 = sbr.rel (%p14) target = $region8
  $region5: #{cnn_base_shared_forward.2} parent=0 // loop_body
    %s18 = ssub.s32 %s13, 1
    %s19 = ssub.s32 %s13, 2
    %s20 = sadd.s32 %s13, 1
    %s21 = ssub.s32 %s13, %s20
    %p22 = scmp.eq.s32.totalorder %s21, 0
    %s24 = sadd.s32 %s23, 1
    %s25 = scalar_select %p22, %s23, %s24
    %p28 = pneg %p22
    %p29 = scmp.eq.s32.totalorder %s13, 1
    %p30 = por %p28, %p29
    %p31 = scmp.ne.s32.totalorder %s23, %s26
    %p32 = scmp.eq.s32.totalorder %s13, 0
    %p33 = por %p31, %p32
    %p34 = scmp.ne.s32.totalorder %s23, %s26
    %p35 = scmp.eq.s32.totalorder %s18, 1
    %p36 = por %p34, %p35
    %p37 = scmp.ne.s32.totalorder %s26, %s27
    %p38 = scmp.eq.s32.totalorder %s18, 0
    %p39 = por %p37, %p38
    %p40 = scmp.ne.s32.totalorder %s26, %s27
    %p41 = scmp.eq.s32.totalorder %s19, 1
    %p42 = por %p40, %p41
    %p44 = scmp.ne.s32.totalorder %s27, %s43
    %p45 = scmp.eq.s32.totalorder %s19, 0
    %p46 = por %p44, %p45
    %s48 = sadd.s32 %s47, 1
    %p51 = scmp.eq.s32.totalorder %s13, 1
    %p52 = scmp.ne.s32.totalorder %s47, %s49
    %p53 = scmp.eq.s32.totalorder %s13, 0
    %p54 = por %p52, %p53
    %p55 = scmp.ne.s32.totalorder %s47, %s49
    %p56 = scmp.eq.s32.totalorder %s18, 1
    %p57 = por %p55, %p56
    %p58 = scmp.ne.s32.totalorder %s49, %s50
    %p59 = scmp.eq.s32.totalorder %s18, 0
    %p60 = por %p58, %p59
    %p61 = scmp.ne.s32.totalorder %s49, %s50
    %p62 = scmp.eq.s32.totalorder %s19, 1
    %p63 = por %p61, %p62
    %p65 = scmp.ne.s32.totalorder %s50, %s64
    %p66 = scmp.eq.s32.totalorder %s19, 0
    %p67 = por %p65, %p66
    %s69 = sadd.s32 %s68, 1
    %p72 = scmp.eq.s32.totalorder %s13, 1
    %p73 = scmp.ne.s32.totalorder %s68, %s70
    %p74 = scmp.eq.s32.totalorder %s13, 0
    %p75 = por %p73, %p74
    %p76 = scmp.ne.s32.totalorder %s68, %s70
    %p77 = scmp.eq.s32.totalorder %s18, 1
    %p78 = por %p76, %p77
    %p79 = scmp.ne.s32.totalorder %s70, %s71
    %p80 = scmp.eq.s32.totalorder %s18, 0
    %p81 = por %p79, %p80
    %p82 = scmp.ne.s32.totalorder %s70, %s71
    %p83 = scmp.eq.s32.totalorder %s19, 1
    %p84 = por %p82, %p83
    %p86 = scmp.ne.s32.totalorder %s71, %s85
    %p87 = scmp.eq.s32.totalorder %s19, 0
    %p88 = por %p86, %p87
    %s90 = sadd.s32 %s89, 1
    %p93 = scmp.eq.s32.totalorder %s13, 1
    %p94 = scmp.ne.s32.totalorder %s89, %s91
    %p95 = scmp.eq.s32.totalorder %s13, 0
    %p96 = por %p94, %p95
    %p97 = scmp.ne.s32.totalorder %s89, %s91
    %p98 = scmp.eq.s32.totalorder %s18, 1
    %p99 = por %p97, %p98
    %p100 = scmp.ne.s32.totalorder %s91, %s92
    %p101 = scmp.eq.s32.totalorder %s18, 0
    %p102 = por %p100, %p101
    %p103 = scmp.ne.s32.totalorder %s91, %s92
    %p104 = scmp.eq.s32.totalorder %s19, 1
    %p105 = por %p103, %p104
    %p107 = scmp.ne.s32.totalorder %s92, %s106
    %p108 = scmp.eq.s32.totalorder %s19, 0
    %p109 = por %p107, %p108
    %s111 = sadd.s32 %s110, 1
    %p114 = scmp.eq.s32.totalorder %s13, 1
    %p115 = scmp.ne.s32.totalorder %s110, %s112
    %p116 = scmp.eq.s32.totalorder %s13, 0
    %p117 = por %p115, %p116
    %p118 = scmp.ne.s32.totalorder %s110, %s112
    %p119 = scmp.eq.s32.totalorder %s18, 1
    %p120 = por %p118, %p119
    %p121 = scmp.ne.s32.totalorder %s112, %s113
    %p122 = scmp.eq.s32.totalorder %s18, 0
    %p123 = por %p121, %p122
    %p124 = scmp.ne.s32.totalorder %s112, %s113
    %p125 = scmp.eq.s32.totalorder %s19, 1
    %p126 = por %p124, %p125
    %p128 = scmp.ne.s32.totalorder %s113, %s127
    %p129 = scmp.eq.s32.totalorder %s19, 0
    %p130 = por %p128, %p129
    %s132 = sadd.s32 %s131, 1
    %p135 = scmp.eq.s32.totalorder %s13, 1
    %p136 = scmp.ne.s32.totalorder %s131, %s133
    %p137 = scmp.eq.s32.totalorder %s13, 0
    %p138 = por %p136, %p137
    %p139 = scmp.ne.s32.totalorder %s131, %s133
    %p140 = scmp.eq.s32.totalorder %s18, 1
    %p141 = por %p139, %p140
    %p142 = scmp.ne.s32.totalorder %s133, %s134
    %p143 = scmp.eq.s32.totalorder %s18, 0
    %p144 = por %p142, %p143
    %p145 = scmp.ne.s32.totalorder %s133, %s134
    %p146 = scmp.eq.s32.totalorder %s19, 1
    %p147 = por %p145, %p146
    %p149 = scmp.ne.s32.totalorder %s134, %s148
    %p150 = scmp.eq.s32.totalorder %s19, 0
    %p151 = por %p149, %p150
    %s153 = sadd.s32 %s152, 1
    %p156 = scmp.eq.s32.totalorder %s13, 1
    %p157 = scmp.ne.s32.totalorder %s152, %s154
    %p158 = scmp.eq.s32.totalorder %s13, 0
    %p159 = por %p157, %p158
    %p160 = scmp.ne.s32.totalorder %s152, %s154
    %p161 = scmp.eq.s32.totalorder %s18, 1
    %p162 = por %p160, %p161
    %p163 = scmp.ne.s32.totalorder %s154, %s155
    %p164 = scmp.eq.s32.totalorder %s18, 0
    %p165 = por %p163, %p164
    %p166 = scmp.ne.s32.totalorder %s154, %s155
    %p167 = scmp.eq.s32.totalorder %s19, 1
    %p168 = por %p166, %p167
    %p170 = scmp.ne.s32.totalorder %s155, %s169
    %p171 = scmp.eq.s32.totalorder %s19, 0
    %p172 = por %p170, %p171
    %s173 = ssub.s32 %s13, %s20
    %p174 = scmp.eq.s32.totalorder %s173, 0
    %s176 = sadd.s32 %s175, 1
    %s177 = scalar_select %p174, %s175, %s176
    %p180 = pneg %p174
    %p181 = scmp.eq.s32.totalorder %s13, 1
    %p182 = por %p180, %p181
    %p183 = scmp.ne.s32.totalorder %s175, %s178
    %p184 = scmp.eq.s32.totalorder %s13, 0
    %p185 = por %p183, %p184
    %p186 = scmp.ne.s32.totalorder %s175, %s178
    %p187 = scmp.eq.s32.totalorder %s18, 1
    %p188 = por %p186, %p187
    %p189 = scmp.ne.s32.totalorder %s178, %s179
    %p190 = scmp.eq.s32.totalorder %s18, 0
    %p191 = por %p189, %p190
    %p192 = scmp.ne.s32.totalorder %s178, %s179
    %p193 = scmp.eq.s32.totalorder %s19, 1
    %p194 = por %p192, %p193
    %p196 = scmp.ne.s32.totalorder %s179, %s195
    %p197 = scmp.eq.s32.totalorder %s19, 0
    %p198 = por %p196, %p197
    %p199 = scmp.le.s32.totalorder 1, %s13
    %p200 = scmp.lt.s32.totalorder %s13, 3
    %p201 = pnand %p199, %p200
    %p202 = pneg %p201
    // Predicated region
    $region9: #{cnn_base_shared_forward.2} parent=5 // pred_check
      _
    $region10: #{cnn_base_shared_forward.2} parent=5 // pred_check_branch
      %204 = sbr.rel (%p201) target = $region12
    $region11: #{cnn_base_shared_forward.2} parent=5 // pred_region
      %s205 = ssub.s32 %s13, 1
      // Predicated region
      $region13: #{cnn_base_shared_forward.2} parent=11 // pred_check
        %p206 = pneg %p60
      $region14: #{cnn_base_shared_forward.2} parent=11 // pred_check_branch
        %208 = sbr.rel (%p206) target = $region16
      $region15: #{cnn_base_shared_forward.2} parent=11 // pred_region
        _
      $region16: #{cnn_base_shared_forward.2} parent=11 // pred_fallthru
        _
      // Predicated region
      $region17: #{cnn_base_shared_forward.2} parent=11 // pred_check
        %p209 = pneg %p81
      $region18: #{cnn_base_shared_forward.2} parent=11 // pred_check_branch
        %211 = sbr.rel (%p209) target = $region20
      $region19: #{cnn_base_shared_forward.2} parent=11 // pred_region
        _
      $region20: #{cnn_base_shared_forward.2} parent=11 // pred_fallthru
        _
      // Predicated region
      $region21: #{cnn_base_shared_forward.2} parent=11 // pred_check
        %p212 = pneg %p102
      $region22: #{cnn_base_shared_forward.2} parent=11 // pred_check_branch
        %214 = sbr.rel (%p212) target = $region24
      $region23: #{cnn_base_shared_forward.2} parent=11 // pred_region
        _
      $region24: #{cnn_base_shared_forward.2} parent=11 // pred_fallthru
        _
      // Predicated region
      $region25: #{cnn_base_shared_forward.2} parent=11 // pred_check
        %p215 = pneg %p123
      $region26: #{cnn_base_shared_forward.2} parent=11 // pred_check_branch
        %217 = sbr.rel (%p215) target = $region28
      $region27: #{cnn_base_shared_forward.2} parent=11 // pred_region
        _
      $region28: #{cnn_base_shared_forward.2} parent=11 // pred_fallthru
        _
      // Predicated region
      $region29: #{cnn_base_shared_forward.2} parent=11 // pred_check
        %p218 = pneg %p144
      $region30: #{cnn_base_shared_forward.2} parent=11 // pred_check_branch
        %220 = sbr.rel (%p218) target = $region32
      $region31: #{cnn_base_shared_forward.2} parent=11 // pred_region
        _
      $region32: #{cnn_base_shared_forward.2} parent=11 // pred_fallthru
        _
      // Predicated region
      $region33: #{cnn_base_shared_forward.2} parent=11 // pred_check
        %p221 = pneg %p165
      $region34: #{cnn_base_shared_forward.2} parent=11 // pred_check_branch
        %223 = sbr.rel (%p221) target = $region36
      $region35: #{cnn_base_shared_forward.2} parent=11 // pred_region
        _
      $region36: #{cnn_base_shared_forward.2} parent=11 // pred_fallthru
        _
    $region12: #{cnn_base_shared_forward.2} parent=5 // pred_fallthru
      _
    %p224 = scmp.lt.s32.totalorder %s13, 2
    // Predicated region
    $region37: #{cnn_base_shared_forward.2} parent=5 // pred_check
      %p225 = pneg %p224
    $region38: #{cnn_base_shared_forward.2} parent=5 // pred_check_branch
      %227 = sbr.rel (%p225) target = $region40
    $region39: #{cnn_base_shared_forward.2} parent=5 // pred_region
      // Predicated region
      $region41: #{cnn_base_shared_forward.2} parent=39 // pred_check
        %p228 = pneg %p33
      $region42: #{cnn_base_shared_forward.2} parent=39 // pred_check_branch
        %230 = sbr.rel (%p228) target = $region44
      $region43: #{cnn_base_shared_forward.2} parent=39 // pred_region
        %p231 = scmp.lt.s32.totalorder %s13, 1
        %s232 = scalar_select %p231, %s13, 1
        %s233 = smul.addr %s232, 104
        %s234 = smul.addr %s233, 4
        %s235 = scalar_lea.vmem %s0, %s234
      $region44: #{cnn_base_shared_forward.2} parent=39 // pred_fallthru
        _
    $region40: #{cnn_base_shared_forward.2} parent=5 // pred_fallthru
      _
    %p236 = scmp.le.s32.totalorder 1, %s13
    %p237 = scmp.lt.s32.totalorder %s13, 3
    %p238 = pnand %p236, %p237
    %p239 = pneg %p238
    // Predicated region
    $region45: #{cnn_base_shared_forward.2} parent=5 // pred_check
      _
    $region46: #{cnn_base_shared_forward.2} parent=5 // pred_check_branch
      %241 = sbr.rel (%p238) target = $region48
    $region47: #{cnn_base_shared_forward.2} parent=5 // pred_region
      %s242 = ssub.s32 %s13, 1
      %p243 = scmp.lt.s32.totalorder %s18, 1
      %s244 = scalar_select %p243, %s18, 1
      %s245 = smul.addr %s244, 104
      %s246 = smul.addr %s245, 4
      %s247 = scalar_lea.vmem %s0, %s246
      %p248 = pneg %p39
      %p249 = pneg %p36
      %p250 = pneg %p60
      %p251 = pneg %p57
      %p252 = pneg %p81
      %p253 = pneg %p78
      %p254 = pneg %p102
      %p255 = pneg %p99
      %p256 = pneg %p123
      %p257 = pneg %p120
      %p258 = pneg %p144
      %p259 = pneg %p141
      %p260 = pneg %p165
      %p261 = pneg %p162
      %p262 = pneg %p191
      %p263 = pneg %p188
      %p264 = scmp.lt.s32.totalorder %s18, 1
      %s265 = scalar_select %p264, %s18, 1
      %s266 = smul.addr %s265, 9
      %s267 = smul.addr %s266, 4
      %s268 = scalar_lea.vmem %s7, %s267
      %p269 = scmp.lt.s32.totalorder %s18, 1
      %s270 = scalar_select %p269, %s18, 1
      %s271 = smul.addr %s270, 104
      %s272 = smul.addr %s271, 4
      %s273 = scalar_lea.vmem %s0, %s272
      %p274 = scmp.lt.s32.totalorder %s18, 1
      %s275 = scalar_select %p274, %s18, 1
      %s276 = smul.addr %s275, 9
      %s277 = smul.addr %s276, 4
      %s278 = scalar_lea.vmem %s7, %s277
      %v280 = vld [vmem:[%s273] sm:$0xff]
      %v281 = vld [vmem:[%s273 + $0x8] sm:$0xff]
      %v282 = vld [vmem:[%s273 + $0x10] sm:$0xff]
      %v283 = vld [vmem:[%s273 + $0x18] sm:$0xff]
      %v284 = vld [vmem:[%s273 + $0x20] sm:$0xff]
      %v285 = vld [vmem:[%s273 + $0x28] sm:$0xff]
      %v286 = vld [vmem:[%s273 + $0x30] sm:$0xff]
      %v287 = vld [vmem:[%s273 + $0x38] sm:$0xff]
      %v288 = vld [vmem:[%s273 + $0x40] sm:$0xff]
      %v289 = vld [vmem:[%s273 + $0x48] sm:$0xff]
      %v290 = vld [vmem:[%s273 + $0x50] sm:$0xff]
      %v291 = vld [vmem:[%s273 + $0x58] sm:$0xff]
      %v292 = vld [vmem:[%s273 + $0x60] sm:$0xff]
      %v293 = vld [vmem:[%s273 + $0x68] sm:$0xff]
      %v294 = vld [vmem:[%s273 + $0x70] sm:$0xff]
      %v295 = vld [vmem:[%s273 + $0x78] sm:$0xff]
      %v296 = vld [vmem:[%s273 + $0x80] sm:$0xff]
      %v297 = vld [vmem:[%s273 + $0x88] sm:$0xff]
      %v298 = vld [vmem:[%s273 + $0x90] sm:$0xff]
      %v299 = vld [vmem:[%s273 + $0x98] sm:$0xff]
      %v300 = vld [vmem:[%s273 + $0xa0] sm:$0xff]
      %v301 = vld [vmem:[%s273 + $0xa8] sm:$0xff]
      %v302 = vld [vmem:[%s273 + $0xb0] sm:$0xff]
      %v303 = vld [vmem:[%s273 + $0xb8] sm:$0xff]
      %v304 = vld [vmem:[%s273 + $0xc0] sm:$0xff]
      %v305 = vld [vmem:[%s273 + $0xc8] sm:$0xff]
      %v306 = vld [vmem:[%s273 + $0xd0] sm:$0xff]
      %v307 = vld [vmem:[%s273 + $0xd8] sm:$0xff]
      %v308 = vld [vmem:[%s273 + $0xe0] sm:$0xff]
      %v309 = vld [vmem:[%s273 + $0xe8] sm:$0xff]
      %v310 = vld [vmem:[%s273 + $0xf0] sm:$0xff]
      %v311 = vld [vmem:[%s273 + $0xf8] sm:$0xff]
      %v312 = vld [vmem:[%s273 + $0x100] sm:$0xff]
      %v313 = vld [vmem:[%s273 + $0x108] sm:$0xff]
      %v314 = vld [vmem:[%s273 + $0x110] sm:$0xff]
      %v315 = vld [vmem:[%s273 + $0x118] sm:$0xff]
      %v316 = vld [vmem:[%s273 + $0x120] sm:$0xff]
      %v317 = vld [vmem:[%s273 + $0x128] sm:$0xff]
      %v318 = vld [vmem:[%s273 + $0x130] sm:$0xff]
      %v319 = vld [vmem:[%s273 + $0x138] sm:$0xff]
      %v320 = vld [vmem:[%s273 + $0x140] sm:$0xff]
      %v321 = vld [vmem:[%s273 + $0x148] sm:$0xff]
      %v322 = vld [vmem:[%s273 + $0x150] sm:$0xff]
      %v323 = vld [vmem:[%s273 + $0x158] sm:$0xff]
      %v324 = vld [vmem:[%s273 + $0x160] sm:$0xff]
      %v325 = vld [vmem:[%s273 + $0x168] sm:$0xff]
      %v326 = vld [vmem:[%s273 + $0x170] sm:$0xff]
      %v327 = vld [vmem:[%s273 + $0x178] sm:$0xff]
      %v328 = vld [vmem:[%s273 + $0x180] sm:$0x33]
      %v329 = vld [vmem:[%s273 + $0x188] sm:$0x33]
      %v330 = vld [vmem:[%s273 + $0x190] sm:$0x33]
      %v331 = vld [vmem:[%s273 + $0x198] sm:$0x33]
      %v332 = vld [vmem:[%s1] sm:$0xf]
      %v333 = vld [vmem:[%s1 + $0x4] sm:$0xf]
      %v334 = vld [vmem:[%s1 + $0x8] sm:$0xf]
      %v335 = vld [vmem:[%s1 + $0xc] sm:$0xf]
      %v336 = vld [vmem:[%s1 + $0x10] sm:$0xf]
      %v337 = vld [vmem:[%s1 + $0x14] sm:$0xf]
      %v338 = vld [vmem:[%s1 + $0x18] sm:$0xf]
      %v339 = vld [vmem:[%s1 + $0x1c] sm:$0xf]
      %v340 = vld [vmem:[%s1 + $0x20] sm:$0xf]
      %v341 = vld [vmem:[%s1 + $0x24] sm:$0xf]
      %v342 = vld [vmem:[%s1 + $0x28] sm:$0xf]
      %v343 = vld [vmem:[%s1 + $0x2c] sm:$0xf]
      %v344 = vld [vmem:[%s1 + $0x30] sm:$0xf]
      %v345 = vld [vmem:[%s1 + $0x34] sm:$0xf]
      %v346 = vld [vmem:[%s1 + $0x38] sm:$0xf]
      %v347 = vld [vmem:[%s1 + $0x3c] sm:$0xf]
      %v348 = vld [vmem:[%s1 + $0x40] sm:$0xf]
      %v349 = vld [vmem:[%s1 + $0x44] sm:$0xf]
      %v350 = vld [vmem:[%s1 + $0x48] sm:$0xf]
      %v351 = vld [vmem:[%s1 + $0x4c] sm:$0xf]
      %v352 = vld [vmem:[%s1 + $0x50] sm:$0xf]
      %v353 = vld [vmem:[%s1 + $0x54] sm:$0xf]
      %v354 = vld [vmem:[%s1 + $0x58] sm:$0xf]
      %v355 = vld [vmem:[%s1 + $0x5c] sm:$0xf]
      %v356 = vld [vmem:[%s1 + $0x60] sm:$0xf]
      %v357 = vld [vmem:[%s1 + $0x64] sm:$0xf]
      %v358 = vld [vmem:[%s1 + $0x68] sm:$0xf]
      %v359 = vld [vmem:[%s1 + $0x6c] sm:$0xf]
      %v360 = vld [vmem:[%s1 + $0x70] sm:$0xf]
      %v361 = vld [vmem:[%s1 + $0x74] sm:$0xf]
      %v362 = vld [vmem:[%s1 + $0x78] sm:$0xf]
      %v363 = vld [vmem:[%s1 + $0x7c] sm:$0xf]
      %v364 = vld [vmem:[%s1 + $0x80] sm:$0xf]
      %v365 = vld [vmem:[%s1 + $0x84] sm:$0xf]
      %v366 = vld [vmem:[%s1 + $0x88] sm:$0xf]
      %v367 = vld [vmem:[%s1 + $0x8c] sm:$0xf]
      %v368 = vld [vmem:[%s1 + $0x90] sm:$0xf]
      %v369 = vld [vmem:[%s1 + $0x94] sm:$0xf]
      %v370 = vld [vmem:[%s1 + $0x98] sm:$0xf]
      %v371 = vld [vmem:[%s1 + $0x9c] sm:$0xf]
      %v372 = vld [vmem:[%s1 + $0xa0] sm:$0xf]
      %v373 = vld [vmem:[%s1 + $0xa4] sm:$0xf]
      %v374 = vld [vmem:[%s1 + $0xa8] sm:$0xf]
      %v375 = vld [vmem:[%s1 + $0xac] sm:$0xf]
      %v376 = vld [vmem:[%s1 + $0xb0] sm:$0xf]
      %v377 = vld [vmem:[%s1 + $0xb4] sm:$0xf]
      %v378 = vld [vmem:[%s1 + $0xb8] sm:$0xf]
      %v379 = vld [vmem:[%s1 + $0xbc] sm:$0xf]
      %v380 = vld [vmem:[%s1 + $0xc0] sm:$0xf]
      %v381 = vld [vmem:[%s1 + $0xc4] sm:$0xf]
      %v382 = vld [vmem:[%s1 + $0xc8] sm:$0xf]
      %v383 = vld [vmem:[%s1 + $0xcc] sm:$0xf]
      %v384 = vld [vmem:[%s1 + $0xd0] sm:$0xf]
      %v385 = vld [vmem:[%s1 + $0xd4] sm:$0xf]
      %v386 = vld [vmem:[%s1 + $0xd8] sm:$0xf]
      %v387 = vld [vmem:[%s1 + $0xdc] sm:$0xf]
      %v388 = vld [vmem:[%s1 + $0xe0] sm:$0xf]
      %v389 = vld [vmem:[%s1 + $0xe4] sm:$0xf]
      %v390 = vld [vmem:[%s1 + $0xe8] sm:$0xf]
      %v391 = vld [vmem:[%s1 + $0xec] sm:$0xf]
      %v392 = vld [vmem:[%s1 + $0xf0] sm:$0xf]
      %v393 = vld [vmem:[%s1 + $0xf4] sm:$0xf]
      %v394 = vld [vmem:[%s1 + $0xf8] sm:$0xf]
      %v395 = vld [vmem:[%s1 + $0xfc] sm:$0xf]
      %v396 = vld [vmem:[%s1 + $0x100] sm:$0xf]
      %v397 = vld [vmem:[%s1 + $0x104] sm:$0xf]
      %v398 = vld [vmem:[%s1 + $0x108] sm:$0xf]
      %v399 = vld [vmem:[%s1 + $0x10c] sm:$0xf]
      %v400 = vld [vmem:[%s1 + $0x110] sm:$0xf]
      %v401 = vld [vmem:[%s1 + $0x114] sm:$0xf]
      %v402 = vld [vmem:[%s1 + $0x118] sm:$0xf]
      %v403 = vld [vmem:[%s1 + $0x11c] sm:$0xf]
      %v404 = vld [vmem:[%s1 + $0x120] sm:$0xf]
      %v405 = vld [vmem:[%s1 + $0x124] sm:$0xf]
      %v406 = vld [vmem:[%s1 + $0x128] sm:$0xf]
      %v407 = vld [vmem:[%s1 + $0x12c] sm:$0xf]
      %v408 = vld [vmem:[%s1 + $0x130] sm:$0xf]
      %v409 = vld [vmem:[%s1 + $0x134] sm:$0xf]
      %v410 = vld [vmem:[%s1 + $0x138] sm:$0xf]
      %v411 = vld [vmem:[%s1 + $0x13c] sm:$0xf]
      %v412 = vld [vmem:[%s1 + $0x140] sm:$0xf]
      %v413 = vld [vmem:[%s1 + $0x144] sm:$0xf]
      %v414 = vld [vmem:[%s1 + $0x148] sm:$0xf]
      %v415 = vld [vmem:[%s1 + $0x14c] sm:$0xf]
      %v416 = vld [vmem:[%s1 + $0x150] sm:$0xf]
      %v417 = vld [vmem:[%s1 + $0x154] sm:$0xf]
      %v418 = vld [vmem:[%s1 + $0x158] sm:$0xf]
      %v419 = vld [vmem:[%s1 + $0x15c] sm:$0xf]
      %v420 = vld [vmem:[%s1 + $0x160] sm:$0xf]
      %v421 = vld [vmem:[%s1 + $0x164] sm:$0xf]
      %v422 = vld [vmem:[%s1 + $0x168] sm:$0xf]
      %v423 = vld [vmem:[%s1 + $0x16c] sm:$0xf]
      %v424 = vld [vmem:[%s1 + $0x170] sm:$0xf]
      %v425 = vld [vmem:[%s1 + $0x174] sm:$0xf]
      %v426 = vld [vmem:[%s1 + $0x178] sm:$0xf]
      %v427 = vld [vmem:[%s1 + $0x17c] sm:$0xf]
      %v428 = vld [vmem:[%s1 + $0x180] sm:$0xf]
      %v429 = vld [vmem:[%s1 + $0x184] sm:$0xf]
      %v430 = vld [vmem:[%s1 + $0x188] sm:$0xf]
      %v431 = vld [vmem:[%s1 + $0x18c] sm:$0xf]
      %v432 = vld [vmem:[%s1 + $0x190] sm:$0xf]
      %v433 = vld [vmem:[%s1 + $0x194] sm:$0xf]
      %v434 = vld [vmem:[%s1 + $0x198] sm:$0xf]
      %v435 = vld [vmem:[%s1 + $0x19c] sm:$0xf]
      %v436 = vld [vmem:[%s1 + $0x1a0] sm:$0xf]
      %v437 = vld [vmem:[%s1 + $0x1a4] sm:$0xf]
      %v438 = vld [vmem:[%s1 + $0x1a8] sm:$0xf]
      %v439 = vld [vmem:[%s1 + $0x1ac] sm:$0xf]
      %v440 = vld [vmem:[%s1 + $0x1b0] sm:$0xf]
      %v441 = vld [vmem:[%s1 + $0x1b4] sm:$0xf]
      %v442 = vld [vmem:[%s1 + $0x1b8] sm:$0xf]
      %v443 = vld [vmem:[%s1 + $0x1bc] sm:$0xf]
      %v444 = vld [vmem:[%s1 + $0x1c0] sm:$0xf]
      %v445 = vld [vmem:[%s1 + $0x1c4] sm:$0xf]
      %v446 = vld [vmem:[%s1 + $0x1c8] sm:$0xf]
      %v447 = vld [vmem:[%s1 + $0x1cc] sm:$0xf]
      %v448 = vld [vmem:[%s1 + $0x1d0] sm:$0xf]
      %v449 = vld [vmem:[%s1 + $0x1d4] sm:$0xf]
      %v450 = vld [vmem:[%s1 + $0x1d8] sm:$0xf]
      %v451 = vld [vmem:[%s1 + $0x1dc] sm:$0xf]
      %v452 = vld [vmem:[%s1 + $0x1e0] sm:$0xf]
      %v453 = vld [vmem:[%s1 + $0x1e4] sm:$0xf]
      %v454 = vld [vmem:[%s1 + $0x1e8] sm:$0xf]
      %v455 = vld [vmem:[%s1 + $0x1ec] sm:$0xf]
      %v456 = vld [vmem:[%s1 + $0x1f0] sm:$0xf]
      %v457 = vld [vmem:[%s1 + $0x1f4] sm:$0xf]
      %v458 = vld [vmem:[%s1 + $0x1f8] sm:$0xf]
      %v459 = vld [vmem:[%s1 + $0x1fc] sm:$0xf]
      %v460 = vld [vmem:[%s2] sm:$0x1]
      %v462 = vlaneseq
      %v463 = vshrl.u32 %v462, 7
      %v464 = vsub.s32 0, %v463
      %v465 = vrot.slane %v460, %v464
      %v519 = vunpack.c.l.b16 %v280
      %v520 = vunpack.c.h.b16 %v280
      %v521 = vunpack.c.l.b16 %v281
      %v522 = vunpack.c.h.b16 %v281
      %v523 = vunpack.c.l.b16 %v282
      %v524 = vunpack.c.h.b16 %v282
      %v525 = vunpack.c.l.b16 %v283
      %v526 = vunpack.c.h.b16 %v283
      %v527 = vunpack.c.l.b16 %v284
      %v528 = vunpack.c.h.b16 %v284
      %v529 = vunpack.c.l.b16 %v285
      %v530 = vunpack.c.h.b16 %v285
      %v531 = vunpack.c.l.b16 %v286
      %v532 = vunpack.c.h.b16 %v286
      %v533 = vunpack.c.l.b16 %v287
      %v534 = vunpack.c.h.b16 %v287
      %v535 = vunpack.c.l.b16 %v288
      %v536 = vunpack.c.h.b16 %v288
      %v537 = vunpack.c.l.b16 %v289
      %v538 = vunpack.c.h.b16 %v289
      %v539 = vunpack.c.l.b16 %v290
      %v540 = vunpack.c.h.b16 %v290
      %v541 = vunpack.c.l.b16 %v291
      %v542 = vunpack.c.h.b16 %v291
      %v543 = vunpack.c.l.b16 %v292
      %v544 = vunpack.c.h.b16 %v292
      %v545 = vunpack.c.l.b16 %v293
      %v546 = vunpack.c.h.b16 %v293
      %v547 = vunpack.c.l.b16 %v294
      %v548 = vunpack.c.h.b16 %v294
      %v549 = vunpack.c.l.b16 %v295
      %v550 = vunpack.c.h.b16 %v295
      %v551 = vunpack.c.l.b16 %v296
      %v552 = vunpack.c.h.b16 %v296
      %v553 = vunpack.c.l.b16 %v297
      %v554 = vunpack.c.h.b16 %v297
      %v555 = vunpack.c.l.b16 %v298
      %v556 = vunpack.c.h.b16 %v298
      %v557 = vunpack.c.l.b16 %v299
      %v558 = vunpack.c.h.b16 %v299
      %v559 = vunpack.c.l.b16 %v300
      %v560 = vunpack.c.h.b16 %v300
      %v561 = vunpack.c.l.b16 %v301
      %v562 = vunpack.c.h.b16 %v301
      %v563 = vunpack.c.l.b16 %v302
      %v564 = vunpack.c.h.b16 %v302
      %v565 = vunpack.c.l.b16 %v303
      %v566 = vunpack.c.h.b16 %v303
      %v567 = vunpack.c.l.b16 %v304
      %v568 = vunpack.c.h.b16 %v304
      %v569 = vunpack.c.l.b16 %v305
      %v570 = vunpack.c.h.b16 %v305
      %v571 = vunpack.c.l.b16 %v306
      %v572 = vunpack.c.h.b16 %v306
      %v573 = vunpack.c.l.b16 %v307
      %v574 = vunpack.c.h.b16 %v307
      %v575 = vunpack.c.l.b16 %v308
      %v576 = vunpack.c.h.b16 %v308
      %v577 = vunpack.c.l.b16 %v309
      %v578 = vunpack.c.h.b16 %v309
      %v579 = vunpack.c.l.b16 %v310
      %v580 = vunpack.c.h.b16 %v310
      %v581 = vunpack.c.l.b16 %v311
      %v582 = vunpack.c.h.b16 %v311
      %v583 = vunpack.c.l.b16 %v312
      %v584 = vunpack.c.h.b16 %v312
      %v585 = vunpack.c.l.b16 %v313
      %v586 = vunpack.c.h.b16 %v313
      %v587 = vunpack.c.l.b16 %v314
      %v588 = vunpack.c.h.b16 %v314
      %v589 = vunpack.c.l.b16 %v315
      %v590 = vunpack.c.h.b16 %v315
      %v591 = vunpack.c.l.b16 %v316
      %v592 = vunpack.c.h.b16 %v316
      %v593 = vunpack.c.l.b16 %v317
      %v594 = vunpack.c.h.b16 %v317
      %v595 = vunpack.c.l.b16 %v318
      %v596 = vunpack.c.h.b16 %v318
      %v597 = vunpack.c.l.b16 %v319
      %v598 = vunpack.c.h.b16 %v319
      %v599 = vunpack.c.l.b16 %v320
      %v600 = vunpack.c.h.b16 %v320
      %v601 = vunpack.c.l.b16 %v321
      %v602 = vunpack.c.h.b16 %v321
      %v603 = vunpack.c.l.b16 %v322
      %v604 = vunpack.c.h.b16 %v322
      %v605 = vunpack.c.l.b16 %v323
      %v606 = vunpack.c.h.b16 %v323
      %v607 = vunpack.c.l.b16 %v324
      %v608 = vunpack.c.h.b16 %v324
      %v609 = vunpack.c.l.b16 %v325
      %v610 = vunpack.c.h.b16 %v325
      %v611 = vunpack.c.l.b16 %v326
      %v612 = vunpack.c.h.b16 %v326
      %v613 = vunpack.c.l.b16 %v327
      %v614 = vunpack.c.h.b16 %v327
      %v615 = vunpack.c.l.b16 %v328
      %v616 = vunpack.c.h.b16 %v328
      %v617 = vunpack.c.l.b16 %v329
      %v618 = vunpack.c.h.b16 %v329
      %v619 = vunpack.c.l.b16 %v330
      %v620 = vunpack.c.h.b16 %v330
      %v621 = vunpack.c.l.b16 %v331
      %v622 = vunpack.c.h.b16 %v331
      %v623 = vpack.c.b16 %v527, %v519
      %v624 = vpack.c.b16 %v528, %v520
      %v625 = vpack.c.b16 %v529, %v521
      %v626 = vpack.c.b16 %v530, %v522
      %v627 = vpack.c.b16 %v531, %v523
      %v628 = vpack.c.b16 %v532, %v524
      %v629 = vpack.c.b16 %v533, %v525
      %v630 = vpack.c.b16 %v534, %v526
      %v631 = vpack.c.b16 %v543, %v535
      %v632 = vpack.c.b16 %v544, %v536
      %v633 = vpack.c.b16 %v545, %v537
      %v634 = vpack.c.b16 %v546, %v538
      %v635 = vpack.c.b16 %v547, %v539
      %v636 = vpack.c.b16 %v548, %v540
      %v637 = vpack.c.b16 %v549, %v541
      %v638 = vpack.c.b16 %v550, %v542
      %v639 = vpack.c.b16 %v559, %v551
      %v640 = vpack.c.b16 %v560, %v552
      %v641 = vpack.c.b16 %v561, %v553
      %v642 = vpack.c.b16 %v562, %v554
      %v643 = vpack.c.b16 %v563, %v555
      %v644 = vpack.c.b16 %v564, %v556
      %v645 = vpack.c.b16 %v565, %v557
      %v646 = vpack.c.b16 %v566, %v558
      %v647 = vpack.c.b16 %v575, %v567
      %v648 = vpack.c.b16 %v576, %v568
      %v649 = vpack.c.b16 %v577, %v569
      %v650 = vpack.c.b16 %v578, %v570
      %v651 = vpack.c.b16 %v579, %v571
      %v652 = vpack.c.b16 %v580, %v572
      %v653 = vpack.c.b16 %v581, %v573
      %v654 = vpack.c.b16 %v582, %v574
      %v655 = vpack.c.b16 %v591, %v583
      %v656 = vpack.c.b16 %v592, %v584
      %v657 = vpack.c.b16 %v593, %v585
      %v658 = vpack.c.b16 %v594, %v586
      %v659 = vpack.c.b16 %v595, %v587
      %v660 = vpack.c.b16 %v596, %v588
      %v661 = vpack.c.b16 %v597, %v589
      %v662 = vpack.c.b16 %v598, %v590
      %v663 = vpack.c.b16 %v607, %v599
      %v664 = vpack.c.b16 %v608, %v600
      %v665 = vpack.c.b16 %v609, %v601
      %v666 = vpack.c.b16 %v610, %v602
      %v667 = vpack.c.b16 %v611, %v603
      %v668 = vpack.c.b16 %v612, %v604
      %v669 = vpack.c.b16 %v613, %v605
      %v670 = vpack.c.b16 %v614, %v606
      %v671 = vpack.c.b16 %v615, %v615
      %v672 = vpack.c.b16 %v616, %v616
      %v673 = vpack.c.b16 %v617, %v617
      %v674 = vpack.c.b16 %v618, %v618
      %v675 = vpack.c.b16 %v619, %v619
      %v676 = vpack.c.b16 %v620, %v620
      %v677 = vpack.c.b16 %v621, %v621
      %v678 = vpack.c.b16 %v622, %v622
      %v863 = vunpack.c.l.b16 %v332
      %v864 = vunpack.c.l.b16 %v333
      %v865 = vunpack.c.l.b16 %v334
      %v866 = vunpack.c.l.b16 %v335
      %v867 = vunpack.c.l.b16 %v336
      %v868 = vunpack.c.l.b16 %v337
      %v869 = vunpack.c.l.b16 %v338
      %v870 = vunpack.c.l.b16 %v339
      %v871 = vunpack.c.l.b16 %v340
      %v872 = vunpack.c.l.b16 %v341
      %v873 = vunpack.c.l.b16 %v342
      %v874 = vunpack.c.l.b16 %v343
      %v875 = vunpack.c.l.b16 %v344
      %v876 = vunpack.c.l.b16 %v345
      %v877 = vunpack.c.l.b16 %v346
      %v878 = vunpack.c.l.b16 %v347
      %v879 = vunpack.c.l.b16 %v348
      %v880 = vunpack.c.l.b16 %v349
      %v881 = vunpack.c.l.b16 %v350
      %v882 = vunpack.c.l.b16 %v351
      %v883 = vunpack.c.l.b16 %v352
      %v884 = vunpack.c.l.b16 %v353
      %v885 = vunpack.c.l.b16 %v354
      %v886 = vunpack.c.l.b16 %v355
      %v887 = vunpack.c.l.b16 %v356
      %v888 = vunpack.c.l.b16 %v357
      %v889 = vunpack.c.l.b16 %v358
      %v890 = vunpack.c.l.b16 %v359
      %v891 = vunpack.c.l.b16 %v360
      %v892 = vunpack.c.l.b16 %v361
      %v893 = vunpack.c.l.b16 %v362
      %v894 = vunpack.c.l.b16 %v363
      %v895 = vunpack.c.l.b16 %v364
      %v896 = vunpack.c.l.b16 %v365
      %v897 = vunpack.c.l.b16 %v366
      %v898 = vunpack.c.l.b16 %v367
      %v899 = vunpack.c.l.b16 %v368
      %v900 = vunpack.c.l.b16 %v369
      %v901 = vunpack.c.l.b16 %v370
      %v902 = vunpack.c.l.b16 %v371
      %v903 = vunpack.c.l.b16 %v372
      %v904 = vunpack.c.l.b16 %v373
      %v905 = vunpack.c.l.b16 %v374
      %v906 = vunpack.c.l.b16 %v375
      %v907 = vunpack.c.l.b16 %v376
      %v908 = vunpack.c.l.b16 %v377
      %v909 = vunpack.c.l.b16 %v378
      %v910 = vunpack.c.l.b16 %v379
      %v911 = vunpack.c.l.b16 %v380
      %v912 = vunpack.c.l.b16 %v381
      %v913 = vunpack.c.l.b16 %v382
      %v914 = vunpack.c.l.b16 %v383
      %v915 = vunpack.c.l.b16 %v384
      %v916 = vunpack.c.l.b16 %v385
      %v917 = vunpack.c.l.b16 %v386
      %v918 = vunpack.c.l.b16 %v387
      %v919 = vunpack.c.l.b16 %v388
      %v920 = vunpack.c.l.b16 %v389
      %v921 = vunpack.c.l.b16 %v390
      %v922 = vunpack.c.l.b16 %v391
      %v923 = vunpack.c.l.b16 %v392
      %v924 = vunpack.c.l.b16 %v393
      %v925 = vunpack.c.l.b16 %v394
      %v926 = vunpack.c.l.b16 %v395
      %v927 = vunpack.c.l.b16 %v396
      %v928 = vunpack.c.l.b16 %v397
      %v929 = vunpack.c.l.b16 %v398
      %v930 = vunpack.c.l.b16 %v399
      %v931 = vunpack.c.l.b16 %v400
      %v932 = vunpack.c.l.b16 %v401
      %v933 = vunpack.c.l.b16 %v402
      %v934 = vunpack.c.l.b16 %v403
      %v935 = vunpack.c.l.b16 %v404
      %v936 = vunpack.c.l.b16 %v405
      %v937 = vunpack.c.l.b16 %v406
      %v938 = vunpack.c.l.b16 %v407
      %v939 = vunpack.c.l.b16 %v408
      %v940 = vunpack.c.l.b16 %v409
      %v941 = vunpack.c.l.b16 %v410
      %v942 = vunpack.c.l.b16 %v411
      %v943 = vunpack.c.l.b16 %v412
      %v944 = vunpack.c.l.b16 %v413
      %v945 = vunpack.c.l.b16 %v414
      %v946 = vunpack.c.l.b16 %v415
      %v947 = vunpack.c.l.b16 %v416
      %v948 = vunpack.c.l.b16 %v417
      %v949 = vunpack.c.l.b16 %v418
      %v950 = vunpack.c.l.b16 %v419
      %v951 = vunpack.c.l.b16 %v420
      %v952 = vunpack.c.l.b16 %v421
      %v953 = vunpack.c.l.b16 %v422
      %v954 = vunpack.c.l.b16 %v423
      %v955 = vunpack.c.l.b16 %v424
      %v956 = vunpack.c.l.b16 %v425
      %v957 = vunpack.c.l.b16 %v426
      %v958 = vunpack.c.l.b16 %v427
      %v959 = vunpack.c.l.b16 %v428
      %v960 = vunpack.c.l.b16 %v429
      %v961 = vunpack.c.l.b16 %v430
      %v962 = vunpack.c.l.b16 %v431
      %v963 = vunpack.c.l.b16 %v432
      %v964 = vunpack.c.l.b16 %v433
      %v965 = vunpack.c.l.b16 %v434
      %v966 = vunpack.c.l.b16 %v435
      %v967 = vunpack.c.l.b16 %v436
      %v968 = vunpack.c.l.b16 %v437
      %v969 = vunpack.c.l.b16 %v438
      %v970 = vunpack.c.l.b16 %v439
      %v971 = vunpack.c.l.b16 %v440
      %v972 = vunpack.c.l.b16 %v441
      %v973 = vunpack.c.l.b16 %v442
      %v974 = vunpack.c.l.b16 %v443
      %v975 = vunpack.c.l.b16 %v444
      %v976 = vunpack.c.l.b16 %v445
      %v977 = vunpack.c.l.b16 %v446
      %v978 = vunpack.c.l.b16 %v447
      %v979 = vunpack.c.l.b16 %v448
      %v980 = vunpack.c.l.b16 %v449
      %v981 = vunpack.c.l.b16 %v450
      %v982 = vunpack.c.l.b16 %v451
      %v983 = vunpack.c.l.b16 %v452
      %v984 = vunpack.c.l.b16 %v453
      %v985 = vunpack.c.l.b16 %v454
      %v986 = vunpack.c.l.b16 %v455
      %v987 = vunpack.c.l.b16 %v456
      %v988 = vunpack.c.l.b16 %v457
      %v989 = vunpack.c.l.b16 %v458
      %v990 = vunpack.c.l.b16 %v459
      %v991 = vpack.c.b16 %v864, %v863
      %v992 = vpack.c.b16 %v866, %v865
      %v993 = vpack.c.b16 %v868, %v867
      %v994 = vpack.c.b16 %v870, %v869
      %v995 = vpack.c.b16 %v872, %v871
      %v996 = vpack.c.b16 %v874, %v873
      %v997 = vpack.c.b16 %v876, %v875
      %v998 = vpack.c.b16 %v878, %v877
      %v999 = vpack.c.b16 %v880, %v879
      %v1000 = vpack.c.b16 %v882, %v881
      %v1001 = vpack.c.b16 %v884, %v883
      %v1002 = vpack.c.b16 %v886, %v885
      %v1003 = vpack.c.b16 %v888, %v887
      %v1004 = vpack.c.b16 %v890, %v889
      %v1005 = vpack.c.b16 %v892, %v891
      %v1006 = vpack.c.b16 %v894, %v893
      %v1007 = vpack.c.b16 %v896, %v895
      %v1008 = vpack.c.b16 %v898, %v897
      %v1009 = vpack.c.b16 %v900, %v899
      %v1010 = vpack.c.b16 %v902, %v901
      %v1011 = vpack.c.b16 %v904, %v903
      %v1012 = vpack.c.b16 %v906, %v905
      %v1013 = vpack.c.b16 %v908, %v907
      %v1014 = vpack.c.b16 %v910, %v909
      %v1015 = vpack.c.b16 %v912, %v911
      %v1016 = vpack.c.b16 %v914, %v913
      %v1017 = vpack.c.b16 %v916, %v915
      %v1018 = vpack.c.b16 %v918, %v917
      %v1019 = vpack.c.b16 %v920, %v919
      %v1020 = vpack.c.b16 %v922, %v921
      %v1021 = vpack.c.b16 %v924, %v923
      %v1022 = vpack.c.b16 %v926, %v925
      %v1023 = vpack.c.b16 %v928, %v927
      %v1024 = vpack.c.b16 %v930, %v929
      %v1025 = vpack.c.b16 %v932, %v931
      %v1026 = vpack.c.b16 %v934, %v933
      %v1027 = vpack.c.b16 %v936, %v935
      %v1028 = vpack.c.b16 %v938, %v937
      %v1029 = vpack.c.b16 %v940, %v939
      %v1030 = vpack.c.b16 %v942, %v941
      %v1031 = vpack.c.b16 %v944, %v943
      %v1032 = vpack.c.b16 %v946, %v945
      %v1033 = vpack.c.b16 %v948, %v947
      %v1034 = vpack.c.b16 %v950, %v949
      %v1035 = vpack.c.b16 %v952, %v951
      %v1036 = vpack.c.b16 %v954, %v953
      %v1037 = vpack.c.b16 %v956, %v955
      %v1038 = vpack.c.b16 %v958, %v957
      %v1039 = vpack.c.b16 %v960, %v959
      %v1040 = vpack.c.b16 %v962, %v961
      %v1041 = vpack.c.b16 %v964, %v963
      %v1042 = vpack.c.b16 %v966, %v965
      %v1043 = vpack.c.b16 %v968, %v967
      %v1044 = vpack.c.b16 %v970, %v969
      %v1045 = vpack.c.b16 %v972, %v971
      %v1046 = vpack.c.b16 %v974, %v973
      %v1047 = vpack.c.b16 %v976, %v975
      %v1048 = vpack.c.b16 %v978, %v977
      %v1049 = vpack.c.b16 %v980, %v979
      %v1050 = vpack.c.b16 %v982, %v981
      %v1051 = vpack.c.b16 %v984, %v983
      %v1052 = vpack.c.b16 %v986, %v985
      %v1053 = vpack.c.b16 %v988, %v987
      %v1054 = vpack.c.b16 %v990, %v989
      %1119 = vmatprep.subr.bf16.mxu0 0
      %1120 = vmatpush1.bf16.msra.mxu0 %v998
      %1121 = vmatprep.subr.bf16.mxu0 0
      %1122 = vmatpush1.bf16.msra.mxu0 %v997
      %1123 = vmatprep.subr.bf16.mxu0 0
      %1124 = vmatpush1.bf16.msra.mxu0 %v996
      %1125 = vmatprep.subr.bf16.mxu0 0
      %1126 = vmatpush1.bf16.msra.mxu0 %v995
      %1127 = vmatprep.subr.bf16.mxu0 0
      %1128 = vmatpush1.bf16.msra.mxu0 %v994
      %1129 = vmatprep.subr.bf16.mxu0 0
      %1130 = vmatpush1.bf16.msra.mxu0 %v993
      %1131 = vmatprep.subr.bf16.mxu0 0
      %1132 = vmatpush1.bf16.msra.mxu0 %v992
      %1133 = vmatprep.subr.bf16.mxu0 0
      %1134 = vmatpush1.bf16.msra.mxu0 %v991
      %1135 = vmatprep.subr.bf16.mxu0 0
      %1136 = vmatpush2.bf16.msra.mxu0 %v1006
      %1137 = vmatprep.subr.bf16.mxu0 0
      %1138 = vmatpush2.bf16.msra.mxu0 %v1005
      %1139 = vmatprep.subr.bf16.mxu0 0
      %1140 = vmatpush2.bf16.msra.mxu0 %v1004
      %1141 = vmatprep.subr.bf16.mxu0 0
      %1142 = vmatpush2.bf16.msra.mxu0 %v1003
      %1143 = vmatprep.subr.bf16.mxu0 0
      %1144 = vmatpush2.bf16.msra.mxu0 %v1002
      %1145 = vmatprep.subr.bf16.mxu0 0
      %1146 = vmatpush2.bf16.msra.mxu0 %v1001
      %1147 = vmatprep.subr.bf16.mxu0 0
      %1148 = vmatpush2.bf16.msra.mxu0 %v1000
      %1149 = vmatprep.subr.bf16.mxu0 0
      %1150 = vmatpush2.bf16.msra.mxu0 %v999
      %1151 = vmatprep.mubr.bf16.mxu0 %v624
      %1152 = vmatmul.mubr.bf16.gmra.mxu0 %v623
      %v1153 = vpop.f32.mrf.mxu0
      %v1154 = vadd.f32 %v465, %v1153
      %v1155 = vpop.f32.mrf.mxu0
      %v1156 = vpop.f32.mrf.mxu0
      %v1157 = vadd.f32 %v465, %v1156
      %v1158 = vpop.f32.mrf.mxu0
      %1159 = vmatprep.mubr.bf16.mxu0 %v632
      %1160 = vmatmul.mubr.bf16.gmra.mxu0 %v631
      %v1161 = vpop.f32.mrf.mxu0
      %v1162 = vadd.f32 %v465, %v1161
      %v1163 = vpop.f32.mrf.mxu0
      %v1164 = vpop.f32.mrf.mxu0
      %v1165 = vadd.f32 %v465, %v1164
      %v1166 = vpop.f32.mrf.mxu0
      %1167 = vmatprep.mubr.bf16.mxu0 %v640
      %1168 = vmatmul.mubr.bf16.gmra.mxu0 %v639
      %v1169 = vpop.f32.mrf.mxu0
      %v1170 = vadd.f32 %v465, %v1169
      %v1171 = vpop.f32.mrf.mxu0
      %v1172 = vpop.f32.mrf.mxu0
      %v1173 = vadd.f32 %v465, %v1172
      %v1174 = vpop.f32.mrf.mxu0
      %1175 = vmatprep.mubr.bf16.mxu0 %v648
      %1176 = vmatmul.mubr.bf16.gmra.mxu0 %v647
      %v1177 = vpop.f32.mrf.mxu0
      %v1178 = vadd.f32 %v465, %v1177
      %v1179 = vpop.f32.mrf.mxu0
      %v1180 = vpop.f32.mrf.mxu0
      %v1181 = vadd.f32 %v465, %v1180
      %v1182 = vpop.f32.mrf.mxu0
      %1183 = vmatprep.mubr.bf16.mxu0 %v656
      %1184 = vmatmul.mubr.bf16.gmra.mxu0 %v655
      %v1185 = vpop.f32.mrf.mxu0
      %v1186 = vadd.f32 %v465, %v1185
      %v1187 = vpop.f32.mrf.mxu0
      %v1188 = vpop.f32.mrf.mxu0
      %v1189 = vadd.f32 %v465, %v1188
      %v1190 = vpop.f32.mrf.mxu0
      %1191 = vmatprep.mubr.bf16.mxu0 %v664
      %1192 = vmatmul.mubr.bf16.gmra.mxu0 %v663
      %v1193 = vpop.f32.mrf.mxu0
      %v1194 = vadd.f32 %v465, %v1193
      %v1195 = vpop.f32.mrf.mxu0
      %v1196 = vpop.f32.mrf.mxu0
      %v1197 = vadd.f32 %v465, %v1196
      %v1198 = vpop.f32.mrf.mxu0
      %1199 = vmatprep.mubr.bf16.mxu0 %v672
      %1200 = vmatmul.mubr.bf16.gmra.mxu0 %v671
      %v1201 = vpop.f32.mrf.mxu0
      %v1202 = vadd.f32 %v465, %v1201
      %v1203 = vpop.f32.mrf.mxu0
      %v1204 = vpop.f32.mrf.mxu0
      %v1205 = vpop.f32.mrf.mxu0
      %1206 = vdwg.mxu0
      %1207 = vmatprep.subr.bf16.mxu0 0
      %1208 = vmatpush1.bf16.msra.mxu0 %v1014
      %1209 = vmatprep.subr.bf16.mxu0 0
      %1210 = vmatpush1.bf16.msra.mxu0 %v1013
      %1211 = vmatprep.subr.bf16.mxu0 0
      %1212 = vmatpush1.bf16.msra.mxu0 %v1012
      %1213 = vmatprep.subr.bf16.mxu0 0
      %1214 = vmatpush1.bf16.msra.mxu0 %v1011
      %1215 = vmatprep.subr.bf16.mxu0 0
      %1216 = vmatpush1.bf16.msra.mxu0 %v1010
      %1217 = vmatprep.subr.bf16.mxu0 0
      %1218 = vmatpush1.bf16.msra.mxu0 %v1009
      %1219 = vmatprep.subr.bf16.mxu0 0
      %1220 = vmatpush1.bf16.msra.mxu0 %v1008
      %1221 = vmatprep.subr.bf16.mxu0 0
      %1222 = vmatpush1.bf16.msra.mxu0 %v1007
      %1223 = vmatprep.subr.bf16.mxu0 0
      %1224 = vmatpush2.bf16.msra.mxu0 %v1022
      %1225 = vmatprep.subr.bf16.mxu0 0
      %1226 = vmatpush2.bf16.msra.mxu0 %v1021
      %1227 = vmatprep.subr.bf16.mxu0 0
      %1228 = vmatpush2.bf16.msra.mxu0 %v1020
      %1229 = vmatprep.subr.bf16.mxu0 0
      %1230 = vmatpush2.bf16.msra.mxu0 %v1019
      %1231 = vmatprep.subr.bf16.mxu0 0
      %1232 = vmatpush2.bf16.msra.mxu0 %v1018
      %1233 = vmatprep.subr.bf16.mxu0 0
      %1234 = vmatpush2.bf16.msra.mxu0 %v1017
      %1235 = vmatprep.subr.bf16.mxu0 0
      %1236 = vmatpush2.bf16.msra.mxu0 %v1016
      %1237 = vmatprep.subr.bf16.mxu0 0
      %1238 = vmatpush2.bf16.msra.mxu0 %v1015
      %1239 = vmatprep.mubr.bf16.mxu0 %v626
      %1240 = vmatmul.mubr.bf16.gmra.mxu0 %v625
      %v1241 = vpop.f32.mrf.mxu0
      %v1242 = vadd.f32 %v1154, %v1241
      %v1243 = vpop.f32.mrf.mxu0
      %v1244 = vpop.f32.mrf.mxu0
      %v1245 = vadd.f32 %v1157, %v1244
      %v1246 = vpop.f32.mrf.mxu0
      %1247 = vmatprep.mubr.bf16.mxu0 %v634
      %1248 = vmatmul.mubr.bf16.gmra.mxu0 %v633
      %v1249 = vpop.f32.mrf.mxu0
      %v1250 = vadd.f32 %v1162, %v1249
      %v1251 = vpop.f32.mrf.mxu0
      %v1252 = vpop.f32.mrf.mxu0
      %v1253 = vadd.f32 %v1165, %v1252
      %v1254 = vpop.f32.mrf.mxu0
      %1255 = vmatprep.mubr.bf16.mxu0 %v642
      %1256 = vmatmul.mubr.bf16.gmra.mxu0 %v641
      %v1257 = vpop.f32.mrf.mxu0
      %v1258 = vadd.f32 %v1170, %v1257
      %v1259 = vpop.f32.mrf.mxu0
      %v1260 = vpop.f32.mrf.mxu0
      %v1261 = vadd.f32 %v1173, %v1260
      %v1262 = vpop.f32.mrf.mxu0
      %1263 = vmatprep.mubr.bf16.mxu0 %v650
      %1264 = vmatmul.mubr.bf16.gmra.mxu0 %v649
      %v1265 = vpop.f32.mrf.mxu0
      %v1266 = vadd.f32 %v1178, %v1265
      %v1267 = vpop.f32.mrf.mxu0
      %v1268 = vpop.f32.mrf.mxu0
      %v1269 = vadd.f32 %v1181, %v1268
      %v1270 = vpop.f32.mrf.mxu0
      %1271 = vmatprep.mubr.bf16.mxu0 %v658
      %1272 = vmatmul.mubr.bf16.gmra.mxu0 %v657
      %v1273 = vpop.f32.mrf.mxu0
      %v1274 = vadd.f32 %v1186, %v1273
      %v1275 = vpop.f32.mrf.mxu0
      %v1276 = vpop.f32.mrf.mxu0
      %v1277 = vadd.f32 %v1189, %v1276
      %v1278 = vpop.f32.mrf.mxu0
      %1279 = vmatprep.mubr.bf16.mxu0 %v666
      %1280 = vmatmul.mubr.bf16.gmra.mxu0 %v665
      %v1281 = vpop.f32.mrf.mxu0
      %v1282 = vadd.f32 %v1194, %v1281
      %v1283 = vpop.f32.mrf.mxu0
      %v1284 = vpop.f32.mrf.mxu0
      %v1285 = vadd.f32 %v1197, %v1284
      %v1286 = vpop.f32.mrf.mxu0
      %1287 = vmatprep.mubr.bf16.mxu0 %v674
      %1288 = vmatmul.mubr.bf16.gmra.mxu0 %v673
      %v1289 = vpop.f32.mrf.mxu0
      %v1290 = vadd.f32 %v1202, %v1289
      %v1291 = vpop.f32.mrf.mxu0
      %v1292 = vpop.f32.mrf.mxu0
      %v1293 = vpop.f32.mrf.mxu0
      %1294 = vdwg.mxu0
      %1295 = vmatprep.subr.bf16.mxu0 0
      %1296 = vmatpush1.bf16.msra.mxu0 %v1030
      %1297 = vmatprep.subr.bf16.mxu0 0
      %1298 = vmatpush1.bf16.msra.mxu0 %v1029
      %1299 = vmatprep.subr.bf16.mxu0 0
      %1300 = vmatpush1.bf16.msra.mxu0 %v1028
      %1301 = vmatprep.subr.bf16.mxu0 0
      %1302 = vmatpush1.bf16.msra.mxu0 %v1027
      %1303 = vmatprep.subr.bf16.mxu0 0
      %1304 = vmatpush1.bf16.msra.mxu0 %v1026
      %1305 = vmatprep.subr.bf16.mxu0 0
      %1306 = vmatpush1.bf16.msra.mxu0 %v1025
      %1307 = vmatprep.subr.bf16.mxu0 0
      %1308 = vmatpush1.bf16.msra.mxu0 %v1024
      %1309 = vmatprep.subr.bf16.mxu0 0
      %1310 = vmatpush1.bf16.msra.mxu0 %v1023
      %1311 = vmatprep.subr.bf16.mxu0 0
      %1312 = vmatpush2.bf16.msra.mxu0 %v1038
      %1313 = vmatprep.subr.bf16.mxu0 0
      %1314 = vmatpush2.bf16.msra.mxu0 %v1037
      %1315 = vmatprep.subr.bf16.mxu0 0
      %1316 = vmatpush2.bf16.msra.mxu0 %v1036
      %1317 = vmatprep.subr.bf16.mxu0 0
      %1318 = vmatpush2.bf16.msra.mxu0 %v1035
      %1319 = vmatprep.subr.bf16.mxu0 0
      %1320 = vmatpush2.bf16.msra.mxu0 %v1034
      %1321 = vmatprep.subr.bf16.mxu0 0
      %1322 = vmatpush2.bf16.msra.mxu0 %v1033
      %1323 = vmatprep.subr.bf16.mxu0 0
      %1324 = vmatpush2.bf16.msra.mxu0 %v1032
      %1325 = vmatprep.subr.bf16.mxu0 0
      %1326 = vmatpush2.bf16.msra.mxu0 %v1031
      %1327 = vmatprep.mubr.bf16.mxu0 %v628
      %1328 = vmatmul.mubr.bf16.gmra.mxu0 %v627
      %v1329 = vpop.f32.mrf.mxu0
      %v1330 = vadd.f32 %v1242, %v1329
      %v1331 = vpop.f32.mrf.mxu0
      %v1332 = vpop.f32.mrf.mxu0
      %v1333 = vadd.f32 %v1245, %v1332
      %v1334 = vpop.f32.mrf.mxu0
      %1335 = vmatprep.mubr.bf16.mxu0 %v636
      %1336 = vmatmul.mubr.bf16.gmra.mxu0 %v635
      %v1337 = vpop.f32.mrf.mxu0
      %v1338 = vadd.f32 %v1250, %v1337
      %v1339 = vpop.f32.mrf.mxu0
      %v1340 = vpop.f32.mrf.mxu0
      %v1341 = vadd.f32 %v1253, %v1340
      %v1342 = vpop.f32.mrf.mxu0
      %1343 = vmatprep.mubr.bf16.mxu0 %v644
      %1344 = vmatmul.mubr.bf16.gmra.mxu0 %v643
      %v1345 = vpop.f32.mrf.mxu0
      %v1346 = vadd.f32 %v1258, %v1345
      %v1347 = vpop.f32.mrf.mxu0
      %v1348 = vpop.f32.mrf.mxu0
      %v1349 = vadd.f32 %v1261, %v1348
      %v1350 = vpop.f32.mrf.mxu0
      %1351 = vmatprep.mubr.bf16.mxu0 %v652
      %1352 = vmatmul.mubr.bf16.gmra.mxu0 %v651
      %v1353 = vpop.f32.mrf.mxu0
      %v1354 = vadd.f32 %v1266, %v1353
      %v1355 = vpop.f32.mrf.mxu0
      %v1356 = vpop.f32.mrf.mxu0
      %v1357 = vadd.f32 %v1269, %v1356
      %v1358 = vpop.f32.mrf.mxu0
      %1359 = vmatprep.mubr.bf16.mxu0 %v660
      %1360 = vmatmul.mubr.bf16.gmra.mxu0 %v659
      %v1361 = vpop.f32.mrf.mxu0
      %v1362 = vadd.f32 %v1274, %v1361
      %v1363 = vpop.f32.mrf.mxu0
      %v1364 = vpop.f32.mrf.mxu0
      %v1365 = vadd.f32 %v1277, %v1364
      %v1366 = vpop.f32.mrf.mxu0
      %1367 = vmatprep.mubr.bf16.mxu0 %v668
      %1368 = vmatmul.mubr.bf16.gmra.mxu0 %v667
      %v1369 = vpop.f32.mrf.mxu0
      %v1370 = vadd.f32 %v1282, %v1369
      %v1371 = vpop.f32.mrf.mxu0
      %v1372 = vpop.f32.mrf.mxu0
      %v1373 = vadd.f32 %v1285, %v1372
      %v1374 = vpop.f32.mrf.mxu0
      %1375 = vmatprep.mubr.bf16.mxu0 %v676
      %1376 = vmatmul.mubr.bf16.gmra.mxu0 %v675
      %v1377 = vpop.f32.mrf.mxu0
      %v1378 = vadd.f32 %v1290, %v1377
      %v1379 = vpop.f32.mrf.mxu0
      %v1380 = vpop.f32.mrf.mxu0
      %v1381 = vpop.f32.mrf.mxu0
      %1382 = vdwg.mxu0
      %1383 = vmatprep.subr.bf16.mxu0 0
      %1384 = vmatpush1.bf16.msra.mxu0 %v1046
      %1385 = vmatprep.subr.bf16.mxu0 0
      %1386 = vmatpush1.bf16.msra.mxu0 %v1045
      %1387 = vmatprep.subr.bf16.mxu0 0
      %1388 = vmatpush1.bf16.msra.mxu0 %v1044
      %1389 = vmatprep.subr.bf16.mxu0 0
      %1390 = vmatpush1.bf16.msra.mxu0 %v1043
      %1391 = vmatprep.subr.bf16.mxu0 0
      %1392 = vmatpush1.bf16.msra.mxu0 %v1042
      %1393 = vmatprep.subr.bf16.mxu0 0
      %1394 = vmatpush1.bf16.msra.mxu0 %v1041
      %1395 = vmatprep.subr.bf16.mxu0 0
      %1396 = vmatpush1.bf16.msra.mxu0 %v1040
      %1397 = vmatprep.subr.bf16.mxu0 0
      %1398 = vmatpush1.bf16.msra.mxu0 %v1039
      %1399 = vmatprep.subr.bf16.mxu0 0
      %1400 = vmatpush2.bf16.msra.mxu0 %v1054
      %1401 = vmatprep.subr.bf16.mxu0 0
      %1402 = vmatpush2.bf16.msra.mxu0 %v1053
      %1403 = vmatprep.subr.bf16.mxu0 0
      %1404 = vmatpush2.bf16.msra.mxu0 %v1052
      %1405 = vmatprep.subr.bf16.mxu0 0
      %1406 = vmatpush2.bf16.msra.mxu0 %v1051
      %1407 = vmatprep.subr.bf16.mxu0 0
      %1408 = vmatpush2.bf16.msra.mxu0 %v1050
      %1409 = vmatprep.subr.bf16.mxu0 0
      %1410 = vmatpush2.bf16.msra.mxu0 %v1049
      %1411 = vmatprep.subr.bf16.mxu0 0
      %1412 = vmatpush2.bf16.msra.mxu0 %v1048
      %1413 = vmatprep.subr.bf16.mxu0 0
      %1414 = vmatpush2.bf16.msra.mxu0 %v1047
      %1415 = vmatprep.mubr.bf16.mxu0 %v630
      %1416 = vmatmul.mubr.bf16.gmra.mxu0 %v629
      %v1417 = vpop.f32.mrf.mxu0
      %v1418 = vadd.f32 %v1330, %v1417
      %v1419 = vpop.f32.mrf.mxu0
      %v1420 = vpop.f32.mrf.mxu0
      %v1421 = vadd.f32 %v1333, %v1420
      %v1422 = vpop.f32.mrf.mxu0
      %1423 = vmatprep.mubr.bf16.mxu0 %v638
      %1424 = vmatmul.mubr.bf16.gmra.mxu0 %v637
      %v1425 = vpop.f32.mrf.mxu0
      %v1426 = vadd.f32 %v1338, %v1425
      %v1427 = vpop.f32.mrf.mxu0
      %v1428 = vpop.f32.mrf.mxu0
      %v1429 = vadd.f32 %v1341, %v1428
      %v1430 = vpop.f32.mrf.mxu0
      %1431 = vmatprep.mubr.bf16.mxu0 %v646
      %1432 = vmatmul.mubr.bf16.gmra.mxu0 %v645
      %v1433 = vpop.f32.mrf.mxu0
      %v1434 = vadd.f32 %v1346, %v1433
      %v1435 = vpop.f32.mrf.mxu0
      %v1436 = vpop.f32.mrf.mxu0
      %v1437 = vadd.f32 %v1349, %v1436
      %v1438 = vpop.f32.mrf.mxu0
      %1439 = vmatprep.mubr.bf16.mxu0 %v654
      %1440 = vmatmul.mubr.bf16.gmra.mxu0 %v653
      %v1441 = vpop.f32.mrf.mxu0
      %v1442 = vadd.f32 %v1354, %v1441
      %v1443 = vpop.f32.mrf.mxu0
      %v1444 = vpop.f32.mrf.mxu0
      %v1445 = vadd.f32 %v1357, %v1444
      %v1446 = vpop.f32.mrf.mxu0
      %1447 = vmatprep.mubr.bf16.mxu0 %v662
      %1448 = vmatmul.mubr.bf16.gmra.mxu0 %v661
      %v1449 = vpop.f32.mrf.mxu0
      %v1450 = vadd.f32 %v1362, %v1449
      %v1451 = vpop.f32.mrf.mxu0
      %v1452 = vpop.f32.mrf.mxu0
      %v1453 = vadd.f32 %v1365, %v1452
      %v1454 = vpop.f32.mrf.mxu0
      %1455 = vmatprep.mubr.bf16.mxu0 %v670
      %1456 = vmatmul.mubr.bf16.gmra.mxu0 %v669
      %v1457 = vpop.f32.mrf.mxu0
      %v1458 = vadd.f32 %v1370, %v1457
      %v1459 = vpop.f32.mrf.mxu0
      %v1460 = vpop.f32.mrf.mxu0
      %v1461 = vadd.f32 %v1373, %v1460
      %v1462 = vpop.f32.mrf.mxu0
      %1463 = vmatprep.mubr.bf16.mxu0 %v678
      %1464 = vmatmul.mubr.bf16.gmra.mxu0 %v677
      %v1465 = vpop.f32.mrf.mxu0
      %v1466 = vadd.f32 %v1378, %v1465
      %v1467 = vpop.f32.mrf.mxu0
      %v1468 = vpop.f32.mrf.mxu0
      %v1469 = vpop.f32.mrf.mxu0
      %1470 = vdwg.mxu0
      %v1471 = vmax.f32 %v1418, 0.0
      %v1472 = vmax.f32 %v1421, 0.0
      %v1473 = vmax.f32 %v1426, 0.0
      %v1474 = vmax.f32 %v1429, 0.0
      %v1475 = vmax.f32 %v1434, 0.0
      %v1476 = vmax.f32 %v1437, 0.0
      %v1477 = vmax.f32 %v1442, 0.0
      %v1478 = vmax.f32 %v1445, 0.0
      %v1479 = vmax.f32 %v1450, 0.0
      %v1480 = vmax.f32 %v1453, 0.0
      %v1481 = vmax.f32 %v1458, 0.0
      %v1482 = vmax.f32 %v1461, 0.0
      %v1483 = vmax.f32 %v1466, 0.0
      %v1484 = vpack.c.bf16 %v1472, %v1471
      %v1485 = vpack.c.bf16 %v1474, %v1473
      %v1486 = vpack.c.bf16 %v1476, %v1475
      %v1487 = vpack.c.bf16 %v1478, %v1477
      %v1488 = vpack.c.bf16 %v1480, %v1479
      %v1489 = vpack.c.bf16 %v1482, %v1481
      %v1490 = vld [vmem:[%s3] sm:$0xf]
      %v1491 = vld [vmem:[%s3 + $0x4] sm:$0xf]
      %v1492 = vld [vmem:[%s3 + $0x8] sm:$0xf]
      %v1493 = vld [vmem:[%s3 + $0xc] sm:$0xf]
      %v1494 = vld [vmem:[%s3 + $0x10] sm:$0xf]
      %v1495 = vld [vmem:[%s3 + $0x14] sm:$0xf]
      %v1496 = vld [vmem:[%s3 + $0x18] sm:$0xf]
      %v1497 = vld [vmem:[%s3 + $0x1c] sm:$0xf]
      %v1498 = vld [vmem:[%s3 + $0x20] sm:$0xf]
      %v1499 = vld [vmem:[%s3 + $0x24] sm:$0xf]
      %v1500 = vld [vmem:[%s3 + $0x28] sm:$0xf]
      %v1501 = vld [vmem:[%s3 + $0x2c] sm:$0xf]
      %v1502 = vld [vmem:[%s3 + $0x30] sm:$0xf]
      %v1503 = vld [vmem:[%s3 + $0x34] sm:$0xf]
      %v1504 = vld [vmem:[%s3 + $0x38] sm:$0xf]
      %v1505 = vld [vmem:[%s3 + $0x3c] sm:$0xf]
      %s1506 = scalar_lea.vmem %s3, 64
      %v1507 = vld [vmem:[%s1506] sm:$0xf]
      %v1508 = vld [vmem:[%s1506 + $0x4] sm:$0xf]
      %v1509 = vld [vmem:[%s1506 + $0x8] sm:$0xf]
      %v1510 = vld [vmem:[%s1506 + $0xc] sm:$0xf]
      %v1511 = vld [vmem:[%s1506 + $0x10] sm:$0xf]
      %v1512 = vld [vmem:[%s1506 + $0x14] sm:$0xf]
      %v1513 = vld [vmem:[%s1506 + $0x18] sm:$0xf]
      %v1514 = vld [vmem:[%s1506 + $0x1c] sm:$0xf]
      %v1515 = vld [vmem:[%s1506 + $0x20] sm:$0xf]
      %v1516 = vld [vmem:[%s1506 + $0x24] sm:$0xf]
      %v1517 = vld [vmem:[%s1506 + $0x28] sm:$0xf]
      %v1518 = vld [vmem:[%s1506 + $0x2c] sm:$0xf]
      %v1519 = vld [vmem:[%s1506 + $0x30] sm:$0xf]
      %v1520 = vld [vmem:[%s1506 + $0x34] sm:$0xf]
      %v1521 = vld [vmem:[%s1506 + $0x38] sm:$0xf]
      %v1522 = vld [vmem:[%s1506 + $0x3c] sm:$0xf]
      %vm1523 = vsmask.f32 7424
      %v1525 = vshrl.u32 %v1484, 16
      %v1527 = vshll.u32 %v1484, 16
      %v1529 = vrot.slane %v1527, 1
      %v1530 = vor.u32 %v1525, %v1529
      %v1532 = vshll.u32 %v1485, 16
      %v1534 = vrot.slane %v1532, 1
      %v1535 = vsel %vm1523, %v1530, %v1534
      %v1536 = vshrl.u32 %v1485, 16
      %v1538 = vor.u32 %v1536, %v1534
      %v1540 = vshll.u32 %v1486, 16
      %v1542 = vrot.slane %v1540, 1
      %v1543 = vsel %vm1523, %v1538, %v1542
      %v1544 = vshrl.u32 %v1486, 16
      %v1546 = vor.u32 %v1544, %v1542
      %v1548 = vshll.u32 %v1487, 16
      %v1550 = vrot.slane %v1548, 1
      %v1551 = vsel %vm1523, %v1546, %v1550
      %v1552 = vshrl.u32 %v1487, 16
      %v1554 = vor.u32 %v1552, %v1550
      %v1556 = vshll.u32 %v1488, 16
      %v1558 = vrot.slane %v1556, 1
      %v1559 = vsel %vm1523, %v1554, %v1558
      %v1560 = vshrl.u32 %v1488, 16
      %v1562 = vor.u32 %v1560, %v1558
      %v1564 = vshll.u32 %v1489, 16
      %v1566 = vrot.slane %v1564, 1
      %v1567 = vsel %vm1523, %v1562, %v1566
      %v1568 = vshrl.u32 %v1489, 16
      %v1570 = vor.u32 %v1568, %v1566
      %v1593 = vunpack.c.l.b16 %v1507
      %v1594 = vunpack.c.l.b16 %v1508
      %v1595 = vunpack.c.l.b16 %v1509
      %v1596 = vunpack.c.l.b16 %v1510
      %v1597 = vunpack.c.l.b16 %v1511
      %v1598 = vunpack.c.l.b16 %v1512
      %v1599 = vunpack.c.l.b16 %v1513
      %v1600 = vunpack.c.l.b16 %v1514
      %v1601 = vunpack.c.l.b16 %v1515
      %v1602 = vunpack.c.l.b16 %v1516
      %v1603 = vunpack.c.l.b16 %v1517
      %v1604 = vunpack.c.l.b16 %v1518
      %v1605 = vunpack.c.l.b16 %v1519
      %v1606 = vunpack.c.l.b16 %v1520
      %v1607 = vunpack.c.l.b16 %v1521
      %v1608 = vunpack.c.l.b16 %v1522
      %v1609 = vpack.c.b16 %v1594, %v1593
      %v1610 = vpack.c.b16 %v1596, %v1595
      %v1611 = vpack.c.b16 %v1598, %v1597
      %v1612 = vpack.c.b16 %v1600, %v1599
      %v1613 = vpack.c.b16 %v1602, %v1601
      %v1614 = vpack.c.b16 %v1604, %v1603
      %v1615 = vpack.c.b16 %v1606, %v1605
      %v1616 = vpack.c.b16 %v1608, %v1607
      %1625 = vmatprep.subr.bf16.mxu0 0
      %1626 = vmatpush1.bf16.msra.mxu0 %v1616
      %1627 = vmatprep.subr.bf16.mxu0 0
      %1628 = vmatpush1.bf16.msra.mxu0 %v1615
      %1629 = vmatprep.subr.bf16.mxu0 0
      %1630 = vmatpush1.bf16.msra.mxu0 %v1614
      %1631 = vmatprep.subr.bf16.mxu0 0
      %1632 = vmatpush1.bf16.msra.mxu0 %v1613
      %1633 = vmatprep.subr.bf16.mxu0 0
      %1634 = vmatpush1.bf16.msra.mxu0 %v1612
      %1635 = vmatprep.subr.bf16.mxu0 0
      %1636 = vmatpush1.bf16.msra.mxu0 %v1611
      %1637 = vmatprep.subr.bf16.mxu0 0
      %1638 = vmatpush1.bf16.msra.mxu0 %v1610
      %1639 = vmatprep.subr.bf16.mxu0 0
      %1640 = vmatpush1.bf16.msra.mxu0 %v1609
      %1641 = vmatprep.subr.bf16.mxu0 0
      %1642 = vmatpush2.bf16.msra.mxu0 0
      %1643 = vmatprep.subr.bf16.mxu0 0
      %1644 = vmatpush2.bf16.msra.mxu0 0
      %1645 = vmatprep.subr.bf16.mxu0 0
      %1646 = vmatpush2.bf16.msra.mxu0 0
      %1647 = vmatprep.subr.bf16.mxu0 0
      %1648 = vmatpush2.bf16.msra.mxu0 0
      %1649 = vmatprep.subr.bf16.mxu0 0
      %1650 = vmatpush2.bf16.msra.mxu0 0
      %1651 = vmatprep.subr.bf16.mxu0 0
      %1652 = vmatpush2.bf16.msra.mxu0 0
      %1653 = vmatprep.subr.bf16.mxu0 0
      %1654 = vmatpush2.bf16.msra.mxu0 0
      %1655 = vmatprep.subr.bf16.mxu0 0
      %1656 = vmatpush2.bf16.msra.mxu0 0
      %1657 = vmatprep.mubr.bf16.mxu0 0
      %1658 = vmatmul.mubr.bf16.gmra.mxu0 %v1535
      %v1659 = vpop.f32.mrf.mxu0
      %v1660 = vadd.f32 0.0, %v1659
      %v1661 = vpop.f32.mrf.mxu0
      %v1662 = vpop.f32.mrf.mxu0
      %v1663 = vadd.f32 0.0, %v1662
      %v1664 = vpop.f32.mrf.mxu0
      %1665 = vmatprep.mubr.bf16.mxu0 0
      %1666 = vmatmul.mubr.bf16.gmra.mxu0 %v1543
      %v1667 = vpop.f32.mrf.mxu0
      %v1668 = vadd.f32 0.0, %v1667
      %v1669 = vpop.f32.mrf.mxu0
      %v1670 = vpop.f32.mrf.mxu0
      %v1671 = vadd.f32 0.0, %v1670
      %v1672 = vpop.f32.mrf.mxu0
      %1673 = vmatprep.mubr.bf16.mxu0 0
      %1674 = vmatmul.mubr.bf16.gmra.mxu0 %v1551
      %v1675 = vpop.f32.mrf.mxu0
      %v1676 = vadd.f32 0.0, %v1675
      %v1677 = vpop.f32.mrf.mxu0
      %v1678 = vpop.f32.mrf.mxu0
      %v1679 = vadd.f32 0.0, %v1678
      %v1680 = vpop.f32.mrf.mxu0
      %1681 = vmatprep.mubr.bf16.mxu0 0
      %1682 = vmatmul.mubr.bf16.gmra.mxu0 %v1559
      %v1683 = vpop.f32.mrf.mxu0
      %v1684 = vadd.f32 0.0, %v1683
      %v1685 = vpop.f32.mrf.mxu0
      %v1686 = vpop.f32.mrf.mxu0
      %v1687 = vadd.f32 0.0, %v1686
      %v1688 = vpop.f32.mrf.mxu0
      %1689 = vmatprep.mubr.bf16.mxu0 0
      %1690 = vmatmul.mubr.bf16.gmra.mxu0 %v1567
      %v1691 = vpop.f32.mrf.mxu0
      %v1692 = vadd.f32 0.0, %v1691
      %v1693 = vpop.f32.mrf.mxu0
      %v1694 = vpop.f32.mrf.mxu0
      %v1695 = vadd.f32 0.0, %v1694
      %v1696 = vpop.f32.mrf.mxu0
      %1697 = vmatprep.mubr.bf16.mxu0 0
      %1698 = vmatmul.mubr.bf16.gmra.mxu0 %v1570
      %v1699 = vpop.f32.mrf.mxu0
      %v1700 = vadd.f32 0.0, %v1699
      %v1701 = vpop.f32.mrf.mxu0
      %v1702 = vpop.f32.mrf.mxu0
      %v1703 = vadd.f32 0.0, %v1702
      %v1704 = vpop.f32.mrf.mxu0
      %1705 = vdwg.mxu0
      %v1722 = vunpack.c.l.b16 %v1490
      %v1723 = vunpack.c.l.b16 %v1491
      %v1724 = vunpack.c.l.b16 %v1492
      %v1725 = vunpack.c.l.b16 %v1493
      %v1726 = vunpack.c.l.b16 %v1494
      %v1727 = vunpack.c.l.b16 %v1495
      %v1728 = vunpack.c.l.b16 %v1496
      %v1729 = vunpack.c.l.b16 %v1497
      %v1730 = vunpack.c.l.b16 %v1498
      %v1731 = vunpack.c.l.b16 %v1499
      %v1732 = vunpack.c.l.b16 %v1500
      %v1733 = vunpack.c.l.b16 %v1501
      %v1734 = vunpack.c.l.b16 %v1502
      %v1735 = vunpack.c.l.b16 %v1503
      %v1736 = vunpack.c.l.b16 %v1504
      %v1737 = vunpack.c.l.b16 %v1505
      %v1738 = vpack.c.b16 %v1723, %v1722
      %v1739 = vpack.c.b16 %v1725, %v1724
      %v1740 = vpack.c.b16 %v1727, %v1726
      %v1741 = vpack.c.b16 %v1729, %v1728
      %v1742 = vpack.c.b16 %v1731, %v1730
      %v1743 = vpack.c.b16 %v1733, %v1732
      %v1744 = vpack.c.b16 %v1735, %v1734
      %v1745 = vpack.c.b16 %v1737, %v1736
      %1754 = vmatprep.subr.bf16.mxu0 0
      %1755 = vmatpush1.bf16.msra.mxu0 %v1745
      %1756 = vmatprep.subr.bf16.mxu0 0
      %1757 = vmatpush1.bf16.msra.mxu0 %v1744
      %1758 = vmatprep.subr.bf16.mxu0 0
      %1759 = vmatpush1.bf16.msra.mxu0 %v1743
      %1760 = vmatprep.subr.bf16.mxu0 0
      %1761 = vmatpush1.bf16.msra.mxu0 %v1742
      %1762 = vmatprep.subr.bf16.mxu0 0
      %1763 = vmatpush1.bf16.msra.mxu0 %v1741
      %1764 = vmatprep.subr.bf16.mxu0 0
      %1765 = vmatpush1.bf16.msra.mxu0 %v1740
      %1766 = vmatprep.subr.bf16.mxu0 0
      %1767 = vmatpush1.bf16.msra.mxu0 %v1739
      %1768 = vmatprep.subr.bf16.mxu0 0
      %1769 = vmatpush1.bf16.msra.mxu0 %v1738
      %1770 = vmatprep.subr.bf16.mxu0 0
      %1771 = vmatpush2.bf16.msra.mxu0 0
      %1772 = vmatprep.subr.bf16.mxu0 0
      %1773 = vmatpush2.bf16.msra.mxu0 0
      %1774 = vmatprep.subr.bf16.mxu0 0
      %1775 = vmatpush2.bf16.msra.mxu0 0
      %1776 = vmatprep.subr.bf16.mxu0 0
      %1777 = vmatpush2.bf16.msra.mxu0 0
      %1778 = vmatprep.subr.bf16.mxu0 0
      %1779 = vmatpush2.bf16.msra.mxu0 0
      %1780 = vmatprep.subr.bf16.mxu0 0
      %1781 = vmatpush2.bf16.msra.mxu0 0
      %1782 = vmatprep.subr.bf16.mxu0 0
      %1783 = vmatpush2.bf16.msra.mxu0 0
      %1784 = vmatprep.subr.bf16.mxu0 0
      %1785 = vmatpush2.bf16.msra.mxu0 0
      %1786 = vmatprep.mubr.bf16.mxu0 0
      %1787 = vmatmul.mubr.bf16.gmra.mxu0 %v1484
      %v1788 = vpop.f32.mrf.mxu0
      %v1789 = vadd.f32 %v1660, %v1788
      %v1790 = vpop.f32.mrf.mxu0
      %v1791 = vpop.f32.mrf.mxu0
      %v1792 = vadd.f32 %v1663, %v1791
      %v1793 = vpop.f32.mrf.mxu0
      %1794 = vmatprep.mubr.bf16.mxu0 0
      %1795 = vmatmul.mubr.bf16.gmra.mxu0 %v1485
      %v1796 = vpop.f32.mrf.mxu0
      %v1797 = vadd.f32 %v1668, %v1796
      %v1798 = vpop.f32.mrf.mxu0
      %v1799 = vpop.f32.mrf.mxu0
      %v1800 = vadd.f32 %v1671, %v1799
      %v1801 = vpop.f32.mrf.mxu0
      %1802 = vmatprep.mubr.bf16.mxu0 0
      %1803 = vmatmul.mubr.bf16.gmra.mxu0 %v1486
      %v1804 = vpop.f32.mrf.mxu0
      %v1805 = vadd.f32 %v1676, %v1804
      %v1806 = vpop.f32.mrf.mxu0
      %v1807 = vpop.f32.mrf.mxu0
      %v1808 = vadd.f32 %v1679, %v1807
      %v1809 = vpop.f32.mrf.mxu0
      %1810 = vmatprep.mubr.bf16.mxu0 0
      %1811 = vmatmul.mubr.bf16.gmra.mxu0 %v1487
      %v1812 = vpop.f32.mrf.mxu0
      %v1813 = vadd.f32 %v1684, %v1812
      %v1814 = vpop.f32.mrf.mxu0
      %v1815 = vpop.f32.mrf.mxu0
      %v1816 = vadd.f32 %v1687, %v1815
      %v1817 = vpop.f32.mrf.mxu0
      %1818 = vmatprep.mubr.bf16.mxu0 0
      %1819 = vmatmul.mubr.bf16.gmra.mxu0 %v1488
      %v1820 = vpop.f32.mrf.mxu0
      %v1821 = vadd.f32 %v1692, %v1820
      %v1822 = vpop.f32.mrf.mxu0
      %v1823 = vpop.f32.mrf.mxu0
      %v1824 = vadd.f32 %v1695, %v1823
      %v1825 = vpop.f32.mrf.mxu0
      %1826 = vmatprep.mubr.bf16.mxu0 0
      %1827 = vmatmul.mubr.bf16.gmra.mxu0 %v1489
      %v1828 = vpop.f32.mrf.mxu0
      %v1829 = vadd.f32 %v1700, %v1828
      %v1830 = vpop.f32.mrf.mxu0
      %v1831 = vpop.f32.mrf.mxu0
      %v1832 = vadd.f32 %v1703, %v1831
      %v1833 = vpop.f32.mrf.mxu0
      %1834 = vdwg.mxu0
      %v1835 = vpack.c.bf16 %v1473, %v1472
      %v1836 = vpack.c.bf16 %v1475, %v1474
      %v1837 = vpack.c.bf16 %v1477, %v1476
      %v1838 = vpack.c.bf16 %v1479, %v1478
      %v1839 = vpack.c.bf16 %v1481, %v1480
      %v1840 = vpack.c.bf16 %v1483, %v1482
      %s1841 = scalar_lea.vmem %s3, 128
      %v1842 = vld [vmem:[%s1841] sm:$0xf]
      %v1843 = vld [vmem:[%s1841 + $0x4] sm:$0xf]
      %v1844 = vld [vmem:[%s1841 + $0x8] sm:$0xf]
      %v1845 = vld [vmem:[%s1841 + $0xc] sm:$0xf]
      %v1846 = vld [vmem:[%s1841 + $0x10] sm:$0xf]
      %v1847 = vld [vmem:[%s1841 + $0x14] sm:$0xf]
      %v1848 = vld [vmem:[%s1841 + $0x18] sm:$0xf]
      %v1849 = vld [vmem:[%s1841 + $0x1c] sm:$0xf]
      %v1850 = vld [vmem:[%s1841 + $0x20] sm:$0xf]
      %v1851 = vld [vmem:[%s1841 + $0x24] sm:$0xf]
      %v1852 = vld [vmem:[%s1841 + $0x28] sm:$0xf]
      %v1853 = vld [vmem:[%s1841 + $0x2c] sm:$0xf]
      %v1854 = vld [vmem:[%s1841 + $0x30] sm:$0xf]
      %v1855 = vld [vmem:[%s1841 + $0x34] sm:$0xf]
      %v1856 = vld [vmem:[%s1841 + $0x38] sm:$0xf]
      %v1857 = vld [vmem:[%s1841 + $0x3c] sm:$0xf]
      %vm1864 = vcmask 1046528
      %v1865 = vrot.slane %v1835, 1
      %v1866 = vrot.slane %v1836, 1
      %v1867 = vsel %vm1864, %v1865, %v1866
      %v1868 = vrot.slane %v1837, 1
      %v1869 = vsel %vm1864, %v1866, %v1868
      %v1870 = vrot.slane %v1838, 1
      %v1871 = vsel %vm1864, %v1868, %v1870
      %v1872 = vrot.slane %v1839, 1
      %v1873 = vsel %vm1864, %v1870, %v1872
      %v1874 = vrot.slane %v1840, 1
      %v1875 = vsel %vm1864, %v1872, %v1874
      %v1898 = vunpack.c.l.b16 %v1842
      %v1899 = vunpack.c.l.b16 %v1843
      %v1900 = vunpack.c.l.b16 %v1844
      %v1901 = vunpack.c.l.b16 %v1845
      %v1902 = vunpack.c.l.b16 %v1846
      %v1903 = vunpack.c.l.b16 %v1847
      %v1904 = vunpack.c.l.b16 %v1848
      %v1905 = vunpack.c.l.b16 %v1849
      %v1906 = vunpack.c.l.b16 %v1850
      %v1907 = vunpack.c.l.b16 %v1851
      %v1908 = vunpack.c.l.b16 %v1852
      %v1909 = vunpack.c.l.b16 %v1853
      %v1910 = vunpack.c.l.b16 %v1854
      %v1911 = vunpack.c.l.b16 %v1855
      %v1912 = vunpack.c.l.b16 %v1856
      %v1913 = vunpack.c.l.b16 %v1857
      %v1914 = vpack.c.b16 %v1899, %v1898
      %v1915 = vpack.c.b16 %v1901, %v1900
      %v1916 = vpack.c.b16 %v1903, %v1902
      %v1917 = vpack.c.b16 %v1905, %v1904
      %v1918 = vpack.c.b16 %v1907, %v1906
      %v1919 = vpack.c.b16 %v1909, %v1908
      %v1920 = vpack.c.b16 %v1911, %v1910
      %v1921 = vpack.c.b16 %v1913, %v1912
      %1930 = vmatprep.subr.bf16.mxu0 0
      %1931 = vmatpush1.bf16.msra.mxu0 %v1921
      %1932 = vmatprep.subr.bf16.mxu0 0
      %1933 = vmatpush1.bf16.msra.mxu0 %v1920
      %1934 = vmatprep.subr.bf16.mxu0 0
      %1935 = vmatpush1.bf16.msra.mxu0 %v1919
      %1936 = vmatprep.subr.bf16.mxu0 0
      %1937 = vmatpush1.bf16.msra.mxu0 %v1918
      %1938 = vmatprep.subr.bf16.mxu0 0
      %1939 = vmatpush1.bf16.msra.mxu0 %v1917
      %1940 = vmatprep.subr.bf16.mxu0 0
      %1941 = vmatpush1.bf16.msra.mxu0 %v1916
      %1942 = vmatprep.subr.bf16.mxu0 0
      %1943 = vmatpush1.bf16.msra.mxu0 %v1915
      %1944 = vmatprep.subr.bf16.mxu0 0
      %1945 = vmatpush1.bf16.msra.mxu0 %v1914
      %1946 = vmatprep.subr.bf16.mxu0 0
      %1947 = vmatpush2.bf16.msra.mxu0 0
      %1948 = vmatprep.subr.bf16.mxu0 0
      %1949 = vmatpush2.bf16.msra.mxu0 0
      %1950 = vmatprep.subr.bf16.mxu0 0
      %1951 = vmatpush2.bf16.msra.mxu0 0
      %1952 = vmatprep.subr.bf16.mxu0 0
      %1953 = vmatpush2.bf16.msra.mxu0 0
      %1954 = vmatprep.subr.bf16.mxu0 0
      %1955 = vmatpush2.bf16.msra.mxu0 0
      %1956 = vmatprep.subr.bf16.mxu0 0
      %1957 = vmatpush2.bf16.msra.mxu0 0
      %1958 = vmatprep.subr.bf16.mxu0 0
      %1959 = vmatpush2.bf16.msra.mxu0 0
      %1960 = vmatprep.subr.bf16.mxu0 0
      %1961 = vmatpush2.bf16.msra.mxu0 0
      %1962 = vmatprep.mubr.bf16.mxu0 0
      %1963 = vmatmul.mubr.bf16.gmra.mxu0 %v1867
      %v1964 = vpop.f32.mrf.mxu0
      %v1965 = vadd.f32 0.0, %v1964
      %v1966 = vpop.f32.mrf.mxu0
      %v1967 = vpop.f32.mrf.mxu0
      %v1968 = vadd.f32 0.0, %v1967
      %v1969 = vpop.f32.mrf.mxu0
      %1970 = vmatprep.mubr.bf16.mxu0 0
      %1971 = vmatmul.mubr.bf16.gmra.mxu0 %v1869
      %v1972 = vpop.f32.mrf.mxu0
      %v1973 = vadd.f32 0.0, %v1972
      %v1974 = vpop.f32.mrf.mxu0
      %v1975 = vpop.f32.mrf.mxu0
      %v1976 = vadd.f32 0.0, %v1975
      %v1977 = vpop.f32.mrf.mxu0
      %1978 = vmatprep.mubr.bf16.mxu0 0
      %1979 = vmatmul.mubr.bf16.gmra.mxu0 %v1871
      %v1980 = vpop.f32.mrf.mxu0
      %v1981 = vadd.f32 0.0, %v1980
      %v1982 = vpop.f32.mrf.mxu0
      %v1983 = vpop.f32.mrf.mxu0
      %v1984 = vadd.f32 0.0, %v1983
      %v1985 = vpop.f32.mrf.mxu0
      %1986 = vmatprep.mubr.bf16.mxu0 0
      %1987 = vmatmul.mubr.bf16.gmra.mxu0 %v1873
      %v1988 = vpop.f32.mrf.mxu0
      %v1989 = vadd.f32 0.0, %v1988
      %v1990 = vpop.f32.mrf.mxu0
      %v1991 = vpop.f32.mrf.mxu0
      %v1992 = vadd.f32 0.0, %v1991
      %v1993 = vpop.f32.mrf.mxu0
      %1994 = vmatprep.mubr.bf16.mxu0 0
      %1995 = vmatmul.mubr.bf16.gmra.mxu0 %v1875
      %v1996 = vpop.f32.mrf.mxu0
      %v1997 = vadd.f32 0.0, %v1996
      %v1998 = vpop.f32.mrf.mxu0
      %v1999 = vpop.f32.mrf.mxu0
      %v2000 = vadd.f32 0.0, %v1999
      %v2001 = vpop.f32.mrf.mxu0
      %2002 = vmatprep.mubr.bf16.mxu0 0
      %2003 = vmatmul.mubr.bf16.gmra.mxu0 %v1874
      %v2004 = vpop.f32.mrf.mxu0
      %v2005 = vadd.f32 0.0, %v2004
      %v2006 = vpop.f32.mrf.mxu0
      %v2007 = vpop.f32.mrf.mxu0
      %v2008 = vadd.f32 0.0, %v2007
      %v2009 = vpop.f32.mrf.mxu0
      %2010 = vdwg.mxu0
      %v2011 = vadd.f32 %v1789, %v1965
      %v2012 = vadd.f32 %v1792, %v1968
      %v2013 = vadd.f32 %v1797, %v1973
      %v2014 = vadd.f32 %v1800, %v1976
      %v2015 = vadd.f32 %v1805, %v1981
      %v2016 = vadd.f32 %v1808, %v1984
      %v2017 = vadd.f32 %v1813, %v1989
      %v2018 = vadd.f32 %v1816, %v1992
      %v2019 = vadd.f32 %v1821, %v1997
      %v2020 = vadd.f32 %v1824, %v2000
      %v2021 = vadd.f32 %v1829, %v2005
      %v2022 = vadd.f32 %v1832, %v2008
      %s2023 = scalar_lea.vmem %s3, 192
      %v2024 = vld [vmem:[%s2023] sm:$0xf]
      %v2025 = vld [vmem:[%s2023 + $0x4] sm:$0xf]
      %v2026 = vld [vmem:[%s2023 + $0x8] sm:$0xf]
      %v2027 = vld [vmem:[%s2023 + $0xc] sm:$0xf]
      %v2028 = vld [vmem:[%s2023 + $0x10] sm:$0xf]
      %v2029 = vld [vmem:[%s2023 + $0x14] sm:$0xf]
      %v2030 = vld [vmem:[%s2023 + $0x18] sm:$0xf]
      %v2031 = vld [vmem:[%s2023 + $0x1c] sm:$0xf]
      %v2032 = vld [vmem:[%s2023 + $0x20] sm:$0xf]
      %v2033 = vld [vmem:[%s2023 + $0x24] sm:$0xf]
      %v2034 = vld [vmem:[%s2023 + $0x28] sm:$0xf]
      %v2035 = vld [vmem:[%s2023 + $0x2c] sm:$0xf]
      %v2036 = vld [vmem:[%s2023 + $0x30] sm:$0xf]
      %v2037 = vld [vmem:[%s2023 + $0x34] sm:$0xf]
      %v2038 = vld [vmem:[%s2023 + $0x38] sm:$0xf]
      %v2039 = vld [vmem:[%s2023 + $0x3c] sm:$0xf]
      %vm2040 = vsmask.f32 6400
      %v2042 = vshrl.u32 %v1835, 16
      %v2044 = vrot.slane %v2042, 1
      %v2045 = vshll.u32 %v1835, 16
      %v2047 = vrot.slane %v2045, 2
      %v2048 = vor.u32 %v2044, %v2047
      %v2050 = vshrl.u32 %v1836, 16
      %v2052 = vrot.slane %v2050, 1
      %v2053 = vshll.u32 %v1836, 16
      %v2055 = vrot.slane %v2053, 2
      %v2056 = vor.u32 %v2052, %v2055
      %v2057 = vsel %vm2040, %v2048, %v2056
      %v2059 = vshrl.u32 %v1837, 16
      %v2061 = vrot.slane %v2059, 1
      %v2062 = vshll.u32 %v1837, 16
      %v2064 = vrot.slane %v2062, 2
      %v2065 = vor.u32 %v2061, %v2064
      %v2066 = vsel %vm2040, %v2056, %v2065
      %v2068 = vshrl.u32 %v1838, 16
      %v2070 = vrot.slane %v2068, 1
      %v2071 = vshll.u32 %v1838, 16
      %v2073 = vrot.slane %v2071, 2
      %v2074 = vor.u32 %v2070, %v2073
      %v2075 = vsel %vm2040, %v2065, %v2074
      %v2077 = vshrl.u32 %v1839, 16
      %v2079 = vrot.slane %v2077, 1
      %v2080 = vshll.u32 %v1839, 16
      %v2082 = vrot.slane %v2080, 2
      %v2083 = vor.u32 %v2079, %v2082
      %v2084 = vsel %vm2040, %v2074, %v2083
      %v2086 = vshrl.u32 %v1840, 16
      %v2088 = vrot.slane %v2086, 1
      %v2089 = vshll.u32 %v1840, 16
      %v2091 = vrot.slane %v2089, 2
      %v2092 = vor.u32 %v2088, %v2091
      %v2093 = vsel %vm2040, %v2083, %v2092
      %v2116 = vunpack.c.l.b16 %v2024
      %v2117 = vunpack.c.l.b16 %v2025
      %v2118 = vunpack.c.l.b16 %v2026
      %v2119 = vunpack.c.l.b16 %v2027
      %v2120 = vunpack.c.l.b16 %v2028
      %v2121 = vunpack.c.l.b16 %v2029
      %v2122 = vunpack.c.l.b16 %v2030
      %v2123 = vunpack.c.l.b16 %v2031
      %v2124 = vunpack.c.l.b16 %v2032
      %v2125 = vunpack.c.l.b16 %v2033
      %v2126 = vunpack.c.l.b16 %v2034
      %v2127 = vunpack.c.l.b16 %v2035
      %v2128 = vunpack.c.l.b16 %v2036
      %v2129 = vunpack.c.l.b16 %v2037
      %v2130 = vunpack.c.l.b16 %v2038
      %v2131 = vunpack.c.l.b16 %v2039
      %v2132 = vpack.c.b16 %v2117, %v2116
      %v2133 = vpack.c.b16 %v2119, %v2118
      %v2134 = vpack.c.b16 %v2121, %v2120
      %v2135 = vpack.c.b16 %v2123, %v2122
      %v2136 = vpack.c.b16 %v2125, %v2124
      %v2137 = vpack.c.b16 %v2127, %v2126
      %v2138 = vpack.c.b16 %v2129, %v2128
      %v2139 = vpack.c.b16 %v2131, %v2130
      %2148 = vmatprep.subr.bf16.mxu0 0
      %2149 = vmatpush1.bf16.msra.mxu0 %v2139
      %2150 = vmatprep.subr.bf16.mxu0 0
      %2151 = vmatpush1.bf16.msra.mxu0 %v2138
      %2152 = vmatprep.subr.bf16.mxu0 0
      %2153 = vmatpush1.bf16.msra.mxu0 %v2137
      %2154 = vmatprep.subr.bf16.mxu0 0
      %2155 = vmatpush1.bf16.msra.mxu0 %v2136
      %2156 = vmatprep.subr.bf16.mxu0 0
      %2157 = vmatpush1.bf16.msra.mxu0 %v2135
      %2158 = vmatprep.subr.bf16.mxu0 0
      %2159 = vmatpush1.bf16.msra.mxu0 %v2134
      %2160 = vmatprep.subr.bf16.mxu0 0
      %2161 = vmatpush1.bf16.msra.mxu0 %v2133
      %2162 = vmatprep.subr.bf16.mxu0 0
      %2163 = vmatpush1.bf16.msra.mxu0 %v2132
      %2164 = vmatprep.subr.bf16.mxu0 0
      %2165 = vmatpush2.bf16.msra.mxu0 0
      %2166 = vmatprep.subr.bf16.mxu0 0
      %2167 = vmatpush2.bf16.msra.mxu0 0
      %2168 = vmatprep.subr.bf16.mxu0 0
      %2169 = vmatpush2.bf16.msra.mxu0 0
      %2170 = vmatprep.subr.bf16.mxu0 0
      %2171 = vmatpush2.bf16.msra.mxu0 0
      %2172 = vmatprep.subr.bf16.mxu0 0
      %2173 = vmatpush2.bf16.msra.mxu0 0
      %2174 = vmatprep.subr.bf16.mxu0 0
      %2175 = vmatpush2.bf16.msra.mxu0 0
      %2176 = vmatprep.subr.bf16.mxu0 0
      %2177 = vmatpush2.bf16.msra.mxu0 0
      %2178 = vmatprep.subr.bf16.mxu0 0
      %2179 = vmatpush2.bf16.msra.mxu0 0
      %2180 = vmatprep.mubr.bf16.mxu0 0
      %2181 = vmatmul.mubr.bf16.gmra.mxu0 %v2057
      %v2182 = vpop.f32.mrf.mxu0
      %v2183 = vadd.f32 0.0, %v2182
      %v2184 = vpop.f32.mrf.mxu0
      %v2185 = vpop.f32.mrf.mxu0
      %v2186 = vadd.f32 0.0, %v2185
      %v2187 = vpop.f32.mrf.mxu0
      %2188 = vmatprep.mubr.bf16.mxu0 0
      %2189 = vmatmul.mubr.bf16.gmra.mxu0 %v2066
      %v2190 = vpop.f32.mrf.mxu0
      %v2191 = vadd.f32 0.0, %v2190
      %v2192 = vpop.f32.mrf.mxu0
      %v2193 = vpop.f32.mrf.mxu0
      %v2194 = vadd.f32 0.0, %v2193
      %v2195 = vpop.f32.mrf.mxu0
      %2196 = vmatprep.mubr.bf16.mxu0 0
      %2197 = vmatmul.mubr.bf16.gmra.mxu0 %v2075
      %v2198 = vpop.f32.mrf.mxu0
      %v2199 = vadd.f32 0.0, %v2198
      %v2200 = vpop.f32.mrf.mxu0
      %v2201 = vpop.f32.mrf.mxu0
      %v2202 = vadd.f32 0.0, %v2201
      %v2203 = vpop.f32.mrf.mxu0
      %2204 = vmatprep.mubr.bf16.mxu0 0
      %2205 = vmatmul.mubr.bf16.gmra.mxu0 %v2084
      %v2206 = vpop.f32.mrf.mxu0
      %v2207 = vadd.f32 0.0, %v2206
      %v2208 = vpop.f32.mrf.mxu0
      %v2209 = vpop.f32.mrf.mxu0
      %v2210 = vadd.f32 0.0, %v2209
      %v2211 = vpop.f32.mrf.mxu0
      %2212 = vmatprep.mubr.bf16.mxu0 0
      %2213 = vmatmul.mubr.bf16.gmra.mxu0 %v2093
      %v2214 = vpop.f32.mrf.mxu0
      %v2215 = vadd.f32 0.0, %v2214
      %v2216 = vpop.f32.mrf.mxu0
      %v2217 = vpop.f32.mrf.mxu0
      %v2218 = vadd.f32 0.0, %v2217
      %v2219 = vpop.f32.mrf.mxu0
      %2220 = vmatprep.mubr.bf16.mxu0 0
      %2221 = vmatmul.mubr.bf16.gmra.mxu0 %v2092
      %v2222 = vpop.f32.mrf.mxu0
      %v2223 = vadd.f32 0.0, %v2222
      %v2224 = vpop.f32.mrf.mxu0
      %v2225 = vpop.f32.mrf.mxu0
      %v2226 = vadd.f32 0.0, %v2225
      %v2227 = vpop.f32.mrf.mxu0
      %2228 = vdwg.mxu0
      %v2229 = vadd.f32 %v2011, %v2183
      %v2230 = vadd.f32 %v2012, %v2186
      %v2231 = vadd.f32 %v2013, %v2191
      %v2232 = vadd.f32 %v2014, %v2194
      %v2233 = vadd.f32 %v2015, %v2199
      %v2234 = vadd.f32 %v2016, %v2202
      %v2235 = vadd.f32 %v2017, %v2207
      %v2236 = vadd.f32 %v2018, %v2210
      %v2237 = vadd.f32 %v2019, %v2215
      %v2238 = vadd.f32 %v2020, %v2218
      %v2239 = vadd.f32 %v2021, %v2223
      %v2240 = vadd.f32 %v2022, %v2226
      %v2241 = vld [vmem:[%s4] sm:$0x1]
      %v2243 = vlaneseq
      %v2244 = vshrl.u32 %v2243, 7
      %v2245 = vsub.s32 0, %v2244
      %v2246 = vrot.slane %v2241, %v2245
      %v2248 = vadd.f32 %v2229, %v2246
      %v2249 = vadd.f32 %v2230, %v2246
      %v2250 = vadd.f32 %v2231, %v2246
      %v2251 = vadd.f32 %v2232, %v2246
      %v2252 = vadd.f32 %v2233, %v2246
      %v2253 = vadd.f32 %v2234, %v2246
      %v2254 = vadd.f32 %v2235, %v2246
      %v2255 = vadd.f32 %v2236, %v2246
      %v2256 = vadd.f32 %v2237, %v2246
      %v2257 = vadd.f32 %v2238, %v2246
      %v2258 = vadd.f32 %v2239, %v2246
      %v2259 = vadd.f32 %v2240, %v2246
      %v2260 = vmax.f32 %v2248, 0.0
      %v2261 = vmax.f32 %v2249, 0.0
      %v2262 = vmax.f32 %v2250, 0.0
      %v2263 = vmax.f32 %v2251, 0.0
      %v2264 = vmax.f32 %v2252, 0.0
      %v2265 = vmax.f32 %v2253, 0.0
      %v2266 = vmax.f32 %v2254, 0.0
      %v2267 = vmax.f32 %v2255, 0.0
      %v2268 = vmax.f32 %v2256, 0.0
      %v2269 = vmax.f32 %v2257, 0.0
      %v2270 = vmax.f32 %v2258, 0.0
      %v2271 = vmax.f32 %v2259, 0.0
      %v2272 = vpack.c.bf16 %v2261, %v2260
      %v2273 = vpack.c.bf16 %v2263, %v2262
      %v2274 = vpack.c.bf16 %v2265, %v2264
      %v2275 = vpack.c.bf16 %v2267, %v2266
      %v2276 = vpack.c.bf16 %v2268, %v2268
      %v2277 = vld [vmem:[%s5] sm:$0xf]
      %v2278 = vld [vmem:[%s5 + $0x4] sm:$0xf]
      %v2279 = vld [vmem:[%s5 + $0x8] sm:$0xf]
      %v2280 = vld [vmem:[%s5 + $0xc] sm:$0xf]
      %v2281 = vld [vmem:[%s5 + $0x10] sm:$0xf]
      %v2282 = vld [vmem:[%s5 + $0x14] sm:$0xf]
      %v2283 = vld [vmem:[%s5 + $0x18] sm:$0xf]
      %v2284 = vld [vmem:[%s5 + $0x1c] sm:$0xf]
      %s2285 = scalar_lea.vmem %s5, 32
      %v2286 = vld [vmem:[%s2285] sm:$0xf]
      %v2287 = vld [vmem:[%s2285 + $0x4] sm:$0xf]
      %v2288 = vld [vmem:[%s2285 + $0x8] sm:$0xf]
      %v2289 = vld [vmem:[%s2285 + $0xc] sm:$0xf]
      %v2290 = vld [vmem:[%s2285 + $0x10] sm:$0xf]
      %v2291 = vld [vmem:[%s2285 + $0x14] sm:$0xf]
      %v2292 = vld [vmem:[%s2285 + $0x18] sm:$0xf]
      %v2293 = vld [vmem:[%s2285 + $0x1c] sm:$0xf]
      %v2295 = vshrl.u32 %v2272, 16
      %v2297 = vshll.u32 %v2272, 16
      %v2299 = vrot.slane %v2297, 1
      %v2300 = vor.u32 %v2295, %v2299
      %v2302 = vshll.u32 %v2273, 16
      %v2304 = vrot.slane %v2302, 1
      %v2305 = vsel %vm1523, %v2300, %v2304
      %v2306 = vshrl.u32 %v2273, 16
      %v2308 = vor.u32 %v2306, %v2304
      %v2310 = vshll.u32 %v2274, 16
      %v2312 = vrot.slane %v2310, 1
      %v2313 = vsel %vm1523, %v2308, %v2312
      %v2314 = vshrl.u32 %v2274, 16
      %v2316 = vor.u32 %v2314, %v2312
      %v2318 = vshll.u32 %v2275, 16
      %v2320 = vrot.slane %v2318, 1
      %v2321 = vsel %vm1523, %v2316, %v2320
      %v2322 = vshrl.u32 %v2275, 16
      %v2324 = vor.u32 %v2322, %v2320
      %v2326 = vshll.u32 %v2276, 16
      %v2328 = vrot.slane %v2326, 1
      %v2329 = vsel %vm1523, %v2324, %v2328
      %v2330 = vshrl.u32 %v2276, 16
      %v2332 = vor.u32 %v2330, %v2328
      %v2341 = vunpack.c.l.b16 %v2286
      %v2342 = vunpack.c.l.b16 %v2287
      %v2343 = vunpack.c.l.b16 %v2288
      %v2344 = vunpack.c.l.b16 %v2289
      %v2345 = vunpack.c.l.b16 %v2290
      %v2346 = vunpack.c.l.b16 %v2291
      %v2347 = vunpack.c.l.b16 %v2292
      %v2348 = vunpack.c.l.b16 %v2293
      %v2349 = vpack.c.b16 %v2342, %v2341
      %v2350 = vpack.c.b16 %v2344, %v2343
      %v2351 = vpack.c.b16 %v2346, %v2345
      %v2352 = vpack.c.b16 %v2348, %v2347
      %vm2357 = vcmask 523264
      %v2359 = vsel %vm2357, %v2305, 0
      %v2362 = vsel %vm2357, %v2313, 0
      %v2365 = vsel %vm2357, %v2321, 0
      %v2368 = vsel %vm2357, %v2329, 0
      %v2371 = vsel %vm2357, %v2332, 0
      %2373 = vmatprep.subr.bf16.mxu0 0
      %2374 = vmatpush1.bf16.msra.mxu0 0
      %2375 = vmatprep.subr.bf16.mxu0 0
      %2376 = vmatpush1.bf16.msra.mxu0 0
      %2377 = vmatprep.subr.bf16.mxu0 0
      %2378 = vmatpush1.bf16.msra.mxu0 0
      %2379 = vmatprep.subr.bf16.mxu0 0
      %2380 = vmatpush1.bf16.msra.mxu0 0
      %2381 = vmatprep.subr.bf16.mxu0 0
      %2382 = vmatpush1.bf16.msra.mxu0 %v2352
      %2383 = vmatprep.subr.bf16.mxu0 0
      %2384 = vmatpush1.bf16.msra.mxu0 %v2351
      %2385 = vmatprep.subr.bf16.mxu0 0
      %2386 = vmatpush1.bf16.msra.mxu0 %v2350
      %2387 = vmatprep.subr.bf16.mxu0 0
      %2388 = vmatpush1.bf16.msra.mxu0 %v2349
      %2389 = vmatprep.subr.bf16.mxu0 0
      %2390 = vmatpush2.bf16.msra.mxu0 0
      %2391 = vmatprep.subr.bf16.mxu0 0
      %2392 = vmatpush2.bf16.msra.mxu0 0
      %2393 = vmatprep.subr.bf16.mxu0 0
      %2394 = vmatpush2.bf16.msra.mxu0 0
      %2395 = vmatprep.subr.bf16.mxu0 0
      %2396 = vmatpush2.bf16.msra.mxu0 0
      %2397 = vmatprep.subr.bf16.mxu0 0
      %2398 = vmatpush2.bf16.msra.mxu0 0
      %2399 = vmatprep.subr.bf16.mxu0 0
      %2400 = vmatpush2.bf16.msra.mxu0 0
      %2401 = vmatprep.subr.bf16.mxu0 0
      %2402 = vmatpush2.bf16.msra.mxu0 0
      %2403 = vmatprep.subr.bf16.mxu0 0
      %2404 = vmatpush2.bf16.msra.mxu0 0
      %2405 = vmatprep.mubr.bf16.mxu0 0
      %2406 = vmatmul.mubr.bf16.gmra.mxu0 %v2359
      %v2407 = vpop.f32.mrf.mxu0
      %v2408 = vadd.f32 0.0, %v2407
      %v2409 = vpop.f32.mrf.mxu0
      %v2410 = vpop.f32.mrf.mxu0
      %v2411 = vadd.f32 0.0, %v2410
      %v2412 = vpop.f32.mrf.mxu0
      %2413 = vmatprep.mubr.bf16.mxu0 0
      %2414 = vmatmul.mubr.bf16.gmra.mxu0 %v2362
      %v2415 = vpop.f32.mrf.mxu0
      %v2416 = vadd.f32 0.0, %v2415
      %v2417 = vpop.f32.mrf.mxu0
      %v2418 = vpop.f32.mrf.mxu0
      %v2419 = vadd.f32 0.0, %v2418
      %v2420 = vpop.f32.mrf.mxu0
      %2421 = vmatprep.mubr.bf16.mxu0 0
      %2422 = vmatmul.mubr.bf16.gmra.mxu0 %v2365
      %v2423 = vpop.f32.mrf.mxu0
      %v2424 = vadd.f32 0.0, %v2423
      %v2425 = vpop.f32.mrf.mxu0
      %v2426 = vpop.f32.mrf.mxu0
      %v2427 = vadd.f32 0.0, %v2426
      %v2428 = vpop.f32.mrf.mxu0
      %2429 = vmatprep.mubr.bf16.mxu0 0
      %2430 = vmatmul.mubr.bf16.gmra.mxu0 %v2368
      %v2431 = vpop.f32.mrf.mxu0
      %v2432 = vadd.f32 0.0, %v2431
      %v2433 = vpop.f32.mrf.mxu0
      %v2434 = vpop.f32.mrf.mxu0
      %v2435 = vadd.f32 0.0, %v2434
      %v2436 = vpop.f32.mrf.mxu0
      %2437 = vmatprep.mubr.bf16.mxu0 0
      %2438 = vmatmul.mubr.bf16.gmra.mxu0 %v2371
      %v2439 = vpop.f32.mrf.mxu0
      %v2440 = vadd.f32 0.0, %v2439
      %v2441 = vpop.f32.mrf.mxu0
      %v2442 = vpop.f32.mrf.mxu0
      %v2443 = vpop.f32.mrf.mxu0
      %2444 = vdwg.mxu0
      %v2453 = vunpack.c.l.b16 %v2277
      %v2454 = vunpack.c.l.b16 %v2278
      %v2455 = vunpack.c.l.b16 %v2279
      %v2456 = vunpack.c.l.b16 %v2280
      %v2457 = vunpack.c.l.b16 %v2281
      %v2458 = vunpack.c.l.b16 %v2282
      %v2459 = vunpack.c.l.b16 %v2283
      %v2460 = vunpack.c.l.b16 %v2284
      %v2461 = vpack.c.b16 %v2454, %v2453
      %v2462 = vpack.c.b16 %v2456, %v2455
      %v2463 = vpack.c.b16 %v2458, %v2457
      %v2464 = vpack.c.b16 %v2460, %v2459
      %v2469 = vsel %vm2357, %v2272, 0
      %v2471 = vsel %vm2357, %v2273, 0
      %v2473 = vsel %vm2357, %v2274, 0
      %v2475 = vsel %vm2357, %v2275, 0
      %v2477 = vsel %vm2357, %v2276, 0
      %2479 = vmatprep.subr.bf16.mxu0 0
      %2480 = vmatpush1.bf16.msra.mxu0 0
      %2481 = vmatprep.subr.bf16.mxu0 0
      %2482 = vmatpush1.bf16.msra.mxu0 0
      %2483 = vmatprep.subr.bf16.mxu0 0
      %2484 = vmatpush1.bf16.msra.mxu0 0
      %2485 = vmatprep.subr.bf16.mxu0 0
      %2486 = vmatpush1.bf16.msra.mxu0 0
      %2487 = vmatprep.subr.bf16.mxu0 0
      %2488 = vmatpush1.bf16.msra.mxu0 %v2464
      %2489 = vmatprep.subr.bf16.mxu0 0
      %2490 = vmatpush1.bf16.msra.mxu0 %v2463
      %2491 = vmatprep.subr.bf16.mxu0 0
      %2492 = vmatpush1.bf16.msra.mxu0 %v2462
      %2493 = vmatprep.subr.bf16.mxu0 0
      %2494 = vmatpush1.bf16.msra.mxu0 %v2461
      %2495 = vmatprep.subr.bf16.mxu0 0
      %2496 = vmatpush2.bf16.msra.mxu0 0
      %2497 = vmatprep.subr.bf16.mxu0 0
      %2498 = vmatpush2.bf16.msra.mxu0 0
      %2499 = vmatprep.subr.bf16.mxu0 0
      %2500 = vmatpush2.bf16.msra.mxu0 0
      %2501 = vmatprep.subr.bf16.mxu0 0
      %2502 = vmatpush2.bf16.msra.mxu0 0
      %2503 = vmatprep.subr.bf16.mxu0 0
      %2504 = vmatpush2.bf16.msra.mxu0 0
      %2505 = vmatprep.subr.bf16.mxu0 0
      %2506 = vmatpush2.bf16.msra.mxu0 0
      %2507 = vmatprep.subr.bf16.mxu0 0
      %2508 = vmatpush2.bf16.msra.mxu0 0
      %2509 = vmatprep.subr.bf16.mxu0 0
      %2510 = vmatpush2.bf16.msra.mxu0 0
      %2511 = vmatprep.mubr.bf16.mxu0 0
      %2512 = vmatmul.mubr.bf16.gmra.mxu0 %v2469
      %v2513 = vpop.f32.mrf.mxu0
      %v2514 = vadd.f32 %v2408, %v2513
      %v2515 = vpop.f32.mrf.mxu0
      %v2516 = vpop.f32.mrf.mxu0
      %v2517 = vadd.f32 %v2411, %v2516
      %v2518 = vpop.f32.mrf.mxu0
      %2519 = vmatprep.mubr.bf16.mxu0 0
      %2520 = vmatmul.mubr.bf16.gmra.mxu0 %v2471
      %v2521 = vpop.f32.mrf.mxu0
      %v2522 = vadd.f32 %v2416, %v2521
      %v2523 = vpop.f32.mrf.mxu0
      %v2524 = vpop.f32.mrf.mxu0
      %v2525 = vadd.f32 %v2419, %v2524
      %v2526 = vpop.f32.mrf.mxu0
      %2527 = vmatprep.mubr.bf16.mxu0 0
      %2528 = vmatmul.mubr.bf16.gmra.mxu0 %v2473
      %v2529 = vpop.f32.mrf.mxu0
      %v2530 = vadd.f32 %v2424, %v2529
      %v2531 = vpop.f32.mrf.mxu0
      %v2532 = vpop.f32.mrf.mxu0
      %v2533 = vadd.f32 %v2427, %v2532
      %v2534 = vpop.f32.mrf.mxu0
      %2535 = vmatprep.mubr.bf16.mxu0 0
      %2536 = vmatmul.mubr.bf16.gmra.mxu0 %v2475
      %v2537 = vpop.f32.mrf.mxu0
      %v2538 = vadd.f32 %v2432, %v2537
      %v2539 = vpop.f32.mrf.mxu0
      %v2540 = vpop.f32.mrf.mxu0
      %v2541 = vadd.f32 %v2435, %v2540
      %v2542 = vpop.f32.mrf.mxu0
      %2543 = vmatprep.mubr.bf16.mxu0 0
      %2544 = vmatmul.mubr.bf16.gmra.mxu0 %v2477
      %v2545 = vpop.f32.mrf.mxu0
      %v2546 = vadd.f32 %v2440, %v2545
      %v2547 = vpop.f32.mrf.mxu0
      %v2548 = vpop.f32.mrf.mxu0
      %v2549 = vpop.f32.mrf.mxu0
      %2550 = vdwg.mxu0
      %s2551 = scalar_lea.vmem %s5, 64
      %v2552 = vld [vmem:[%s2551] sm:$0xf]
      %v2553 = vld [vmem:[%s2551 + $0x4] sm:$0xf]
      %v2554 = vld [vmem:[%s2551 + $0x8] sm:$0xf]
      %v2555 = vld [vmem:[%s2551 + $0xc] sm:$0xf]
      %v2556 = vld [vmem:[%s2551 + $0x10] sm:$0xf]
      %v2557 = vld [vmem:[%s2551 + $0x14] sm:$0xf]
      %v2558 = vld [vmem:[%s2551 + $0x18] sm:$0xf]
      %v2559 = vld [vmem:[%s2551 + $0x1c] sm:$0xf]
      %v2565 = vrot.slane %v2272, 1
      %v2566 = vrot.slane %v2273, 1
      %v2567 = vsel %vm1864, %v2565, %v2566
      %v2568 = vrot.slane %v2274, 1
      %v2569 = vsel %vm1864, %v2566, %v2568
      %v2570 = vrot.slane %v2275, 1
      %v2571 = vsel %vm1864, %v2568, %v2570
      %v2572 = vrot.slane %v2276, 1
      %v2573 = vsel %vm1864, %v2570, %v2572
      %v2582 = vunpack.c.l.b16 %v2552
      %v2583 = vunpack.c.l.b16 %v2553
      %v2584 = vunpack.c.l.b16 %v2554
      %v2585 = vunpack.c.l.b16 %v2555
      %v2586 = vunpack.c.l.b16 %v2556
      %v2587 = vunpack.c.l.b16 %v2557
      %v2588 = vunpack.c.l.b16 %v2558
      %v2589 = vunpack.c.l.b16 %v2559
      %v2590 = vpack.c.b16 %v2583, %v2582
      %v2591 = vpack.c.b16 %v2585, %v2584
      %v2592 = vpack.c.b16 %v2587, %v2586
      %v2593 = vpack.c.b16 %v2589, %v2588
      %v2599 = vsel %vm2357, %v2567, 0
      %v2602 = vsel %vm2357, %v2569, 0
      %v2605 = vsel %vm2357, %v2571, 0
      %v2608 = vsel %vm2357, %v2573, 0
      %v2611 = vsel %vm2357, %v2572, 0
      %2613 = vmatprep.subr.bf16.mxu0 0
      %2614 = vmatpush1.bf16.msra.mxu0 0
      %2615 = vmatprep.subr.bf16.mxu0 0
      %2616 = vmatpush1.bf16.msra.mxu0 0
      %2617 = vmatprep.subr.bf16.mxu0 0
      %2618 = vmatpush1.bf16.msra.mxu0 0
      %2619 = vmatprep.subr.bf16.mxu0 0
      %2620 = vmatpush1.bf16.msra.mxu0 0
      %2621 = vmatprep.subr.bf16.mxu0 0
      %2622 = vmatpush1.bf16.msra.mxu0 %v2593
      %2623 = vmatprep.subr.bf16.mxu0 0
      %2624 = vmatpush1.bf16.msra.mxu0 %v2592
      %2625 = vmatprep.subr.bf16.mxu0 0
      %2626 = vmatpush1.bf16.msra.mxu0 %v2591
      %2627 = vmatprep.subr.bf16.mxu0 0
      %2628 = vmatpush1.bf16.msra.mxu0 %v2590
      %2629 = vmatprep.subr.bf16.mxu0 0
      %2630 = vmatpush2.bf16.msra.mxu0 0
      %2631 = vmatprep.subr.bf16.mxu0 0
      %2632 = vmatpush2.bf16.msra.mxu0 0
      %2633 = vmatprep.subr.bf16.mxu0 0
      %2634 = vmatpush2.bf16.msra.mxu0 0
      %2635 = vmatprep.subr.bf16.mxu0 0
      %2636 = vmatpush2.bf16.msra.mxu0 0
      %2637 = vmatprep.subr.bf16.mxu0 0
      %2638 = vmatpush2.bf16.msra.mxu0 0
      %2639 = vmatprep.subr.bf16.mxu0 0
      %2640 = vmatpush2.bf16.msra.mxu0 0
      %2641 = vmatprep.subr.bf16.mxu0 0
      %2642 = vmatpush2.bf16.msra.mxu0 0
      %2643 = vmatprep.subr.bf16.mxu0 0
      %2644 = vmatpush2.bf16.msra.mxu0 0
      %2645 = vmatprep.mubr.bf16.mxu0 0
      %2646 = vmatmul.mubr.bf16.gmra.mxu0 %v2599
      %v2647 = vpop.f32.mrf.mxu0
      %v2648 = vadd.f32 0.0, %v2647
      %v2649 = vpop.f32.mrf.mxu0
      %v2650 = vpop.f32.mrf.mxu0
      %v2651 = vadd.f32 0.0, %v2650
      %v2652 = vpop.f32.mrf.mxu0
      %2653 = vmatprep.mubr.bf16.mxu0 0
      %2654 = vmatmul.mubr.bf16.gmra.mxu0 %v2602
      %v2655 = vpop.f32.mrf.mxu0
      %v2656 = vadd.f32 0.0, %v2655
      %v2657 = vpop.f32.mrf.mxu0
      %v2658 = vpop.f32.mrf.mxu0
      %v2659 = vadd.f32 0.0, %v2658
      %v2660 = vpop.f32.mrf.mxu0
      %2661 = vmatprep.mubr.bf16.mxu0 0
      %2662 = vmatmul.mubr.bf16.gmra.mxu0 %v2605
      %v2663 = vpop.f32.mrf.mxu0
      %v2664 = vadd.f32 0.0, %v2663
      %v2665 = vpop.f32.mrf.mxu0
      %v2666 = vpop.f32.mrf.mxu0
      %v2667 = vadd.f32 0.0, %v2666
      %v2668 = vpop.f32.mrf.mxu0
      %2669 = vmatprep.mubr.bf16.mxu0 0
      %2670 = vmatmul.mubr.bf16.gmra.mxu0 %v2608
      %v2671 = vpop.f32.mrf.mxu0
      %v2672 = vadd.f32 0.0, %v2671
      %v2673 = vpop.f32.mrf.mxu0
      %v2674 = vpop.f32.mrf.mxu0
      %v2675 = vadd.f32 0.0, %v2674
      %v2676 = vpop.f32.mrf.mxu0
      %2677 = vmatprep.mubr.bf16.mxu0 0
      %2678 = vmatmul.mubr.bf16.gmra.mxu0 %v2611
      %v2679 = vpop.f32.mrf.mxu0
      %v2680 = vadd.f32 0.0, %v2679
      %v2681 = vpop.f32.mrf.mxu0
      %v2682 = vpop.f32.mrf.mxu0
      %v2683 = vpop.f32.mrf.mxu0
      %2684 = vdwg.mxu0
      %v2685 = vadd.f32 %v2514, %v2648
      %v2686 = vadd.f32 %v2517, %v2651
      %v2687 = vadd.f32 %v2522, %v2656
      %v2688 = vadd.f32 %v2525, %v2659
      %v2689 = vadd.f32 %v2530, %v2664
      %v2690 = vadd.f32 %v2533, %v2667
      %v2691 = vadd.f32 %v2538, %v2672
      %v2692 = vadd.f32 %v2541, %v2675
      %v2693 = vadd.f32 %v2546, %v2680
      %v2694 = vpack.c.bf16 %v2262, %v2261
      %v2695 = vpack.c.bf16 %v2264, %v2263
      %v2696 = vpack.c.bf16 %v2266, %v2265
      %v2697 = vpack.c.bf16 %v2268, %v2267
      %v2698 = vpack.c.bf16 %v2269, %v2269
      %s2699 = scalar_lea.vmem %s5, 96
      %v2700 = vld [vmem:[%s2699] sm:$0xf]
      %v2701 = vld [vmem:[%s2699 + $0x4] sm:$0xf]
      %v2702 = vld [vmem:[%s2699 + $0x8] sm:$0xf]
      %v2703 = vld [vmem:[%s2699 + $0xc] sm:$0xf]
      %v2704 = vld [vmem:[%s2699 + $0x10] sm:$0xf]
      %v2705 = vld [vmem:[%s2699 + $0x14] sm:$0xf]
      %v2706 = vld [vmem:[%s2699 + $0x18] sm:$0xf]
      %v2707 = vld [vmem:[%s2699 + $0x1c] sm:$0xf]
      %v2713 = vrot.slane %v2694, 1
      %v2714 = vrot.slane %v2695, 1
      %v2715 = vsel %vm1864, %v2713, %v2714
      %v2716 = vrot.slane %v2696, 1
      %v2717 = vsel %vm1864, %v2714, %v2716
      %v2718 = vrot.slane %v2697, 1
      %v2719 = vsel %vm1864, %v2716, %v2718
      %v2720 = vrot.slane %v2698, 1
      %v2721 = vsel %vm1864, %v2718, %v2720
      %v2730 = vunpack.c.l.b16 %v2700
      %v2731 = vunpack.c.l.b16 %v2701
      %v2732 = vunpack.c.l.b16 %v2702
      %v2733 = vunpack.c.l.b16 %v2703
      %v2734 = vunpack.c.l.b16 %v2704
      %v2735 = vunpack.c.l.b16 %v2705
      %v2736 = vunpack.c.l.b16 %v2706
      %v2737 = vunpack.c.l.b16 %v2707
      %v2738 = vpack.c.b16 %v2731, %v2730
      %v2739 = vpack.c.b16 %v2733, %v2732
      %v2740 = vpack.c.b16 %v2735, %v2734
      %v2741 = vpack.c.b16 %v2737, %v2736
      %v2747 = vsel %vm2357, %v2715, 0
      %v2750 = vsel %vm2357, %v2717, 0
      %v2753 = vsel %vm2357, %v2719, 0
      %v2756 = vsel %vm2357, %v2721, 0
      %v2759 = vsel %vm2357, %v2720, 0
      %2761 = vmatprep.subr.bf16.mxu0 0
      %2762 = vmatpush1.bf16.msra.mxu0 0
      %2763 = vmatprep.subr.bf16.mxu0 0
      %2764 = vmatpush1.bf16.msra.mxu0 0
      %2765 = vmatprep.subr.bf16.mxu0 0
      %2766 = vmatpush1.bf16.msra.mxu0 0
      %2767 = vmatprep.subr.bf16.mxu0 0
      %2768 = vmatpush1.bf16.msra.mxu0 0
      %2769 = vmatprep.subr.bf16.mxu0 0
      %2770 = vmatpush1.bf16.msra.mxu0 %v2741
      %2771 = vmatprep.subr.bf16.mxu0 0
      %2772 = vmatpush1.bf16.msra.mxu0 %v2740
      %2773 = vmatprep.subr.bf16.mxu0 0
      %2774 = vmatpush1.bf16.msra.mxu0 %v2739
      %2775 = vmatprep.subr.bf16.mxu0 0
      %2776 = vmatpush1.bf16.msra.mxu0 %v2738
      %2777 = vmatprep.subr.bf16.mxu0 0
      %2778 = vmatpush2.bf16.msra.mxu0 0
      %2779 = vmatprep.subr.bf16.mxu0 0
      %2780 = vmatpush2.bf16.msra.mxu0 0
      %2781 = vmatprep.subr.bf16.mxu0 0
      %2782 = vmatpush2.bf16.msra.mxu0 0
      %2783 = vmatprep.subr.bf16.mxu0 0
      %2784 = vmatpush2.bf16.msra.mxu0 0
      %2785 = vmatprep.subr.bf16.mxu0 0
      %2786 = vmatpush2.bf16.msra.mxu0 0
      %2787 = vmatprep.subr.bf16.mxu0 0
      %2788 = vmatpush2.bf16.msra.mxu0 0
      %2789 = vmatprep.subr.bf16.mxu0 0
      %2790 = vmatpush2.bf16.msra.mxu0 0
      %2791 = vmatprep.subr.bf16.mxu0 0
      %2792 = vmatpush2.bf16.msra.mxu0 0
      %2793 = vmatprep.mubr.bf16.mxu0 0
      %2794 = vmatmul.mubr.bf16.gmra.mxu0 %v2747
      %v2795 = vpop.f32.mrf.mxu0
      %v2796 = vadd.f32 0.0, %v2795
      %v2797 = vpop.f32.mrf.mxu0
      %v2798 = vpop.f32.mrf.mxu0
      %v2799 = vadd.f32 0.0, %v2798
      %v2800 = vpop.f32.mrf.mxu0
      %2801 = vmatprep.mubr.bf16.mxu0 0
      %2802 = vmatmul.mubr.bf16.gmra.mxu0 %v2750
      %v2803 = vpop.f32.mrf.mxu0
      %v2804 = vadd.f32 0.0, %v2803
      %v2805 = vpop.f32.mrf.mxu0
      %v2806 = vpop.f32.mrf.mxu0
      %v2807 = vadd.f32 0.0, %v2806
      %v2808 = vpop.f32.mrf.mxu0
      %2809 = vmatprep.mubr.bf16.mxu0 0
      %2810 = vmatmul.mubr.bf16.gmra.mxu0 %v2753
      %v2811 = vpop.f32.mrf.mxu0
      %v2812 = vadd.f32 0.0, %v2811
      %v2813 = vpop.f32.mrf.mxu0
      %v2814 = vpop.f32.mrf.mxu0
      %v2815 = vadd.f32 0.0, %v2814
      %v2816 = vpop.f32.mrf.mxu0
      %2817 = vmatprep.mubr.bf16.mxu0 0
      %2818 = vmatmul.mubr.bf16.gmra.mxu0 %v2756
      %v2819 = vpop.f32.mrf.mxu0
      %v2820 = vadd.f32 0.0, %v2819
      %v2821 = vpop.f32.mrf.mxu0
      %v2822 = vpop.f32.mrf.mxu0
      %v2823 = vadd.f32 0.0, %v2822
      %v2824 = vpop.f32.mrf.mxu0
      %2825 = vmatprep.mubr.bf16.mxu0 0
      %2826 = vmatmul.mubr.bf16.gmra.mxu0 %v2759
      %v2827 = vpop.f32.mrf.mxu0
      %v2828 = vadd.f32 0.0, %v2827
      %v2829 = vpop.f32.mrf.mxu0
      %v2830 = vpop.f32.mrf.mxu0
      %v2831 = vpop.f32.mrf.mxu0
      %2832 = vdwg.mxu0
      %v2833 = vadd.f32 %v2685, %v2796
      %v2834 = vadd.f32 %v2686, %v2799
      %v2835 = vadd.f32 %v2687, %v2804
      %v2836 = vadd.f32 %v2688, %v2807
      %v2837 = vadd.f32 %v2689, %v2812
      %v2838 = vadd.f32 %v2690, %v2815
      %v2839 = vadd.f32 %v2691, %v2820
      %v2840 = vadd.f32 %v2692, %v2823
      %v2841 = vadd.f32 %v2693, %v2828
      %s2842 = scalar_lea.vmem %s5, 128
      %v2843 = vld [vmem:[%s2842] sm:$0xf]
      %v2844 = vld [vmem:[%s2842 + $0x4] sm:$0xf]
      %v2845 = vld [vmem:[%s2842 + $0x8] sm:$0xf]
      %v2846 = vld [vmem:[%s2842 + $0xc] sm:$0xf]
      %v2847 = vld [vmem:[%s2842 + $0x10] sm:$0xf]
      %v2848 = vld [vmem:[%s2842 + $0x14] sm:$0xf]
      %v2849 = vld [vmem:[%s2842 + $0x18] sm:$0xf]
      %v2850 = vld [vmem:[%s2842 + $0x1c] sm:$0xf]
      %v2852 = vshrl.u32 %v2694, 16
      %v2854 = vrot.slane %v2852, 1
      %v2855 = vshll.u32 %v2694, 16
      %v2857 = vrot.slane %v2855, 2
      %v2858 = vor.u32 %v2854, %v2857
      %v2860 = vshrl.u32 %v2695, 16
      %v2862 = vrot.slane %v2860, 1
      %v2863 = vshll.u32 %v2695, 16
      %v2865 = vrot.slane %v2863, 2
      %v2866 = vor.u32 %v2862, %v2865
      %v2867 = vsel %vm2040, %v2858, %v2866
      %v2869 = vshrl.u32 %v2696, 16
      %v2871 = vrot.slane %v2869, 1
      %v2872 = vshll.u32 %v2696, 16
      %v2874 = vrot.slane %v2872, 2
      %v2875 = vor.u32 %v2871, %v2874
      %v2876 = vsel %vm2040, %v2866, %v2875
      %v2878 = vshrl.u32 %v2697, 16
      %v2880 = vrot.slane %v2878, 1
      %v2881 = vshll.u32 %v2697, 16
      %v2883 = vrot.slane %v2881, 2
      %v2884 = vor.u32 %v2880, %v2883
      %v2885 = vsel %vm2040, %v2875, %v2884
      %v2887 = vshrl.u32 %v2698, 16
      %v2889 = vrot.slane %v2887, 1
      %v2890 = vshll.u32 %v2698, 16
      %v2892 = vrot.slane %v2890, 2
      %v2893 = vor.u32 %v2889, %v2892
      %v2894 = vsel %vm2040, %v2884, %v2893
      %v2903 = vunpack.c.l.b16 %v2843
      %v2904 = vunpack.c.l.b16 %v2844
      %v2905 = vunpack.c.l.b16 %v2845
      %v2906 = vunpack.c.l.b16 %v2846
      %v2907 = vunpack.c.l.b16 %v2847
      %v2908 = vunpack.c.l.b16 %v2848
      %v2909 = vunpack.c.l.b16 %v2849
      %v2910 = vunpack.c.l.b16 %v2850
      %v2911 = vpack.c.b16 %v2904, %v2903
      %v2912 = vpack.c.b16 %v2906, %v2905
      %v2913 = vpack.c.b16 %v2908, %v2907
      %v2914 = vpack.c.b16 %v2910, %v2909
      %v2920 = vsel %vm2357, %v2867, 0
      %v2923 = vsel %vm2357, %v2876, 0
      %v2926 = vsel %vm2357, %v2885, 0
      %v2929 = vsel %vm2357, %v2894, 0
      %v2932 = vsel %vm2357, %v2893, 0
      %2934 = vmatprep.subr.bf16.mxu0 0
      %2935 = vmatpush1.bf16.msra.mxu0 0
      %2936 = vmatprep.subr.bf16.mxu0 0
      %2937 = vmatpush1.bf16.msra.mxu0 0
      %2938 = vmatprep.subr.bf16.mxu0 0
      %2939 = vmatpush1.bf16.msra.mxu0 0
      %2940 = vmatprep.subr.bf16.mxu0 0
      %2941 = vmatpush1.bf16.msra.mxu0 0
      %2942 = vmatprep.subr.bf16.mxu0 0
      %2943 = vmatpush1.bf16.msra.mxu0 %v2914
      %2944 = vmatprep.subr.bf16.mxu0 0
      %2945 = vmatpush1.bf16.msra.mxu0 %v2913
      %2946 = vmatprep.subr.bf16.mxu0 0
      %2947 = vmatpush1.bf16.msra.mxu0 %v2912
      %2948 = vmatprep.subr.bf16.mxu0 0
      %2949 = vmatpush1.bf16.msra.mxu0 %v2911
      %2950 = vmatprep.subr.bf16.mxu0 0
      %2951 = vmatpush2.bf16.msra.mxu0 0
      %2952 = vmatprep.subr.bf16.mxu0 0
      %2953 = vmatpush2.bf16.msra.mxu0 0
      %2954 = vmatprep.subr.bf16.mxu0 0
      %2955 = vmatpush2.bf16.msra.mxu0 0
      %2956 = vmatprep.subr.bf16.mxu0 0
      %2957 = vmatpush2.bf16.msra.mxu0 0
      %2958 = vmatprep.subr.bf16.mxu0 0
      %2959 = vmatpush2.bf16.msra.mxu0 0
      %2960 = vmatprep.subr.bf16.mxu0 0
      %2961 = vmatpush2.bf16.msra.mxu0 0
      %2962 = vmatprep.subr.bf16.mxu0 0
      %2963 = vmatpush2.bf16.msra.mxu0 0
      %2964 = vmatprep.subr.bf16.mxu0 0
      %2965 = vmatpush2.bf16.msra.mxu0 0
      %2966 = vmatprep.mubr.bf16.mxu0 0
      %2967 = vmatmul.mubr.bf16.gmra.mxu0 %v2920
      %v2968 = vpop.f32.mrf.mxu0
      %v2969 = vadd.f32 0.0, %v2968
      %v2970 = vpop.f32.mrf.mxu0
      %v2971 = vpop.f32.mrf.mxu0
      %v2972 = vadd.f32 0.0, %v2971
      %v2973 = vpop.f32.mrf.mxu0
      %2974 = vmatprep.mubr.bf16.mxu0 0
      %2975 = vmatmul.mubr.bf16.gmra.mxu0 %v2923
      %v2976 = vpop.f32.mrf.mxu0
      %v2977 = vadd.f32 0.0, %v2976
      %v2978 = vpop.f32.mrf.mxu0
      %v2979 = vpop.f32.mrf.mxu0
      %v2980 = vadd.f32 0.0, %v2979
      %v2981 = vpop.f32.mrf.mxu0
      %2982 = vmatprep.mubr.bf16.mxu0 0
      %2983 = vmatmul.mubr.bf16.gmra.mxu0 %v2926
      %v2984 = vpop.f32.mrf.mxu0
      %v2985 = vadd.f32 0.0, %v2984
      %v2986 = vpop.f32.mrf.mxu0
      %v2987 = vpop.f32.mrf.mxu0
      %v2988 = vadd.f32 0.0, %v2987
      %v2989 = vpop.f32.mrf.mxu0
      %2990 = vmatprep.mubr.bf16.mxu0 0
      %2991 = vmatmul.mubr.bf16.gmra.mxu0 %v2929
      %v2992 = vpop.f32.mrf.mxu0
      %v2993 = vadd.f32 0.0, %v2992
      %v2994 = vpop.f32.mrf.mxu0
      %v2995 = vpop.f32.mrf.mxu0
      %v2996 = vadd.f32 0.0, %v2995
      %v2997 = vpop.f32.mrf.mxu0
      %2998 = vmatprep.mubr.bf16.mxu0 0
      %2999 = vmatmul.mubr.bf16.gmra.mxu0 %v2932
      %v3000 = vpop.f32.mrf.mxu0
      %v3001 = vadd.f32 0.0, %v3000
      %v3002 = vpop.f32.mrf.mxu0
      %v3003 = vpop.f32.mrf.mxu0
      %v3004 = vpop.f32.mrf.mxu0
      %3005 = vdwg.mxu0
      %v3006 = vadd.f32 %v2833, %v2969
      %v3007 = vadd.f32 %v2834, %v2972
      %v3008 = vadd.f32 %v2835, %v2977
      %v3009 = vadd.f32 %v2836, %v2980
      %v3010 = vadd.f32 %v2837, %v2985
      %v3011 = vadd.f32 %v2838, %v2988
      %v3012 = vadd.f32 %v2839, %v2993
      %v3013 = vadd.f32 %v2840, %v2996
      %v3014 = vadd.f32 %v2841, %v3001
      %s3015 = scalar_lea.vmem %s5, 160
      %v3016 = vld [vmem:[%s3015] sm:$0xf]
      %v3017 = vld [vmem:[%s3015 + $0x4] sm:$0xf]
      %v3018 = vld [vmem:[%s3015 + $0x8] sm:$0xf]
      %v3019 = vld [vmem:[%s3015 + $0xc] sm:$0xf]
      %v3020 = vld [vmem:[%s3015 + $0x10] sm:$0xf]
      %v3021 = vld [vmem:[%s3015 + $0x14] sm:$0xf]
      %v3022 = vld [vmem:[%s3015 + $0x18] sm:$0xf]
      %v3023 = vld [vmem:[%s3015 + $0x1c] sm:$0xf]
      %vm3024 = vcmask 1045504
      %v3025 = vrot.slane %v2694, 2
      %v3026 = vrot.slane %v2695, 2
      %v3027 = vsel %vm3024, %v3025, %v3026
      %v3028 = vrot.slane %v2696, 2
      %v3029 = vsel %vm3024, %v3026, %v3028
      %v3030 = vrot.slane %v2697, 2
      %v3031 = vsel %vm3024, %v3028, %v3030
      %v3032 = vrot.slane %v2698, 2
      %v3033 = vsel %vm3024, %v3030, %v3032
      %v3042 = vunpack.c.l.b16 %v3016
      %v3043 = vunpack.c.l.b16 %v3017
      %v3044 = vunpack.c.l.b16 %v3018
      %v3045 = vunpack.c.l.b16 %v3019
      %v3046 = vunpack.c.l.b16 %v3020
      %v3047 = vunpack.c.l.b16 %v3021
      %v3048 = vunpack.c.l.b16 %v3022
      %v3049 = vunpack.c.l.b16 %v3023
      %v3050 = vpack.c.b16 %v3043, %v3042
      %v3051 = vpack.c.b16 %v3045, %v3044
      %v3052 = vpack.c.b16 %v3047, %v3046
      %v3053 = vpack.c.b16 %v3049, %v3048
      %v3059 = vsel %vm2357, %v3027, 0
      %v3062 = vsel %vm2357, %v3029, 0
      %v3065 = vsel %vm2357, %v3031, 0
      %v3068 = vsel %vm2357, %v3033, 0
      %v3071 = vsel %vm2357, %v3032, 0
      %3073 = vmatprep.subr.bf16.mxu0 0
      %3074 = vmatpush1.bf16.msra.mxu0 0
      %3075 = vmatprep.subr.bf16.mxu0 0
      %3076 = vmatpush1.bf16.msra.mxu0 0
      %3077 = vmatprep.subr.bf16.mxu0 0
      %3078 = vmatpush1.bf16.msra.mxu0 0
      %3079 = vmatprep.subr.bf16.mxu0 0
      %3080 = vmatpush1.bf16.msra.mxu0 0
      %3081 = vmatprep.subr.bf16.mxu0 0
      %3082 = vmatpush1.bf16.msra.mxu0 %v3053
      %3083 = vmatprep.subr.bf16.mxu0 0
      %3084 = vmatpush1.bf16.msra.mxu0 %v3052
      %3085 = vmatprep.subr.bf16.mxu0 0
      %3086 = vmatpush1.bf16.msra.mxu0 %v3051
      %3087 = vmatprep.subr.bf16.mxu0 0
      %3088 = vmatpush1.bf16.msra.mxu0 %v3050
      %3089 = vmatprep.subr.bf16.mxu0 0
      %3090 = vmatpush2.bf16.msra.mxu0 0
      %3091 = vmatprep.subr.bf16.mxu0 0
      %3092 = vmatpush2.bf16.msra.mxu0 0
      %3093 = vmatprep.subr.bf16.mxu0 0
      %3094 = vmatpush2.bf16.msra.mxu0 0
      %3095 = vmatprep.subr.bf16.mxu0 0
      %3096 = vmatpush2.bf16.msra.mxu0 0
      %3097 = vmatprep.subr.bf16.mxu0 0
      %3098 = vmatpush2.bf16.msra.mxu0 0
      %3099 = vmatprep.subr.bf16.mxu0 0
      %3100 = vmatpush2.bf16.msra.mxu0 0
      %3101 = vmatprep.subr.bf16.mxu0 0
      %3102 = vmatpush2.bf16.msra.mxu0 0
      %3103 = vmatprep.subr.bf16.mxu0 0
      %3104 = vmatpush2.bf16.msra.mxu0 0
      %3105 = vmatprep.mubr.bf16.mxu0 0
      %3106 = vmatmul.mubr.bf16.gmra.mxu0 %v3059
      %v3107 = vpop.f32.mrf.mxu0
      %v3108 = vadd.f32 0.0, %v3107
      %v3109 = vpop.f32.mrf.mxu0
      %v3110 = vpop.f32.mrf.mxu0
      %v3111 = vadd.f32 0.0, %v3110
      %v3112 = vpop.f32.mrf.mxu0
      %3113 = vmatprep.mubr.bf16.mxu0 0
      %3114 = vmatmul.mubr.bf16.gmra.mxu0 %v3062
      %v3115 = vpop.f32.mrf.mxu0
      %v3116 = vadd.f32 0.0, %v3115
      %v3117 = vpop.f32.mrf.mxu0
      %v3118 = vpop.f32.mrf.mxu0
      %v3119 = vadd.f32 0.0, %v3118
      %v3120 = vpop.f32.mrf.mxu0
      %3121 = vmatprep.mubr.bf16.mxu0 0
      %3122 = vmatmul.mubr.bf16.gmra.mxu0 %v3065
      %v3123 = vpop.f32.mrf.mxu0
      %v3124 = vadd.f32 0.0, %v3123
      %v3125 = vpop.f32.mrf.mxu0
      %v3126 = vpop.f32.mrf.mxu0
      %v3127 = vadd.f32 0.0, %v3126
      %v3128 = vpop.f32.mrf.mxu0
      %3129 = vmatprep.mubr.bf16.mxu0 0
      %3130 = vmatmul.mubr.bf16.gmra.mxu0 %v3068
      %v3131 = vpop.f32.mrf.mxu0
      %v3132 = vadd.f32 0.0, %v3131
      %v3133 = vpop.f32.mrf.mxu0
      %v3134 = vpop.f32.mrf.mxu0
      %v3135 = vadd.f32 0.0, %v3134
      %v3136 = vpop.f32.mrf.mxu0
      %3137 = vmatprep.mubr.bf16.mxu0 0
      %3138 = vmatmul.mubr.bf16.gmra.mxu0 %v3071
      %v3139 = vpop.f32.mrf.mxu0
      %v3140 = vadd.f32 0.0, %v3139
      %v3141 = vpop.f32.mrf.mxu0
      %v3142 = vpop.f32.mrf.mxu0
      %v3143 = vpop.f32.mrf.mxu0
      %3144 = vdwg.mxu0
      %v3145 = vadd.f32 %v3006, %v3108
      %v3146 = vadd.f32 %v3007, %v3111
      %v3147 = vadd.f32 %v3008, %v3116
      %v3148 = vadd.f32 %v3009, %v3119
      %v3149 = vadd.f32 %v3010, %v3124
      %v3150 = vadd.f32 %v3011, %v3127
      %v3151 = vadd.f32 %v3012, %v3132
      %v3152 = vadd.f32 %v3013, %v3135
      %v3153 = vadd.f32 %v3014, %v3140
      %v3154 = vpack.c.bf16 %v2269, %v2268
      %v3155 = vpack.c.bf16 %v2270, %v2270
      %s3156 = scalar_lea.vmem %s5, 192
      %v3157 = vld [vmem:[%s3156] sm:$0xf]
      %v3158 = vld [vmem:[%s3156 + $0x4] sm:$0xf]
      %v3159 = vld [vmem:[%s3156 + $0x8] sm:$0xf]
      %v3160 = vld [vmem:[%s3156 + $0xc] sm:$0xf]
      %v3161 = vld [vmem:[%s3156 + $0x10] sm:$0xf]
      %v3162 = vld [vmem:[%s3156 + $0x14] sm:$0xf]
      %v3163 = vld [vmem:[%s3156 + $0x18] sm:$0xf]
      %v3164 = vld [vmem:[%s3156 + $0x1c] sm:$0xf]
      %v3167 = vrot.slane %v2273, 2
      %v3168 = vrot.slane %v2274, 2
      %v3169 = vsel %vm3024, %v3167, %v3168
      %v3170 = vrot.slane %v2275, 2
      %v3171 = vsel %vm3024, %v3168, %v3170
      %v3172 = vrot.slane %v3154, 2
      %v3173 = vsel %vm3024, %v3170, %v3172
      %v3174 = vrot.slane %v3155, 2
      %v3175 = vsel %vm3024, %v3172, %v3174
      %v3184 = vunpack.c.l.b16 %v3157
      %v3185 = vunpack.c.l.b16 %v3158
      %v3186 = vunpack.c.l.b16 %v3159
      %v3187 = vunpack.c.l.b16 %v3160
      %v3188 = vunpack.c.l.b16 %v3161
      %v3189 = vunpack.c.l.b16 %v3162
      %v3190 = vunpack.c.l.b16 %v3163
      %v3191 = vunpack.c.l.b16 %v3164
      %v3192 = vpack.c.b16 %v3185, %v3184
      %v3193 = vpack.c.b16 %v3187, %v3186
      %v3194 = vpack.c.b16 %v3189, %v3188
      %v3195 = vpack.c.b16 %v3191, %v3190
      %v3201 = vsel %vm2357, %v3169, 0
      %v3204 = vsel %vm2357, %v3171, 0
      %v3207 = vsel %vm2357, %v3173, 0
      %v3210 = vsel %vm2357, %v3175, 0
      %v3213 = vsel %vm2357, %v3174, 0
      %3215 = vmatprep.subr.bf16.mxu0 0
      %3216 = vmatpush1.bf16.msra.mxu0 0
      %3217 = vmatprep.subr.bf16.mxu0 0
      %3218 = vmatpush1.bf16.msra.mxu0 0
      %3219 = vmatprep.subr.bf16.mxu0 0
      %3220 = vmatpush1.bf16.msra.mxu0 0
      %3221 = vmatprep.subr.bf16.mxu0 0
      %3222 = vmatpush1.bf16.msra.mxu0 0
      %3223 = vmatprep.subr.bf16.mxu0 0
      %3224 = vmatpush1.bf16.msra.mxu0 %v3195
      %3225 = vmatprep.subr.bf16.mxu0 0
      %3226 = vmatpush1.bf16.msra.mxu0 %v3194
      %3227 = vmatprep.subr.bf16.mxu0 0
      %3228 = vmatpush1.bf16.msra.mxu0 %v3193
      %3229 = vmatprep.subr.bf16.mxu0 0
      %3230 = vmatpush1.bf16.msra.mxu0 %v3192
      %3231 = vmatprep.subr.bf16.mxu0 0
      %3232 = vmatpush2.bf16.msra.mxu0 0
      %3233 = vmatprep.subr.bf16.mxu0 0
      %3234 = vmatpush2.bf16.msra.mxu0 0
      %3235 = vmatprep.subr.bf16.mxu0 0
      %3236 = vmatpush2.bf16.msra.mxu0 0
      %3237 = vmatprep.subr.bf16.mxu0 0
      %3238 = vmatpush2.bf16.msra.mxu0 0
      %3239 = vmatprep.subr.bf16.mxu0 0
      %3240 = vmatpush2.bf16.msra.mxu0 0
      %3241 = vmatprep.subr.bf16.mxu0 0
      %3242 = vmatpush2.bf16.msra.mxu0 0
      %3243 = vmatprep.subr.bf16.mxu0 0
      %3244 = vmatpush2.bf16.msra.mxu0 0
      %3245 = vmatprep.subr.bf16.mxu0 0
      %3246 = vmatpush2.bf16.msra.mxu0 0
      %3247 = vmatprep.mubr.bf16.mxu0 0
      %3248 = vmatmul.mubr.bf16.gmra.mxu0 %v3201
      %v3249 = vpop.f32.mrf.mxu0
      %v3250 = vadd.f32 0.0, %v3249
      %v3251 = vpop.f32.mrf.mxu0
      %v3252 = vpop.f32.mrf.mxu0
      %v3253 = vadd.f32 0.0, %v3252
      %v3254 = vpop.f32.mrf.mxu0
      %3255 = vmatprep.mubr.bf16.mxu0 0
      %3256 = vmatmul.mubr.bf16.gmra.mxu0 %v3204
      %v3257 = vpop.f32.mrf.mxu0
      %v3258 = vadd.f32 0.0, %v3257
      %v3259 = vpop.f32.mrf.mxu0
      %v3260 = vpop.f32.mrf.mxu0
      %v3261 = vadd.f32 0.0, %v3260
      %v3262 = vpop.f32.mrf.mxu0
      %3263 = vmatprep.mubr.bf16.mxu0 0
      %3264 = vmatmul.mubr.bf16.gmra.mxu0 %v3207
      %v3265 = vpop.f32.mrf.mxu0
      %v3266 = vadd.f32 0.0, %v3265
      %v3267 = vpop.f32.mrf.mxu0
      %v3268 = vpop.f32.mrf.mxu0
      %v3269 = vadd.f32 0.0, %v3268
      %v3270 = vpop.f32.mrf.mxu0
      %3271 = vmatprep.mubr.bf16.mxu0 0
      %3272 = vmatmul.mubr.bf16.gmra.mxu0 %v3210
      %v3273 = vpop.f32.mrf.mxu0
      %v3274 = vadd.f32 0.0, %v3273
      %v3275 = vpop.f32.mrf.mxu0
      %v3276 = vpop.f32.mrf.mxu0
      %v3277 = vadd.f32 0.0, %v3276
      %v3278 = vpop.f32.mrf.mxu0
      %3279 = vmatprep.mubr.bf16.mxu0 0
      %3280 = vmatmul.mubr.bf16.gmra.mxu0 %v3213
      %v3281 = vpop.f32.mrf.mxu0
      %v3282 = vadd.f32 0.0, %v3281
      %v3283 = vpop.f32.mrf.mxu0
      %v3284 = vpop.f32.mrf.mxu0
      %v3285 = vpop.f32.mrf.mxu0
      %3286 = vdwg.mxu0
      %v3287 = vadd.f32 %v3145, %v3250
      %v3288 = vadd.f32 %v3146, %v3253
      %v3289 = vadd.f32 %v3147, %v3258
      %v3290 = vadd.f32 %v3148, %v3261
      %v3291 = vadd.f32 %v3149, %v3266
      %v3292 = vadd.f32 %v3150, %v3269
      %v3293 = vadd.f32 %v3151, %v3274
      %v3294 = vadd.f32 %v3152, %v3277
      %v3295 = vadd.f32 %v3153, %v3282
      %s3296 = scalar_lea.vmem %s5, 224
      %v3297 = vld [vmem:[%s3296] sm:$0xf]
      %v3298 = vld [vmem:[%s3296 + $0x4] sm:$0xf]
      %v3299 = vld [vmem:[%s3296 + $0x8] sm:$0xf]
      %v3300 = vld [vmem:[%s3296 + $0xc] sm:$0xf]
      %v3301 = vld [vmem:[%s3296 + $0x10] sm:$0xf]
      %v3302 = vld [vmem:[%s3296 + $0x14] sm:$0xf]
      %v3303 = vld [vmem:[%s3296 + $0x18] sm:$0xf]
      %v3304 = vld [vmem:[%s3296 + $0x1c] sm:$0xf]
      %vm3305 = vsmask.f32 5376
      %v3306 = vrot.slane %v2306, 2
      %v3307 = vrot.slane %v2302, 3
      %v3308 = vor.u32 %v3306, %v3307
      %v3309 = vrot.slane %v2314, 2
      %v3310 = vrot.slane %v2310, 3
      %v3311 = vor.u32 %v3309, %v3310
      %v3312 = vsel %vm3305, %v3308, %v3311
      %v3313 = vrot.slane %v2322, 2
      %v3314 = vrot.slane %v2318, 3
      %v3315 = vor.u32 %v3313, %v3314
      %v3316 = vsel %vm3305, %v3311, %v3315
      %v3318 = vshrl.u32 %v3154, 16
      %v3320 = vrot.slane %v3318, 2
      %v3321 = vshll.u32 %v3154, 16
      %v3323 = vrot.slane %v3321, 3
      %v3324 = vor.u32 %v3320, %v3323
      %v3325 = vsel %vm3305, %v3315, %v3324
      %v3327 = vshrl.u32 %v3155, 16
      %v3329 = vrot.slane %v3327, 2
      %v3330 = vshll.u32 %v3155, 16
      %v3332 = vrot.slane %v3330, 3
      %v3333 = vor.u32 %v3329, %v3332
      %v3334 = vsel %vm3305, %v3324, %v3333
      %v3343 = vunpack.c.l.b16 %v3297
      %v3344 = vunpack.c.l.b16 %v3298
      %v3345 = vunpack.c.l.b16 %v3299
      %v3346 = vunpack.c.l.b16 %v3300
      %v3347 = vunpack.c.l.b16 %v3301
      %v3348 = vunpack.c.l.b16 %v3302
      %v3349 = vunpack.c.l.b16 %v3303
      %v3350 = vunpack.c.l.b16 %v3304
      %v3351 = vpack.c.b16 %v3344, %v3343
      %v3352 = vpack.c.b16 %v3346, %v3345
      %v3353 = vpack.c.b16 %v3348, %v3347
      %v3354 = vpack.c.b16 %v3350, %v3349
      %v3360 = vsel %vm2357, %v3312, 0
      %v3363 = vsel %vm2357, %v3316, 0
      %v3366 = vsel %vm2357, %v3325, 0
      %v3369 = vsel %vm2357, %v3334, 0
      %v3372 = vsel %vm2357, %v3333, 0
      %3374 = vmatprep.subr.bf16.mxu0 0
      %3375 = vmatpush1.bf16.msra.mxu0 0
      %3376 = vmatprep.subr.bf16.mxu0 0
      %3377 = vmatpush1.bf16.msra.mxu0 0
      %3378 = vmatprep.subr.bf16.mxu0 0
      %3379 = vmatpush1.bf16.msra.mxu0 0
      %3380 = vmatprep.subr.bf16.mxu0 0
      %3381 = vmatpush1.bf16.msra.mxu0 0
      %3382 = vmatprep.subr.bf16.mxu0 0
      %3383 = vmatpush1.bf16.msra.mxu0 %v3354
      %3384 = vmatprep.subr.bf16.mxu0 0
      %3385 = vmatpush1.bf16.msra.mxu0 %v3353
      %3386 = vmatprep.subr.bf16.mxu0 0
      %3387 = vmatpush1.bf16.msra.mxu0 %v3352
      %3388 = vmatprep.subr.bf16.mxu0 0
      %3389 = vmatpush1.bf16.msra.mxu0 %v3351
      %3390 = vmatprep.subr.bf16.mxu0 0
      %3391 = vmatpush2.bf16.msra.mxu0 0
      %3392 = vmatprep.subr.bf16.mxu0 0
      %3393 = vmatpush2.bf16.msra.mxu0 0
      %3394 = vmatprep.subr.bf16.mxu0 0
      %3395 = vmatpush2.bf16.msra.mxu0 0
      %3396 = vmatprep.subr.bf16.mxu0 0
      %3397 = vmatpush2.bf16.msra.mxu0 0
      %3398 = vmatprep.subr.bf16.mxu0 0
      %3399 = vmatpush2.bf16.msra.mxu0 0
      %3400 = vmatprep.subr.bf16.mxu0 0
      %3401 = vmatpush2.bf16.msra.mxu0 0
      %3402 = vmatprep.subr.bf16.mxu0 0
      %3403 = vmatpush2.bf16.msra.mxu0 0
      %3404 = vmatprep.subr.bf16.mxu0 0
      %3405 = vmatpush2.bf16.msra.mxu0 0
      %3406 = vmatprep.mubr.bf16.mxu0 0
      %3407 = vmatmul.mubr.bf16.gmra.mxu0 %v3360
      %v3408 = vpop.f32.mrf.mxu0
      %v3409 = vadd.f32 0.0, %v3408
      %v3410 = vpop.f32.mrf.mxu0
      %v3411 = vpop.f32.mrf.mxu0
      %v3412 = vadd.f32 0.0, %v3411
      %v3413 = vpop.f32.mrf.mxu0
      %3414 = vmatprep.mubr.bf16.mxu0 0
      %3415 = vmatmul.mubr.bf16.gmra.mxu0 %v3363
      %v3416 = vpop.f32.mrf.mxu0
      %v3417 = vadd.f32 0.0, %v3416
      %v3418 = vpop.f32.mrf.mxu0
      %v3419 = vpop.f32.mrf.mxu0
      %v3420 = vadd.f32 0.0, %v3419
      %v3421 = vpop.f32.mrf.mxu0
      %3422 = vmatprep.mubr.bf16.mxu0 0
      %3423 = vmatmul.mubr.bf16.gmra.mxu0 %v3366
      %v3424 = vpop.f32.mrf.mxu0
      %v3425 = vadd.f32 0.0, %v3424
      %v3426 = vpop.f32.mrf.mxu0
      %v3427 = vpop.f32.mrf.mxu0
      %v3428 = vadd.f32 0.0, %v3427
      %v3429 = vpop.f32.mrf.mxu0
      %3430 = vmatprep.mubr.bf16.mxu0 0
      %3431 = vmatmul.mubr.bf16.gmra.mxu0 %v3369
      %v3432 = vpop.f32.mrf.mxu0
      %v3433 = vadd.f32 0.0, %v3432
      %v3434 = vpop.f32.mrf.mxu0
      %v3435 = vpop.f32.mrf.mxu0
      %v3436 = vadd.f32 0.0, %v3435
      %v3437 = vpop.f32.mrf.mxu0
      %3438 = vmatprep.mubr.bf16.mxu0 0
      %3439 = vmatmul.mubr.bf16.gmra.mxu0 %v3372
      %v3440 = vpop.f32.mrf.mxu0
      %v3441 = vadd.f32 0.0, %v3440
      %v3442 = vpop.f32.mrf.mxu0
      %v3443 = vpop.f32.mrf.mxu0
      %v3444 = vpop.f32.mrf.mxu0
      %3445 = vdwg.mxu0
      %v3446 = vadd.f32 %v3287, %v3409
      %v3447 = vadd.f32 %v3288, %v3412
      %v3448 = vadd.f32 %v3289, %v3417
      %v3449 = vadd.f32 %v3290, %v3420
      %v3450 = vadd.f32 %v3291, %v3425
      %v3451 = vadd.f32 %v3292, %v3428
      %v3452 = vadd.f32 %v3293, %v3433
      %v3453 = vadd.f32 %v3294, %v3436
      %v3454 = vadd.f32 %v3295, %v3441
      %v3455 = vpack.c.bf16 %v2271, %v2270
      %s3456 = scalar_lea.vmem %s5, 256
      %v3457 = vld [vmem:[%s3456] sm:$0xf]
      %v3458 = vld [vmem:[%s3456 + $0x4] sm:$0xf]
      %v3459 = vld [vmem:[%s3456 + $0x8] sm:$0xf]
      %v3460 = vld [vmem:[%s3456 + $0xc] sm:$0xf]
      %v3461 = vld [vmem:[%s3456 + $0x10] sm:$0xf]
      %v3462 = vld [vmem:[%s3456 + $0x14] sm:$0xf]
      %v3463 = vld [vmem:[%s3456 + $0x18] sm:$0xf]
      %v3464 = vld [vmem:[%s3456 + $0x1c] sm:$0xf]
      %vm3466 = vcmask 1044480
      %v3467 = vrot.slane %v2273, 3
      %v3468 = vrot.slane %v2274, 3
      %v3469 = vsel %vm3466, %v3467, %v3468
      %v3470 = vrot.slane %v2275, 3
      %v3471 = vsel %vm3466, %v3468, %v3470
      %v3472 = vrot.slane %v3154, 3
      %v3473 = vsel %vm3466, %v3470, %v3472
      %v3474 = vrot.slane %v3455, 3
      %v3475 = vsel %vm3466, %v3472, %v3474
      %v3484 = vunpack.c.l.b16 %v3457
      %v3485 = vunpack.c.l.b16 %v3458
      %v3486 = vunpack.c.l.b16 %v3459
      %v3487 = vunpack.c.l.b16 %v3460
      %v3488 = vunpack.c.l.b16 %v3461
      %v3489 = vunpack.c.l.b16 %v3462
      %v3490 = vunpack.c.l.b16 %v3463
      %v3491 = vunpack.c.l.b16 %v3464
      %v3492 = vpack.c.b16 %v3485, %v3484
      %v3493 = vpack.c.b16 %v3487, %v3486
      %v3494 = vpack.c.b16 %v3489, %v3488
      %v3495 = vpack.c.b16 %v3491, %v3490
      %v3501 = vsel %vm2357, %v3469, 0
      %v3504 = vsel %vm2357, %v3471, 0
      %v3507 = vsel %vm2357, %v3473, 0
      %v3510 = vsel %vm2357, %v3475, 0
      %v3513 = vsel %vm2357, %v3474, 0
      %3515 = vmatprep.subr.bf16.mxu0 0
      %3516 = vmatpush1.bf16.msra.mxu0 0
      %3517 = vmatprep.subr.bf16.mxu0 0
      %3518 = vmatpush1.bf16.msra.mxu0 0
      %3519 = vmatprep.subr.bf16.mxu0 0
      %3520 = vmatpush1.bf16.msra.mxu0 0
      %3521 = vmatprep.subr.bf16.mxu0 0
      %3522 = vmatpush1.bf16.msra.mxu0 0
      %3523 = vmatprep.subr.bf16.mxu0 0
      %3524 = vmatpush1.bf16.msra.mxu0 %v3495
      %3525 = vmatprep.subr.bf16.mxu0 0
      %3526 = vmatpush1.bf16.msra.mxu0 %v3494
      %3527 = vmatprep.subr.bf16.mxu0 0
      %3528 = vmatpush1.bf16.msra.mxu0 %v3493
      %3529 = vmatprep.subr.bf16.mxu0 0
      %3530 = vmatpush1.bf16.msra.mxu0 %v3492
      %3531 = vmatprep.subr.bf16.mxu0 0
      %3532 = vmatpush2.bf16.msra.mxu0 0
      %3533 = vmatprep.subr.bf16.mxu0 0
      %3534 = vmatpush2.bf16.msra.mxu0 0
      %3535 = vmatprep.subr.bf16.mxu0 0
      %3536 = vmatpush2.bf16.msra.mxu0 0
      %3537 = vmatprep.subr.bf16.mxu0 0
      %3538 = vmatpush2.bf16.msra.mxu0 0
      %3539 = vmatprep.subr.bf16.mxu0 0
      %3540 = vmatpush2.bf16.msra.mxu0 0
      %3541 = vmatprep.subr.bf16.mxu0 0
      %3542 = vmatpush2.bf16.msra.mxu0 0
      %3543 = vmatprep.subr.bf16.mxu0 0
      %3544 = vmatpush2.bf16.msra.mxu0 0
      %3545 = vmatprep.subr.bf16.mxu0 0
      %3546 = vmatpush2.bf16.msra.mxu0 0
      %3547 = vmatprep.mubr.bf16.mxu0 0
      %3548 = vmatmul.mubr.bf16.gmra.mxu0 %v3501
      %v3549 = vpop.f32.mrf.mxu0
      %v3550 = vadd.f32 0.0, %v3549
      %v3551 = vpop.f32.mrf.mxu0
      %v3552 = vpop.f32.mrf.mxu0
      %v3553 = vadd.f32 0.0, %v3552
      %v3554 = vpop.f32.mrf.mxu0
      %3555 = vmatprep.mubr.bf16.mxu0 0
      %3556 = vmatmul.mubr.bf16.gmra.mxu0 %v3504
      %v3557 = vpop.f32.mrf.mxu0
      %v3558 = vadd.f32 0.0, %v3557
      %v3559 = vpop.f32.mrf.mxu0
      %v3560 = vpop.f32.mrf.mxu0
      %v3561 = vadd.f32 0.0, %v3560
      %v3562 = vpop.f32.mrf.mxu0
      %3563 = vmatprep.mubr.bf16.mxu0 0
      %3564 = vmatmul.mubr.bf16.gmra.mxu0 %v3507
      %v3565 = vpop.f32.mrf.mxu0
      %v3566 = vadd.f32 0.0, %v3565
      %v3567 = vpop.f32.mrf.mxu0
      %v3568 = vpop.f32.mrf.mxu0
      %v3569 = vadd.f32 0.0, %v3568
      %v3570 = vpop.f32.mrf.mxu0
      %3571 = vmatprep.mubr.bf16.mxu0 0
      %3572 = vmatmul.mubr.bf16.gmra.mxu0 %v3510
      %v3573 = vpop.f32.mrf.mxu0
      %v3574 = vadd.f32 0.0, %v3573
      %v3575 = vpop.f32.mrf.mxu0
      %v3576 = vpop.f32.mrf.mxu0
      %v3577 = vadd.f32 0.0, %v3576
      %v3578 = vpop.f32.mrf.mxu0
      %3579 = vmatprep.mubr.bf16.mxu0 0
      %3580 = vmatmul.mubr.bf16.gmra.mxu0 %v3513
      %v3581 = vpop.f32.mrf.mxu0
      %v3582 = vadd.f32 0.0, %v3581
      %v3583 = vpop.f32.mrf.mxu0
      %v3584 = vpop.f32.mrf.mxu0
      %v3585 = vpop.f32.mrf.mxu0
      %3586 = vdwg.mxu0
      %v3587 = vadd.f32 %v3446, %v3550
      %v3588 = vadd.f32 %v3447, %v3553
      %v3589 = vadd.f32 %v3448, %v3558
      %v3590 = vadd.f32 %v3449, %v3561
      %v3591 = vadd.f32 %v3450, %v3566
      %v3592 = vadd.f32 %v3451, %v3569
      %v3593 = vadd.f32 %v3452, %v3574
      %v3594 = vadd.f32 %v3453, %v3577
      %v3595 = vadd.f32 %v3454, %v3582
      %v3596 = vld [vmem:[%s6] sm:$0x1]
      %v3598 = vlaneseq
      %v3599 = vshrl.u32 %v3598, 7
      %v3600 = vsub.s32 0, %v3599
      %v3601 = vrot.slane %v3596, %v3600
      %v3603 = vadd.f32 %v3587, %v3601
      %v3604 = vadd.f32 %v3588, %v3601
      %v3605 = vadd.f32 %v3589, %v3601
      %v3606 = vadd.f32 %v3590, %v3601
      %v3607 = vadd.f32 %v3591, %v3601
      %v3608 = vadd.f32 %v3592, %v3601
      %v3609 = vadd.f32 %v3593, %v3601
      %v3610 = vadd.f32 %v3594, %v3601
      %v3611 = vadd.f32 %v3595, %v3601
      %v3612 = vmax.f32 %v3603, 0.0
      %v3613 = vmax.f32 %v3604, 0.0
      %v3614 = vmax.f32 %v3605, 0.0
      %v3615 = vmax.f32 %v3606, 0.0
      %v3616 = vmax.f32 %v3607, 0.0
      %v3617 = vmax.f32 %v3608, 0.0
      %v3618 = vmax.f32 %v3609, 0.0
      %v3619 = vmax.f32 %v3610, 0.0
      %v3620 = vmax.f32 %v3611, 0.0
      %v3621 = vpack.c.bf16 %v3613, %v3612
      %v3622 = vpack.c.bf16 %v3615, %v3614
      %v3623 = vpack.c.bf16 %v3617, %v3616
      %v3624 = vpack.c.bf16 %v3619, %v3618
      %v3625 = vpack.c.bf16 %v3620, %v3620
      %v3631 = vunpack.c.l.b16 %v3621
      %v3632 = vunpack.c.h.b16 %v3621
      %v3633 = vunpack.c.l.b16 %v3622
      %v3634 = vunpack.c.h.b16 %v3622
      %v3635 = vunpack.c.l.b16 %v3623
      %v3636 = vunpack.c.h.b16 %v3623
      %v3637 = vunpack.c.l.b16 %v3624
      %v3638 = vunpack.c.h.b16 %v3624
      %v3639 = vunpack.c.l.b16 %v3625
      %v3640 = vpack.c.b16 %v3631, %v3631
      %v3641 = vpack.c.b16 %v3632, %v3632
      %v3642 = vpack.c.b16 %v3633, %v3633
      %v3643 = vpack.c.b16 %v3634, %v3634
      %v3644 = vpack.c.b16 %v3635, %v3635
      %v3645 = vpack.c.b16 %v3636, %v3636
      %v3646 = vpack.c.b16 %v3637, %v3637
      %v3647 = vpack.c.b16 %v3638, %v3638
      %v3648 = vpack.c.b16 %v3639, %v3639
      %vm3658 = vcmask 257024
      %3659 = vst.msk [vmem:[%s278] sm:$0xf] %vm3658, %v3640
      %3660 = vst.msk [vmem:[%s278 + $0x4] sm:$0xf] %vm3658, %v3641
      %3661 = vst.msk [vmem:[%s278 + $0x8] sm:$0xf] %vm3658, %v3642
      %3662 = vst.msk [vmem:[%s278 + $0xc] sm:$0xf] %vm3658, %v3643
      %3663 = vst.msk [vmem:[%s278 + $0x10] sm:$0xf] %vm3658, %v3644
      %3664 = vst.msk [vmem:[%s278 + $0x14] sm:$0xf] %vm3658, %v3645
      %3665 = vst.msk [vmem:[%s278 + $0x18] sm:$0xf] %vm3658, %v3646
      %3666 = vst.msk [vmem:[%s278 + $0x1c] sm:$0xf] %vm3658, %v3647
      %vm3667 = vcmask 254976
      %vm3668 = vsmask.f32 1280
      %vm3669 = vmand %vm3667, %vm3668
      %v3670 = vld [vmem:[%s278 + $0x20] sm:$0x3]
      %v3671 = vsel %vm3669, %v3648, %v3670
      %3672 = vst [vmem:[%s278 + $0x20] sm:$0x3] %v3671
      %p3673 = scmp.lt.s32.totalorder %s18, 1
      %s3674 = scalar_select %p3673, %s18, 1
      %s3675 = smul.addr %s3674, 9
      %s3676 = smul.addr %s3675, 4
      %s3677 = scalar_lea.vmem %s7, %s3676
      // Predicated region
      $region49: #{cnn_base_shared_forward.2} parent=47 // pred_check
        %p3678 = pneg %p188
      $region50: #{cnn_base_shared_forward.2} parent=47 // pred_check_branch
        %3680 = sbr.rel (%p3678) target = $region52
      $region51: #{cnn_base_shared_forward.2} parent=47 // pred_region
        _
      $region52: #{cnn_base_shared_forward.2} parent=47 // pred_fallthru
        _
    $region48: #{cnn_base_shared_forward.2} parent=5 // pred_fallthru
      _
    %p3681 = scmp.le.s32.totalorder 2, %s13
    // Predicated region
    $region53: #{cnn_base_shared_forward.2} parent=5 // pred_check
      %p3682 = pneg %p3681
    $region54: #{cnn_base_shared_forward.2} parent=5 // pred_check_branch
      %3684 = sbr.rel (%p3682) target = $region56
    $region55: #{cnn_base_shared_forward.2} parent=5 // pred_region
      %s3685 = ssub.s32 %s13, 2
      // Predicated region
      $region57: #{cnn_base_shared_forward.2} parent=55 // pred_check
        %p3686 = pneg %p194
      $region58: #{cnn_base_shared_forward.2} parent=55 // pred_check_branch
        %3688 = sbr.rel (%p3686) target = $region60
      $region59: #{cnn_base_shared_forward.2} parent=55 // pred_region
        %p3689 = scmp.lt.s32.totalorder %s19, 1
        %s3690 = scalar_select %p3689, %s19, 1
        %s3691 = smul.addr %s3690, 9
        %s3692 = smul.addr %s3691, 4
        %s3693 = scalar_lea.vmem %s7, %s3692
      $region60: #{cnn_base_shared_forward.2} parent=55 // pred_fallthru
        _
    $region56: #{cnn_base_shared_forward.2} parent=5 // pred_fallthru
      _
  $region6: #{cnn_base_shared_forward.2} parent=0 // loop_footer
    %s17 = sadd.s32 1, %s13
  $region7: #{cnn_base_shared_forward.2} parent=0 // loop_footer_branch
    %12 = sbr.rel target = $region3
  $region8: #{cnn_base_shared_forward.2} parent=0 // loop_exit
    _

// kernel: cnn_base_shared_forward.3
$region0: #{cnn_base_shared_forward.3}
  #allocation0 [shape = 'u32[]', space=smem, size = 0x4, offset = 0x4, fixed_abs, tag = 'smem constant byte address 0x4 - core index']
  #allocation1 [shape = 'u32[144,128]{1,0:T(1,128)}', space=vmem, size = 0x12000, scoped, tag = 'internal scratch']
  %s0 = inlined_call_operand.vmem [shape: bf16[2,2144], index: 0, kind: input, shape index: {}]
  %s1 = inlined_call_operand.vmem [shape: bf16[2144,512], index: 1, kind: input, shape index: {}]
  %s2 = inlined_call_operand.vmem [shape: f32[1,512], index: 2, kind: input, shape index: {}]
  %s3 = inlined_call_operand.vmem [shape: bf16[512,7], index: 3, kind: input, shape index: {}]
  %s4 = inlined_call_operand.vmem [shape: f32[1,7], index: 4, kind: input, shape index: {}]
  %s5 = inlined_call_operand.vmem [shape: f32[2,7], index: 5, kind: output, shape index: {}]
  %s6 = sld [smem:[#allocation0]]
  $region30: #{cnn_base_shared_forward.3} parent=0
    _
  %s8 = ssub.s32 1, %s6
  %s9 = scalar_select 0, %s8, %s6
  // Predicated region
  $region2: #{cnn_base_shared_forward.3} parent=0 // pred_check
    _
  $region3: #{cnn_base_shared_forward.3} parent=0 // pred_check_branch
    %11 = sbr.rel (0) target = $region5
  $region4: #{cnn_base_shared_forward.3} parent=0 // pred_region
    _
  $region5: #{cnn_base_shared_forward.3} parent=0 // pred_fallthru
    _
  // Predicated region
  $region6: #{cnn_base_shared_forward.3} parent=0 // pred_check
    _
  $region7: #{cnn_base_shared_forward.3} parent=0 // pred_check_branch
    %13 = sbr.rel (0) target = $region9
  $region8: #{cnn_base_shared_forward.3} parent=0 // pred_region
    _
  $region9: #{cnn_base_shared_forward.3} parent=0 // pred_fallthru
    _
  // Predicated region
  $region10: #{cnn_base_shared_forward.3} parent=0 // pred_check
    _
  $region11: #{cnn_base_shared_forward.3} parent=0 // pred_check_branch
    %15 = sbr.rel (0) target = $region13
  $region12: #{cnn_base_shared_forward.3} parent=0 // pred_region
    _
  $region13: #{cnn_base_shared_forward.3} parent=0 // pred_fallthru
    _
  // Predicated region
  $region14: #{cnn_base_shared_forward.3} parent=0 // pred_check
    _
  $region15: #{cnn_base_shared_forward.3} parent=0 // pred_check_branch
    %17 = sbr.rel (0) target = $region17
  $region16: #{cnn_base_shared_forward.3} parent=0 // pred_region
    _
  $region17: #{cnn_base_shared_forward.3} parent=0 // pred_fallthru
    _
  // Predicated region
  $region18: #{cnn_base_shared_forward.3} parent=0 // pred_check
    _
  $region19: #{cnn_base_shared_forward.3} parent=0 // pred_check_branch
    %19 = sbr.rel (0) target = $region21
  $region20: #{cnn_base_shared_forward.3} parent=0 // pred_region
    _
  $region21: #{cnn_base_shared_forward.3} parent=0 // pred_fallthru
    _
  %v21 = vld [vmem:[%s0] sm:$0xff]
  %v22 = vld [vmem:[%s0 + $0x8] sm:$0xff]
  %v23 = vld [vmem:[%s0 + $0x10] sm:$0x1]
  %v24 = vld [vmem:[%s1] sm:$0xff]
  %v25 = vld [vmem:[%s1 + $0x8] sm:$0xff]
  %v26 = vld [vmem:[%s1 + $0x10] sm:$0xff]
  %v27 = vld [vmem:[%s1 + $0x18] sm:$0xff]
  %v28 = vld [vmem:[%s1 + $0x20] sm:$0xff]
  %v29 = vld [vmem:[%s1 + $0x28] sm:$0xff]
  %v30 = vld [vmem:[%s1 + $0x30] sm:$0xff]
  %v31 = vld [vmem:[%s1 + $0x38] sm:$0xff]
  %v32 = vld [vmem:[%s1 + $0x40] sm:$0xff]
  %v33 = vld [vmem:[%s1 + $0x48] sm:$0xff]
  %v34 = vld [vmem:[%s1 + $0x50] sm:$0xff]
  %v35 = vld [vmem:[%s1 + $0x58] sm:$0xff]
  %v36 = vld [vmem:[%s1 + $0x60] sm:$0xff]
  %v37 = vld [vmem:[%s1 + $0x68] sm:$0xff]
  %v38 = vld [vmem:[%s1 + $0x70] sm:$0xff]
  %v39 = vld [vmem:[%s1 + $0x78] sm:$0xff]
  %v40 = vld [vmem:[%s1 + $0x80] sm:$0xff]
  %v41 = vld [vmem:[%s1 + $0x88] sm:$0xff]
  %v42 = vld [vmem:[%s1 + $0x90] sm:$0xff]
  %v43 = vld [vmem:[%s1 + $0x98] sm:$0xff]
  %v44 = vld [vmem:[%s1 + $0xa0] sm:$0xff]
  %v45 = vld [vmem:[%s1 + $0xa8] sm:$0xff]
  %v46 = vld [vmem:[%s1 + $0xb0] sm:$0xff]
  %v47 = vld [vmem:[%s1 + $0xb8] sm:$0xff]
  %v48 = vld [vmem:[%s1 + $0xc0] sm:$0xff]
  %v49 = vld [vmem:[%s1 + $0xc8] sm:$0xff]
  %v50 = vld [vmem:[%s1 + $0xd0] sm:$0xff]
  %v51 = vld [vmem:[%s1 + $0xd8] sm:$0xff]
  %v52 = vld [vmem:[%s1 + $0xe0] sm:$0xff]
  %v53 = vld [vmem:[%s1 + $0xe8] sm:$0xff]
  %v54 = vld [vmem:[%s1 + $0xf0] sm:$0xff]
  %v55 = vld [vmem:[%s1 + $0xf8] sm:$0xff]
  %v56 = vld [vmem:[%s1 + $0x100] sm:$0xff]
  %v57 = vld [vmem:[%s1 + $0x108] sm:$0xff]
  %v58 = vld [vmem:[%s1 + $0x110] sm:$0xff]
  %v59 = vld [vmem:[%s1 + $0x118] sm:$0xff]
  %v60 = vld [vmem:[%s1 + $0x120] sm:$0xff]
  %v61 = vld [vmem:[%s1 + $0x128] sm:$0xff]
  %v62 = vld [vmem:[%s1 + $0x130] sm:$0xff]
  %v63 = vld [vmem:[%s1 + $0x138] sm:$0xff]
  %v64 = vld [vmem:[%s1 + $0x140] sm:$0xff]
  %v65 = vld [vmem:[%s1 + $0x148] sm:$0xff]
  %v66 = vld [vmem:[%s1 + $0x150] sm:$0xff]
  %v67 = vld [vmem:[%s1 + $0x158] sm:$0xff]
  %v68 = vld [vmem:[%s1 + $0x160] sm:$0xff]
  %v69 = vld [vmem:[%s1 + $0x168] sm:$0xff]
  %v70 = vld [vmem:[%s1 + $0x170] sm:$0xff]
  %v71 = vld [vmem:[%s1 + $0x178] sm:$0xff]
  %v72 = vld [vmem:[%s1 + $0x180] sm:$0xff]
  %v73 = vld [vmem:[%s1 + $0x188] sm:$0xff]
  %v74 = vld [vmem:[%s1 + $0x190] sm:$0xff]
  %v75 = vld [vmem:[%s1 + $0x198] sm:$0xff]
  %v76 = vld [vmem:[%s1 + $0x1a0] sm:$0xff]
  %v77 = vld [vmem:[%s1 + $0x1a8] sm:$0xff]
  %v78 = vld [vmem:[%s1 + $0x1b0] sm:$0xff]
  %v79 = vld [vmem:[%s1 + $0x1b8] sm:$0xff]
  %v80 = vld [vmem:[%s1 + $0x1c0] sm:$0xff]
  %v81 = vld [vmem:[%s1 + $0x1c8] sm:$0xff]
  %v82 = vld [vmem:[%s1 + $0x1d0] sm:$0xff]
  %v83 = vld [vmem:[%s1 + $0x1d8] sm:$0xff]
  %v84 = vld [vmem:[%s1 + $0x1e0] sm:$0xff]
  %v85 = vld [vmem:[%s1 + $0x1e8] sm:$0xff]
  %v86 = vld [vmem:[%s1 + $0x1f0] sm:$0xff]
  %v87 = vld [vmem:[%s1 + $0x1f8] sm:$0xff]
  %v88 = vld [vmem:[%s1 + $0x200] sm:$0xff]
  %v89 = vld [vmem:[%s1 + $0x208] sm:$0xff]
  %v90 = vld [vmem:[%s1 + $0x210] sm:$0xff]
  %v91 = vld [vmem:[%s1 + $0x218] sm:$0xff]
  %v92 = vld [vmem:[%s1 + $0x220] sm:$0xff]
  %v93 = vld [vmem:[%s1 + $0x228] sm:$0xff]
  %v94 = vld [vmem:[%s1 + $0x230] sm:$0xff]
  %v95 = vld [vmem:[%s1 + $0x238] sm:$0xff]
  %v96 = vld [vmem:[%s1 + $0x240] sm:$0xff]
  %v97 = vld [vmem:[%s1 + $0x248] sm:$0xff]
  %v98 = vld [vmem:[%s1 + $0x250] sm:$0xff]
  %v99 = vld [vmem:[%s1 + $0x258] sm:$0xff]
  %v100 = vld [vmem:[%s1 + $0x260] sm:$0xff]
  %v101 = vld [vmem:[%s1 + $0x268] sm:$0xff]
  %v102 = vld [vmem:[%s1 + $0x270] sm:$0xff]
  %v103 = vld [vmem:[%s1 + $0x278] sm:$0xff]
  %v104 = vld [vmem:[%s1 + $0x280] sm:$0xff]
  %v105 = vld [vmem:[%s1 + $0x288] sm:$0xff]
  %v106 = vld [vmem:[%s1 + $0x290] sm:$0xff]
  %v107 = vld [vmem:[%s1 + $0x298] sm:$0xff]
  %v108 = vld [vmem:[%s1 + $0x2a0] sm:$0xff]
  %v109 = vld [vmem:[%s1 + $0x2a8] sm:$0xff]
  %v110 = vld [vmem:[%s1 + $0x2b0] sm:$0xff]
  %v111 = vld [vmem:[%s1 + $0x2b8] sm:$0xff]
  %v112 = vld [vmem:[%s1 + $0x2c0] sm:$0xff]
  %v113 = vld [vmem:[%s1 + $0x2c8] sm:$0xff]
  %v114 = vld [vmem:[%s1 + $0x2d0] sm:$0xff]
  %v115 = vld [vmem:[%s1 + $0x2d8] sm:$0xff]
  %v116 = vld [vmem:[%s1 + $0x2e0] sm:$0xff]
  %v117 = vld [vmem:[%s1 + $0x2e8] sm:$0xff]
  %v118 = vld [vmem:[%s1 + $0x2f0] sm:$0xff]
  %v119 = vld [vmem:[%s1 + $0x2f8] sm:$0xff]
  %v120 = vld [vmem:[%s1 + $0x300] sm:$0xff]
  %v121 = vld [vmem:[%s1 + $0x308] sm:$0xff]
  %v122 = vld [vmem:[%s1 + $0x310] sm:$0xff]
  %v123 = vld [vmem:[%s1 + $0x318] sm:$0xff]
  %v124 = vld [vmem:[%s1 + $0x320] sm:$0xff]
  %v125 = vld [vmem:[%s1 + $0x328] sm:$0xff]
  %v126 = vld [vmem:[%s1 + $0x330] sm:$0xff]
  %v127 = vld [vmem:[%s1 + $0x338] sm:$0xff]
  %v128 = vld [vmem:[%s1 + $0x340] sm:$0xff]
  %v129 = vld [vmem:[%s1 + $0x348] sm:$0xff]
  %v130 = vld [vmem:[%s1 + $0x350] sm:$0xff]
  %v131 = vld [vmem:[%s1 + $0x358] sm:$0xff]
  %v132 = vld [vmem:[%s1 + $0x360] sm:$0xff]
  %v133 = vld [vmem:[%s1 + $0x368] sm:$0xff]
  %v134 = vld [vmem:[%s1 + $0x370] sm:$0xff]
  %v135 = vld [vmem:[%s1 + $0x378] sm:$0xff]
  %v136 = vld [vmem:[%s1 + $0x380] sm:$0xff]
  %v137 = vld [vmem:[%s1 + $0x388] sm:$0xff]
  %v138 = vld [vmem:[%s1 + $0x390] sm:$0xff]
  %v139 = vld [vmem:[%s1 + $0x398] sm:$0xff]
  %v140 = vld [vmem:[%s1 + $0x3a0] sm:$0xff]
  %v141 = vld [vmem:[%s1 + $0x3a8] sm:$0xff]
  %v142 = vld [vmem:[%s1 + $0x3b0] sm:$0xff]
  %v143 = vld [vmem:[%s1 + $0x3b8] sm:$0xff]
  %v144 = vld [vmem:[%s1 + $0x3c0] sm:$0xff]
  %v145 = vld [vmem:[%s1 + $0x3c8] sm:$0xff]
  %v146 = vld [vmem:[%s1 + $0x3d0] sm:$0xff]
  %v147 = vld [vmem:[%s1 + $0x3d8] sm:$0xff]
  %v148 = vld [vmem:[%s1 + $0x3e0] sm:$0xff]
  %v149 = vld [vmem:[%s1 + $0x3e8] sm:$0xff]
  %v150 = vld [vmem:[%s1 + $0x3f0] sm:$0xff]
  %v151 = vld [vmem:[%s1 + $0x3f8] sm:$0xff]
  %v152 = vld [vmem:[%s1 + $0x400] sm:$0xff]
  %v153 = vld [vmem:[%s1 + $0x408] sm:$0xff]
  %v154 = vld [vmem:[%s1 + $0x410] sm:$0xff]
  %v155 = vld [vmem:[%s1 + $0x418] sm:$0xff]
  %v156 = vld [vmem:[%s1 + $0x420] sm:$0xff]
  %v157 = vld [vmem:[%s1 + $0x428] sm:$0xff]
  %v158 = vld [vmem:[%s1 + $0x430] sm:$0xff]
  %v159 = vld [vmem:[%s1 + $0x438] sm:$0xff]
  %v160 = vld [vmem:[%s1 + $0x440] sm:$0xff]
  %v161 = vld [vmem:[%s1 + $0x448] sm:$0xff]
  %v162 = vld [vmem:[%s1 + $0x450] sm:$0xff]
  %v163 = vld [vmem:[%s1 + $0x458] sm:$0xff]
  %v164 = vld [vmem:[%s1 + $0x460] sm:$0xff]
  %v165 = vld [vmem:[%s1 + $0x468] sm:$0xff]
  %v166 = vld [vmem:[%s1 + $0x470] sm:$0xff]
  %v167 = vld [vmem:[%s1 + $0x478] sm:$0xff]
  %v168 = vld [vmem:[%s1 + $0x480] sm:$0xff]
  %v169 = vld [vmem:[%s1 + $0x488] sm:$0xff]
  %v170 = vld [vmem:[%s1 + $0x490] sm:$0xff]
  %v171 = vld [vmem:[%s1 + $0x498] sm:$0xff]
  %v172 = vld [vmem:[%s1 + $0x4a0] sm:$0xff]
  %v173 = vld [vmem:[%s1 + $0x4a8] sm:$0xff]
  %v174 = vld [vmem:[%s1 + $0x4b0] sm:$0xff]
  %v175 = vld [vmem:[%s1 + $0x4b8] sm:$0xff]
  %v176 = vld [vmem:[%s1 + $0x4c0] sm:$0xff]
  %v177 = vld [vmem:[%s1 + $0x4c8] sm:$0xff]
  %v178 = vld [vmem:[%s1 + $0x4d0] sm:$0xff]
  %v179 = vld [vmem:[%s1 + $0x4d8] sm:$0xff]
  %v180 = vld [vmem:[%s1 + $0x4e0] sm:$0xff]
  %v181 = vld [vmem:[%s1 + $0x4e8] sm:$0xff]
  %v182 = vld [vmem:[%s1 + $0x4f0] sm:$0xff]
  %v183 = vld [vmem:[%s1 + $0x4f8] sm:$0xff]
  %v184 = vld [vmem:[%s1 + $0x500] sm:$0xff]
  %v185 = vld [vmem:[%s1 + $0x508] sm:$0xff]
  %v186 = vld [vmem:[%s1 + $0x510] sm:$0xff]
  %v187 = vld [vmem:[%s1 + $0x518] sm:$0xff]
  %v188 = vld [vmem:[%s1 + $0x520] sm:$0xff]
  %v189 = vld [vmem:[%s1 + $0x528] sm:$0xff]
  %v190 = vld [vmem:[%s1 + $0x530] sm:$0xff]
  %v191 = vld [vmem:[%s1 + $0x538] sm:$0xff]
  %v192 = vld [vmem:[%s1 + $0x540] sm:$0xff]
  %v193 = vld [vmem:[%s1 + $0x548] sm:$0xff]
  %v194 = vld [vmem:[%s1 + $0x550] sm:$0xff]
  %v195 = vld [vmem:[%s1 + $0x558] sm:$0xff]
  %v196 = vld [vmem:[%s1 + $0x560] sm:$0xff]
  %v197 = vld [vmem:[%s1 + $0x568] sm:$0xff]
  %v198 = vld [vmem:[%s1 + $0x570] sm:$0xff]
  %v199 = vld [vmem:[%s1 + $0x578] sm:$0xff]
  %v200 = vld [vmem:[%s1 + $0x580] sm:$0xff]
  %v201 = vld [vmem:[%s1 + $0x588] sm:$0xff]
  %v202 = vld [vmem:[%s1 + $0x590] sm:$0xff]
  %v203 = vld [vmem:[%s1 + $0x598] sm:$0xff]
  %v204 = vld [vmem:[%s1 + $0x5a0] sm:$0xff]
  %v205 = vld [vmem:[%s1 + $0x5a8] sm:$0xff]
  %v206 = vld [vmem:[%s1 + $0x5b0] sm:$0xff]
  %v207 = vld [vmem:[%s1 + $0x5b8] sm:$0xff]
  %v208 = vld [vmem:[%s1 + $0x5c0] sm:$0xff]
  %v209 = vld [vmem:[%s1 + $0x5c8] sm:$0xff]
  %v210 = vld [vmem:[%s1 + $0x5d0] sm:$0xff]
  %v211 = vld [vmem:[%s1 + $0x5d8] sm:$0xff]
  %v212 = vld [vmem:[%s1 + $0x5e0] sm:$0xff]
  %v213 = vld [vmem:[%s1 + $0x5e8] sm:$0xff]
  %v214 = vld [vmem:[%s1 + $0x5f0] sm:$0xff]
  %v215 = vld [vmem:[%s1 + $0x5f8] sm:$0xff]
  %v216 = vld [vmem:[%s1 + $0x600] sm:$0xff]
  %v217 = vld [vmem:[%s1 + $0x608] sm:$0xff]
  %v218 = vld [vmem:[%s1 + $0x610] sm:$0xff]
  %v219 = vld [vmem:[%s1 + $0x618] sm:$0xff]
  %v220 = vld [vmem:[%s1 + $0x620] sm:$0xff]
  %v221 = vld [vmem:[%s1 + $0x628] sm:$0xff]
  %v222 = vld [vmem:[%s1 + $0x630] sm:$0xff]
  %v223 = vld [vmem:[%s1 + $0x638] sm:$0xff]
  %v224 = vld [vmem:[%s1 + $0x640] sm:$0xff]
  %v225 = vld [vmem:[%s1 + $0x648] sm:$0xff]
  %v226 = vld [vmem:[%s1 + $0x650] sm:$0xff]
  %v227 = vld [vmem:[%s1 + $0x658] sm:$0xff]
  %v228 = vld [vmem:[%s1 + $0x660] sm:$0xff]
  %v229 = vld [vmem:[%s1 + $0x668] sm:$0xff]
  %v230 = vld [vmem:[%s1 + $0x670] sm:$0xff]
  %v231 = vld [vmem:[%s1 + $0x678] sm:$0xff]
  %v232 = vld [vmem:[%s1 + $0x680] sm:$0xff]
  %v233 = vld [vmem:[%s1 + $0x688] sm:$0xff]
  %v234 = vld [vmem:[%s1 + $0x690] sm:$0xff]
  %v235 = vld [vmem:[%s1 + $0x698] sm:$0xff]
  %v236 = vld [vmem:[%s1 + $0x6a0] sm:$0xff]
  %v237 = vld [vmem:[%s1 + $0x6a8] sm:$0xff]
  %v238 = vld [vmem:[%s1 + $0x6b0] sm:$0xff]
  %v239 = vld [vmem:[%s1 + $0x6b8] sm:$0xff]
  %v240 = vld [vmem:[%s1 + $0x6c0] sm:$0xff]
  %v241 = vld [vmem:[%s1 + $0x6c8] sm:$0xff]
  %v242 = vld [vmem:[%s1 + $0x6d0] sm:$0xff]
  %v243 = vld [vmem:[%s1 + $0x6d8] sm:$0xff]
  %v244 = vld [vmem:[%s1 + $0x6e0] sm:$0xff]
  %v245 = vld [vmem:[%s1 + $0x6e8] sm:$0xff]
  %v246 = vld [vmem:[%s1 + $0x6f0] sm:$0xff]
  %v247 = vld [vmem:[%s1 + $0x6f8] sm:$0xff]
  %v248 = vld [vmem:[%s1 + $0x700] sm:$0xff]
  %v249 = vld [vmem:[%s1 + $0x708] sm:$0xff]
  %v250 = vld [vmem:[%s1 + $0x710] sm:$0xff]
  %v251 = vld [vmem:[%s1 + $0x718] sm:$0xff]
  %v252 = vld [vmem:[%s1 + $0x720] sm:$0xff]
  %v253 = vld [vmem:[%s1 + $0x728] sm:$0xff]
  %v254 = vld [vmem:[%s1 + $0x730] sm:$0xff]
  %v255 = vld [vmem:[%s1 + $0x738] sm:$0xff]
  %v256 = vld [vmem:[%s1 + $0x740] sm:$0xff]
  %v257 = vld [vmem:[%s1 + $0x748] sm:$0xff]
  %v258 = vld [vmem:[%s1 + $0x750] sm:$0xff]
  %v259 = vld [vmem:[%s1 + $0x758] sm:$0xff]
  %v260 = vld [vmem:[%s1 + $0x760] sm:$0xff]
  %v261 = vld [vmem:[%s1 + $0x768] sm:$0xff]
  %v262 = vld [vmem:[%s1 + $0x770] sm:$0xff]
  %v263 = vld [vmem:[%s1 + $0x778] sm:$0xff]
  %v264 = vld [vmem:[%s1 + $0x780] sm:$0xff]
  %v265 = vld [vmem:[%s1 + $0x788] sm:$0xff]
  %v266 = vld [vmem:[%s1 + $0x790] sm:$0xff]
  %v267 = vld [vmem:[%s1 + $0x798] sm:$0xff]
  %v268 = vld [vmem:[%s1 + $0x7a0] sm:$0xff]
  %v269 = vld [vmem:[%s1 + $0x7a8] sm:$0xff]
  %v270 = vld [vmem:[%s1 + $0x7b0] sm:$0xff]
  %v271 = vld [vmem:[%s1 + $0x7b8] sm:$0xff]
  %v272 = vld [vmem:[%s1 + $0x7c0] sm:$0xff]
  %v273 = vld [vmem:[%s1 + $0x7c8] sm:$0xff]
  %v274 = vld [vmem:[%s1 + $0x7d0] sm:$0xff]
  %v275 = vld [vmem:[%s1 + $0x7d8] sm:$0xff]
  %v276 = vld [vmem:[%s1 + $0x7e0] sm:$0xff]
  %v277 = vld [vmem:[%s1 + $0x7e8] sm:$0xff]
  %v278 = vld [vmem:[%s1 + $0x7f0] sm:$0xff]
  %v279 = vld [vmem:[%s1 + $0x7f8] sm:$0xff]
  %v280 = vld [vmem:[%s1 + $0x800] sm:$0xff]
  %v281 = vld [vmem:[%s1 + $0x808] sm:$0xff]
  %v282 = vld [vmem:[%s1 + $0x810] sm:$0xff]
  %v283 = vld [vmem:[%s1 + $0x818] sm:$0xff]
  %v284 = vld [vmem:[%s1 + $0x820] sm:$0xff]
  %v285 = vld [vmem:[%s1 + $0x828] sm:$0xff]
  %v286 = vld [vmem:[%s1 + $0x830] sm:$0xff]
  %v287 = vld [vmem:[%s1 + $0x838] sm:$0xff]
  %v288 = vld [vmem:[%s1 + $0x840] sm:$0xff]
  %v289 = vld [vmem:[%s1 + $0x848] sm:$0xff]
  %v290 = vld [vmem:[%s1 + $0x850] sm:$0xff]
  %v291 = vld [vmem:[%s1 + $0x858] sm:$0xff]
  %v292 = vld [vmem:[%s1 + $0x860] sm:$0xff]
  %v293 = vld [vmem:[%s1 + $0x868] sm:$0xff]
  %v294 = vld [vmem:[%s1 + $0x870] sm:$0xff]
  %v295 = vld [vmem:[%s1 + $0x878] sm:$0xff]
  %v296 = vld [vmem:[%s1 + $0x880] sm:$0xff]
  %v297 = vld [vmem:[%s1 + $0x888] sm:$0xff]
  %v298 = vld [vmem:[%s1 + $0x890] sm:$0xff]
  %v299 = vld [vmem:[%s1 + $0x898] sm:$0xff]
  %v300 = vld [vmem:[%s1 + $0x8a0] sm:$0xff]
  %v301 = vld [vmem:[%s1 + $0x8a8] sm:$0xff]
  %v302 = vld [vmem:[%s1 + $0x8b0] sm:$0xff]
  %v303 = vld [vmem:[%s1 + $0x8b8] sm:$0xff]
  %v304 = vld [vmem:[%s1 + $0x8c0] sm:$0xff]
  %v305 = vld [vmem:[%s1 + $0x8c8] sm:$0xff]
  %v306 = vld [vmem:[%s1 + $0x8d0] sm:$0xff]
  %v307 = vld [vmem:[%s1 + $0x8d8] sm:$0xff]
  %v308 = vld [vmem:[%s1 + $0x8e0] sm:$0xff]
  %v309 = vld [vmem:[%s1 + $0x8e8] sm:$0xff]
  %v310 = vld [vmem:[%s1 + $0x8f0] sm:$0xff]
  %v311 = vld [vmem:[%s1 + $0x8f8] sm:$0xff]
  %v312 = vld [vmem:[%s1 + $0x900] sm:$0xff]
  %v313 = vld [vmem:[%s1 + $0x908] sm:$0xff]
  %v314 = vld [vmem:[%s1 + $0x910] sm:$0xff]
  %v315 = vld [vmem:[%s1 + $0x918] sm:$0xff]
  %v316 = vld [vmem:[%s1 + $0x920] sm:$0xff]
  %v317 = vld [vmem:[%s1 + $0x928] sm:$0xff]
  %v318 = vld [vmem:[%s1 + $0x930] sm:$0xff]
  %v319 = vld [vmem:[%s1 + $0x938] sm:$0xff]
  %v320 = vld [vmem:[%s1 + $0x940] sm:$0xff]
  %v321 = vld [vmem:[%s1 + $0x948] sm:$0xff]
  %v322 = vld [vmem:[%s1 + $0x950] sm:$0xff]
  %v323 = vld [vmem:[%s1 + $0x958] sm:$0xff]
  %v324 = vld [vmem:[%s1 + $0x960] sm:$0xff]
  %v325 = vld [vmem:[%s1 + $0x968] sm:$0xff]
  %v326 = vld [vmem:[%s1 + $0x970] sm:$0xff]
  %v327 = vld [vmem:[%s1 + $0x978] sm:$0xff]
  %v328 = vld [vmem:[%s1 + $0x980] sm:$0xff]
  %v329 = vld [vmem:[%s1 + $0x988] sm:$0xff]
  %v330 = vld [vmem:[%s1 + $0x990] sm:$0xff]
  %v331 = vld [vmem:[%s1 + $0x998] sm:$0xff]
  %v332 = vld [vmem:[%s1 + $0x9a0] sm:$0xff]
  %v333 = vld [vmem:[%s1 + $0x9a8] sm:$0xff]
  %v334 = vld [vmem:[%s1 + $0x9b0] sm:$0xff]
  %v335 = vld [vmem:[%s1 + $0x9b8] sm:$0xff]
  %v336 = vld [vmem:[%s1 + $0x9c0] sm:$0xff]
  %v337 = vld [vmem:[%s1 + $0x9c8] sm:$0xff]
  %v338 = vld [vmem:[%s1 + $0x9d0] sm:$0xff]
  %v339 = vld [vmem:[%s1 + $0x9d8] sm:$0xff]
  %v340 = vld [vmem:[%s1 + $0x9e0] sm:$0xff]
  %v341 = vld [vmem:[%s1 + $0x9e8] sm:$0xff]
  %v342 = vld [vmem:[%s1 + $0x9f0] sm:$0xff]
  %v343 = vld [vmem:[%s1 + $0x9f8] sm:$0xff]
  %v344 = vld [vmem:[%s1 + $0xa00] sm:$0xff]
  %v345 = vld [vmem:[%s1 + $0xa08] sm:$0xff]
  %v346 = vld [vmem:[%s1 + $0xa10] sm:$0xff]
  %v347 = vld [vmem:[%s1 + $0xa18] sm:$0xff]
  %v348 = vld [vmem:[%s1 + $0xa20] sm:$0xff]
  %v349 = vld [vmem:[%s1 + $0xa28] sm:$0xff]
  %v350 = vld [vmem:[%s1 + $0xa30] sm:$0xff]
  %v351 = vld [vmem:[%s1 + $0xa38] sm:$0xff]
  %v352 = vld [vmem:[%s1 + $0xa40] sm:$0xff]
  %v353 = vld [vmem:[%s1 + $0xa48] sm:$0xff]
  %v354 = vld [vmem:[%s1 + $0xa50] sm:$0xff]
  %v355 = vld [vmem:[%s1 + $0xa58] sm:$0xff]
  %v356 = vld [vmem:[%s1 + $0xa60] sm:$0xff]
  %v357 = vld [vmem:[%s1 + $0xa68] sm:$0xff]
  %v358 = vld [vmem:[%s1 + $0xa70] sm:$0xff]
  %v359 = vld [vmem:[%s1 + $0xa78] sm:$0xff]
  %v360 = vld [vmem:[%s1 + $0xa80] sm:$0xff]
  %v361 = vld [vmem:[%s1 + $0xa88] sm:$0xff]
  %v362 = vld [vmem:[%s1 + $0xa90] sm:$0xff]
  %v363 = vld [vmem:[%s1 + $0xa98] sm:$0xff]
  %v364 = vld [vmem:[%s1 + $0xaa0] sm:$0xff]
  %v365 = vld [vmem:[%s1 + $0xaa8] sm:$0xff]
  %v366 = vld [vmem:[%s1 + $0xab0] sm:$0xff]
  %v367 = vld [vmem:[%s1 + $0xab8] sm:$0xff]
  %v368 = vld [vmem:[%s1 + $0xac0] sm:$0xff]
  %v369 = vld [vmem:[%s1 + $0xac8] sm:$0xff]
  %v370 = vld [vmem:[%s1 + $0xad0] sm:$0xff]
  %v371 = vld [vmem:[%s1 + $0xad8] sm:$0xff]
  %v372 = vld [vmem:[%s1 + $0xae0] sm:$0xff]
  %v373 = vld [vmem:[%s1 + $0xae8] sm:$0xff]
  %v374 = vld [vmem:[%s1 + $0xaf0] sm:$0xff]
  %v375 = vld [vmem:[%s1 + $0xaf8] sm:$0xff]
  %v376 = vld [vmem:[%s1 + $0xb00] sm:$0xff]
  %v377 = vld [vmem:[%s1 + $0xb08] sm:$0xff]
  %v378 = vld [vmem:[%s1 + $0xb10] sm:$0xff]
  %v379 = vld [vmem:[%s1 + $0xb18] sm:$0xff]
  %v380 = vld [vmem:[%s1 + $0xb20] sm:$0xff]
  %v381 = vld [vmem:[%s1 + $0xb28] sm:$0xff]
  %v382 = vld [vmem:[%s1 + $0xb30] sm:$0xff]
  %v383 = vld [vmem:[%s1 + $0xb38] sm:$0xff]
  %v384 = vld [vmem:[%s1 + $0xb40] sm:$0xff]
  %v385 = vld [vmem:[%s1 + $0xb48] sm:$0xff]
  %v386 = vld [vmem:[%s1 + $0xb50] sm:$0xff]
  %v387 = vld [vmem:[%s1 + $0xb58] sm:$0xff]
  %v388 = vld [vmem:[%s1 + $0xb60] sm:$0xff]
  %v389 = vld [vmem:[%s1 + $0xb68] sm:$0xff]
  %v390 = vld [vmem:[%s1 + $0xb70] sm:$0xff]
  %v391 = vld [vmem:[%s1 + $0xb78] sm:$0xff]
  %v392 = vld [vmem:[%s1 + $0xb80] sm:$0xff]
  %v393 = vld [vmem:[%s1 + $0xb88] sm:$0xff]
  %v394 = vld [vmem:[%s1 + $0xb90] sm:$0xff]
  %v395 = vld [vmem:[%s1 + $0xb98] sm:$0xff]
  %v396 = vld [vmem:[%s1 + $0xba0] sm:$0xff]
  %v397 = vld [vmem:[%s1 + $0xba8] sm:$0xff]
  %v398 = vld [vmem:[%s1 + $0xbb0] sm:$0xff]
  %v399 = vld [vmem:[%s1 + $0xbb8] sm:$0xff]
  %v400 = vld [vmem:[%s1 + $0xbc0] sm:$0xff]
  %v401 = vld [vmem:[%s1 + $0xbc8] sm:$0xff]
  %v402 = vld [vmem:[%s1 + $0xbd0] sm:$0xff]
  %v403 = vld [vmem:[%s1 + $0xbd8] sm:$0xff]
  %v404 = vld [vmem:[%s1 + $0xbe0] sm:$0xff]
  %v405 = vld [vmem:[%s1 + $0xbe8] sm:$0xff]
  %v406 = vld [vmem:[%s1 + $0xbf0] sm:$0xff]
  %v407 = vld [vmem:[%s1 + $0xbf8] sm:$0xff]
  %v408 = vld [vmem:[%s1 + $0xc00] sm:$0xff]
  %v409 = vld [vmem:[%s1 + $0xc08] sm:$0xff]
  %v410 = vld [vmem:[%s1 + $0xc10] sm:$0xff]
  %v411 = vld [vmem:[%s1 + $0xc18] sm:$0xff]
  %v412 = vld [vmem:[%s1 + $0xc20] sm:$0xff]
  %v413 = vld [vmem:[%s1 + $0xc28] sm:$0xff]
  %v414 = vld [vmem:[%s1 + $0xc30] sm:$0xff]
  %v415 = vld [vmem:[%s1 + $0xc38] sm:$0xff]
  %v416 = vld [vmem:[%s1 + $0xc40] sm:$0xff]
  %v417 = vld [vmem:[%s1 + $0xc48] sm:$0xff]
  %v418 = vld [vmem:[%s1 + $0xc50] sm:$0xff]
  %v419 = vld [vmem:[%s1 + $0xc58] sm:$0xff]
  %v420 = vld [vmem:[%s1 + $0xc60] sm:$0xff]
  %v421 = vld [vmem:[%s1 + $0xc68] sm:$0xff]
  %v422 = vld [vmem:[%s1 + $0xc70] sm:$0xff]
  %v423 = vld [vmem:[%s1 + $0xc78] sm:$0xff]
  %v424 = vld [vmem:[%s1 + $0xc80] sm:$0xff]
  %v425 = vld [vmem:[%s1 + $0xc88] sm:$0xff]
  %v426 = vld [vmem:[%s1 + $0xc90] sm:$0xff]
  %v427 = vld [vmem:[%s1 + $0xc98] sm:$0xff]
  %v428 = vld [vmem:[%s1 + $0xca0] sm:$0xff]
  %v429 = vld [vmem:[%s1 + $0xca8] sm:$0xff]
  %v430 = vld [vmem:[%s1 + $0xcb0] sm:$0xff]
  %v431 = vld [vmem:[%s1 + $0xcb8] sm:$0xff]
  %v432 = vld [vmem:[%s1 + $0xcc0] sm:$0xff]
  %v433 = vld [vmem:[%s1 + $0xcc8] sm:$0xff]
  %v434 = vld [vmem:[%s1 + $0xcd0] sm:$0xff]
  %v435 = vld [vmem:[%s1 + $0xcd8] sm:$0xff]
  %v436 = vld [vmem:[%s1 + $0xce0] sm:$0xff]
  %v437 = vld [vmem:[%s1 + $0xce8] sm:$0xff]
  %v438 = vld [vmem:[%s1 + $0xcf0] sm:$0xff]
  %v439 = vld [vmem:[%s1 + $0xcf8] sm:$0xff]
  %v440 = vld [vmem:[%s1 + $0xd00] sm:$0xff]
  %v441 = vld [vmem:[%s1 + $0xd08] sm:$0xff]
  %v442 = vld [vmem:[%s1 + $0xd10] sm:$0xff]
  %v443 = vld [vmem:[%s1 + $0xd18] sm:$0xff]
  %v444 = vld [vmem:[%s1 + $0xd20] sm:$0xff]
  %v445 = vld [vmem:[%s1 + $0xd28] sm:$0xff]
  %v446 = vld [vmem:[%s1 + $0xd30] sm:$0xff]
  %v447 = vld [vmem:[%s1 + $0xd38] sm:$0xff]
  %v448 = vld [vmem:[%s1 + $0xd40] sm:$0xff]
  %v449 = vld [vmem:[%s1 + $0xd48] sm:$0xff]
  %v450 = vld [vmem:[%s1 + $0xd50] sm:$0xff]
  %v451 = vld [vmem:[%s1 + $0xd58] sm:$0xff]
  %v452 = vld [vmem:[%s1 + $0xd60] sm:$0xff]
  %v453 = vld [vmem:[%s1 + $0xd68] sm:$0xff]
  %v454 = vld [vmem:[%s1 + $0xd70] sm:$0xff]
  %v455 = vld [vmem:[%s1 + $0xd78] sm:$0xff]
  %v456 = vld [vmem:[%s1 + $0xd80] sm:$0xff]
  %v457 = vld [vmem:[%s1 + $0xd88] sm:$0xff]
  %v458 = vld [vmem:[%s1 + $0xd90] sm:$0xff]
  %v459 = vld [vmem:[%s1 + $0xd98] sm:$0xff]
  %v460 = vld [vmem:[%s1 + $0xda0] sm:$0xff]
  %v461 = vld [vmem:[%s1 + $0xda8] sm:$0xff]
  %v462 = vld [vmem:[%s1 + $0xdb0] sm:$0xff]
  %v463 = vld [vmem:[%s1 + $0xdb8] sm:$0xff]
  %v464 = vld [vmem:[%s1 + $0xdc0] sm:$0xff]
  %v465 = vld [vmem:[%s1 + $0xdc8] sm:$0xff]
  %v466 = vld [vmem:[%s1 + $0xdd0] sm:$0xff]
  %v467 = vld [vmem:[%s1 + $0xdd8] sm:$0xff]
  %v468 = vld [vmem:[%s1 + $0xde0] sm:$0xff]
  %v469 = vld [vmem:[%s1 + $0xde8] sm:$0xff]
  %v470 = vld [vmem:[%s1 + $0xdf0] sm:$0xff]
  %v471 = vld [vmem:[%s1 + $0xdf8] sm:$0xff]
  %v472 = vld [vmem:[%s1 + $0xe00] sm:$0xff]
  %v473 = vld [vmem:[%s1 + $0xe08] sm:$0xff]
  %v474 = vld [vmem:[%s1 + $0xe10] sm:$0xff]
  %v475 = vld [vmem:[%s1 + $0xe18] sm:$0xff]
  %v476 = vld [vmem:[%s1 + $0xe20] sm:$0xff]
  %v477 = vld [vmem:[%s1 + $0xe28] sm:$0xff]
  %v478 = vld [vmem:[%s1 + $0xe30] sm:$0xff]
  %v479 = vld [vmem:[%s1 + $0xe38] sm:$0xff]
  %v480 = vld [vmem:[%s1 + $0xe40] sm:$0xff]
  %v481 = vld [vmem:[%s1 + $0xe48] sm:$0xff]
  %v482 = vld [vmem:[%s1 + $0xe50] sm:$0xff]
  %v483 = vld [vmem:[%s1 + $0xe58] sm:$0xff]
  %v484 = vld [vmem:[%s1 + $0xe60] sm:$0xff]
  %v485 = vld [vmem:[%s1 + $0xe68] sm:$0xff]
  %v486 = vld [vmem:[%s1 + $0xe70] sm:$0xff]
  %v487 = vld [vmem:[%s1 + $0xe78] sm:$0xff]
  %v488 = vld [vmem:[%s1 + $0xe80] sm:$0xff]
  %v489 = vld [vmem:[%s1 + $0xe88] sm:$0xff]
  %v490 = vld [vmem:[%s1 + $0xe90] sm:$0xff]
  %v491 = vld [vmem:[%s1 + $0xe98] sm:$0xff]
  %v492 = vld [vmem:[%s1 + $0xea0] sm:$0xff]
  %v493 = vld [vmem:[%s1 + $0xea8] sm:$0xff]
  %v494 = vld [vmem:[%s1 + $0xeb0] sm:$0xff]
  %v495 = vld [vmem:[%s1 + $0xeb8] sm:$0xff]
  %v496 = vld [vmem:[%s1 + $0xec0] sm:$0xff]
  %v497 = vld [vmem:[%s1 + $0xec8] sm:$0xff]
  %v498 = vld [vmem:[%s1 + $0xed0] sm:$0xff]
  %v499 = vld [vmem:[%s1 + $0xed8] sm:$0xff]
  %v500 = vld [vmem:[%s1 + $0xee0] sm:$0xff]
  %v501 = vld [vmem:[%s1 + $0xee8] sm:$0xff]
  %v502 = vld [vmem:[%s1 + $0xef0] sm:$0xff]
  %v503 = vld [vmem:[%s1 + $0xef8] sm:$0xff]
  %v504 = vld [vmem:[%s1 + $0xf00] sm:$0xff]
  %v505 = vld [vmem:[%s1 + $0xf08] sm:$0xff]
  %v506 = vld [vmem:[%s1 + $0xf10] sm:$0xff]
  %v507 = vld [vmem:[%s1 + $0xf18] sm:$0xff]
  %v508 = vld [vmem:[%s1 + $0xf20] sm:$0xff]
  %v509 = vld [vmem:[%s1 + $0xf28] sm:$0xff]
  %v510 = vld [vmem:[%s1 + $0xf30] sm:$0xff]
  %v511 = vld [vmem:[%s1 + $0xf38] sm:$0xff]
  %v512 = vld [vmem:[%s1 + $0xf40] sm:$0xff]
  %v513 = vld [vmem:[%s1 + $0xf48] sm:$0xff]
  %v514 = vld [vmem:[%s1 + $0xf50] sm:$0xff]
  %v515 = vld [vmem:[%s1 + $0xf58] sm:$0xff]
  %v516 = vld [vmem:[%s1 + $0xf60] sm:$0xff]
  %v517 = vld [vmem:[%s1 + $0xf68] sm:$0xff]
  %v518 = vld [vmem:[%s1 + $0xf70] sm:$0xff]
  %v519 = vld [vmem:[%s1 + $0xf78] sm:$0xff]
  %v520 = vld [vmem:[%s1 + $0xf80] sm:$0xff]
  %v521 = vld [vmem:[%s1 + $0xf88] sm:$0xff]
  %v522 = vld [vmem:[%s1 + $0xf90] sm:$0xff]
  %v523 = vld [vmem:[%s1 + $0xf98] sm:$0xff]
  %v524 = vld [vmem:[%s1 + $0xfa0] sm:$0xff]
  %v525 = vld [vmem:[%s1 + $0xfa8] sm:$0xff]
  %v526 = vld [vmem:[%s1 + $0xfb0] sm:$0xff]
  %v527 = vld [vmem:[%s1 + $0xfb8] sm:$0xff]
  %v528 = vld [vmem:[%s1 + $0xfc0] sm:$0xff]
  %v529 = vld [vmem:[%s1 + $0xfc8] sm:$0xff]
  %v530 = vld [vmem:[%s1 + $0xfd0] sm:$0xff]
  %v531 = vld [vmem:[%s1 + $0xfd8] sm:$0xff]
  %v532 = vld [vmem:[%s1 + $0xfe0] sm:$0xff]
  %v533 = vld [vmem:[%s1 + $0xfe8] sm:$0xff]
  %v534 = vld [vmem:[%s1 + $0xff0] sm:$0xff]
  %v535 = vld [vmem:[%s1 + $0xff8] sm:$0xff]
  %v536 = vld [vmem:[%s1 + $0x1000] sm:$0xff]
  %v537 = vld [vmem:[%s1 + $0x1008] sm:$0xff]
  %v538 = vld [vmem:[%s1 + $0x1010] sm:$0xff]
  %v539 = vld [vmem:[%s1 + $0x1018] sm:$0xff]
  %v540 = vld [vmem:[%s1 + $0x1020] sm:$0xff]
  %v541 = vld [vmem:[%s1 + $0x1028] sm:$0xff]
  %v542 = vld [vmem:[%s1 + $0x1030] sm:$0xff]
  %v543 = vld [vmem:[%s1 + $0x1038] sm:$0xff]
  %v544 = vld [vmem:[%s1 + $0x1040] sm:$0xff]
  %v545 = vld [vmem:[%s1 + $0x1048] sm:$0xff]
  %v546 = vld [vmem:[%s1 + $0x1050] sm:$0xff]
  %v547 = vld [vmem:[%s1 + $0x1058] sm:$0xff]
  %v548 = vld [vmem:[%s1 + $0x1060] sm:$0xff]
  %v549 = vld [vmem:[%s1 + $0x1068] sm:$0xff]
  %v550 = vld [vmem:[%s1 + $0x1070] sm:$0xff]
  %v551 = vld [vmem:[%s1 + $0x1078] sm:$0xff]
  %v552 = vld [vmem:[%s1 + $0x1080] sm:$0xff]
  %v553 = vld [vmem:[%s1 + $0x1088] sm:$0xff]
  %v554 = vld [vmem:[%s1 + $0x1090] sm:$0xff]
  %v555 = vld [vmem:[%s1 + $0x1098] sm:$0xff]
  %v556 = vld [vmem:[%s1 + $0x10a0] sm:$0xff]
  %v557 = vld [vmem:[%s1 + $0x10a8] sm:$0xff]
  %v558 = vld [vmem:[%s1 + $0x10b0] sm:$0xff]
  %v559 = vld [vmem:[%s1 + $0x10b8] sm:$0xff]
  %v560 = vld [vmem:[%s2] sm:$0xf]
  %v562 = vlaneseq
  %v563 = vshrl.u32 %v562, 7
  %v564 = vsub.s32 0, %v563
  %v565 = vrot.slane %v560, %v564
  %v566 = vlaneseq
  %v567 = vshrl.u32 %v566, 7
  %v568 = vsub.s32 1, %v567
  %v569 = vrot.slane %v560, %v568
  %v570 = vlaneseq
  %v571 = vshrl.u32 %v570, 7
  %v572 = vsub.s32 2, %v571
  %v573 = vrot.slane %v560, %v572
  %v574 = vlaneseq
  %v575 = vshrl.u32 %v574, 7
  %v576 = vsub.s32 3, %v575
  %v577 = vrot.slane %v560, %v576
  %v585 = vcombine.high %v21, %v21
  %v587 = vunpack.c.l.s4 1966171168
  %v588 = vunpack.c.0.s8 %v587
  %v589 = vlaneseq
  %v590 = vshrl.u32 %v589, 7
  %v591 = vsub.s32 %v588, %v590
  %v592 = vrot.slane %v21, %v591
  %v594 = vunpack.c.l.s4 1966171168
  %v595 = vunpack.c.0.s8 %v594
  %v596 = vlaneseq
  %v597 = vshrl.u32 %v596, 7
  %v598 = vsub.s32 %v595, %v597
  %v599 = vrot.slane %v585, %v598
  %v600 = vcombine.high %v592, %v592
  %v601 = vcombine.high %v599, %v599
  %v603 = vunpack.c.l.s4 1966171168
  %v604 = vunpack.c.0.s8 %v603
  %v605 = vlaneseq
  %v606 = vshrl.u32 %v605, 7
  %v607 = vsub.s32 %v604, %v606
  %v608 = vrot.slane %v592, %v607
  %v610 = vunpack.c.l.s4 1966171168
  %v611 = vunpack.c.0.s8 %v610
  %v612 = vlaneseq
  %v613 = vshrl.u32 %v612, 7
  %v614 = vsub.s32 %v611, %v613
  %v615 = vrot.slane %v599, %v614
  %v617 = vunpack.c.l.s4 1966171168
  %v618 = vunpack.c.0.s8 %v617
  %v619 = vlaneseq
  %v620 = vshrl.u32 %v619, 7
  %v621 = vsub.s32 %v618, %v620
  %v622 = vrot.slane %v600, %v621
  %v624 = vunpack.c.l.s4 1966171168
  %v625 = vunpack.c.0.s8 %v624
  %v626 = vlaneseq
  %v627 = vshrl.u32 %v626, 7
  %v628 = vsub.s32 %v625, %v627
  %v629 = vrot.slane %v601, %v628
  %v630 = vcombine.high %v608, %v608
  %v631 = vcombine.high %v615, %v615
  %v632 = vcombine.high %v622, %v622
  %v633 = vcombine.high %v629, %v629
  %v634 = vcombine.high %v22, %v22
  %v636 = vunpack.c.l.s4 1966171168
  %v637 = vunpack.c.0.s8 %v636
  %v638 = vlaneseq
  %v639 = vshrl.u32 %v638, 7
  %v640 = vsub.s32 %v637, %v639
  %v641 = vrot.slane %v22, %v640
  %v643 = vunpack.c.l.s4 1966171168
  %v644 = vunpack.c.0.s8 %v643
  %v645 = vlaneseq
  %v646 = vshrl.u32 %v645, 7
  %v647 = vsub.s32 %v644, %v646
  %v648 = vrot.slane %v634, %v647
  %v649 = vcombine.high %v641, %v641
  %v650 = vcombine.high %v648, %v648
  %v652 = vunpack.c.l.s4 1966171168
  %v653 = vunpack.c.0.s8 %v652
  %v654 = vlaneseq
  %v655 = vshrl.u32 %v654, 7
  %v656 = vsub.s32 %v653, %v655
  %v657 = vrot.slane %v641, %v656
  %v659 = vunpack.c.l.s4 1966171168
  %v660 = vunpack.c.0.s8 %v659
  %v661 = vlaneseq
  %v662 = vshrl.u32 %v661, 7
  %v663 = vsub.s32 %v660, %v662
  %v664 = vrot.slane %v648, %v663
  %v666 = vunpack.c.l.s4 1966171168
  %v667 = vunpack.c.0.s8 %v666
  %v668 = vlaneseq
  %v669 = vshrl.u32 %v668, 7
  %v670 = vsub.s32 %v667, %v669
  %v671 = vrot.slane %v649, %v670
  %v673 = vunpack.c.l.s4 1966171168
  %v674 = vunpack.c.0.s8 %v673
  %v675 = vlaneseq
  %v676 = vshrl.u32 %v675, 7
  %v677 = vsub.s32 %v674, %v676
  %v678 = vrot.slane %v650, %v677
  %v679 = vcombine.high %v657, %v657
  %v680 = vcombine.high %v664, %v664
  %v681 = vcombine.high %v671, %v671
  %v682 = vcombine.high %v678, %v678
  %v684 = vunpack.c.l.s4 1966171168
  %v685 = vunpack.c.0.s8 %v684
  %v686 = vlaneseq
  %v687 = vshrl.u32 %v686, 7
  %v688 = vsub.s32 %v685, %v687
  %v689 = vrot.slane %v23, %v688
  %v691 = vunpack.c.l.s4 1966171168
  %v692 = vunpack.c.0.s8 %v691
  %v693 = vlaneseq
  %v694 = vshrl.u32 %v693, 7
  %v695 = vsub.s32 %v692, %v694
  %v696 = vrot.slane %v689, %v695
  %v1249 = vunpack.c.l.b16 %v24
  %v1250 = vunpack.c.h.b16 %v24
  %v1251 = vunpack.c.l.b16 %v25
  %v1252 = vunpack.c.h.b16 %v25
  %v1253 = vunpack.c.l.b16 %v26
  %v1254 = vunpack.c.h.b16 %v26
  %v1255 = vunpack.c.l.b16 %v27
  %v1256 = vunpack.c.h.b16 %v27
  %v1257 = vunpack.c.l.b16 %v28
  %v1258 = vunpack.c.h.b16 %v28
  %v1259 = vunpack.c.l.b16 %v29
  %v1260 = vunpack.c.h.b16 %v29
  %v1261 = vunpack.c.l.b16 %v30
  %v1262 = vunpack.c.h.b16 %v30
  %v1263 = vunpack.c.l.b16 %v31
  %v1264 = vunpack.c.h.b16 %v31
  %v1265 = vunpack.c.l.b16 %v32
  %v1266 = vunpack.c.h.b16 %v32
  %v1267 = vunpack.c.l.b16 %v33
  %v1268 = vunpack.c.h.b16 %v33
  %v1269 = vunpack.c.l.b16 %v34
  %v1270 = vunpack.c.h.b16 %v34
  %v1271 = vunpack.c.l.b16 %v35
  %v1272 = vunpack.c.h.b16 %v35
  %v1273 = vunpack.c.l.b16 %v36
  %v1274 = vunpack.c.h.b16 %v36
  %v1275 = vunpack.c.l.b16 %v37
  %v1276 = vunpack.c.h.b16 %v37
  %v1277 = vunpack.c.l.b16 %v38
  %v1278 = vunpack.c.h.b16 %v38
  %v1279 = vunpack.c.l.b16 %v39
  %v1280 = vunpack.c.h.b16 %v39
  %v1281 = vunpack.c.l.b16 %v40
  %v1282 = vunpack.c.h.b16 %v40
  %v1283 = vunpack.c.l.b16 %v41
  %v1284 = vunpack.c.h.b16 %v41
  %v1285 = vunpack.c.l.b16 %v42
  %v1286 = vunpack.c.h.b16 %v42
  %v1287 = vunpack.c.l.b16 %v43
  %v1288 = vunpack.c.h.b16 %v43
  %v1289 = vunpack.c.l.b16 %v44
  %v1290 = vunpack.c.h.b16 %v44
  %v1291 = vunpack.c.l.b16 %v45
  %v1292 = vunpack.c.h.b16 %v45
  %v1293 = vunpack.c.l.b16 %v46
  %v1294 = vunpack.c.h.b16 %v46
  %v1295 = vunpack.c.l.b16 %v47
  %v1296 = vunpack.c.h.b16 %v47
  %v1297 = vunpack.c.l.b16 %v48
  %v1298 = vunpack.c.h.b16 %v48
  %v1299 = vunpack.c.l.b16 %v49
  %v1300 = vunpack.c.h.b16 %v49
  %v1301 = vunpack.c.l.b16 %v50
  %v1302 = vunpack.c.h.b16 %v50
  %v1303 = vunpack.c.l.b16 %v51
  %v1304 = vunpack.c.h.b16 %v51
  %v1305 = vunpack.c.l.b16 %v52
  %v1306 = vunpack.c.h.b16 %v52
  %v1307 = vunpack.c.l.b16 %v53
  %v1308 = vunpack.c.h.b16 %v53
  %v1309 = vunpack.c.l.b16 %v54
  %v1310 = vunpack.c.h.b16 %v54
  %v1311 = vunpack.c.l.b16 %v55
  %v1312 = vunpack.c.h.b16 %v55
  %v1313 = vunpack.c.l.b16 %v56
  %v1314 = vunpack.c.h.b16 %v56
  %v1315 = vunpack.c.l.b16 %v57
  %v1316 = vunpack.c.h.b16 %v57
  %v1317 = vunpack.c.l.b16 %v58
  %v1318 = vunpack.c.h.b16 %v58
  %v1319 = vunpack.c.l.b16 %v59
  %v1320 = vunpack.c.h.b16 %v59
  %v1321 = vunpack.c.l.b16 %v60
  %v1322 = vunpack.c.h.b16 %v60
  %v1323 = vunpack.c.l.b16 %v61
  %v1324 = vunpack.c.h.b16 %v61
  %v1325 = vunpack.c.l.b16 %v62
  %v1326 = vunpack.c.h.b16 %v62
  %v1327 = vunpack.c.l.b16 %v63
  %v1328 = vunpack.c.h.b16 %v63
  %v1329 = vunpack.c.l.b16 %v64
  %v1330 = vunpack.c.h.b16 %v64
  %v1331 = vunpack.c.l.b16 %v65
  %v1332 = vunpack.c.h.b16 %v65
  %v1333 = vunpack.c.l.b16 %v66
  %v1334 = vunpack.c.h.b16 %v66
  %v1335 = vunpack.c.l.b16 %v67
  %v1336 = vunpack.c.h.b16 %v67
  %v1337 = vunpack.c.l.b16 %v68
  %v1338 = vunpack.c.h.b16 %v68
  %v1339 = vunpack.c.l.b16 %v69
  %v1340 = vunpack.c.h.b16 %v69
  %v1341 = vunpack.c.l.b16 %v70
  %v1342 = vunpack.c.h.b16 %v70
  %v1343 = vunpack.c.l.b16 %v71
  %v1344 = vunpack.c.h.b16 %v71
  %v1345 = vunpack.c.l.b16 %v72
  %v1346 = vunpack.c.h.b16 %v72
  %v1347 = vunpack.c.l.b16 %v73
  %v1348 = vunpack.c.h.b16 %v73
  %v1349 = vunpack.c.l.b16 %v74
  %v1350 = vunpack.c.h.b16 %v74
  %v1351 = vunpack.c.l.b16 %v75
  %v1352 = vunpack.c.h.b16 %v75
  %v1353 = vunpack.c.l.b16 %v76
  %v1354 = vunpack.c.h.b16 %v76
  %v1355 = vunpack.c.l.b16 %v77
  %v1356 = vunpack.c.h.b16 %v77
  %v1357 = vunpack.c.l.b16 %v78
  %v1358 = vunpack.c.h.b16 %v78
  %v1359 = vunpack.c.l.b16 %v79
  %v1360 = vunpack.c.h.b16 %v79
  %v1361 = vunpack.c.l.b16 %v80
  %v1362 = vunpack.c.h.b16 %v80
  %v1363 = vunpack.c.l.b16 %v81
  %v1364 = vunpack.c.h.b16 %v81
  %v1365 = vunpack.c.l.b16 %v82
  %v1366 = vunpack.c.h.b16 %v82
  %v1367 = vunpack.c.l.b16 %v83
  %v1368 = vunpack.c.h.b16 %v83
  %v1369 = vunpack.c.l.b16 %v84
  %v1370 = vunpack.c.h.b16 %v84
  %v1371 = vunpack.c.l.b16 %v85
  %v1372 = vunpack.c.h.b16 %v85
  %v1373 = vunpack.c.l.b16 %v86
  %v1374 = vunpack.c.h.b16 %v86
  %v1375 = vunpack.c.l.b16 %v87
  %v1376 = vunpack.c.h.b16 %v87
  %v1377 = vunpack.c.l.b16 %v88
  %v1378 = vunpack.c.h.b16 %v88
  %v1379 = vunpack.c.l.b16 %v89
  %v1380 = vunpack.c.h.b16 %v89
  %v1381 = vunpack.c.l.b16 %v90
  %v1382 = vunpack.c.h.b16 %v90
  %v1383 = vunpack.c.l.b16 %v91
  %v1384 = vunpack.c.h.b16 %v91
  %v1385 = vunpack.c.l.b16 %v92
  %v1386 = vunpack.c.h.b16 %v92
  %v1387 = vunpack.c.l.b16 %v93
  %v1388 = vunpack.c.h.b16 %v93
  %v1389 = vunpack.c.l.b16 %v94
  %v1390 = vunpack.c.h.b16 %v94
  %v1391 = vunpack.c.l.b16 %v95
  %v1392 = vunpack.c.h.b16 %v95
  %v1393 = vunpack.c.l.b16 %v96
  %v1394 = vunpack.c.h.b16 %v96
  %v1395 = vunpack.c.l.b16 %v97
  %v1396 = vunpack.c.h.b16 %v97
  %v1397 = vunpack.c.l.b16 %v98
  %v1398 = vunpack.c.h.b16 %v98
  %v1399 = vunpack.c.l.b16 %v99
  %v1400 = vunpack.c.h.b16 %v99
  %v1401 = vunpack.c.l.b16 %v100
  %v1402 = vunpack.c.h.b16 %v100
  %v1403 = vunpack.c.l.b16 %v101
  %v1404 = vunpack.c.h.b16 %v101
  %v1405 = vunpack.c.l.b16 %v102
  %v1406 = vunpack.c.h.b16 %v102
  %v1407 = vunpack.c.l.b16 %v103
  %v1408 = vunpack.c.h.b16 %v103
  %v1409 = vunpack.c.l.b16 %v104
  %v1410 = vunpack.c.h.b16 %v104
  %v1411 = vunpack.c.l.b16 %v105
  %v1412 = vunpack.c.h.b16 %v105
  %v1413 = vunpack.c.l.b16 %v106
  %v1414 = vunpack.c.h.b16 %v106
  %v1415 = vunpack.c.l.b16 %v107
  %v1416 = vunpack.c.h.b16 %v107
  %v1417 = vunpack.c.l.b16 %v108
  %v1418 = vunpack.c.h.b16 %v108
  %v1419 = vunpack.c.l.b16 %v109
  %v1420 = vunpack.c.h.b16 %v109
  %v1421 = vunpack.c.l.b16 %v110
  %v1422 = vunpack.c.h.b16 %v110
  %v1423 = vunpack.c.l.b16 %v111
  %v1424 = vunpack.c.h.b16 %v111
  %v1425 = vunpack.c.l.b16 %v112
  %v1426 = vunpack.c.h.b16 %v112
  %v1427 = vunpack.c.l.b16 %v113
  %v1428 = vunpack.c.h.b16 %v113
  %v1429 = vunpack.c.l.b16 %v114
  %v1430 = vunpack.c.h.b16 %v114
  %v1431 = vunpack.c.l.b16 %v115
  %v1432 = vunpack.c.h.b16 %v115
  %v1433 = vunpack.c.l.b16 %v116
  %v1434 = vunpack.c.h.b16 %v116
  %v1435 = vunpack.c.l.b16 %v117
  %v1436 = vunpack.c.h.b16 %v117
  %v1437 = vunpack.c.l.b16 %v118
  %v1438 = vunpack.c.h.b16 %v118
  %v1439 = vunpack.c.l.b16 %v119
  %v1440 = vunpack.c.h.b16 %v119
  %v1441 = vunpack.c.l.b16 %v120
  %v1442 = vunpack.c.h.b16 %v120
  %v1443 = vunpack.c.l.b16 %v121
  %v1444 = vunpack.c.h.b16 %v121
  %v1445 = vunpack.c.l.b16 %v122
  %v1446 = vunpack.c.h.b16 %v122
  %v1447 = vunpack.c.l.b16 %v123
  %v1448 = vunpack.c.h.b16 %v123
  %v1449 = vunpack.c.l.b16 %v124
  %v1450 = vunpack.c.h.b16 %v124
  %v1451 = vunpack.c.l.b16 %v125
  %v1452 = vunpack.c.h.b16 %v125
  %v1453 = vunpack.c.l.b16 %v126
  %v1454 = vunpack.c.h.b16 %v126
  %v1455 = vunpack.c.l.b16 %v127
  %v1456 = vunpack.c.h.b16 %v127
  %v1457 = vunpack.c.l.b16 %v128
  %v1458 = vunpack.c.h.b16 %v128
  %v1459 = vunpack.c.l.b16 %v129
  %v1460 = vunpack.c.h.b16 %v129
  %v1461 = vunpack.c.l.b16 %v130
  %v1462 = vunpack.c.h.b16 %v130
  %v1463 = vunpack.c.l.b16 %v131
  %v1464 = vunpack.c.h.b16 %v131
  %v1465 = vunpack.c.l.b16 %v132
  %v1466 = vunpack.c.h.b16 %v132
  %v1467 = vunpack.c.l.b16 %v133
  %v1468 = vunpack.c.h.b16 %v133
  %v1469 = vunpack.c.l.b16 %v134
  %v1470 = vunpack.c.h.b16 %v134
  %v1471 = vunpack.c.l.b16 %v135
  %v1472 = vunpack.c.h.b16 %v135
  %v1473 = vunpack.c.l.b16 %v136
  %v1474 = vunpack.c.h.b16 %v136
  %v1475 = vunpack.c.l.b16 %v137
  %v1476 = vunpack.c.h.b16 %v137
  %v1477 = vunpack.c.l.b16 %v138
  %v1478 = vunpack.c.h.b16 %v138
  %v1479 = vunpack.c.l.b16 %v139
  %v1480 = vunpack.c.h.b16 %v139
  %v1481 = vunpack.c.l.b16 %v140
  %v1482 = vunpack.c.h.b16 %v140
  %v1483 = vunpack.c.l.b16 %v141
  %v1484 = vunpack.c.h.b16 %v141
  %v1485 = vunpack.c.l.b16 %v142
  %v1486 = vunpack.c.h.b16 %v142
  %v1487 = vunpack.c.l.b16 %v143
  %v1488 = vunpack.c.h.b16 %v143
  %v1489 = vunpack.c.l.b16 %v144
  %v1490 = vunpack.c.h.b16 %v144
  %v1491 = vunpack.c.l.b16 %v145
  %v1492 = vunpack.c.h.b16 %v145
  %v1493 = vunpack.c.l.b16 %v146
  %v1494 = vunpack.c.h.b16 %v146
  %v1495 = vunpack.c.l.b16 %v147
  %v1496 = vunpack.c.h.b16 %v147
  %v1497 = vunpack.c.l.b16 %v148
  %v1498 = vunpack.c.h.b16 %v148
  %v1499 = vunpack.c.l.b16 %v149
  %v1500 = vunpack.c.h.b16 %v149
  %v1501 = vunpack.c.l.b16 %v150
  %v1502 = vunpack.c.h.b16 %v150
  %v1503 = vunpack.c.l.b16 %v151
  %v1504 = vunpack.c.h.b16 %v151
  %v1505 = vunpack.c.l.b16 %v152
  %v1506 = vunpack.c.h.b16 %v152
  %v1507 = vunpack.c.l.b16 %v153
  %v1508 = vunpack.c.h.b16 %v153
  %v1509 = vunpack.c.l.b16 %v154
  %v1510 = vunpack.c.h.b16 %v154
  %v1511 = vunpack.c.l.b16 %v155
  %v1512 = vunpack.c.h.b16 %v155
  %v1513 = vunpack.c.l.b16 %v156
  %v1514 = vunpack.c.h.b16 %v156
  %v1515 = vunpack.c.l.b16 %v157
  %v1516 = vunpack.c.h.b16 %v157
  %v1517 = vunpack.c.l.b16 %v158
  %v1518 = vunpack.c.h.b16 %v158
  %v1519 = vunpack.c.l.b16 %v159
  %v1520 = vunpack.c.h.b16 %v159
  %v1521 = vunpack.c.l.b16 %v160
  %v1522 = vunpack.c.h.b16 %v160
  %v1523 = vunpack.c.l.b16 %v161
  %v1524 = vunpack.c.h.b16 %v161
  %v1525 = vunpack.c.l.b16 %v162
  %v1526 = vunpack.c.h.b16 %v162
  %v1527 = vunpack.c.l.b16 %v163
  %v1528 = vunpack.c.h.b16 %v163
  %v1529 = vunpack.c.l.b16 %v164
  %v1530 = vunpack.c.h.b16 %v164
  %v1531 = vunpack.c.l.b16 %v165
  %v1532 = vunpack.c.h.b16 %v165
  %v1533 = vunpack.c.l.b16 %v166
  %v1534 = vunpack.c.h.b16 %v166
  %v1535 = vunpack.c.l.b16 %v167
  %v1536 = vunpack.c.h.b16 %v167
  %v1537 = vunpack.c.l.b16 %v168
  %v1538 = vunpack.c.h.b16 %v168
  %v1539 = vunpack.c.l.b16 %v169
  %v1540 = vunpack.c.h.b16 %v169
  %v1541 = vunpack.c.l.b16 %v170
  %v1542 = vunpack.c.h.b16 %v170
  %v1543 = vunpack.c.l.b16 %v171
  %v1544 = vunpack.c.h.b16 %v171
  %v1545 = vunpack.c.l.b16 %v172
  %v1546 = vunpack.c.h.b16 %v172
  %v1547 = vunpack.c.l.b16 %v173
  %v1548 = vunpack.c.h.b16 %v173
  %v1549 = vunpack.c.l.b16 %v174
  %v1550 = vunpack.c.h.b16 %v174
  %v1551 = vunpack.c.l.b16 %v175
  %v1552 = vunpack.c.h.b16 %v175
  %v1553 = vunpack.c.l.b16 %v176
  %v1554 = vunpack.c.h.b16 %v176
  %v1555 = vunpack.c.l.b16 %v177
  %v1556 = vunpack.c.h.b16 %v177
  %v1557 = vunpack.c.l.b16 %v178
  %v1558 = vunpack.c.h.b16 %v178
  %v1559 = vunpack.c.l.b16 %v179
  %v1560 = vunpack.c.h.b16 %v179
  %v1561 = vunpack.c.l.b16 %v180
  %v1562 = vunpack.c.h.b16 %v180
  %v1563 = vunpack.c.l.b16 %v181
  %v1564 = vunpack.c.h.b16 %v181
  %v1565 = vunpack.c.l.b16 %v182
  %v1566 = vunpack.c.h.b16 %v182
  %v1567 = vunpack.c.l.b16 %v183
  %v1568 = vunpack.c.h.b16 %v183
  %v1569 = vunpack.c.l.b16 %v184
  %v1570 = vunpack.c.h.b16 %v184
  %v1571 = vunpack.c.l.b16 %v185
  %v1572 = vunpack.c.h.b16 %v185
  %v1573 = vunpack.c.l.b16 %v186
  %v1574 = vunpack.c.h.b16 %v186
  %v1575 = vunpack.c.l.b16 %v187
  %v1576 = vunpack.c.h.b16 %v187
  %v1577 = vunpack.c.l.b16 %v188
  %v1578 = vunpack.c.h.b16 %v188
  %v1579 = vunpack.c.l.b16 %v189
  %v1580 = vunpack.c.h.b16 %v189
  %v1581 = vunpack.c.l.b16 %v190
  %v1582 = vunpack.c.h.b16 %v190
  %v1583 = vunpack.c.l.b16 %v191
  %v1584 = vunpack.c.h.b16 %v191
  %v1585 = vunpack.c.l.b16 %v192
  %v1586 = vunpack.c.h.b16 %v192
  %v1587 = vunpack.c.l.b16 %v193
  %v1588 = vunpack.c.h.b16 %v193
  %v1589 = vunpack.c.l.b16 %v194
  %v1590 = vunpack.c.h.b16 %v194
  %v1591 = vunpack.c.l.b16 %v195
  %v1592 = vunpack.c.h.b16 %v195
  %v1593 = vunpack.c.l.b16 %v196
  %v1594 = vunpack.c.h.b16 %v196
  %v1595 = vunpack.c.l.b16 %v197
  %v1596 = vunpack.c.h.b16 %v197
  %v1597 = vunpack.c.l.b16 %v198
  %v1598 = vunpack.c.h.b16 %v198
  %v1599 = vunpack.c.l.b16 %v199
  %v1600 = vunpack.c.h.b16 %v199
  %v1601 = vunpack.c.l.b16 %v200
  %v1602 = vunpack.c.h.b16 %v200
  %v1603 = vunpack.c.l.b16 %v201
  %v1604 = vunpack.c.h.b16 %v201
  %v1605 = vunpack.c.l.b16 %v202
  %v1606 = vunpack.c.h.b16 %v202
  %v1607 = vunpack.c.l.b16 %v203
  %v1608 = vunpack.c.h.b16 %v203
  %v1609 = vunpack.c.l.b16 %v204
  %v1610 = vunpack.c.h.b16 %v204
  %v1611 = vunpack.c.l.b16 %v205
  %v1612 = vunpack.c.h.b16 %v205
  %v1613 = vunpack.c.l.b16 %v206
  %v1614 = vunpack.c.h.b16 %v206
  %v1615 = vunpack.c.l.b16 %v207
  %v1616 = vunpack.c.h.b16 %v207
  %v1617 = vunpack.c.l.b16 %v208
  %v1618 = vunpack.c.h.b16 %v208
  %v1619 = vunpack.c.l.b16 %v209
  %v1620 = vunpack.c.h.b16 %v209
  %v1621 = vunpack.c.l.b16 %v210
  %v1622 = vunpack.c.h.b16 %v210
  %v1623 = vunpack.c.l.b16 %v211
  %v1624 = vunpack.c.h.b16 %v211
  %v1625 = vunpack.c.l.b16 %v212
  %v1626 = vunpack.c.h.b16 %v212
  %v1627 = vunpack.c.l.b16 %v213
  %v1628 = vunpack.c.h.b16 %v213
  %v1629 = vunpack.c.l.b16 %v214
  %v1630 = vunpack.c.h.b16 %v214
  %v1631 = vunpack.c.l.b16 %v215
  %v1632 = vunpack.c.h.b16 %v215
  %v1633 = vunpack.c.l.b16 %v216
  %v1634 = vunpack.c.h.b16 %v216
  %v1635 = vunpack.c.l.b16 %v217
  %v1636 = vunpack.c.h.b16 %v217
  %v1637 = vunpack.c.l.b16 %v218
  %v1638 = vunpack.c.h.b16 %v218
  %v1639 = vunpack.c.l.b16 %v219
  %v1640 = vunpack.c.h.b16 %v219
  %v1641 = vunpack.c.l.b16 %v220
  %v1642 = vunpack.c.h.b16 %v220
  %v1643 = vunpack.c.l.b16 %v221
  %v1644 = vunpack.c.h.b16 %v221
  %v1645 = vunpack.c.l.b16 %v222
  %v1646 = vunpack.c.h.b16 %v222
  %v1647 = vunpack.c.l.b16 %v223
  %v1648 = vunpack.c.h.b16 %v223
  %v1649 = vunpack.c.l.b16 %v224
  %v1650 = vunpack.c.h.b16 %v224
  %v1651 = vunpack.c.l.b16 %v225
  %v1652 = vunpack.c.h.b16 %v225
  %v1653 = vunpack.c.l.b16 %v226
  %v1654 = vunpack.c.h.b16 %v226
  %v1655 = vunpack.c.l.b16 %v227
  %v1656 = vunpack.c.h.b16 %v227
  %v1657 = vunpack.c.l.b16 %v228
  %v1658 = vunpack.c.h.b16 %v228
  %v1659 = vunpack.c.l.b16 %v229
  %v1660 = vunpack.c.h.b16 %v229
  %v1661 = vunpack.c.l.b16 %v230
  %v1662 = vunpack.c.h.b16 %v230
  %v1663 = vunpack.c.l.b16 %v231
  %v1664 = vunpack.c.h.b16 %v231
  %v1665 = vunpack.c.l.b16 %v232
  %v1666 = vunpack.c.h.b16 %v232
  %v1667 = vunpack.c.l.b16 %v233
  %v1668 = vunpack.c.h.b16 %v233
  %v1669 = vunpack.c.l.b16 %v234
  %v1670 = vunpack.c.h.b16 %v234
  %v1671 = vunpack.c.l.b16 %v235
  %v1672 = vunpack.c.h.b16 %v235
  %v1673 = vunpack.c.l.b16 %v236
  %v1674 = vunpack.c.h.b16 %v236
  %v1675 = vunpack.c.l.b16 %v237
  %v1676 = vunpack.c.h.b16 %v237
  %v1677 = vunpack.c.l.b16 %v238
  %v1678 = vunpack.c.h.b16 %v238
  %v1679 = vunpack.c.l.b16 %v239
  %v1680 = vunpack.c.h.b16 %v239
  %v1681 = vunpack.c.l.b16 %v240
  %v1682 = vunpack.c.h.b16 %v240
  %v1683 = vunpack.c.l.b16 %v241
  %v1684 = vunpack.c.h.b16 %v241
  %v1685 = vunpack.c.l.b16 %v242
  %v1686 = vunpack.c.h.b16 %v242
  %v1687 = vunpack.c.l.b16 %v243
  %v1688 = vunpack.c.h.b16 %v243
  %v1689 = vunpack.c.l.b16 %v244
  %v1690 = vunpack.c.h.b16 %v244
  %v1691 = vunpack.c.l.b16 %v245
  %v1692 = vunpack.c.h.b16 %v245
  %v1693 = vunpack.c.l.b16 %v246
  %v1694 = vunpack.c.h.b16 %v246
  %v1695 = vunpack.c.l.b16 %v247
  %v1696 = vunpack.c.h.b16 %v247
  %v1697 = vunpack.c.l.b16 %v248
  %v1698 = vunpack.c.h.b16 %v248
  %v1699 = vunpack.c.l.b16 %v249
  %v1700 = vunpack.c.h.b16 %v249
  %v1701 = vunpack.c.l.b16 %v250
  %v1702 = vunpack.c.h.b16 %v250
  %v1703 = vunpack.c.l.b16 %v251
  %v1704 = vunpack.c.h.b16 %v251
  %v1705 = vunpack.c.l.b16 %v252
  %v1706 = vunpack.c.h.b16 %v252
  %v1707 = vunpack.c.l.b16 %v253
  %v1708 = vunpack.c.h.b16 %v253
  %v1709 = vunpack.c.l.b16 %v254
  %v1710 = vunpack.c.h.b16 %v254
  %v1711 = vunpack.c.l.b16 %v255
  %v1712 = vunpack.c.h.b16 %v255
  %v1713 = vunpack.c.l.b16 %v256
  %v1714 = vunpack.c.h.b16 %v256
  %v1715 = vunpack.c.l.b16 %v257
  %v1716 = vunpack.c.h.b16 %v257
  %v1717 = vunpack.c.l.b16 %v258
  %v1718 = vunpack.c.h.b16 %v258
  %v1719 = vunpack.c.l.b16 %v259
  %v1720 = vunpack.c.h.b16 %v259
  %v1721 = vunpack.c.l.b16 %v260
  %v1722 = vunpack.c.h.b16 %v260
  %v1723 = vunpack.c.l.b16 %v261
  %v1724 = vunpack.c.h.b16 %v261
  %v1725 = vunpack.c.l.b16 %v262
  %v1726 = vunpack.c.h.b16 %v262
  %v1727 = vunpack.c.l.b16 %v263
  %v1728 = vunpack.c.h.b16 %v263
  %v1729 = vunpack.c.l.b16 %v264
  %v1730 = vunpack.c.h.b16 %v264
  %v1731 = vunpack.c.l.b16 %v265
  %v1732 = vunpack.c.h.b16 %v265
  %v1733 = vunpack.c.l.b16 %v266
  %v1734 = vunpack.c.h.b16 %v266
  %v1735 = vunpack.c.l.b16 %v267
  %v1736 = vunpack.c.h.b16 %v267
  %v1737 = vunpack.c.l.b16 %v268
  %v1738 = vunpack.c.h.b16 %v268
  %v1739 = vunpack.c.l.b16 %v269
  %v1740 = vunpack.c.h.b16 %v269
  %v1741 = vunpack.c.l.b16 %v270
  %v1742 = vunpack.c.h.b16 %v270
  %v1743 = vunpack.c.l.b16 %v271
  %v1744 = vunpack.c.h.b16 %v271
  %v1745 = vunpack.c.l.b16 %v272
  %v1746 = vunpack.c.h.b16 %v272
  %v1747 = vunpack.c.l.b16 %v273
  %v1748 = vunpack.c.h.b16 %v273
  %v1749 = vunpack.c.l.b16 %v274
  %v1750 = vunpack.c.h.b16 %v274
  %v1751 = vunpack.c.l.b16 %v275
  %v1752 = vunpack.c.h.b16 %v275
  %v1753 = vunpack.c.l.b16 %v276
  %v1754 = vunpack.c.h.b16 %v276
  %v1755 = vunpack.c.l.b16 %v277
  %v1756 = vunpack.c.h.b16 %v277
  %v1757 = vunpack.c.l.b16 %v278
  %v1758 = vunpack.c.h.b16 %v278
  %v1759 = vunpack.c.l.b16 %v279
  %v1760 = vunpack.c.h.b16 %v279
  %v1761 = vunpack.c.l.b16 %v280
  %v1762 = vunpack.c.h.b16 %v280
  %v1763 = vunpack.c.l.b16 %v281
  %v1764 = vunpack.c.h.b16 %v281
  %v1765 = vunpack.c.l.b16 %v282
  %v1766 = vunpack.c.h.b16 %v282
  %v1767 = vunpack.c.l.b16 %v283
  %v1768 = vunpack.c.h.b16 %v283
  %v1769 = vunpack.c.l.b16 %v284
  %v1770 = vunpack.c.h.b16 %v284
  %v1771 = vunpack.c.l.b16 %v285
  %v1772 = vunpack.c.h.b16 %v285
  %v1773 = vunpack.c.l.b16 %v286
  %v1774 = vunpack.c.h.b16 %v286
  %v1775 = vunpack.c.l.b16 %v287
  %v1776 = vunpack.c.h.b16 %v287
  %v1777 = vunpack.c.l.b16 %v288
  %v1778 = vunpack.c.h.b16 %v288
  %v1779 = vunpack.c.l.b16 %v289
  %v1780 = vunpack.c.h.b16 %v289
  %v1781 = vunpack.c.l.b16 %v290
  %v1782 = vunpack.c.h.b16 %v290
  %v1783 = vunpack.c.l.b16 %v291
  %v1784 = vunpack.c.h.b16 %v291
  %v1785 = vunpack.c.l.b16 %v292
  %v1786 = vunpack.c.h.b16 %v292
  %v1787 = vunpack.c.l.b16 %v293
  %v1788 = vunpack.c.h.b16 %v293
  %v1789 = vunpack.c.l.b16 %v294
  %v1790 = vunpack.c.h.b16 %v294
  %v1791 = vunpack.c.l.b16 %v295
  %v1792 = vunpack.c.h.b16 %v295
  %v1793 = vunpack.c.l.b16 %v296
  %v1794 = vunpack.c.h.b16 %v296
  %v1795 = vunpack.c.l.b16 %v297
  %v1796 = vunpack.c.h.b16 %v297
  %v1797 = vunpack.c.l.b16 %v298
  %v1798 = vunpack.c.h.b16 %v298
  %v1799 = vunpack.c.l.b16 %v299
  %v1800 = vunpack.c.h.b16 %v299
  %v1801 = vunpack.c.l.b16 %v300
  %v1802 = vunpack.c.h.b16 %v300
  %v1803 = vunpack.c.l.b16 %v301
  %v1804 = vunpack.c.h.b16 %v301
  %v1805 = vunpack.c.l.b16 %v302
  %v1806 = vunpack.c.h.b16 %v302
  %v1807 = vunpack.c.l.b16 %v303
  %v1808 = vunpack.c.h.b16 %v303
  %v1809 = vunpack.c.l.b16 %v304
  %v1810 = vunpack.c.h.b16 %v304
  %v1811 = vunpack.c.l.b16 %v305
  %v1812 = vunpack.c.h.b16 %v305
  %v1813 = vunpack.c.l.b16 %v306
  %v1814 = vunpack.c.h.b16 %v306
  %v1815 = vunpack.c.l.b16 %v307
  %v1816 = vunpack.c.h.b16 %v307
  %v1817 = vunpack.c.l.b16 %v308
  %v1818 = vunpack.c.h.b16 %v308
  %v1819 = vunpack.c.l.b16 %v309
  %v1820 = vunpack.c.h.b16 %v309
  %v1821 = vunpack.c.l.b16 %v310
  %v1822 = vunpack.c.h.b16 %v310
  %v1823 = vunpack.c.l.b16 %v311
  %v1824 = vunpack.c.h.b16 %v311
  %v1825 = vunpack.c.l.b16 %v312
  %v1826 = vunpack.c.h.b16 %v312
  %v1827 = vunpack.c.l.b16 %v313
  %v1828 = vunpack.c.h.b16 %v313
  %v1829 = vunpack.c.l.b16 %v314
  %v1830 = vunpack.c.h.b16 %v314
  %v1831 = vunpack.c.l.b16 %v315
  %v1832 = vunpack.c.h.b16 %v315
  %v1833 = vunpack.c.l.b16 %v316
  %v1834 = vunpack.c.h.b16 %v316
  %v1835 = vunpack.c.l.b16 %v317
  %v1836 = vunpack.c.h.b16 %v317
  %v1837 = vunpack.c.l.b16 %v318
  %v1838 = vunpack.c.h.b16 %v318
  %v1839 = vunpack.c.l.b16 %v319
  %v1840 = vunpack.c.h.b16 %v319
  %v1841 = vunpack.c.l.b16 %v320
  %v1842 = vunpack.c.h.b16 %v320
  %v1843 = vunpack.c.l.b16 %v321
  %v1844 = vunpack.c.h.b16 %v321
  %v1845 = vunpack.c.l.b16 %v322
  %v1846 = vunpack.c.h.b16 %v322
  %v1847 = vunpack.c.l.b16 %v323
  %v1848 = vunpack.c.h.b16 %v323
  %v1849 = vunpack.c.l.b16 %v324
  %v1850 = vunpack.c.h.b16 %v324
  %v1851 = vunpack.c.l.b16 %v325
  %v1852 = vunpack.c.h.b16 %v325
  %v1853 = vunpack.c.l.b16 %v326
  %v1854 = vunpack.c.h.b16 %v326
  %v1855 = vunpack.c.l.b16 %v327
  %v1856 = vunpack.c.h.b16 %v327
  %v1857 = vunpack.c.l.b16 %v328
  %v1858 = vunpack.c.h.b16 %v328
  %v1859 = vunpack.c.l.b16 %v329
  %v1860 = vunpack.c.h.b16 %v329
  %v1861 = vunpack.c.l.b16 %v330
  %v1862 = vunpack.c.h.b16 %v330
  %v1863 = vunpack.c.l.b16 %v331
  %v1864 = vunpack.c.h.b16 %v331
  %v1865 = vunpack.c.l.b16 %v332
  %v1866 = vunpack.c.h.b16 %v332
  %v1867 = vunpack.c.l.b16 %v333
  %v1868 = vunpack.c.h.b16 %v333
  %v1869 = vunpack.c.l.b16 %v334
  %v1870 = vunpack.c.h.b16 %v334
  %v1871 = vunpack.c.l.b16 %v335
  %v1872 = vunpack.c.h.b16 %v335
  %v1873 = vunpack.c.l.b16 %v336
  %v1874 = vunpack.c.h.b16 %v336
  %v1875 = vunpack.c.l.b16 %v337
  %v1876 = vunpack.c.h.b16 %v337
  %v1877 = vunpack.c.l.b16 %v338
  %v1878 = vunpack.c.h.b16 %v338
  %v1879 = vunpack.c.l.b16 %v339
  %v1880 = vunpack.c.h.b16 %v339
  %v1881 = vunpack.c.l.b16 %v340
  %v1882 = vunpack.c.h.b16 %v340
  %v1883 = vunpack.c.l.b16 %v341
  %v1884 = vunpack.c.h.b16 %v341
  %v1885 = vunpack.c.l.b16 %v342
  %v1886 = vunpack.c.h.b16 %v342
  %v1887 = vunpack.c.l.b16 %v343
  %v1888 = vunpack.c.h.b16 %v343
  %v1889 = vunpack.c.l.b16 %v344
  %v1890 = vunpack.c.h.b16 %v344
  %v1891 = vunpack.c.l.b16 %v345
  %v1892 = vunpack.c.h.b16 %v345
  %v1893 = vunpack.c.l.b16 %v346
  %v1894 = vunpack.c.h.b16 %v346
  %v1895 = vunpack.c.l.b16 %v347
  %v1896 = vunpack.c.h.b16 %v347
  %v1897 = vunpack.c.l.b16 %v348
  %v1898 = vunpack.c.h.b16 %v348
  %v1899 = vunpack.c.l.b16 %v349
  %v1900 = vunpack.c.h.b16 %v349
  %v1901 = vunpack.c.l.b16 %v350
  %v1902 = vunpack.c.h.b16 %v350
  %v1903 = vunpack.c.l.b16 %v351
  %v1904 = vunpack.c.h.b16 %v351
  %v1905 = vunpack.c.l.b16 %v352
  %v1906 = vunpack.c.h.b16 %v352
  %v1907 = vunpack.c.l.b16 %v353
  %v1908 = vunpack.c.h.b16 %v353
  %v1909 = vunpack.c.l.b16 %v354
  %v1910 = vunpack.c.h.b16 %v354
  %v1911 = vunpack.c.l.b16 %v355
  %v1912 = vunpack.c.h.b16 %v355
  %v1913 = vunpack.c.l.b16 %v356
  %v1914 = vunpack.c.h.b16 %v356
  %v1915 = vunpack.c.l.b16 %v357
  %v1916 = vunpack.c.h.b16 %v357
  %v1917 = vunpack.c.l.b16 %v358
  %v1918 = vunpack.c.h.b16 %v358
  %v1919 = vunpack.c.l.b16 %v359
  %v1920 = vunpack.c.h.b16 %v359
  %v1921 = vunpack.c.l.b16 %v360
  %v1922 = vunpack.c.h.b16 %v360
  %v1923 = vunpack.c.l.b16 %v361
  %v1924 = vunpack.c.h.b16 %v361
  %v1925 = vunpack.c.l.b16 %v362
  %v1926 = vunpack.c.h.b16 %v362
  %v1927 = vunpack.c.l.b16 %v363
  %v1928 = vunpack.c.h.b16 %v363
  %v1929 = vunpack.c.l.b16 %v364
  %v1930 = vunpack.c.h.b16 %v364
  %v1931 = vunpack.c.l.b16 %v365
  %v1932 = vunpack.c.h.b16 %v365
  %v1933 = vunpack.c.l.b16 %v366
  %v1934 = vunpack.c.h.b16 %v366
  %v1935 = vunpack.c.l.b16 %v367
  %v1936 = vunpack.c.h.b16 %v367
  %v1937 = vunpack.c.l.b16 %v368
  %v1938 = vunpack.c.h.b16 %v368
  %v1939 = vunpack.c.l.b16 %v369
  %v1940 = vunpack.c.h.b16 %v369
  %v1941 = vunpack.c.l.b16 %v370
  %v1942 = vunpack.c.h.b16 %v370
  %v1943 = vunpack.c.l.b16 %v371
  %v1944 = vunpack.c.h.b16 %v371
  %v1945 = vunpack.c.l.b16 %v372
  %v1946 = vunpack.c.h.b16 %v372
  %v1947 = vunpack.c.l.b16 %v373
  %v1948 = vunpack.c.h.b16 %v373
  %v1949 = vunpack.c.l.b16 %v374
  %v1950 = vunpack.c.h.b16 %v374
  %v1951 = vunpack.c.l.b16 %v375
  %v1952 = vunpack.c.h.b16 %v375
  %v1953 = vunpack.c.l.b16 %v376
  %v1954 = vunpack.c.h.b16 %v376
  %v1955 = vunpack.c.l.b16 %v377
  %v1956 = vunpack.c.h.b16 %v377
  %v1957 = vunpack.c.l.b16 %v378
  %v1958 = vunpack.c.h.b16 %v378
  %v1959 = vunpack.c.l.b16 %v379
  %v1960 = vunpack.c.h.b16 %v379
  %v1961 = vunpack.c.l.b16 %v380
  %v1962 = vunpack.c.h.b16 %v380
  %v1963 = vunpack.c.l.b16 %v381
  %v1964 = vunpack.c.h.b16 %v381
  %v1965 = vunpack.c.l.b16 %v382
  %v1966 = vunpack.c.h.b16 %v382
  %v1967 = vunpack.c.l.b16 %v383
  %v1968 = vunpack.c.h.b16 %v383
  %v1969 = vunpack.c.l.b16 %v384
  %v1970 = vunpack.c.h.b16 %v384
  %v1971 = vunpack.c.l.b16 %v385
  %v1972 = vunpack.c.h.b16 %v385
  %v1973 = vunpack.c.l.b16 %v386
  %v1974 = vunpack.c.h.b16 %v386
  %v1975 = vunpack.c.l.b16 %v387
  %v1976 = vunpack.c.h.b16 %v387
  %v1977 = vunpack.c.l.b16 %v388
  %v1978 = vunpack.c.h.b16 %v388
  %v1979 = vunpack.c.l.b16 %v389
  %v1980 = vunpack.c.h.b16 %v389
  %v1981 = vunpack.c.l.b16 %v390
  %v1982 = vunpack.c.h.b16 %v390
  %v1983 = vunpack.c.l.b16 %v391
  %v1984 = vunpack.c.h.b16 %v391
  %v1985 = vunpack.c.l.b16 %v392
  %v1986 = vunpack.c.h.b16 %v392
  %v1987 = vunpack.c.l.b16 %v393
  %v1988 = vunpack.c.h.b16 %v393
  %v1989 = vunpack.c.l.b16 %v394
  %v1990 = vunpack.c.h.b16 %v394
  %v1991 = vunpack.c.l.b16 %v395
  %v1992 = vunpack.c.h.b16 %v395
  %v1993 = vunpack.c.l.b16 %v396
  %v1994 = vunpack.c.h.b16 %v396
  %v1995 = vunpack.c.l.b16 %v397
  %v1996 = vunpack.c.h.b16 %v397
  %v1997 = vunpack.c.l.b16 %v398
  %v1998 = vunpack.c.h.b16 %v398
  %v1999 = vunpack.c.l.b16 %v399
  %v2000 = vunpack.c.h.b16 %v399
  %v2001 = vunpack.c.l.b16 %v400
  %v2002 = vunpack.c.h.b16 %v400
  %v2003 = vunpack.c.l.b16 %v401
  %v2004 = vunpack.c.h.b16 %v401
  %v2005 = vunpack.c.l.b16 %v402
  %v2006 = vunpack.c.h.b16 %v402
  %v2007 = vunpack.c.l.b16 %v403
  %v2008 = vunpack.c.h.b16 %v403
  %v2009 = vunpack.c.l.b16 %v404
  %v2010 = vunpack.c.h.b16 %v404
  %v2011 = vunpack.c.l.b16 %v405
  %v2012 = vunpack.c.h.b16 %v405
  %v2013 = vunpack.c.l.b16 %v406
  %v2014 = vunpack.c.h.b16 %v406
  %v2015 = vunpack.c.l.b16 %v407
  %v2016 = vunpack.c.h.b16 %v407
  %v2017 = vunpack.c.l.b16 %v408
  %v2018 = vunpack.c.h.b16 %v408
  %v2019 = vunpack.c.l.b16 %v409
  %v2020 = vunpack.c.h.b16 %v409
  %v2021 = vunpack.c.l.b16 %v410
  %v2022 = vunpack.c.h.b16 %v410
  %v2023 = vunpack.c.l.b16 %v411
  %v2024 = vunpack.c.h.b16 %v411
  %v2025 = vunpack.c.l.b16 %v412
  %v2026 = vunpack.c.h.b16 %v412
  %v2027 = vunpack.c.l.b16 %v413
  %v2028 = vunpack.c.h.b16 %v413
  %v2029 = vunpack.c.l.b16 %v414
  %v2030 = vunpack.c.h.b16 %v414
  %v2031 = vunpack.c.l.b16 %v415
  %v2032 = vunpack.c.h.b16 %v415
  %v2033 = vunpack.c.l.b16 %v416
  %v2034 = vunpack.c.h.b16 %v416
  %v2035 = vunpack.c.l.b16 %v417
  %v2036 = vunpack.c.h.b16 %v417
  %v2037 = vunpack.c.l.b16 %v418
  %v2038 = vunpack.c.h.b16 %v418
  %v2039 = vunpack.c.l.b16 %v419
  %v2040 = vunpack.c.h.b16 %v419
  %v2041 = vunpack.c.l.b16 %v420
  %v2042 = vunpack.c.h.b16 %v420
  %v2043 = vunpack.c.l.b16 %v421
  %v2044 = vunpack.c.h.b16 %v421
  %v2045 = vunpack.c.l.b16 %v422
  %v2046 = vunpack.c.h.b16 %v422
  %v2047 = vunpack.c.l.b16 %v423
  %v2048 = vunpack.c.h.b16 %v423
  %v2049 = vunpack.c.l.b16 %v424
  %v2050 = vunpack.c.h.b16 %v424
  %v2051 = vunpack.c.l.b16 %v425
  %v2052 = vunpack.c.h.b16 %v425
  %v2053 = vunpack.c.l.b16 %v426
  %v2054 = vunpack.c.h.b16 %v426
  %v2055 = vunpack.c.l.b16 %v427
  %v2056 = vunpack.c.h.b16 %v427
  %v2057 = vunpack.c.l.b16 %v428
  %v2058 = vunpack.c.h.b16 %v428
  %v2059 = vunpack.c.l.b16 %v429
  %v2060 = vunpack.c.h.b16 %v429
  %v2061 = vunpack.c.l.b16 %v430
  %v2062 = vunpack.c.h.b16 %v430
  %v2063 = vunpack.c.l.b16 %v431
  %v2064 = vunpack.c.h.b16 %v431
  %v2065 = vunpack.c.l.b16 %v432
  %v2066 = vunpack.c.h.b16 %v432
  %v2067 = vunpack.c.l.b16 %v433
  %v2068 = vunpack.c.h.b16 %v433
  %v2069 = vunpack.c.l.b16 %v434
  %v2070 = vunpack.c.h.b16 %v434
  %v2071 = vunpack.c.l.b16 %v435
  %v2072 = vunpack.c.h.b16 %v435
  %v2073 = vunpack.c.l.b16 %v436
  %v2074 = vunpack.c.h.b16 %v436
  %v2075 = vunpack.c.l.b16 %v437
  %v2076 = vunpack.c.h.b16 %v437
  %v2077 = vunpack.c.l.b16 %v438
  %v2078 = vunpack.c.h.b16 %v438
  %v2079 = vunpack.c.l.b16 %v439
  %v2080 = vunpack.c.h.b16 %v439
  %v2081 = vunpack.c.l.b16 %v440
  %v2082 = vunpack.c.h.b16 %v440
  %v2083 = vunpack.c.l.b16 %v441
  %v2084 = vunpack.c.h.b16 %v441
  %v2085 = vunpack.c.l.b16 %v442
  %v2086 = vunpack.c.h.b16 %v442
  %v2087 = vunpack.c.l.b16 %v443
  %v2088 = vunpack.c.h.b16 %v443
  %v2089 = vunpack.c.l.b16 %v444
  %v2090 = vunpack.c.h.b16 %v444
  %v2091 = vunpack.c.l.b16 %v445
  %v2092 = vunpack.c.h.b16 %v445
  %v2093 = vunpack.c.l.b16 %v446
  %v2094 = vunpack.c.h.b16 %v446
  %v2095 = vunpack.c.l.b16 %v447
  %v2096 = vunpack.c.h.b16 %v447
  %v2097 = vunpack.c.l.b16 %v448
  %v2098 = vunpack.c.h.b16 %v448
  %v2099 = vunpack.c.l.b16 %v449
  %v2100 = vunpack.c.h.b16 %v449
  %v2101 = vunpack.c.l.b16 %v450
  %v2102 = vunpack.c.h.b16 %v450
  %v2103 = vunpack.c.l.b16 %v451
  %v2104 = vunpack.c.h.b16 %v451
  %v2105 = vunpack.c.l.b16 %v452
  %v2106 = vunpack.c.h.b16 %v452
  %v2107 = vunpack.c.l.b16 %v453
  %v2108 = vunpack.c.h.b16 %v453
  %v2109 = vunpack.c.l.b16 %v454
  %v2110 = vunpack.c.h.b16 %v454
  %v2111 = vunpack.c.l.b16 %v455
  %v2112 = vunpack.c.h.b16 %v455
  %v2113 = vunpack.c.l.b16 %v456
  %v2114 = vunpack.c.h.b16 %v456
  %v2115 = vunpack.c.l.b16 %v457
  %v2116 = vunpack.c.h.b16 %v457
  %v2117 = vunpack.c.l.b16 %v458
  %v2118 = vunpack.c.h.b16 %v458
  %v2119 = vunpack.c.l.b16 %v459
  %v2120 = vunpack.c.h.b16 %v459
  %v2121 = vunpack.c.l.b16 %v460
  %v2122 = vunpack.c.h.b16 %v460
  %v2123 = vunpack.c.l.b16 %v461
  %v2124 = vunpack.c.h.b16 %v461
  %v2125 = vunpack.c.l.b16 %v462
  %v2126 = vunpack.c.h.b16 %v462
  %v2127 = vunpack.c.l.b16 %v463
  %v2128 = vunpack.c.h.b16 %v463
  %v2129 = vunpack.c.l.b16 %v464
  %v2130 = vunpack.c.h.b16 %v464
  %v2131 = vunpack.c.l.b16 %v465
  %v2132 = vunpack.c.h.b16 %v465
  %v2133 = vunpack.c.l.b16 %v466
  %v2134 = vunpack.c.h.b16 %v466
  %v2135 = vunpack.c.l.b16 %v467
  %v2136 = vunpack.c.h.b16 %v467
  %v2137 = vunpack.c.l.b16 %v468
  %v2138 = vunpack.c.h.b16 %v468
  %v2139 = vunpack.c.l.b16 %v469
  %v2140 = vunpack.c.h.b16 %v469
  %v2141 = vunpack.c.l.b16 %v470
  %v2142 = vunpack.c.h.b16 %v470
  %v2143 = vunpack.c.l.b16 %v471
  %v2144 = vunpack.c.h.b16 %v471
  %v2145 = vunpack.c.l.b16 %v472
  %v2146 = vunpack.c.h.b16 %v472
  %v2147 = vunpack.c.l.b16 %v473
  %v2148 = vunpack.c.h.b16 %v473
  %v2149 = vunpack.c.l.b16 %v474
  %v2150 = vunpack.c.h.b16 %v474
  %v2151 = vunpack.c.l.b16 %v475
  %v2152 = vunpack.c.h.b16 %v475
  %v2153 = vunpack.c.l.b16 %v476
  %v2154 = vunpack.c.h.b16 %v476
  %v2155 = vunpack.c.l.b16 %v477
  %v2156 = vunpack.c.h.b16 %v477
  %v2157 = vunpack.c.l.b16 %v478
  %v2158 = vunpack.c.h.b16 %v478
  %v2159 = vunpack.c.l.b16 %v479
  %v2160 = vunpack.c.h.b16 %v479
  %v2161 = vunpack.c.l.b16 %v480
  %v2162 = vunpack.c.h.b16 %v480
  %v2163 = vunpack.c.l.b16 %v481
  %v2164 = vunpack.c.h.b16 %v481
  %v2165 = vunpack.c.l.b16 %v482
  %v2166 = vunpack.c.h.b16 %v482
  %v2167 = vunpack.c.l.b16 %v483
  %v2168 = vunpack.c.h.b16 %v483
  %v2169 = vunpack.c.l.b16 %v484
  %v2170 = vunpack.c.h.b16 %v484
  %v2171 = vunpack.c.l.b16 %v485
  %v2172 = vunpack.c.h.b16 %v485
  %v2173 = vunpack.c.l.b16 %v486
  %v2174 = vunpack.c.h.b16 %v486
  %v2175 = vunpack.c.l.b16 %v487
  %v2176 = vunpack.c.h.b16 %v487
  %v2177 = vunpack.c.l.b16 %v488
  %v2178 = vunpack.c.h.b16 %v488
  %v2179 = vunpack.c.l.b16 %v489
  %v2180 = vunpack.c.h.b16 %v489
  %v2181 = vunpack.c.l.b16 %v490
  %v2182 = vunpack.c.h.b16 %v490
  %v2183 = vunpack.c.l.b16 %v491
  %v2184 = vunpack.c.h.b16 %v491
  %v2185 = vunpack.c.l.b16 %v492
  %v2186 = vunpack.c.h.b16 %v492
  %v2187 = vunpack.c.l.b16 %v493
  %v2188 = vunpack.c.h.b16 %v493
  %v2189 = vunpack.c.l.b16 %v494
  %v2190 = vunpack.c.h.b16 %v494
  %v2191 = vunpack.c.l.b16 %v495
  %v2192 = vunpack.c.h.b16 %v495
  %v2193 = vunpack.c.l.b16 %v496
  %v2194 = vunpack.c.h.b16 %v496
  %v2195 = vunpack.c.l.b16 %v497
  %v2196 = vunpack.c.h.b16 %v497
  %v2197 = vunpack.c.l.b16 %v498
  %v2198 = vunpack.c.h.b16 %v498
  %v2199 = vunpack.c.l.b16 %v499
  %v2200 = vunpack.c.h.b16 %v499
  %v2201 = vunpack.c.l.b16 %v500
  %v2202 = vunpack.c.h.b16 %v500
  %v2203 = vunpack.c.l.b16 %v501
  %v2204 = vunpack.c.h.b16 %v501
  %v2205 = vunpack.c.l.b16 %v502
  %v2206 = vunpack.c.h.b16 %v502
  %v2207 = vunpack.c.l.b16 %v503
  %v2208 = vunpack.c.h.b16 %v503
  %v2209 = vunpack.c.l.b16 %v504
  %v2210 = vunpack.c.h.b16 %v504
  %v2211 = vunpack.c.l.b16 %v505
  %v2212 = vunpack.c.h.b16 %v505
  %v2213 = vunpack.c.l.b16 %v506
  %v2214 = vunpack.c.h.b16 %v506
  %v2215 = vunpack.c.l.b16 %v507
  %v2216 = vunpack.c.h.b16 %v507
  %v2217 = vunpack.c.l.b16 %v508
  %v2218 = vunpack.c.h.b16 %v508
  %v2219 = vunpack.c.l.b16 %v509
  %v2220 = vunpack.c.h.b16 %v509
  %v2221 = vunpack.c.l.b16 %v510
  %v2222 = vunpack.c.h.b16 %v510
  %v2223 = vunpack.c.l.b16 %v511
  %v2224 = vunpack.c.h.b16 %v511
  %v2225 = vunpack.c.l.b16 %v512
  %v2226 = vunpack.c.h.b16 %v512
  %v2227 = vunpack.c.l.b16 %v513
  %v2228 = vunpack.c.h.b16 %v513
  %v2229 = vunpack.c.l.b16 %v514
  %v2230 = vunpack.c.h.b16 %v514
  %v2231 = vunpack.c.l.b16 %v515
  %v2232 = vunpack.c.h.b16 %v515
  %v2233 = vunpack.c.l.b16 %v516
  %v2234 = vunpack.c.h.b16 %v516
  %v2235 = vunpack.c.l.b16 %v517
  %v2236 = vunpack.c.h.b16 %v517
  %v2237 = vunpack.c.l.b16 %v518
  %v2238 = vunpack.c.h.b16 %v518
  %v2239 = vunpack.c.l.b16 %v519
  %v2240 = vunpack.c.h.b16 %v519
  %v2241 = vunpack.c.l.b16 %v520
  %v2242 = vunpack.c.h.b16 %v520
  %v2243 = vunpack.c.l.b16 %v521
  %v2244 = vunpack.c.h.b16 %v521
  %v2245 = vunpack.c.l.b16 %v522
  %v2246 = vunpack.c.h.b16 %v522
  %v2247 = vunpack.c.l.b16 %v523
  %v2248 = vunpack.c.h.b16 %v523
  %v2249 = vunpack.c.l.b16 %v524
  %v2250 = vunpack.c.h.b16 %v524
  %v2251 = vunpack.c.l.b16 %v525
  %v2252 = vunpack.c.h.b16 %v525
  %v2253 = vunpack.c.l.b16 %v526
  %v2254 = vunpack.c.h.b16 %v526
  %v2255 = vunpack.c.l.b16 %v527
  %v2256 = vunpack.c.h.b16 %v527
  %v2257 = vunpack.c.l.b16 %v528
  %v2258 = vunpack.c.h.b16 %v528
  %v2259 = vunpack.c.l.b16 %v529
  %v2260 = vunpack.c.h.b16 %v529
  %v2261 = vunpack.c.l.b16 %v530
  %v2262 = vunpack.c.h.b16 %v530
  %v2263 = vunpack.c.l.b16 %v531
  %v2264 = vunpack.c.h.b16 %v531
  %v2265 = vunpack.c.l.b16 %v532
  %v2266 = vunpack.c.h.b16 %v532
  %v2267 = vunpack.c.l.b16 %v533
  %v2268 = vunpack.c.h.b16 %v533
  %v2269 = vunpack.c.l.b16 %v534
  %v2270 = vunpack.c.h.b16 %v534
  %v2271 = vunpack.c.l.b16 %v535
  %v2272 = vunpack.c.h.b16 %v535
  %v2273 = vunpack.c.l.b16 %v536
  %v2274 = vunpack.c.h.b16 %v536
  %v2275 = vunpack.c.l.b16 %v537
  %v2276 = vunpack.c.h.b16 %v537
  %v2277 = vunpack.c.l.b16 %v538
  %v2278 = vunpack.c.h.b16 %v538
  %v2279 = vunpack.c.l.b16 %v539
  %v2280 = vunpack.c.h.b16 %v539
  %v2281 = vunpack.c.l.b16 %v540
  %v2282 = vunpack.c.h.b16 %v540
  %v2283 = vunpack.c.l.b16 %v541
  %v2284 = vunpack.c.h.b16 %v541
  %v2285 = vunpack.c.l.b16 %v542
  %v2286 = vunpack.c.h.b16 %v542
  %v2287 = vunpack.c.l.b16 %v543
  %v2288 = vunpack.c.h.b16 %v543
  %v2289 = vunpack.c.l.b16 %v544
  %v2290 = vunpack.c.h.b16 %v544
  %v2291 = vunpack.c.l.b16 %v545
  %v2292 = vunpack.c.h.b16 %v545
  %v2293 = vunpack.c.l.b16 %v546
  %v2294 = vunpack.c.h.b16 %v546
  %v2295 = vunpack.c.l.b16 %v547
  %v2296 = vunpack.c.h.b16 %v547
  %v2297 = vunpack.c.l.b16 %v548
  %v2298 = vunpack.c.h.b16 %v548
  %v2299 = vunpack.c.l.b16 %v549
  %v2300 = vunpack.c.h.b16 %v549
  %v2301 = vunpack.c.l.b16 %v550
  %v2302 = vunpack.c.h.b16 %v550
  %v2303 = vunpack.c.l.b16 %v551
  %v2304 = vunpack.c.h.b16 %v551
  %v2305 = vunpack.c.l.b16 %v552
  %v2306 = vunpack.c.h.b16 %v552
  %v2307 = vunpack.c.l.b16 %v553
  %v2308 = vunpack.c.h.b16 %v553
  %v2309 = vunpack.c.l.b16 %v554
  %v2310 = vunpack.c.h.b16 %v554
  %v2311 = vunpack.c.l.b16 %v555
  %v2312 = vunpack.c.h.b16 %v555
  %v2313 = vunpack.c.l.b16 %v556
  %v2314 = vunpack.c.h.b16 %v556
  %v2315 = vunpack.c.l.b16 %v557
  %v2316 = vunpack.c.h.b16 %v557
  %v2317 = vunpack.c.l.b16 %v558
  %v2318 = vunpack.c.h.b16 %v558
  %v2319 = vunpack.c.l.b16 %v559
  %v2320 = vunpack.c.h.b16 %v559
  %v2321 = vpack.c.b16 %v1253, %v1249
  %v2322 = vpack.c.b16 %v1254, %v1250
  %v2323 = vpack.c.b16 %v1255, %v1251
  %v2324 = vpack.c.b16 %v1256, %v1252
  %v2325 = vpack.c.b16 %v1261, %v1257
  %v2326 = vpack.c.b16 %v1262, %v1258
  %v2327 = vpack.c.b16 %v1263, %v1259
  %v2328 = vpack.c.b16 %v1264, %v1260
  %v2329 = vpack.c.b16 %v1269, %v1265
  %v2330 = vpack.c.b16 %v1270, %v1266
  %v2331 = vpack.c.b16 %v1271, %v1267
  %v2332 = vpack.c.b16 %v1272, %v1268
  %v2333 = vpack.c.b16 %v1277, %v1273
  %v2334 = vpack.c.b16 %v1278, %v1274
  %v2335 = vpack.c.b16 %v1279, %v1275
  %v2336 = vpack.c.b16 %v1280, %v1276
  %v2337 = vpack.c.b16 %v1285, %v1281
  %v2338 = vpack.c.b16 %v1286, %v1282
  %v2339 = vpack.c.b16 %v1287, %v1283
  %v2340 = vpack.c.b16 %v1288, %v1284
  %v2341 = vpack.c.b16 %v1293, %v1289
  %v2342 = vpack.c.b16 %v1294, %v1290
  %v2343 = vpack.c.b16 %v1295, %v1291
  %v2344 = vpack.c.b16 %v1296, %v1292
  %v2345 = vpack.c.b16 %v1301, %v1297
  %v2346 = vpack.c.b16 %v1302, %v1298
  %v2347 = vpack.c.b16 %v1303, %v1299
  %v2348 = vpack.c.b16 %v1304, %v1300
  %v2349 = vpack.c.b16 %v1309, %v1305
  %v2350 = vpack.c.b16 %v1310, %v1306
  %v2351 = vpack.c.b16 %v1311, %v1307
  %v2352 = vpack.c.b16 %v1312, %v1308
  %v2353 = vpack.c.b16 %v1317, %v1313
  %v2354 = vpack.c.b16 %v1318, %v1314
  %v2355 = vpack.c.b16 %v1319, %v1315
  %v2356 = vpack.c.b16 %v1320, %v1316
  %v2357 = vpack.c.b16 %v1325, %v1321
  %v2358 = vpack.c.b16 %v1326, %v1322
  %v2359 = vpack.c.b16 %v1327, %v1323
  %v2360 = vpack.c.b16 %v1328, %v1324
  %v2361 = vpack.c.b16 %v1333, %v1329
  %v2362 = vpack.c.b16 %v1334, %v1330
  %v2363 = vpack.c.b16 %v1335, %v1331
  %v2364 = vpack.c.b16 %v1336, %v1332
  %v2365 = vpack.c.b16 %v1341, %v1337
  %v2366 = vpack.c.b16 %v1342, %v1338
  %v2367 = vpack.c.b16 %v1343, %v1339
  %v2368 = vpack.c.b16 %v1344, %v1340
  %v2369 = vpack.c.b16 %v1349, %v1345
  %v2370 = vpack.c.b16 %v1350, %v1346
  %v2371 = vpack.c.b16 %v1351, %v1347
  %v2372 = vpack.c.b16 %v1352, %v1348
  %v2373 = vpack.c.b16 %v1357, %v1353
  %v2374 = vpack.c.b16 %v1358, %v1354
  %v2375 = vpack.c.b16 %v1359, %v1355
  %v2376 = vpack.c.b16 %v1360, %v1356
  %v2377 = vpack.c.b16 %v1365, %v1361
  %v2378 = vpack.c.b16 %v1366, %v1362
  %v2379 = vpack.c.b16 %v1367, %v1363
  %v2380 = vpack.c.b16 %v1368, %v1364
  %v2381 = vpack.c.b16 %v1373, %v1369
  %v2382 = vpack.c.b16 %v1374, %v1370
  %v2383 = vpack.c.b16 %v1375, %v1371
  %v2384 = vpack.c.b16 %v1376, %v1372
  %v2385 = vpack.c.b16 %v1381, %v1377
  %v2386 = vpack.c.b16 %v1382, %v1378
  %v2387 = vpack.c.b16 %v1383, %v1379
  %v2388 = vpack.c.b16 %v1384, %v1380
  %v2389 = vpack.c.b16 %v1389, %v1385
  %v2390 = vpack.c.b16 %v1390, %v1386
  %v2391 = vpack.c.b16 %v1391, %v1387
  %v2392 = vpack.c.b16 %v1392, %v1388
  %v2393 = vpack.c.b16 %v1397, %v1393
  %v2394 = vpack.c.b16 %v1398, %v1394
  %v2395 = vpack.c.b16 %v1399, %v1395
  %v2396 = vpack.c.b16 %v1400, %v1396
  %v2397 = vpack.c.b16 %v1405, %v1401
  %v2398 = vpack.c.b16 %v1406, %v1402
  %v2399 = vpack.c.b16 %v1407, %v1403
  %v2400 = vpack.c.b16 %v1408, %v1404
  %v2401 = vpack.c.b16 %v1413, %v1409
  %v2402 = vpack.c.b16 %v1414, %v1410
  %v2403 = vpack.c.b16 %v1415, %v1411
  %v2404 = vpack.c.b16 %v1416, %v1412
  %v2405 = vpack.c.b16 %v1421, %v1417
  %v2406 = vpack.c.b16 %v1422, %v1418
  %v2407 = vpack.c.b16 %v1423, %v1419
  %v2408 = vpack.c.b16 %v1424, %v1420
  %v2409 = vpack.c.b16 %v1429, %v1425
  %v2410 = vpack.c.b16 %v1430, %v1426
  %v2411 = vpack.c.b16 %v1431, %v1427
  %v2412 = vpack.c.b16 %v1432, %v1428
  %v2413 = vpack.c.b16 %v1437, %v1433
  %v2414 = vpack.c.b16 %v1438, %v1434
  %v2415 = vpack.c.b16 %v1439, %v1435
  %v2416 = vpack.c.b16 %v1440, %v1436
  %v2417 = vpack.c.b16 %v1445, %v1441
  %v2418 = vpack.c.b16 %v1446, %v1442
  %v2419 = vpack.c.b16 %v1447, %v1443
  %v2420 = vpack.c.b16 %v1448, %v1444
  %v2421 = vpack.c.b16 %v1453, %v1449
  %v2422 = vpack.c.b16 %v1454, %v1450
  %v2423 = vpack.c.b16 %v1455, %v1451
  %v2424 = vpack.c.b16 %v1456, %v1452
  %v2425 = vpack.c.b16 %v1461, %v1457
  %v2426 = vpack.c.b16 %v1462, %v1458
  %v2427 = vpack.c.b16 %v1463, %v1459
  %v2428 = vpack.c.b16 %v1464, %v1460
  %v2429 = vpack.c.b16 %v1469, %v1465
  %v2430 = vpack.c.b16 %v1470, %v1466
  %v2431 = vpack.c.b16 %v1471, %v1467
  %v2432 = vpack.c.b16 %v1472, %v1468
  %v2433 = vpack.c.b16 %v1477, %v1473
  %v2434 = vpack.c.b16 %v1478, %v1474
  %v2435 = vpack.c.b16 %v1479, %v1475
  %v2436 = vpack.c.b16 %v1480, %v1476
  %v2437 = vpack.c.b16 %v1485, %v1481
  %v2438 = vpack.c.b16 %v1486, %v1482
  %v2439 = vpack.c.b16 %v1487, %v1483
  %v2440 = vpack.c.b16 %v1488, %v1484
  %v2441 = vpack.c.b16 %v1493, %v1489
  %v2442 = vpack.c.b16 %v1494, %v1490
  %v2443 = vpack.c.b16 %v1495, %v1491
  %v2444 = vpack.c.b16 %v1496, %v1492
  %v2445 = vpack.c.b16 %v1501, %v1497
  %v2446 = vpack.c.b16 %v1502, %v1498
  %v2447 = vpack.c.b16 %v1503, %v1499
  %v2448 = vpack.c.b16 %v1504, %v1500
  %v2449 = vpack.c.b16 %v1509, %v1505
  %v2450 = vpack.c.b16 %v1510, %v1506
  %v2451 = vpack.c.b16 %v1511, %v1507
  %v2452 = vpack.c.b16 %v1512, %v1508
  %v2453 = vpack.c.b16 %v1517, %v1513
  %v2454 = vpack.c.b16 %v1518, %v1514
  %v2455 = vpack.c.b16 %v1519, %v1515
  %v2456 = vpack.c.b16 %v1520, %v1516
  %v2457 = vpack.c.b16 %v1525, %v1521
  %v2458 = vpack.c.b16 %v1526, %v1522
  %v2459 = vpack.c.b16 %v1527, %v1523
  %v2460 = vpack.c.b16 %v1528, %v1524
  %v2461 = vpack.c.b16 %v1533, %v1529
  %v2462 = vpack.c.b16 %v1534, %v1530
  %v2463 = vpack.c.b16 %v1535, %v1531
  %v2464 = vpack.c.b16 %v1536, %v1532
  %v2465 = vpack.c.b16 %v1541, %v1537
  %v2466 = vpack.c.b16 %v1542, %v1538
  %v2467 = vpack.c.b16 %v1543, %v1539
  %v2468 = vpack.c.b16 %v1544, %v1540
  %v2469 = vpack.c.b16 %v1549, %v1545
  %v2470 = vpack.c.b16 %v1550, %v1546
  %v2471 = vpack.c.b16 %v1551, %v1547
  %v2472 = vpack.c.b16 %v1552, %v1548
  %v2473 = vpack.c.b16 %v1557, %v1553
  %v2474 = vpack.c.b16 %v1558, %v1554
  %v2475 = vpack.c.b16 %v1559, %v1555
  %v2476 = vpack.c.b16 %v1560, %v1556
  %v2477 = vpack.c.b16 %v1565, %v1561
  %v2478 = vpack.c.b16 %v1566, %v1562
  %v2479 = vpack.c.b16 %v1567, %v1563
  %v2480 = vpack.c.b16 %v1568, %v1564
  %v2481 = vpack.c.b16 %v1573, %v1569
  %v2482 = vpack.c.b16 %v1574, %v1570
  %v2483 = vpack.c.b16 %v1575, %v1571
  %v2484 = vpack.c.b16 %v1576, %v1572
  %v2485 = vpack.c.b16 %v1581, %v1577
  %v2486 = vpack.c.b16 %v1582, %v1578
  %v2487 = vpack.c.b16 %v1583, %v1579
  %v2488 = vpack.c.b16 %v1584, %v1580
  %v2489 = vpack.c.b16 %v1589, %v1585
  %v2490 = vpack.c.b16 %v1590, %v1586
  %v2491 = vpack.c.b16 %v1591, %v1587
  %v2492 = vpack.c.b16 %v1592, %v1588
  %v2493 = vpack.c.b16 %v1597, %v1593
  %v2494 = vpack.c.b16 %v1598, %v1594
  %v2495 = vpack.c.b16 %v1599, %v1595
  %v2496 = vpack.c.b16 %v1600, %v1596
  %v2497 = vpack.c.b16 %v1605, %v1601
  %v2498 = vpack.c.b16 %v1606, %v1602
  %v2499 = vpack.c.b16 %v1607, %v1603
  %v2500 = vpack.c.b16 %v1608, %v1604
  %v2501 = vpack.c.b16 %v1613, %v1609
  %v2502 = vpack.c.b16 %v1614, %v1610
  %v2503 = vpack.c.b16 %v1615, %v1611
  %v2504 = vpack.c.b16 %v1616, %v1612
  %v2505 = vpack.c.b16 %v1621, %v1617
  %v2506 = vpack.c.b16 %v1622, %v1618
  %v2507 = vpack.c.b16 %v1623, %v1619
  %v2508 = vpack.c.b16 %v1624, %v1620
  %v2509 = vpack.c.b16 %v1629, %v1625
  %v2510 = vpack.c.b16 %v1630, %v1626
  %v2511 = vpack.c.b16 %v1631, %v1627
  %v2512 = vpack.c.b16 %v1632, %v1628
  %v2513 = vpack.c.b16 %v1637, %v1633
  %v2514 = vpack.c.b16 %v1638, %v1634
  %v2515 = vpack.c.b16 %v1639, %v1635
  %v2516 = vpack.c.b16 %v1640, %v1636
  %v2517 = vpack.c.b16 %v1645, %v1641
  %v2518 = vpack.c.b16 %v1646, %v1642
  %v2519 = vpack.c.b16 %v1647, %v1643
  %v2520 = vpack.c.b16 %v1648, %v1644
  %v2521 = vpack.c.b16 %v1653, %v1649
  %v2522 = vpack.c.b16 %v1654, %v1650
  %v2523 = vpack.c.b16 %v1655, %v1651
  %v2524 = vpack.c.b16 %v1656, %v1652
  %v2525 = vpack.c.b16 %v1661, %v1657
  %v2526 = vpack.c.b16 %v1662, %v1658
  %v2527 = vpack.c.b16 %v1663, %v1659
  %v2528 = vpack.c.b16 %v1664, %v1660
  %v2529 = vpack.c.b16 %v1669, %v1665
  %v2530 = vpack.c.b16 %v1670, %v1666
  %v2531 = vpack.c.b16 %v1671, %v1667
  %v2532 = vpack.c.b16 %v1672, %v1668
  %v2533 = vpack.c.b16 %v1677, %v1673
  %v2534 = vpack.c.b16 %v1678, %v1674
  %v2535 = vpack.c.b16 %v1679, %v1675
  %v2536 = vpack.c.b16 %v1680, %v1676
  %v2537 = vpack.c.b16 %v1685, %v1681
  %v2538 = vpack.c.b16 %v1686, %v1682
  %v2539 = vpack.c.b16 %v1687, %v1683
  %v2540 = vpack.c.b16 %v1688, %v1684
  %v2541 = vpack.c.b16 %v1693, %v1689
  %v2542 = vpack.c.b16 %v1694, %v1690
  %v2543 = vpack.c.b16 %v1695, %v1691
  %v2544 = vpack.c.b16 %v1696, %v1692
  %v2545 = vpack.c.b16 %v1701, %v1697
  %v2546 = vpack.c.b16 %v1702, %v1698
  %v2547 = vpack.c.b16 %v1703, %v1699
  %v2548 = vpack.c.b16 %v1704, %v1700
  %v2549 = vpack.c.b16 %v1709, %v1705
  %v2550 = vpack.c.b16 %v1710, %v1706
  %v2551 = vpack.c.b16 %v1711, %v1707
  %v2552 = vpack.c.b16 %v1712, %v1708
  %v2553 = vpack.c.b16 %v1717, %v1713
  %v2554 = vpack.c.b16 %v1718, %v1714
  %v2555 = vpack.c.b16 %v1719, %v1715
  %v2556 = vpack.c.b16 %v1720, %v1716
  %v2557 = vpack.c.b16 %v1725, %v1721
  %v2558 = vpack.c.b16 %v1726, %v1722
  %v2559 = vpack.c.b16 %v1727, %v1723
  %v2560 = vpack.c.b16 %v1728, %v1724
  %v2561 = vpack.c.b16 %v1733, %v1729
  %v2562 = vpack.c.b16 %v1734, %v1730
  %v2563 = vpack.c.b16 %v1735, %v1731
  %v2564 = vpack.c.b16 %v1736, %v1732
  %v2565 = vpack.c.b16 %v1741, %v1737
  %v2566 = vpack.c.b16 %v1742, %v1738
  %v2567 = vpack.c.b16 %v1743, %v1739
  %v2568 = vpack.c.b16 %v1744, %v1740
  %v2569 = vpack.c.b16 %v1749, %v1745
  %v2570 = vpack.c.b16 %v1750, %v1746
  %v2571 = vpack.c.b16 %v1751, %v1747
  %v2572 = vpack.c.b16 %v1752, %v1748
  %v2573 = vpack.c.b16 %v1757, %v1753
  %v2574 = vpack.c.b16 %v1758, %v1754
  %v2575 = vpack.c.b16 %v1759, %v1755
  %v2576 = vpack.c.b16 %v1760, %v1756
  %v2577 = vpack.c.b16 %v1765, %v1761
  %v2578 = vpack.c.b16 %v1766, %v1762
  %v2579 = vpack.c.b16 %v1767, %v1763
  %v2580 = vpack.c.b16 %v1768, %v1764
  %v2581 = vpack.c.b16 %v1773, %v1769
  %v2582 = vpack.c.b16 %v1774, %v1770
  %v2583 = vpack.c.b16 %v1775, %v1771
  %v2584 = vpack.c.b16 %v1776, %v1772
  %v2585 = vpack.c.b16 %v1781, %v1777
  %v2586 = vpack.c.b16 %v1782, %v1778
  %v2587 = vpack.c.b16 %v1783, %v1779
  %v2588 = vpack.c.b16 %v1784, %v1780
  %v2589 = vpack.c.b16 %v1789, %v1785
  %v2590 = vpack.c.b16 %v1790, %v1786
  %v2591 = vpack.c.b16 %v1791, %v1787
  %v2592 = vpack.c.b16 %v1792, %v1788
  %v2593 = vpack.c.b16 %v1797, %v1793
  %v2594 = vpack.c.b16 %v1798, %v1794
  %v2595 = vpack.c.b16 %v1799, %v1795
  %v2596 = vpack.c.b16 %v1800, %v1796
  %v2597 = vpack.c.b16 %v1805, %v1801
  %v2598 = vpack.c.b16 %v1806, %v1802
  %v2599 = vpack.c.b16 %v1807, %v1803
  %v2600 = vpack.c.b16 %v1808, %v1804
  %v2601 = vpack.c.b16 %v1813, %v1809
  %v2602 = vpack.c.b16 %v1814, %v1810
  %v2603 = vpack.c.b16 %v1815, %v1811
  %v2604 = vpack.c.b16 %v1816, %v1812
  %v2605 = vpack.c.b16 %v1821, %v1817
  %v2606 = vpack.c.b16 %v1822, %v1818
  %v2607 = vpack.c.b16 %v1823, %v1819
  %v2608 = vpack.c.b16 %v1824, %v1820
  %v2609 = vpack.c.b16 %v1829, %v1825
  %v2610 = vpack.c.b16 %v1830, %v1826
  %v2611 = vpack.c.b16 %v1831, %v1827
  %v2612 = vpack.c.b16 %v1832, %v1828
  %v2613 = vpack.c.b16 %v1837, %v1833
  %v2614 = vpack.c.b16 %v1838, %v1834
  %v2615 = vpack.c.b16 %v1839, %v1835
  %v2616 = vpack.c.b16 %v1840, %v1836
  %v2617 = vpack.c.b16 %v1845, %v1841
  %v2618 = vpack.c.b16 %v1846, %v1842
  %v2619 = vpack.c.b16 %v1847, %v1843
  %v2620 = vpack.c.b16 %v1848, %v1844
  %v2621 = vpack.c.b16 %v1853, %v1849
  %v2622 = vpack.c.b16 %v1854, %v1850
  %v2623 = vpack.c.b16 %v1855, %v1851
  %v2624 = vpack.c.b16 %v1856, %v1852
  %v2625 = vpack.c.b16 %v1861, %v1857
  %v2626 = vpack.c.b16 %v1862, %v1858
  %v2627 = vpack.c.b16 %v1863, %v1859
  %v2628 = vpack.c.b16 %v1864, %v1860
  %v2629 = vpack.c.b16 %v1869, %v1865
  %v2630 = vpack.c.b16 %v1870, %v1866
  %v2631 = vpack.c.b16 %v1871, %v1867
  %v2632 = vpack.c.b16 %v1872, %v1868
  %v2633 = vpack.c.b16 %v1877, %v1873
  %v2634 = vpack.c.b16 %v1878, %v1874
  %v2635 = vpack.c.b16 %v1879, %v1875
  %v2636 = vpack.c.b16 %v1880, %v1876
  %v2637 = vpack.c.b16 %v1885, %v1881
  %v2638 = vpack.c.b16 %v1886, %v1882
  %v2639 = vpack.c.b16 %v1887, %v1883
  %v2640 = vpack.c.b16 %v1888, %v1884
  %v2641 = vpack.c.b16 %v1893, %v1889
  %v2642 = vpack.c.b16 %v1894, %v1890
  %v2643 = vpack.c.b16 %v1895, %v1891
  %v2644 = vpack.c.b16 %v1896, %v1892
  %v2645 = vpack.c.b16 %v1901, %v1897
  %v2646 = vpack.c.b16 %v1902, %v1898
  %v2647 = vpack.c.b16 %v1903, %v1899
  %v2648 = vpack.c.b16 %v1904, %v1900
  %v2649 = vpack.c.b16 %v1909, %v1905
  %v2650 = vpack.c.b16 %v1910, %v1906
  %v2651 = vpack.c.b16 %v1911, %v1907
  %v2652 = vpack.c.b16 %v1912, %v1908
  %v2653 = vpack.c.b16 %v1917, %v1913
  %v2654 = vpack.c.b16 %v1918, %v1914
  %v2655 = vpack.c.b16 %v1919, %v1915
  %v2656 = vpack.c.b16 %v1920, %v1916
  %v2657 = vpack.c.b16 %v1925, %v1921
  %v2658 = vpack.c.b16 %v1926, %v1922
  %v2659 = vpack.c.b16 %v1927, %v1923
  %v2660 = vpack.c.b16 %v1928, %v1924
  %v2661 = vpack.c.b16 %v1933, %v1929
  %v2662 = vpack.c.b16 %v1934, %v1930
  %v2663 = vpack.c.b16 %v1935, %v1931
  %v2664 = vpack.c.b16 %v1936, %v1932
  %v2665 = vpack.c.b16 %v1941, %v1937
  %v2666 = vpack.c.b16 %v1942, %v1938
  %v2667 = vpack.c.b16 %v1943, %v1939
  %v2668 = vpack.c.b16 %v1944, %v1940
  %v2669 = vpack.c.b16 %v1949, %v1945
  %v2670 = vpack.c.b16 %v1950, %v1946
  %v2671 = vpack.c.b16 %v1951, %v1947
  %v2672 = vpack.c.b16 %v1952, %v1948
  %v2673 = vpack.c.b16 %v1957, %v1953
  %v2674 = vpack.c.b16 %v1958, %v1954
  %v2675 = vpack.c.b16 %v1959, %v1955
  %v2676 = vpack.c.b16 %v1960, %v1956
  %v2677 = vpack.c.b16 %v1965, %v1961
  %v2678 = vpack.c.b16 %v1966, %v1962
  %v2679 = vpack.c.b16 %v1967, %v1963
  %v2680 = vpack.c.b16 %v1968, %v1964
  %v2681 = vpack.c.b16 %v1973, %v1969
  %v2682 = vpack.c.b16 %v1974, %v1970
  %v2683 = vpack.c.b16 %v1975, %v1971
  %v2684 = vpack.c.b16 %v1976, %v1972
  %v2685 = vpack.c.b16 %v1981, %v1977
  %v2686 = vpack.c.b16 %v1982, %v1978
  %v2687 = vpack.c.b16 %v1983, %v1979
  %v2688 = vpack.c.b16 %v1984, %v1980
  %v2689 = vpack.c.b16 %v1989, %v1985
  %v2690 = vpack.c.b16 %v1990, %v1986
  %v2691 = vpack.c.b16 %v1991, %v1987
  %v2692 = vpack.c.b16 %v1992, %v1988
  %v2693 = vpack.c.b16 %v1997, %v1993
  %v2694 = vpack.c.b16 %v1998, %v1994
  %v2695 = vpack.c.b16 %v1999, %v1995
  %v2696 = vpack.c.b16 %v2000, %v1996
  %v2697 = vpack.c.b16 %v2005, %v2001
  %v2698 = vpack.c.b16 %v2006, %v2002
  %v2699 = vpack.c.b16 %v2007, %v2003
  %v2700 = vpack.c.b16 %v2008, %v2004
  %v2701 = vpack.c.b16 %v2013, %v2009
  %v2702 = vpack.c.b16 %v2014, %v2010
  %v2703 = vpack.c.b16 %v2015, %v2011
  %v2704 = vpack.c.b16 %v2016, %v2012
  %v2705 = vpack.c.b16 %v2021, %v2017
  %v2706 = vpack.c.b16 %v2022, %v2018
  %v2707 = vpack.c.b16 %v2023, %v2019
  %v2708 = vpack.c.b16 %v2024, %v2020
  %v2709 = vpack.c.b16 %v2029, %v2025
  %v2710 = vpack.c.b16 %v2030, %v2026
  %v2711 = vpack.c.b16 %v2031, %v2027
  %v2712 = vpack.c.b16 %v2032, %v2028
  %v2713 = vpack.c.b16 %v2037, %v2033
  %v2714 = vpack.c.b16 %v2038, %v2034
  %v2715 = vpack.c.b16 %v2039, %v2035
  %v2716 = vpack.c.b16 %v2040, %v2036
  %v2717 = vpack.c.b16 %v2045, %v2041
  %v2718 = vpack.c.b16 %v2046, %v2042
  %v2719 = vpack.c.b16 %v2047, %v2043
  %v2720 = vpack.c.b16 %v2048, %v2044
  %v2721 = vpack.c.b16 %v2053, %v2049
  %v2722 = vpack.c.b16 %v2054, %v2050
  %v2723 = vpack.c.b16 %v2055, %v2051
  %v2724 = vpack.c.b16 %v2056, %v2052
  %v2725 = vpack.c.b16 %v2061, %v2057
  %v2726 = vpack.c.b16 %v2062, %v2058
  %v2727 = vpack.c.b16 %v2063, %v2059
  %v2728 = vpack.c.b16 %v2064, %v2060
  %v2729 = vpack.c.b16 %v2069, %v2065
  %v2730 = vpack.c.b16 %v2070, %v2066
  %v2731 = vpack.c.b16 %v2071, %v2067
  %v2732 = vpack.c.b16 %v2072, %v2068
  %v2733 = vpack.c.b16 %v2077, %v2073
  %v2734 = vpack.c.b16 %v2078, %v2074
  %v2735 = vpack.c.b16 %v2079, %v2075
  %v2736 = vpack.c.b16 %v2080, %v2076
  %v2737 = vpack.c.b16 %v2085, %v2081
  %v2738 = vpack.c.b16 %v2086, %v2082
  %v2739 = vpack.c.b16 %v2087, %v2083
  %v2740 = vpack.c.b16 %v2088, %v2084
  %v2741 = vpack.c.b16 %v2093, %v2089
  %v2742 = vpack.c.b16 %v2094, %v2090
  %v2743 = vpack.c.b16 %v2095, %v2091
  %v2744 = vpack.c.b16 %v2096, %v2092
  %v2745 = vpack.c.b16 %v2101, %v2097
  %v2746 = vpack.c.b16 %v2102, %v2098
  %v2747 = vpack.c.b16 %v2103, %v2099
  %v2748 = vpack.c.b16 %v2104, %v2100
  %v2749 = vpack.c.b16 %v2109, %v2105
  %v2750 = vpack.c.b16 %v2110, %v2106
  %v2751 = vpack.c.b16 %v2111, %v2107
  %v2752 = vpack.c.b16 %v2112, %v2108
  %v2753 = vpack.c.b16 %v2117, %v2113
  %v2754 = vpack.c.b16 %v2118, %v2114
  %v2755 = vpack.c.b16 %v2119, %v2115
  %v2756 = vpack.c.b16 %v2120, %v2116
  %v2757 = vpack.c.b16 %v2125, %v2121
  %v2758 = vpack.c.b16 %v2126, %v2122
  %v2759 = vpack.c.b16 %v2127, %v2123
  %v2760 = vpack.c.b16 %v2128, %v2124
  %v2761 = vpack.c.b16 %v2133, %v2129
  %v2762 = vpack.c.b16 %v2134, %v2130
  %v2763 = vpack.c.b16 %v2135, %v2131
  %v2764 = vpack.c.b16 %v2136, %v2132
  %v2765 = vpack.c.b16 %v2141, %v2137
  %v2766 = vpack.c.b16 %v2142, %v2138
  %v2767 = vpack.c.b16 %v2143, %v2139
  %v2768 = vpack.c.b16 %v2144, %v2140
  %v2769 = vpack.c.b16 %v2149, %v2145
  %v2770 = vpack.c.b16 %v2150, %v2146
  %v2771 = vpack.c.b16 %v2151, %v2147
  %v2772 = vpack.c.b16 %v2152, %v2148
  %v2773 = vpack.c.b16 %v2157, %v2153
  %v2774 = vpack.c.b16 %v2158, %v2154
  %v2775 = vpack.c.b16 %v2159, %v2155
  %v2776 = vpack.c.b16 %v2160, %v2156
  %v2777 = vpack.c.b16 %v2165, %v2161
  %v2778 = vpack.c.b16 %v2166, %v2162
  %v2779 = vpack.c.b16 %v2167, %v2163
  %v2780 = vpack.c.b16 %v2168, %v2164
  %v2781 = vpack.c.b16 %v2173, %v2169
  %v2782 = vpack.c.b16 %v2174, %v2170
  %v2783 = vpack.c.b16 %v2175, %v2171
  %v2784 = vpack.c.b16 %v2176, %v2172
  %v2785 = vpack.c.b16 %v2181, %v2177
  %v2786 = vpack.c.b16 %v2182, %v2178
  %v2787 = vpack.c.b16 %v2183, %v2179
  %v2788 = vpack.c.b16 %v2184, %v2180
  %v2789 = vpack.c.b16 %v2189, %v2185
  %v2790 = vpack.c.b16 %v2190, %v2186
  %v2791 = vpack.c.b16 %v2191, %v2187
  %v2792 = vpack.c.b16 %v2192, %v2188
  %v2793 = vpack.c.b16 %v2197, %v2193
  %v2794 = vpack.c.b16 %v2198, %v2194
  %v2795 = vpack.c.b16 %v2199, %v2195
  %v2796 = vpack.c.b16 %v2200, %v2196
  %v2797 = vpack.c.b16 %v2205, %v2201
  %v2798 = vpack.c.b16 %v2206, %v2202
  %v2799 = vpack.c.b16 %v2207, %v2203
  %v2800 = vpack.c.b16 %v2208, %v2204
  %v2801 = vpack.c.b16 %v2213, %v2209
  %v2802 = vpack.c.b16 %v2214, %v2210
  %v2803 = vpack.c.b16 %v2215, %v2211
  %v2804 = vpack.c.b16 %v2216, %v2212
  %v2805 = vpack.c.b16 %v2221, %v2217
  %v2806 = vpack.c.b16 %v2222, %v2218
  %v2807 = vpack.c.b16 %v2223, %v2219
  %v2808 = vpack.c.b16 %v2224, %v2220
  %v2809 = vpack.c.b16 %v2229, %v2225
  %v2810 = vpack.c.b16 %v2230, %v2226
  %v2811 = vpack.c.b16 %v2231, %v2227
  %v2812 = vpack.c.b16 %v2232, %v2228
  %v2813 = vpack.c.b16 %v2237, %v2233
  %v2814 = vpack.c.b16 %v2238, %v2234
  %v2815 = vpack.c.b16 %v2239, %v2235
  %v2816 = vpack.c.b16 %v2240, %v2236
  %v2817 = vpack.c.b16 %v2245, %v2241
  %v2818 = vpack.c.b16 %v2246, %v2242
  %v2819 = vpack.c.b16 %v2247, %v2243
  %v2820 = vpack.c.b16 %v2248, %v2244
  %v2821 = vpack.c.b16 %v2253, %v2249
  %v2822 = vpack.c.b16 %v2254, %v2250
  %v2823 = vpack.c.b16 %v2255, %v2251
  %v2824 = vpack.c.b16 %v2256, %v2252
  %v2825 = vpack.c.b16 %v2261, %v2257
  %v2826 = vpack.c.b16 %v2262, %v2258
  %v2827 = vpack.c.b16 %v2263, %v2259
  %v2828 = vpack.c.b16 %v2264, %v2260
  %v2829 = vpack.c.b16 %v2269, %v2265
  %v2830 = vpack.c.b16 %v2270, %v2266
  %v2831 = vpack.c.b16 %v2271, %v2267
  %v2832 = vpack.c.b16 %v2272, %v2268
  %v2833 = vpack.c.b16 %v2277, %v2273
  %v2834 = vpack.c.b16 %v2278, %v2274
  %v2835 = vpack.c.b16 %v2279, %v2275
  %v2836 = vpack.c.b16 %v2280, %v2276
  %v2837 = vpack.c.b16 %v2285, %v2281
  %v2838 = vpack.c.b16 %v2286, %v2282
  %v2839 = vpack.c.b16 %v2287, %v2283
  %v2840 = vpack.c.b16 %v2288, %v2284
  %v2841 = vpack.c.b16 %v2293, %v2289
  %v2842 = vpack.c.b16 %v2294, %v2290
  %v2843 = vpack.c.b16 %v2295, %v2291
  %v2844 = vpack.c.b16 %v2296, %v2292
  %v2845 = vpack.c.b16 %v2301, %v2297
  %v2846 = vpack.c.b16 %v2302, %v2298
  %v2847 = vpack.c.b16 %v2303, %v2299
  %v2848 = vpack.c.b16 %v2304, %v2300
  %v2849 = vpack.c.b16 %v2309, %v2305
  %v2850 = vpack.c.b16 %v2310, %v2306
  %v2851 = vpack.c.b16 %v2311, %v2307
  %v2852 = vpack.c.b16 %v2312, %v2308
  %v2853 = vpack.c.b16 %v2317, %v2313
  %v2854 = vpack.c.b16 %v2318, %v2314
  %v2855 = vpack.c.b16 %v2319, %v2315
  %v2856 = vpack.c.b16 %v2320, %v2316
  %vm3393 = vcmask 785408
  %v3395 = vsel %vm3393, %v696, 0
  %3397 = vmatprep.subr.bf16.mxu0 %v2350
  %3398 = vmatpush1.bf16.msra.mxu0 %v2349
  %3399 = vmatprep.subr.bf16.mxu0 %v2346
  %3400 = vmatpush1.bf16.msra.mxu0 %v2345
  %3401 = vmatprep.subr.bf16.mxu0 %v2342
  %3402 = vmatpush1.bf16.msra.mxu0 %v2341
  %3403 = vmatprep.subr.bf16.mxu0 %v2338
  %3404 = vmatpush1.bf16.msra.mxu0 %v2337
  %3405 = vmatprep.subr.bf16.mxu0 %v2334
  %3406 = vmatpush1.bf16.msra.mxu0 %v2333
  %3407 = vmatprep.subr.bf16.mxu0 %v2330
  %3408 = vmatpush1.bf16.msra.mxu0 %v2329
  %3409 = vmatprep.subr.bf16.mxu0 %v2326
  %3410 = vmatpush1.bf16.msra.mxu0 %v2325
  %3411 = vmatprep.subr.bf16.mxu0 %v2322
  %3412 = vmatpush1.bf16.msra.mxu0 %v2321
  %3413 = vmatprep.subr.bf16.mxu0 %v2382
  %3414 = vmatpush2.bf16.msra.mxu0 %v2381
  %3415 = vmatprep.subr.bf16.mxu0 %v2378
  %3416 = vmatpush2.bf16.msra.mxu0 %v2377
  %3417 = vmatprep.subr.bf16.mxu0 %v2374
  %3418 = vmatpush2.bf16.msra.mxu0 %v2373
  %3419 = vmatprep.subr.bf16.mxu0 %v2370
  %3420 = vmatpush2.bf16.msra.mxu0 %v2369
  %3421 = vmatprep.subr.bf16.mxu0 %v2366
  %3422 = vmatpush2.bf16.msra.mxu0 %v2365
  %3423 = vmatprep.subr.bf16.mxu0 %v2362
  %3424 = vmatpush2.bf16.msra.mxu0 %v2361
  %3425 = vmatprep.subr.bf16.mxu0 %v2358
  %3426 = vmatpush2.bf16.msra.mxu0 %v2357
  %3427 = vmatprep.subr.bf16.mxu0 %v2354
  %3428 = vmatpush2.bf16.msra.mxu0 %v2353
  %3429 = vmatprep.mubr.bf16.mxu0 %v622
  %3430 = vmatmul.mubr.bf16.gmra.mxu0 %v608
  %v3431 = vpop.f32.mrf.mxu0
  %v3432 = vadd.f32 %v565, %v3431
  %v3433 = vpop.f32.mrf.mxu0
  %v3434 = vadd.f32 %v569, %v3433
  %v3435 = vpop.f32.mrf.mxu0
  %v3436 = vpop.f32.mrf.mxu0
  %3437 = vdwg.mxu0
  %3438 = vmatprep.subr.bf16.mxu0 %v2414
  %3439 = vmatpush1.bf16.msra.mxu0 %v2413
  %3440 = vmatprep.subr.bf16.mxu0 %v2410
  %3441 = vmatpush1.bf16.msra.mxu0 %v2409
  %3442 = vmatprep.subr.bf16.mxu0 %v2406
  %3443 = vmatpush1.bf16.msra.mxu0 %v2405
  %3444 = vmatprep.subr.bf16.mxu0 %v2402
  %3445 = vmatpush1.bf16.msra.mxu0 %v2401
  %3446 = vmatprep.subr.bf16.mxu0 %v2398
  %3447 = vmatpush1.bf16.msra.mxu0 %v2397
  %3448 = vmatprep.subr.bf16.mxu0 %v2394
  %3449 = vmatpush1.bf16.msra.mxu0 %v2393
  %3450 = vmatprep.subr.bf16.mxu0 %v2390
  %3451 = vmatpush1.bf16.msra.mxu0 %v2389
  %3452 = vmatprep.subr.bf16.mxu0 %v2386
  %3453 = vmatpush1.bf16.msra.mxu0 %v2385
  %3454 = vmatprep.subr.bf16.mxu0 %v2446
  %3455 = vmatpush2.bf16.msra.mxu0 %v2445
  %3456 = vmatprep.subr.bf16.mxu0 %v2442
  %3457 = vmatpush2.bf16.msra.mxu0 %v2441
  %3458 = vmatprep.subr.bf16.mxu0 %v2438
  %3459 = vmatpush2.bf16.msra.mxu0 %v2437
  %3460 = vmatprep.subr.bf16.mxu0 %v2434
  %3461 = vmatpush2.bf16.msra.mxu0 %v2433
  %3462 = vmatprep.subr.bf16.mxu0 %v2430
  %3463 = vmatpush2.bf16.msra.mxu0 %v2429
  %3464 = vmatprep.subr.bf16.mxu0 %v2426
  %3465 = vmatpush2.bf16.msra.mxu0 %v2425
  %3466 = vmatprep.subr.bf16.mxu0 %v2422
  %3467 = vmatpush2.bf16.msra.mxu0 %v2421
  %3468 = vmatprep.subr.bf16.mxu0 %v2418
  %3469 = vmatpush2.bf16.msra.mxu0 %v2417
  %3470 = vmatprep.mubr.bf16.mxu0 %v632
  %3471 = vmatmul.mubr.bf16.gmra.mxu0 %v630
  %v3472 = vpop.f32.mrf.mxu0
  %v3473 = vadd.f32 %v3432, %v3472
  %v3474 = vpop.f32.mrf.mxu0
  %v3475 = vadd.f32 %v3434, %v3474
  %v3476 = vpop.f32.mrf.mxu0
  %v3477 = vpop.f32.mrf.mxu0
  %3478 = vdwg.mxu0
  %3479 = vmatprep.subr.bf16.mxu0 %v2478
  %3480 = vmatpush1.bf16.msra.mxu0 %v2477
  %3481 = vmatprep.subr.bf16.mxu0 %v2474
  %3482 = vmatpush1.bf16.msra.mxu0 %v2473
  %3483 = vmatprep.subr.bf16.mxu0 %v2470
  %3484 = vmatpush1.bf16.msra.mxu0 %v2469
  %3485 = vmatprep.subr.bf16.mxu0 %v2466
  %3486 = vmatpush1.bf16.msra.mxu0 %v2465
  %3487 = vmatprep.subr.bf16.mxu0 %v2462
  %3488 = vmatpush1.bf16.msra.mxu0 %v2461
  %3489 = vmatprep.subr.bf16.mxu0 %v2458
  %3490 = vmatpush1.bf16.msra.mxu0 %v2457
  %3491 = vmatprep.subr.bf16.mxu0 %v2454
  %3492 = vmatpush1.bf16.msra.mxu0 %v2453
  %3493 = vmatprep.subr.bf16.mxu0 %v2450
  %3494 = vmatpush1.bf16.msra.mxu0 %v2449
  %3495 = vmatprep.subr.bf16.mxu0 %v2510
  %3496 = vmatpush2.bf16.msra.mxu0 %v2509
  %3497 = vmatprep.subr.bf16.mxu0 %v2506
  %3498 = vmatpush2.bf16.msra.mxu0 %v2505
  %3499 = vmatprep.subr.bf16.mxu0 %v2502
  %3500 = vmatpush2.bf16.msra.mxu0 %v2501
  %3501 = vmatprep.subr.bf16.mxu0 %v2498
  %3502 = vmatpush2.bf16.msra.mxu0 %v2497
  %3503 = vmatprep.subr.bf16.mxu0 %v2494
  %3504 = vmatpush2.bf16.msra.mxu0 %v2493
  %3505 = vmatprep.subr.bf16.mxu0 %v2490
  %3506 = vmatpush2.bf16.msra.mxu0 %v2489
  %3507 = vmatprep.subr.bf16.mxu0 %v2486
  %3508 = vmatpush2.bf16.msra.mxu0 %v2485
  %3509 = vmatprep.subr.bf16.mxu0 %v2482
  %3510 = vmatpush2.bf16.msra.mxu0 %v2481
  %3511 = vmatprep.mubr.bf16.mxu0 %v629
  %3512 = vmatmul.mubr.bf16.gmra.mxu0 %v615
  %v3513 = vpop.f32.mrf.mxu0
  %v3514 = vadd.f32 %v3473, %v3513
  %v3515 = vpop.f32.mrf.mxu0
  %v3516 = vadd.f32 %v3475, %v3515
  %v3517 = vpop.f32.mrf.mxu0
  %v3518 = vpop.f32.mrf.mxu0
  %3519 = vdwg.mxu0
  %3520 = vmatprep.subr.bf16.mxu0 %v2542
  %3521 = vmatpush1.bf16.msra.mxu0 %v2541
  %3522 = vmatprep.subr.bf16.mxu0 %v2538
  %3523 = vmatpush1.bf16.msra.mxu0 %v2537
  %3524 = vmatprep.subr.bf16.mxu0 %v2534
  %3525 = vmatpush1.bf16.msra.mxu0 %v2533
  %3526 = vmatprep.subr.bf16.mxu0 %v2530
  %3527 = vmatpush1.bf16.msra.mxu0 %v2529
  %3528 = vmatprep.subr.bf16.mxu0 %v2526
  %3529 = vmatpush1.bf16.msra.mxu0 %v2525
  %3530 = vmatprep.subr.bf16.mxu0 %v2522
  %3531 = vmatpush1.bf16.msra.mxu0 %v2521
  %3532 = vmatprep.subr.bf16.mxu0 %v2518
  %3533 = vmatpush1.bf16.msra.mxu0 %v2517
  %3534 = vmatprep.subr.bf16.mxu0 %v2514
  %3535 = vmatpush1.bf16.msra.mxu0 %v2513
  %3536 = vmatprep.subr.bf16.mxu0 %v2574
  %3537 = vmatpush2.bf16.msra.mxu0 %v2573
  %3538 = vmatprep.subr.bf16.mxu0 %v2570
  %3539 = vmatpush2.bf16.msra.mxu0 %v2569
  %3540 = vmatprep.subr.bf16.mxu0 %v2566
  %3541 = vmatpush2.bf16.msra.mxu0 %v2565
  %3542 = vmatprep.subr.bf16.mxu0 %v2562
  %3543 = vmatpush2.bf16.msra.mxu0 %v2561
  %3544 = vmatprep.subr.bf16.mxu0 %v2558
  %3545 = vmatpush2.bf16.msra.mxu0 %v2557
  %3546 = vmatprep.subr.bf16.mxu0 %v2554
  %3547 = vmatpush2.bf16.msra.mxu0 %v2553
  %3548 = vmatprep.subr.bf16.mxu0 %v2550
  %3549 = vmatpush2.bf16.msra.mxu0 %v2549
  %3550 = vmatprep.subr.bf16.mxu0 %v2546
  %3551 = vmatpush2.bf16.msra.mxu0 %v2545
  %3552 = vmatprep.mubr.bf16.mxu0 %v633
  %3553 = vmatmul.mubr.bf16.gmra.mxu0 %v631
  %v3554 = vpop.f32.mrf.mxu0
  %v3555 = vadd.f32 %v3514, %v3554
  %v3556 = vpop.f32.mrf.mxu0
  %v3557 = vadd.f32 %v3516, %v3556
  %v3558 = vpop.f32.mrf.mxu0
  %v3559 = vpop.f32.mrf.mxu0
  %3560 = vdwg.mxu0
  %3561 = vmatprep.subr.bf16.mxu0 %v2606
  %3562 = vmatpush1.bf16.msra.mxu0 %v2605
  %3563 = vmatprep.subr.bf16.mxu0 %v2602
  %3564 = vmatpush1.bf16.msra.mxu0 %v2601
  %3565 = vmatprep.subr.bf16.mxu0 %v2598
  %3566 = vmatpush1.bf16.msra.mxu0 %v2597
  %3567 = vmatprep.subr.bf16.mxu0 %v2594
  %3568 = vmatpush1.bf16.msra.mxu0 %v2593
  %3569 = vmatprep.subr.bf16.mxu0 %v2590
  %3570 = vmatpush1.bf16.msra.mxu0 %v2589
  %3571 = vmatprep.subr.bf16.mxu0 %v2586
  %3572 = vmatpush1.bf16.msra.mxu0 %v2585
  %3573 = vmatprep.subr.bf16.mxu0 %v2582
  %3574 = vmatpush1.bf16.msra.mxu0 %v2581
  %3575 = vmatprep.subr.bf16.mxu0 %v2578
  %3576 = vmatpush1.bf16.msra.mxu0 %v2577
  %3577 = vmatprep.subr.bf16.mxu0 %v2638
  %3578 = vmatpush2.bf16.msra.mxu0 %v2637
  %3579 = vmatprep.subr.bf16.mxu0 %v2634
  %3580 = vmatpush2.bf16.msra.mxu0 %v2633
  %3581 = vmatprep.subr.bf16.mxu0 %v2630
  %3582 = vmatpush2.bf16.msra.mxu0 %v2629
  %3583 = vmatprep.subr.bf16.mxu0 %v2626
  %3584 = vmatpush2.bf16.msra.mxu0 %v2625
  %3585 = vmatprep.subr.bf16.mxu0 %v2622
  %3586 = vmatpush2.bf16.msra.mxu0 %v2621
  %3587 = vmatprep.subr.bf16.mxu0 %v2618
  %3588 = vmatpush2.bf16.msra.mxu0 %v2617
  %3589 = vmatprep.subr.bf16.mxu0 %v2614
  %3590 = vmatpush2.bf16.msra.mxu0 %v2613
  %3591 = vmatprep.subr.bf16.mxu0 %v2610
  %3592 = vmatpush2.bf16.msra.mxu0 %v2609
  %3593 = vmatprep.mubr.bf16.mxu0 %v671
  %3594 = vmatmul.mubr.bf16.gmra.mxu0 %v657
  %v3595 = vpop.f32.mrf.mxu0
  %v3596 = vadd.f32 %v3555, %v3595
  %v3597 = vpop.f32.mrf.mxu0
  %v3598 = vadd.f32 %v3557, %v3597
  %v3599 = vpop.f32.mrf.mxu0
  %v3600 = vpop.f32.mrf.mxu0
  %3601 = vdwg.mxu0
  %3602 = vmatprep.subr.bf16.mxu0 %v2670
  %3603 = vmatpush1.bf16.msra.mxu0 %v2669
  %3604 = vmatprep.subr.bf16.mxu0 %v2666
  %3605 = vmatpush1.bf16.msra.mxu0 %v2665
  %3606 = vmatprep.subr.bf16.mxu0 %v2662
  %3607 = vmatpush1.bf16.msra.mxu0 %v2661
  %3608 = vmatprep.subr.bf16.mxu0 %v2658
  %3609 = vmatpush1.bf16.msra.mxu0 %v2657
  %3610 = vmatprep.subr.bf16.mxu0 %v2654
  %3611 = vmatpush1.bf16.msra.mxu0 %v2653
  %3612 = vmatprep.subr.bf16.mxu0 %v2650
  %3613 = vmatpush1.bf16.msra.mxu0 %v2649
  %3614 = vmatprep.subr.bf16.mxu0 %v2646
  %3615 = vmatpush1.bf16.msra.mxu0 %v2645
  %3616 = vmatprep.subr.bf16.mxu0 %v2642
  %3617 = vmatpush1.bf16.msra.mxu0 %v2641
  %3618 = vmatprep.subr.bf16.mxu0 %v2702
  %3619 = vmatpush2.bf16.msra.mxu0 %v2701
  %3620 = vmatprep.subr.bf16.mxu0 %v2698
  %3621 = vmatpush2.bf16.msra.mxu0 %v2697
  %3622 = vmatprep.subr.bf16.mxu0 %v2694
  %3623 = vmatpush2.bf16.msra.mxu0 %v2693
  %3624 = vmatprep.subr.bf16.mxu0 %v2690
  %3625 = vmatpush2.bf16.msra.mxu0 %v2689
  %3626 = vmatprep.subr.bf16.mxu0 %v2686
  %3627 = vmatpush2.bf16.msra.mxu0 %v2685
  %3628 = vmatprep.subr.bf16.mxu0 %v2682
  %3629 = vmatpush2.bf16.msra.mxu0 %v2681
  %3630 = vmatprep.subr.bf16.mxu0 %v2678
  %3631 = vmatpush2.bf16.msra.mxu0 %v2677
  %3632 = vmatprep.subr.bf16.mxu0 %v2674
  %3633 = vmatpush2.bf16.msra.mxu0 %v2673
  %3634 = vmatprep.mubr.bf16.mxu0 %v681
  %3635 = vmatmul.mubr.bf16.gmra.mxu0 %v679
  %v3636 = vpop.f32.mrf.mxu0
  %v3637 = vadd.f32 %v3596, %v3636
  %v3638 = vpop.f32.mrf.mxu0
  %v3639 = vadd.f32 %v3598, %v3638
  %v3640 = vpop.f32.mrf.mxu0
  %v3641 = vpop.f32.mrf.mxu0
  %3642 = vdwg.mxu0
  %3643 = vmatprep.subr.bf16.mxu0 %v2734
  %3644 = vmatpush1.bf16.msra.mxu0 %v2733
  %3645 = vmatprep.subr.bf16.mxu0 %v2730
  %3646 = vmatpush1.bf16.msra.mxu0 %v2729
  %3647 = vmatprep.subr.bf16.mxu0 %v2726
  %3648 = vmatpush1.bf16.msra.mxu0 %v2725
  %3649 = vmatprep.subr.bf16.mxu0 %v2722
  %3650 = vmatpush1.bf16.msra.mxu0 %v2721
  %3651 = vmatprep.subr.bf16.mxu0 %v2718
  %3652 = vmatpush1.bf16.msra.mxu0 %v2717
  %3653 = vmatprep.subr.bf16.mxu0 %v2714
  %3654 = vmatpush1.bf16.msra.mxu0 %v2713
  %3655 = vmatprep.subr.bf16.mxu0 %v2710
  %3656 = vmatpush1.bf16.msra.mxu0 %v2709
  %3657 = vmatprep.subr.bf16.mxu0 %v2706
  %3658 = vmatpush1.bf16.msra.mxu0 %v2705
  %3659 = vmatprep.subr.bf16.mxu0 %v2766
  %3660 = vmatpush2.bf16.msra.mxu0 %v2765
  %3661 = vmatprep.subr.bf16.mxu0 %v2762
  %3662 = vmatpush2.bf16.msra.mxu0 %v2761
  %3663 = vmatprep.subr.bf16.mxu0 %v2758
  %3664 = vmatpush2.bf16.msra.mxu0 %v2757
  %3665 = vmatprep.subr.bf16.mxu0 %v2754
  %3666 = vmatpush2.bf16.msra.mxu0 %v2753
  %3667 = vmatprep.subr.bf16.mxu0 %v2750
  %3668 = vmatpush2.bf16.msra.mxu0 %v2749
  %3669 = vmatprep.subr.bf16.mxu0 %v2746
  %3670 = vmatpush2.bf16.msra.mxu0 %v2745
  %3671 = vmatprep.subr.bf16.mxu0 %v2742
  %3672 = vmatpush2.bf16.msra.mxu0 %v2741
  %3673 = vmatprep.subr.bf16.mxu0 %v2738
  %3674 = vmatpush2.bf16.msra.mxu0 %v2737
  %3675 = vmatprep.mubr.bf16.mxu0 %v678
  %3676 = vmatmul.mubr.bf16.gmra.mxu0 %v664
  %v3677 = vpop.f32.mrf.mxu0
  %v3678 = vadd.f32 %v3637, %v3677
  %v3679 = vpop.f32.mrf.mxu0
  %v3680 = vadd.f32 %v3639, %v3679
  %v3681 = vpop.f32.mrf.mxu0
  %v3682 = vpop.f32.mrf.mxu0
  %3683 = vdwg.mxu0
  %3684 = vmatprep.subr.bf16.mxu0 %v2798
  %3685 = vmatpush1.bf16.msra.mxu0 %v2797
  %3686 = vmatprep.subr.bf16.mxu0 %v2794
  %3687 = vmatpush1.bf16.msra.mxu0 %v2793
  %3688 = vmatprep.subr.bf16.mxu0 %v2790
  %3689 = vmatpush1.bf16.msra.mxu0 %v2789
  %3690 = vmatprep.subr.bf16.mxu0 %v2786
  %3691 = vmatpush1.bf16.msra.mxu0 %v2785
  %3692 = vmatprep.subr.bf16.mxu0 %v2782
  %3693 = vmatpush1.bf16.msra.mxu0 %v2781
  %3694 = vmatprep.subr.bf16.mxu0 %v2778
  %3695 = vmatpush1.bf16.msra.mxu0 %v2777
  %3696 = vmatprep.subr.bf16.mxu0 %v2774
  %3697 = vmatpush1.bf16.msra.mxu0 %v2773
  %3698 = vmatprep.subr.bf16.mxu0 %v2770
  %3699 = vmatpush1.bf16.msra.mxu0 %v2769
  %3700 = vmatprep.subr.bf16.mxu0 %v2830
  %3701 = vmatpush2.bf16.msra.mxu0 %v2829
  %3702 = vmatprep.subr.bf16.mxu0 %v2826
  %3703 = vmatpush2.bf16.msra.mxu0 %v2825
  %3704 = vmatprep.subr.bf16.mxu0 %v2822
  %3705 = vmatpush2.bf16.msra.mxu0 %v2821
  %3706 = vmatprep.subr.bf16.mxu0 %v2818
  %3707 = vmatpush2.bf16.msra.mxu0 %v2817
  %3708 = vmatprep.subr.bf16.mxu0 %v2814
  %3709 = vmatpush2.bf16.msra.mxu0 %v2813
  %3710 = vmatprep.subr.bf16.mxu0 %v2810
  %3711 = vmatpush2.bf16.msra.mxu0 %v2809
  %3712 = vmatprep.subr.bf16.mxu0 %v2806
  %3713 = vmatpush2.bf16.msra.mxu0 %v2805
  %3714 = vmatprep.subr.bf16.mxu0 %v2802
  %3715 = vmatpush2.bf16.msra.mxu0 %v2801
  %3716 = vmatprep.mubr.bf16.mxu0 %v682
  %3717 = vmatmul.mubr.bf16.gmra.mxu0 %v680
  %v3718 = vpop.f32.mrf.mxu0
  %v3719 = vadd.f32 %v3678, %v3718
  %v3720 = vpop.f32.mrf.mxu0
  %v3721 = vadd.f32 %v3680, %v3720
  %v3722 = vpop.f32.mrf.mxu0
  %v3723 = vpop.f32.mrf.mxu0
  %3724 = vdwg.mxu0
  %3725 = vmatprep.subr.bf16.mxu0 0
  %3726 = vmatpush1.bf16.msra.mxu0 0
  %3727 = vmatprep.subr.bf16.mxu0 0
  %3728 = vmatpush1.bf16.msra.mxu0 0
  %3729 = vmatprep.subr.bf16.mxu0 %v2854
  %3730 = vmatpush1.bf16.msra.mxu0 %v2853
  %3731 = vmatprep.subr.bf16.mxu0 %v2850
  %3732 = vmatpush1.bf16.msra.mxu0 %v2849
  %3733 = vmatprep.subr.bf16.mxu0 %v2846
  %3734 = vmatpush1.bf16.msra.mxu0 %v2845
  %3735 = vmatprep.subr.bf16.mxu0 %v2842
  %3736 = vmatpush1.bf16.msra.mxu0 %v2841
  %3737 = vmatprep.subr.bf16.mxu0 %v2838
  %3738 = vmatpush1.bf16.msra.mxu0 %v2837
  %3739 = vmatprep.subr.bf16.mxu0 %v2834
  %3740 = vmatpush1.bf16.msra.mxu0 %v2833
  %3741 = vmatprep.subr.bf16.mxu0 0
  %3742 = vmatpush2.bf16.msra.mxu0 0
  %3743 = vmatprep.subr.bf16.mxu0 0
  %3744 = vmatpush2.bf16.msra.mxu0 0
  %3745 = vmatprep.subr.bf16.mxu0 0
  %3746 = vmatpush2.bf16.msra.mxu0 0
  %3747 = vmatprep.subr.bf16.mxu0 0
  %3748 = vmatpush2.bf16.msra.mxu0 0
  %3749 = vmatprep.subr.bf16.mxu0 0
  %3750 = vmatpush2.bf16.msra.mxu0 0
  %3751 = vmatprep.subr.bf16.mxu0 0
  %3752 = vmatpush2.bf16.msra.mxu0 0
  %3753 = vmatprep.subr.bf16.mxu0 0
  %3754 = vmatpush2.bf16.msra.mxu0 0
  %3755 = vmatprep.subr.bf16.mxu0 0
  %3756 = vmatpush2.bf16.msra.mxu0 0
  %3757 = vmatprep.mubr.bf16.mxu0 0
  %3758 = vmatmul.mubr.bf16.gmra.mxu0 %v3395
  %v3759 = vpop.f32.mrf.mxu0
  %v3760 = vadd.f32 %v3719, %v3759
  %v3761 = vpop.f32.mrf.mxu0
  %v3762 = vadd.f32 %v3721, %v3761
  %v3763 = vpop.f32.mrf.mxu0
  %v3764 = vpop.f32.mrf.mxu0
  %3765 = vdwg.mxu0
  %3766 = vmatprep.subr.bf16.mxu0 %v2352
  %3767 = vmatpush1.bf16.msra.mxu0 %v2351
  %3768 = vmatprep.subr.bf16.mxu0 %v2348
  %3769 = vmatpush1.bf16.msra.mxu0 %v2347
  %3770 = vmatprep.subr.bf16.mxu0 %v2344
  %3771 = vmatpush1.bf16.msra.mxu0 %v2343
  %3772 = vmatprep.subr.bf16.mxu0 %v2340
  %3773 = vmatpush1.bf16.msra.mxu0 %v2339
  %3774 = vmatprep.subr.bf16.mxu0 %v2336
  %3775 = vmatpush1.bf16.msra.mxu0 %v2335
  %3776 = vmatprep.subr.bf16.mxu0 %v2332
  %3777 = vmatpush1.bf16.msra.mxu0 %v2331
  %3778 = vmatprep.subr.bf16.mxu0 %v2328
  %3779 = vmatpush1.bf16.msra.mxu0 %v2327
  %3780 = vmatprep.subr.bf16.mxu0 %v2324
  %3781 = vmatpush1.bf16.msra.mxu0 %v2323
  %3782 = vmatprep.subr.bf16.mxu0 %v2384
  %3783 = vmatpush2.bf16.msra.mxu0 %v2383
  %3784 = vmatprep.subr.bf16.mxu0 %v2380
  %3785 = vmatpush2.bf16.msra.mxu0 %v2379
  %3786 = vmatprep.subr.bf16.mxu0 %v2376
  %3787 = vmatpush2.bf16.msra.mxu0 %v2375
  %3788 = vmatprep.subr.bf16.mxu0 %v2372
  %3789 = vmatpush2.bf16.msra.mxu0 %v2371
  %3790 = vmatprep.subr.bf16.mxu0 %v2368
  %3791 = vmatpush2.bf16.msra.mxu0 %v2367
  %3792 = vmatprep.subr.bf16.mxu0 %v2364
  %3793 = vmatpush2.bf16.msra.mxu0 %v2363
  %3794 = vmatprep.subr.bf16.mxu0 %v2360
  %3795 = vmatpush2.bf16.msra.mxu0 %v2359
  %3796 = vmatprep.subr.bf16.mxu0 %v2356
  %3797 = vmatpush2.bf16.msra.mxu0 %v2355
  %3798 = vmatprep.mubr.bf16.mxu0 %v622
  %3799 = vmatmul.mubr.bf16.gmra.mxu0 %v608
  %v3800 = vpop.f32.mrf.mxu0
  %v3801 = vadd.f32 %v573, %v3800
  %v3802 = vpop.f32.mrf.mxu0
  %v3803 = vadd.f32 %v577, %v3802
  %v3804 = vpop.f32.mrf.mxu0
  %v3805 = vpop.f32.mrf.mxu0
  %3806 = vdwg.mxu0
  %3807 = vmatprep.subr.bf16.mxu0 %v2416
  %3808 = vmatpush1.bf16.msra.mxu0 %v2415
  %3809 = vmatprep.subr.bf16.mxu0 %v2412
  %3810 = vmatpush1.bf16.msra.mxu0 %v2411
  %3811 = vmatprep.subr.bf16.mxu0 %v2408
  %3812 = vmatpush1.bf16.msra.mxu0 %v2407
  %3813 = vmatprep.subr.bf16.mxu0 %v2404
  %3814 = vmatpush1.bf16.msra.mxu0 %v2403
  %3815 = vmatprep.subr.bf16.mxu0 %v2400
  %3816 = vmatpush1.bf16.msra.mxu0 %v2399
  %3817 = vmatprep.subr.bf16.mxu0 %v2396
  %3818 = vmatpush1.bf16.msra.mxu0 %v2395
  %3819 = vmatprep.subr.bf16.mxu0 %v2392
  %3820 = vmatpush1.bf16.msra.mxu0 %v2391
  %3821 = vmatprep.subr.bf16.mxu0 %v2388
  %3822 = vmatpush1.bf16.msra.mxu0 %v2387
  %3823 = vmatprep.subr.bf16.mxu0 %v2448
  %3824 = vmatpush2.bf16.msra.mxu0 %v2447
  %3825 = vmatprep.subr.bf16.mxu0 %v2444
  %3826 = vmatpush2.bf16.msra.mxu0 %v2443
  %3827 = vmatprep.subr.bf16.mxu0 %v2440
  %3828 = vmatpush2.bf16.msra.mxu0 %v2439
  %3829 = vmatprep.subr.bf16.mxu0 %v2436
  %3830 = vmatpush2.bf16.msra.mxu0 %v2435
  %3831 = vmatprep.subr.bf16.mxu0 %v2432
  %3832 = vmatpush2.bf16.msra.mxu0 %v2431
  %3833 = vmatprep.subr.bf16.mxu0 %v2428
  %3834 = vmatpush2.bf16.msra.mxu0 %v2427
  %3835 = vmatprep.subr.bf16.mxu0 %v2424
  %3836 = vmatpush2.bf16.msra.mxu0 %v2423
  %3837 = vmatprep.subr.bf16.mxu0 %v2420
  %3838 = vmatpush2.bf16.msra.mxu0 %v2419
  %3839 = vmatprep.mubr.bf16.mxu0 %v632
  %3840 = vmatmul.mubr.bf16.gmra.mxu0 %v630
  %v3841 = vpop.f32.mrf.mxu0
  %v3842 = vadd.f32 %v3801, %v3841
  %v3843 = vpop.f32.mrf.mxu0
  %v3844 = vadd.f32 %v3803, %v3843
  %v3845 = vpop.f32.mrf.mxu0
  %v3846 = vpop.f32.mrf.mxu0
  %3847 = vdwg.mxu0
  %3848 = vmatprep.subr.bf16.mxu0 %v2480
  %3849 = vmatpush1.bf16.msra.mxu0 %v2479
  %3850 = vmatprep.subr.bf16.mxu0 %v2476
  %3851 = vmatpush1.bf16.msra.mxu0 %v2475
  %3852 = vmatprep.subr.bf16.mxu0 %v2472
  %3853 = vmatpush1.bf16.msra.mxu0 %v2471
  %3854 = vmatprep.subr.bf16.mxu0 %v2468
  %3855 = vmatpush1.bf16.msra.mxu0 %v2467
  %3856 = vmatprep.subr.bf16.mxu0 %v2464
  %3857 = vmatpush1.bf16.msra.mxu0 %v2463
  %3858 = vmatprep.subr.bf16.mxu0 %v2460
  %3859 = vmatpush1.bf16.msra.mxu0 %v2459
  %3860 = vmatprep.subr.bf16.mxu0 %v2456
  %3861 = vmatpush1.bf16.msra.mxu0 %v2455
  %3862 = vmatprep.subr.bf16.mxu0 %v2452
  %3863 = vmatpush1.bf16.msra.mxu0 %v2451
  %3864 = vmatprep.subr.bf16.mxu0 %v2512
  %3865 = vmatpush2.bf16.msra.mxu0 %v2511
  %3866 = vmatprep.subr.bf16.mxu0 %v2508
  %3867 = vmatpush2.bf16.msra.mxu0 %v2507
  %3868 = vmatprep.subr.bf16.mxu0 %v2504
  %3869 = vmatpush2.bf16.msra.mxu0 %v2503
  %3870 = vmatprep.subr.bf16.mxu0 %v2500
  %3871 = vmatpush2.bf16.msra.mxu0 %v2499
  %3872 = vmatprep.subr.bf16.mxu0 %v2496
  %3873 = vmatpush2.bf16.msra.mxu0 %v2495
  %3874 = vmatprep.subr.bf16.mxu0 %v2492
  %3875 = vmatpush2.bf16.msra.mxu0 %v2491
  %3876 = vmatprep.subr.bf16.mxu0 %v2488
  %3877 = vmatpush2.bf16.msra.mxu0 %v2487
  %3878 = vmatprep.subr.bf16.mxu0 %v2484
  %3879 = vmatpush2.bf16.msra.mxu0 %v2483
  %3880 = vmatprep.mubr.bf16.mxu0 %v629
  %3881 = vmatmul.mubr.bf16.gmra.mxu0 %v615
  %v3882 = vpop.f32.mrf.mxu0
  %v3883 = vadd.f32 %v3842, %v3882
  %v3884 = vpop.f32.mrf.mxu0
  %v3885 = vadd.f32 %v3844, %v3884
  %v3886 = vpop.f32.mrf.mxu0
  %v3887 = vpop.f32.mrf.mxu0
  %3888 = vdwg.mxu0
  %3889 = vmatprep.subr.bf16.mxu0 %v2544
  %3890 = vmatpush1.bf16.msra.mxu0 %v2543
  %3891 = vmatprep.subr.bf16.mxu0 %v2540
  %3892 = vmatpush1.bf16.msra.mxu0 %v2539
  %3893 = vmatprep.subr.bf16.mxu0 %v2536
  %3894 = vmatpush1.bf16.msra.mxu0 %v2535
  %3895 = vmatprep.subr.bf16.mxu0 %v2532
  %3896 = vmatpush1.bf16.msra.mxu0 %v2531
  %3897 = vmatprep.subr.bf16.mxu0 %v2528
  %3898 = vmatpush1.bf16.msra.mxu0 %v2527
  %3899 = vmatprep.subr.bf16.mxu0 %v2524
  %3900 = vmatpush1.bf16.msra.mxu0 %v2523
  %3901 = vmatprep.subr.bf16.mxu0 %v2520
  %3902 = vmatpush1.bf16.msra.mxu0 %v2519
  %3903 = vmatprep.subr.bf16.mxu0 %v2516
  %3904 = vmatpush1.bf16.msra.mxu0 %v2515
  %3905 = vmatprep.subr.bf16.mxu0 %v2576
  %3906 = vmatpush2.bf16.msra.mxu0 %v2575
  %3907 = vmatprep.subr.bf16.mxu0 %v2572
  %3908 = vmatpush2.bf16.msra.mxu0 %v2571
  %3909 = vmatprep.subr.bf16.mxu0 %v2568
  %3910 = vmatpush2.bf16.msra.mxu0 %v2567
  %3911 = vmatprep.subr.bf16.mxu0 %v2564
  %3912 = vmatpush2.bf16.msra.mxu0 %v2563
  %3913 = vmatprep.subr.bf16.mxu0 %v2560
  %3914 = vmatpush2.bf16.msra.mxu0 %v2559
  %3915 = vmatprep.subr.bf16.mxu0 %v2556
  %3916 = vmatpush2.bf16.msra.mxu0 %v2555
  %3917 = vmatprep.subr.bf16.mxu0 %v2552
  %3918 = vmatpush2.bf16.msra.mxu0 %v2551
  %3919 = vmatprep.subr.bf16.mxu0 %v2548
  %3920 = vmatpush2.bf16.msra.mxu0 %v2547
  %3921 = vmatprep.mubr.bf16.mxu0 %v633
  %3922 = vmatmul.mubr.bf16.gmra.mxu0 %v631
  %v3923 = vpop.f32.mrf.mxu0
  %v3924 = vadd.f32 %v3883, %v3923
  %v3925 = vpop.f32.mrf.mxu0
  %v3926 = vadd.f32 %v3885, %v3925
  %v3927 = vpop.f32.mrf.mxu0
  %v3928 = vpop.f32.mrf.mxu0
  %3929 = vdwg.mxu0
  %3930 = vmatprep.subr.bf16.mxu0 %v2608
  %3931 = vmatpush1.bf16.msra.mxu0 %v2607
  %3932 = vmatprep.subr.bf16.mxu0 %v2604
  %3933 = vmatpush1.bf16.msra.mxu0 %v2603
  %3934 = vmatprep.subr.bf16.mxu0 %v2600
  %3935 = vmatpush1.bf16.msra.mxu0 %v2599
  %3936 = vmatprep.subr.bf16.mxu0 %v2596
  %3937 = vmatpush1.bf16.msra.mxu0 %v2595
  %3938 = vmatprep.subr.bf16.mxu0 %v2592
  %3939 = vmatpush1.bf16.msra.mxu0 %v2591
  %3940 = vmatprep.subr.bf16.mxu0 %v2588
  %3941 = vmatpush1.bf16.msra.mxu0 %v2587
  %3942 = vmatprep.subr.bf16.mxu0 %v2584
  %3943 = vmatpush1.bf16.msra.mxu0 %v2583
  %3944 = vmatprep.subr.bf16.mxu0 %v2580
  %3945 = vmatpush1.bf16.msra.mxu0 %v2579
  %3946 = vmatprep.subr.bf16.mxu0 %v2640
  %3947 = vmatpush2.bf16.msra.mxu0 %v2639
  %3948 = vmatprep.subr.bf16.mxu0 %v2636
  %3949 = vmatpush2.bf16.msra.mxu0 %v2635
  %3950 = vmatprep.subr.bf16.mxu0 %v2632
  %3951 = vmatpush2.bf16.msra.mxu0 %v2631
  %3952 = vmatprep.subr.bf16.mxu0 %v2628
  %3953 = vmatpush2.bf16.msra.mxu0 %v2627
  %3954 = vmatprep.subr.bf16.mxu0 %v2624
  %3955 = vmatpush2.bf16.msra.mxu0 %v2623
  %3956 = vmatprep.subr.bf16.mxu0 %v2620
  %3957 = vmatpush2.bf16.msra.mxu0 %v2619
  %3958 = vmatprep.subr.bf16.mxu0 %v2616
  %3959 = vmatpush2.bf16.msra.mxu0 %v2615
  %3960 = vmatprep.subr.bf16.mxu0 %v2612
  %3961 = vmatpush2.bf16.msra.mxu0 %v2611
  %3962 = vmatprep.mubr.bf16.mxu0 %v671
  %3963 = vmatmul.mubr.bf16.gmra.mxu0 %v657
  %v3964 = vpop.f32.mrf.mxu0
  %v3965 = vadd.f32 %v3924, %v3964
  %v3966 = vpop.f32.mrf.mxu0
  %v3967 = vadd.f32 %v3926, %v3966
  %v3968 = vpop.f32.mrf.mxu0
  %v3969 = vpop.f32.mrf.mxu0
  %3970 = vdwg.mxu0
  %3971 = vmatprep.subr.bf16.mxu0 %v2672
  %3972 = vmatpush1.bf16.msra.mxu0 %v2671
  %3973 = vmatprep.subr.bf16.mxu0 %v2668
  %3974 = vmatpush1.bf16.msra.mxu0 %v2667
  %3975 = vmatprep.subr.bf16.mxu0 %v2664
  %3976 = vmatpush1.bf16.msra.mxu0 %v2663
  %3977 = vmatprep.subr.bf16.mxu0 %v2660
  %3978 = vmatpush1.bf16.msra.mxu0 %v2659
  %3979 = vmatprep.subr.bf16.mxu0 %v2656
  %3980 = vmatpush1.bf16.msra.mxu0 %v2655
  %3981 = vmatprep.subr.bf16.mxu0 %v2652
  %3982 = vmatpush1.bf16.msra.mxu0 %v2651
  %3983 = vmatprep.subr.bf16.mxu0 %v2648
  %3984 = vmatpush1.bf16.msra.mxu0 %v2647
  %3985 = vmatprep.subr.bf16.mxu0 %v2644
  %3986 = vmatpush1.bf16.msra.mxu0 %v2643
  %3987 = vmatprep.subr.bf16.mxu0 %v2704
  %3988 = vmatpush2.bf16.msra.mxu0 %v2703
  %3989 = vmatprep.subr.bf16.mxu0 %v2700
  %3990 = vmatpush2.bf16.msra.mxu0 %v2699
  %3991 = vmatprep.subr.bf16.mxu0 %v2696
  %3992 = vmatpush2.bf16.msra.mxu0 %v2695
  %3993 = vmatprep.subr.bf16.mxu0 %v2692
  %3994 = vmatpush2.bf16.msra.mxu0 %v2691
  %3995 = vmatprep.subr.bf16.mxu0 %v2688
  %3996 = vmatpush2.bf16.msra.mxu0 %v2687
  %3997 = vmatprep.subr.bf16.mxu0 %v2684
  %3998 = vmatpush2.bf16.msra.mxu0 %v2683
  %3999 = vmatprep.subr.bf16.mxu0 %v2680
  %4000 = vmatpush2.bf16.msra.mxu0 %v2679
  %4001 = vmatprep.subr.bf16.mxu0 %v2676
  %4002 = vmatpush2.bf16.msra.mxu0 %v2675
  %4003 = vmatprep.mubr.bf16.mxu0 %v681
  %4004 = vmatmul.mubr.bf16.gmra.mxu0 %v679
  %v4005 = vpop.f32.mrf.mxu0
  %v4006 = vadd.f32 %v3965, %v4005
  %v4007 = vpop.f32.mrf.mxu0
  %v4008 = vadd.f32 %v3967, %v4007
  %v4009 = vpop.f32.mrf.mxu0
  %v4010 = vpop.f32.mrf.mxu0
  %4011 = vdwg.mxu0
  %4012 = vmatprep.subr.bf16.mxu0 %v2736
  %4013 = vmatpush1.bf16.msra.mxu0 %v2735
  %4014 = vmatprep.subr.bf16.mxu0 %v2732
  %4015 = vmatpush1.bf16.msra.mxu0 %v2731
  %4016 = vmatprep.subr.bf16.mxu0 %v2728
  %4017 = vmatpush1.bf16.msra.mxu0 %v2727
  %4018 = vmatprep.subr.bf16.mxu0 %v2724
  %4019 = vmatpush1.bf16.msra.mxu0 %v2723
  %4020 = vmatprep.subr.bf16.mxu0 %v2720
  %4021 = vmatpush1.bf16.msra.mxu0 %v2719
  %4022 = vmatprep.subr.bf16.mxu0 %v2716
  %4023 = vmatpush1.bf16.msra.mxu0 %v2715
  %4024 = vmatprep.subr.bf16.mxu0 %v2712
  %4025 = vmatpush1.bf16.msra.mxu0 %v2711
  %4026 = vmatprep.subr.bf16.mxu0 %v2708
  %4027 = vmatpush1.bf16.msra.mxu0 %v2707
  %4028 = vmatprep.subr.bf16.mxu0 %v2768
  %4029 = vmatpush2.bf16.msra.mxu0 %v2767
  %4030 = vmatprep.subr.bf16.mxu0 %v2764
  %4031 = vmatpush2.bf16.msra.mxu0 %v2763
  %4032 = vmatprep.subr.bf16.mxu0 %v2760
  %4033 = vmatpush2.bf16.msra.mxu0 %v2759
  %4034 = vmatprep.subr.bf16.mxu0 %v2756
  %4035 = vmatpush2.bf16.msra.mxu0 %v2755
  %4036 = vmatprep.subr.bf16.mxu0 %v2752
  %4037 = vmatpush2.bf16.msra.mxu0 %v2751
  %4038 = vmatprep.subr.bf16.mxu0 %v2748
  %4039 = vmatpush2.bf16.msra.mxu0 %v2747
  %4040 = vmatprep.subr.bf16.mxu0 %v2744
  %4041 = vmatpush2.bf16.msra.mxu0 %v2743
  %4042 = vmatprep.subr.bf16.mxu0 %v2740
  %4043 = vmatpush2.bf16.msra.mxu0 %v2739
  %4044 = vmatprep.mubr.bf16.mxu0 %v678
  %4045 = vmatmul.mubr.bf16.gmra.mxu0 %v664
  %v4046 = vpop.f32.mrf.mxu0
  %v4047 = vadd.f32 %v4006, %v4046
  %v4048 = vpop.f32.mrf.mxu0
  %v4049 = vadd.f32 %v4008, %v4048
  %v4050 = vpop.f32.mrf.mxu0
  %v4051 = vpop.f32.mrf.mxu0
  %4052 = vdwg.mxu0
  %4053 = vmatprep.subr.bf16.mxu0 %v2800
  %4054 = vmatpush1.bf16.msra.mxu0 %v2799
  %4055 = vmatprep.subr.bf16.mxu0 %v2796
  %4056 = vmatpush1.bf16.msra.mxu0 %v2795
  %4057 = vmatprep.subr.bf16.mxu0 %v2792
  %4058 = vmatpush1.bf16.msra.mxu0 %v2791
  %4059 = vmatprep.subr.bf16.mxu0 %v2788
  %4060 = vmatpush1.bf16.msra.mxu0 %v2787
  %4061 = vmatprep.subr.bf16.mxu0 %v2784
  %4062 = vmatpush1.bf16.msra.mxu0 %v2783
  %4063 = vmatprep.subr.bf16.mxu0 %v2780
  %4064 = vmatpush1.bf16.msra.mxu0 %v2779
  %4065 = vmatprep.subr.bf16.mxu0 %v2776
  %4066 = vmatpush1.bf16.msra.mxu0 %v2775
  %4067 = vmatprep.subr.bf16.mxu0 %v2772
  %4068 = vmatpush1.bf16.msra.mxu0 %v2771
  %4069 = vmatprep.subr.bf16.mxu0 %v2832
  %4070 = vmatpush2.bf16.msra.mxu0 %v2831
  %4071 = vmatprep.subr.bf16.mxu0 %v2828
  %4072 = vmatpush2.bf16.msra.mxu0 %v2827
  %4073 = vmatprep.subr.bf16.mxu0 %v2824
  %4074 = vmatpush2.bf16.msra.mxu0 %v2823
  %4075 = vmatprep.subr.bf16.mxu0 %v2820
  %4076 = vmatpush2.bf16.msra.mxu0 %v2819
  %4077 = vmatprep.subr.bf16.mxu0 %v2816
  %4078 = vmatpush2.bf16.msra.mxu0 %v2815
  %4079 = vmatprep.subr.bf16.mxu0 %v2812
  %4080 = vmatpush2.bf16.msra.mxu0 %v2811
  %4081 = vmatprep.subr.bf16.mxu0 %v2808
  %4082 = vmatpush2.bf16.msra.mxu0 %v2807
  %4083 = vmatprep.subr.bf16.mxu0 %v2804
  %4084 = vmatpush2.bf16.msra.mxu0 %v2803
  %4085 = vmatprep.mubr.bf16.mxu0 %v682
  %4086 = vmatmul.mubr.bf16.gmra.mxu0 %v680
  %v4087 = vpop.f32.mrf.mxu0
  %v4088 = vadd.f32 %v4047, %v4087
  %v4089 = vpop.f32.mrf.mxu0
  %v4090 = vadd.f32 %v4049, %v4089
  %v4091 = vpop.f32.mrf.mxu0
  %v4092 = vpop.f32.mrf.mxu0
  %4093 = vdwg.mxu0
  %4094 = vmatprep.subr.bf16.mxu0 0
  %4095 = vmatpush1.bf16.msra.mxu0 0
  %4096 = vmatprep.subr.bf16.mxu0 0
  %4097 = vmatpush1.bf16.msra.mxu0 0
  %4098 = vmatprep.subr.bf16.mxu0 %v2856
  %4099 = vmatpush1.bf16.msra.mxu0 %v2855
  %4100 = vmatprep.subr.bf16.mxu0 %v2852
  %4101 = vmatpush1.bf16.msra.mxu0 %v2851
  %4102 = vmatprep.subr.bf16.mxu0 %v2848
  %4103 = vmatpush1.bf16.msra.mxu0 %v2847
  %4104 = vmatprep.subr.bf16.mxu0 %v2844
  %4105 = vmatpush1.bf16.msra.mxu0 %v2843
  %4106 = vmatprep.subr.bf16.mxu0 %v2840
  %4107 = vmatpush1.bf16.msra.mxu0 %v2839
  %4108 = vmatprep.subr.bf16.mxu0 %v2836
  %4109 = vmatpush1.bf16.msra.mxu0 %v2835
  %4110 = vmatprep.subr.bf16.mxu0 0
  %4111 = vmatpush2.bf16.msra.mxu0 0
  %4112 = vmatprep.subr.bf16.mxu0 0
  %4113 = vmatpush2.bf16.msra.mxu0 0
  %4114 = vmatprep.subr.bf16.mxu0 0
  %4115 = vmatpush2.bf16.msra.mxu0 0
  %4116 = vmatprep.subr.bf16.mxu0 0
  %4117 = vmatpush2.bf16.msra.mxu0 0
  %4118 = vmatprep.subr.bf16.mxu0 0
  %4119 = vmatpush2.bf16.msra.mxu0 0
  %4120 = vmatprep.subr.bf16.mxu0 0
  %4121 = vmatpush2.bf16.msra.mxu0 0
  %4122 = vmatprep.subr.bf16.mxu0 0
  %4123 = vmatpush2.bf16.msra.mxu0 0
  %4124 = vmatprep.subr.bf16.mxu0 0
  %4125 = vmatpush2.bf16.msra.mxu0 0
  %4126 = vmatprep.mubr.bf16.mxu0 0
  %4127 = vmatmul.mubr.bf16.gmra.mxu0 %v3395
  %v4128 = vpop.f32.mrf.mxu0
  %v4129 = vadd.f32 %v4088, %v4128
  %v4130 = vpop.f32.mrf.mxu0
  %v4131 = vadd.f32 %v4090, %v4130
  %v4132 = vpop.f32.mrf.mxu0
  %v4133 = vpop.f32.mrf.mxu0
  %4134 = vdwg.mxu0
  %v4135 = vmax.f32 %v3760, 0.0
  %v4136 = vmax.f32 %v3762, 0.0
  %v4137 = vmax.f32 %v4129, 0.0
  %v4138 = vmax.f32 %v4131, 0.0
  %v4139 = vpack.c.bf16 %v4135, %v4135
  %v4140 = vpack.c.bf16 %v4136, %v4136
  %v4141 = vpack.c.bf16 %v4137, %v4137
  %v4142 = vpack.c.bf16 %v4138, %v4138
  %v4143 = vld [vmem:[%s3] sm:$0xf]
  %v4144 = vld [vmem:[%s3 + $0x4] sm:$0xf]
  %v4145 = vld [vmem:[%s3 + $0x8] sm:$0xf]
  %v4146 = vld [vmem:[%s3 + $0xc] sm:$0xf]
  %v4147 = vld [vmem:[%s3 + $0x10] sm:$0xf]
  %v4148 = vld [vmem:[%s3 + $0x14] sm:$0xf]
  %v4149 = vld [vmem:[%s3 + $0x18] sm:$0xf]
  %v4150 = vld [vmem:[%s3 + $0x1c] sm:$0xf]
  %v4151 = vld [vmem:[%s3 + $0x20] sm:$0xf]
  %v4152 = vld [vmem:[%s3 + $0x24] sm:$0xf]
  %v4153 = vld [vmem:[%s3 + $0x28] sm:$0xf]
  %v4154 = vld [vmem:[%s3 + $0x2c] sm:$0xf]
  %v4155 = vld [vmem:[%s3 + $0x30] sm:$0xf]
  %v4156 = vld [vmem:[%s3 + $0x34] sm:$0xf]
  %v4157 = vld [vmem:[%s3 + $0x38] sm:$0xf]
  %v4158 = vld [vmem:[%s3 + $0x3c] sm:$0xf]
  %v4159 = vld [vmem:[%s3 + $0x40] sm:$0xf]
  %v4160 = vld [vmem:[%s3 + $0x44] sm:$0xf]
  %v4161 = vld [vmem:[%s3 + $0x48] sm:$0xf]
  %v4162 = vld [vmem:[%s3 + $0x4c] sm:$0xf]
  %v4163 = vld [vmem:[%s3 + $0x50] sm:$0xf]
  %v4164 = vld [vmem:[%s3 + $0x54] sm:$0xf]
  %v4165 = vld [vmem:[%s3 + $0x58] sm:$0xf]
  %v4166 = vld [vmem:[%s3 + $0x5c] sm:$0xf]
  %v4167 = vld [vmem:[%s3 + $0x60] sm:$0xf]
  %v4168 = vld [vmem:[%s3 + $0x64] sm:$0xf]
  %v4169 = vld [vmem:[%s3 + $0x68] sm:$0xf]
  %v4170 = vld [vmem:[%s3 + $0x6c] sm:$0xf]
  %v4171 = vld [vmem:[%s3 + $0x70] sm:$0xf]
  %v4172 = vld [vmem:[%s3 + $0x74] sm:$0xf]
  %v4173 = vld [vmem:[%s3 + $0x78] sm:$0xf]
  %v4174 = vld [vmem:[%s3 + $0x7c] sm:$0xf]
  %v4175 = vld [vmem:[%s3 + $0x80] sm:$0xf]
  %v4176 = vld [vmem:[%s3 + $0x84] sm:$0xf]
  %v4177 = vld [vmem:[%s3 + $0x88] sm:$0xf]
  %v4178 = vld [vmem:[%s3 + $0x8c] sm:$0xf]
  %v4179 = vld [vmem:[%s3 + $0x90] sm:$0xf]
  %v4180 = vld [vmem:[%s3 + $0x94] sm:$0xf]
  %v4181 = vld [vmem:[%s3 + $0x98] sm:$0xf]
  %v4182 = vld [vmem:[%s3 + $0x9c] sm:$0xf]
  %v4183 = vld [vmem:[%s3 + $0xa0] sm:$0xf]
  %v4184 = vld [vmem:[%s3 + $0xa4] sm:$0xf]
  %v4185 = vld [vmem:[%s3 + $0xa8] sm:$0xf]
  %v4186 = vld [vmem:[%s3 + $0xac] sm:$0xf]
  %v4187 = vld [vmem:[%s3 + $0xb0] sm:$0xf]
  %v4188 = vld [vmem:[%s3 + $0xb4] sm:$0xf]
  %v4189 = vld [vmem:[%s3 + $0xb8] sm:$0xf]
  %v4190 = vld [vmem:[%s3 + $0xbc] sm:$0xf]
  %v4191 = vld [vmem:[%s3 + $0xc0] sm:$0xf]
  %v4192 = vld [vmem:[%s3 + $0xc4] sm:$0xf]
  %v4193 = vld [vmem:[%s3 + $0xc8] sm:$0xf]
  %v4194 = vld [vmem:[%s3 + $0xcc] sm:$0xf]
  %v4195 = vld [vmem:[%s3 + $0xd0] sm:$0xf]
  %v4196 = vld [vmem:[%s3 + $0xd4] sm:$0xf]
  %v4197 = vld [vmem:[%s3 + $0xd8] sm:$0xf]
  %v4198 = vld [vmem:[%s3 + $0xdc] sm:$0xf]
  %v4199 = vld [vmem:[%s3 + $0xe0] sm:$0xf]
  %v4200 = vld [vmem:[%s3 + $0xe4] sm:$0xf]
  %v4201 = vld [vmem:[%s3 + $0xe8] sm:$0xf]
  %v4202 = vld [vmem:[%s3 + $0xec] sm:$0xf]
  %v4203 = vld [vmem:[%s3 + $0xf0] sm:$0xf]
  %v4204 = vld [vmem:[%s3 + $0xf4] sm:$0xf]
  %v4205 = vld [vmem:[%s3 + $0xf8] sm:$0xf]
  %v4206 = vld [vmem:[%s3 + $0xfc] sm:$0xf]
  %v4207 = vld [vmem:[%s4] sm:$0x1]
  %v4209 = vlaneseq
  %v4210 = vshrl.u32 %v4209, 7
  %v4211 = vsub.s32 0, %v4210
  %v4212 = vrot.slane %v4207, %v4211
  %v4278 = vunpack.c.l.b16 %v4143
  %v4279 = vunpack.c.l.b16 %v4144
  %v4280 = vunpack.c.l.b16 %v4145
  %v4281 = vunpack.c.l.b16 %v4146
  %v4282 = vunpack.c.l.b16 %v4147
  %v4283 = vunpack.c.l.b16 %v4148
  %v4284 = vunpack.c.l.b16 %v4149
  %v4285 = vunpack.c.l.b16 %v4150
  %v4286 = vunpack.c.l.b16 %v4151
  %v4287 = vunpack.c.l.b16 %v4152
  %v4288 = vunpack.c.l.b16 %v4153
  %v4289 = vunpack.c.l.b16 %v4154
  %v4290 = vunpack.c.l.b16 %v4155
  %v4291 = vunpack.c.l.b16 %v4156
  %v4292 = vunpack.c.l.b16 %v4157
  %v4293 = vunpack.c.l.b16 %v4158
  %v4294 = vunpack.c.l.b16 %v4159
  %v4295 = vunpack.c.l.b16 %v4160
  %v4296 = vunpack.c.l.b16 %v4161
  %v4297 = vunpack.c.l.b16 %v4162
  %v4298 = vunpack.c.l.b16 %v4163
  %v4299 = vunpack.c.l.b16 %v4164
  %v4300 = vunpack.c.l.b16 %v4165
  %v4301 = vunpack.c.l.b16 %v4166
  %v4302 = vunpack.c.l.b16 %v4167
  %v4303 = vunpack.c.l.b16 %v4168
  %v4304 = vunpack.c.l.b16 %v4169
  %v4305 = vunpack.c.l.b16 %v4170
  %v4306 = vunpack.c.l.b16 %v4171
  %v4307 = vunpack.c.l.b16 %v4172
  %v4308 = vunpack.c.l.b16 %v4173
  %v4309 = vunpack.c.l.b16 %v4174
  %v4310 = vunpack.c.l.b16 %v4175
  %v4311 = vunpack.c.l.b16 %v4176
  %v4312 = vunpack.c.l.b16 %v4177
  %v4313 = vunpack.c.l.b16 %v4178
  %v4314 = vunpack.c.l.b16 %v4179
  %v4315 = vunpack.c.l.b16 %v4180
  %v4316 = vunpack.c.l.b16 %v4181
  %v4317 = vunpack.c.l.b16 %v4182
  %v4318 = vunpack.c.l.b16 %v4183
  %v4319 = vunpack.c.l.b16 %v4184
  %v4320 = vunpack.c.l.b16 %v4185
  %v4321 = vunpack.c.l.b16 %v4186
  %v4322 = vunpack.c.l.b16 %v4187
  %v4323 = vunpack.c.l.b16 %v4188
  %v4324 = vunpack.c.l.b16 %v4189
  %v4325 = vunpack.c.l.b16 %v4190
  %v4326 = vunpack.c.l.b16 %v4191
  %v4327 = vunpack.c.l.b16 %v4192
  %v4328 = vunpack.c.l.b16 %v4193
  %v4329 = vunpack.c.l.b16 %v4194
  %v4330 = vunpack.c.l.b16 %v4195
  %v4331 = vunpack.c.l.b16 %v4196
  %v4332 = vunpack.c.l.b16 %v4197
  %v4333 = vunpack.c.l.b16 %v4198
  %v4334 = vunpack.c.l.b16 %v4199
  %v4335 = vunpack.c.l.b16 %v4200
  %v4336 = vunpack.c.l.b16 %v4201
  %v4337 = vunpack.c.l.b16 %v4202
  %v4338 = vunpack.c.l.b16 %v4203
  %v4339 = vunpack.c.l.b16 %v4204
  %v4340 = vunpack.c.l.b16 %v4205
  %v4341 = vunpack.c.l.b16 %v4206
  %v4342 = vpack.c.b16 %v4279, %v4278
  %v4343 = vpack.c.b16 %v4281, %v4280
  %v4344 = vpack.c.b16 %v4283, %v4282
  %v4345 = vpack.c.b16 %v4285, %v4284
  %v4346 = vpack.c.b16 %v4287, %v4286
  %v4347 = vpack.c.b16 %v4289, %v4288
  %v4348 = vpack.c.b16 %v4291, %v4290
  %v4349 = vpack.c.b16 %v4293, %v4292
  %v4350 = vpack.c.b16 %v4295, %v4294
  %v4351 = vpack.c.b16 %v4297, %v4296
  %v4352 = vpack.c.b16 %v4299, %v4298
  %v4353 = vpack.c.b16 %v4301, %v4300
  %v4354 = vpack.c.b16 %v4303, %v4302
  %v4355 = vpack.c.b16 %v4305, %v4304
  %v4356 = vpack.c.b16 %v4307, %v4306
  %v4357 = vpack.c.b16 %v4309, %v4308
  %v4358 = vpack.c.b16 %v4311, %v4310
  %v4359 = vpack.c.b16 %v4313, %v4312
  %v4360 = vpack.c.b16 %v4315, %v4314
  %v4361 = vpack.c.b16 %v4317, %v4316
  %v4362 = vpack.c.b16 %v4319, %v4318
  %v4363 = vpack.c.b16 %v4321, %v4320
  %v4364 = vpack.c.b16 %v4323, %v4322
  %v4365 = vpack.c.b16 %v4325, %v4324
  %v4366 = vpack.c.b16 %v4327, %v4326
  %v4367 = vpack.c.b16 %v4329, %v4328
  %v4368 = vpack.c.b16 %v4331, %v4330
  %v4369 = vpack.c.b16 %v4333, %v4332
  %v4370 = vpack.c.b16 %v4335, %v4334
  %v4371 = vpack.c.b16 %v4337, %v4336
  %v4372 = vpack.c.b16 %v4339, %v4338
  %v4373 = vpack.c.b16 %v4341, %v4340
  %4406 = vmatprep.subr.bf16.mxu0 0
  %4407 = vmatpush1.bf16.msra.mxu0 %v4349
  %4408 = vmatprep.subr.bf16.mxu0 0
  %4409 = vmatpush1.bf16.msra.mxu0 %v4348
  %4410 = vmatprep.subr.bf16.mxu0 0
  %4411 = vmatpush1.bf16.msra.mxu0 %v4347
  %4412 = vmatprep.subr.bf16.mxu0 0
  %4413 = vmatpush1.bf16.msra.mxu0 %v4346
  %4414 = vmatprep.subr.bf16.mxu0 0
  %4415 = vmatpush1.bf16.msra.mxu0 %v4345
  %4416 = vmatprep.subr.bf16.mxu0 0
  %4417 = vmatpush1.bf16.msra.mxu0 %v4344
  %4418 = vmatprep.subr.bf16.mxu0 0
  %4419 = vmatpush1.bf16.msra.mxu0 %v4343
  %4420 = vmatprep.subr.bf16.mxu0 0
  %4421 = vmatpush1.bf16.msra.mxu0 %v4342
  %4422 = vmatprep.subr.bf16.mxu0 0
  %4423 = vmatpush2.bf16.msra.mxu0 %v4357
  %4424 = vmatprep.subr.bf16.mxu0 0
  %4425 = vmatpush2.bf16.msra.mxu0 %v4356
  %4426 = vmatprep.subr.bf16.mxu0 0
  %4427 = vmatpush2.bf16.msra.mxu0 %v4355
  %4428 = vmatprep.subr.bf16.mxu0 0
  %4429 = vmatpush2.bf16.msra.mxu0 %v4354
  %4430 = vmatprep.subr.bf16.mxu0 0
  %4431 = vmatpush2.bf16.msra.mxu0 %v4353
  %4432 = vmatprep.subr.bf16.mxu0 0
  %4433 = vmatpush2.bf16.msra.mxu0 %v4352
  %4434 = vmatprep.subr.bf16.mxu0 0
  %4435 = vmatpush2.bf16.msra.mxu0 %v4351
  %4436 = vmatprep.subr.bf16.mxu0 0
  %4437 = vmatpush2.bf16.msra.mxu0 %v4350
  %4438 = vmatprep.mubr.bf16.mxu0 %v4140
  %4439 = vmatmul.mubr.bf16.gmra.mxu0 %v4139
  %v4440 = vpop.f32.mrf.mxu0
  %v4441 = vadd.f32 %v4212, %v4440
  %v4442 = vpop.f32.mrf.mxu0
  %v4443 = vpop.f32.mrf.mxu0
  %v4444 = vpop.f32.mrf.mxu0
  %4445 = vdwg.mxu0
  %4446 = vmatprep.subr.bf16.mxu0 0
  %4447 = vmatpush1.bf16.msra.mxu0 %v4365
  %4448 = vmatprep.subr.bf16.mxu0 0
  %4449 = vmatpush1.bf16.msra.mxu0 %v4364
  %4450 = vmatprep.subr.bf16.mxu0 0
  %4451 = vmatpush1.bf16.msra.mxu0 %v4363
  %4452 = vmatprep.subr.bf16.mxu0 0
  %4453 = vmatpush1.bf16.msra.mxu0 %v4362
  %4454 = vmatprep.subr.bf16.mxu0 0
  %4455 = vmatpush1.bf16.msra.mxu0 %v4361
  %4456 = vmatprep.subr.bf16.mxu0 0
  %4457 = vmatpush1.bf16.msra.mxu0 %v4360
  %4458 = vmatprep.subr.bf16.mxu0 0
  %4459 = vmatpush1.bf16.msra.mxu0 %v4359
  %4460 = vmatprep.subr.bf16.mxu0 0
  %4461 = vmatpush1.bf16.msra.mxu0 %v4358
  %4462 = vmatprep.subr.bf16.mxu0 0
  %4463 = vmatpush2.bf16.msra.mxu0 %v4373
  %4464 = vmatprep.subr.bf16.mxu0 0
  %4465 = vmatpush2.bf16.msra.mxu0 %v4372
  %4466 = vmatprep.subr.bf16.mxu0 0
  %4467 = vmatpush2.bf16.msra.mxu0 %v4371
  %4468 = vmatprep.subr.bf16.mxu0 0
  %4469 = vmatpush2.bf16.msra.mxu0 %v4370
  %4470 = vmatprep.subr.bf16.mxu0 0
  %4471 = vmatpush2.bf16.msra.mxu0 %v4369
  %4472 = vmatprep.subr.bf16.mxu0 0
  %4473 = vmatpush2.bf16.msra.mxu0 %v4368
  %4474 = vmatprep.subr.bf16.mxu0 0
  %4475 = vmatpush2.bf16.msra.mxu0 %v4367
  %4476 = vmatprep.subr.bf16.mxu0 0
  %4477 = vmatpush2.bf16.msra.mxu0 %v4366
  %4478 = vmatprep.mubr.bf16.mxu0 %v4142
  %4479 = vmatmul.mubr.bf16.gmra.mxu0 %v4141
  %v4480 = vpop.f32.mrf.mxu0
  %v4481 = vadd.f32 %v4441, %v4480
  %v4482 = vpop.f32.mrf.mxu0
  %v4483 = vpop.f32.mrf.mxu0
  %v4484 = vpop.f32.mrf.mxu0
  %4485 = vdwg.mxu0
  %vm4486 = vcmask 50176
  %4487 = vst.msk [vmem:[%s5] sm:$0x3] %vm4486, %v4481
  // Predicated region
  $region22: #{cnn_base_shared_forward.3} parent=0 // pred_check
    _
  $region23: #{cnn_base_shared_forward.3} parent=0 // pred_check_branch
    %4489 = sbr.rel (0) target = $region25
  $region24: #{cnn_base_shared_forward.3} parent=0 // pred_region
    _
  $region25: #{cnn_base_shared_forward.3} parent=0 // pred_fallthru
    _
  // Predicated region
  $region26: #{cnn_base_shared_forward.3} parent=0 // pred_check
    _
  $region27: #{cnn_base_shared_forward.3} parent=0 // pred_check_branch
    %4491 = sbr.rel (0) target = $region29
  $region28: #{cnn_base_shared_forward.3} parent=0 // pred_region
    _
  $region29: #{cnn_base_shared_forward.3} parent=0 // pred_fallthru
    _

</llo_original>
